<compile_context>
chip_gen: v6e
topology: v6e:2x2x1
jax: 0.10.0
libtpu: 0.0.40
codegen_flags: <defaults>
</compile_context>

<pallas_src>
import numpy as np
import jax
import jax.numpy as jnp
from jax import lax
from jax.experimental import pallas as pl
from jax.experimental.pallas import tpu as pltpu

NUM_BRANCH = 3        # forward concatenates 3 branches -> 900 = 3*300 fc_out input
KS = (3, 4, 5)        # conv13 / conv14 / conv15 kernel heights
NC = len(KS)
CO = 100              # conv out channels
CO_PAD = 128          # lane-padded channel block
N_CLS = 4
OUT_PAD = 128         # lane-dense output store, sliced to 4 in the wrapper


# ----------------------------------- kernel -----------------------------------
def turnip_kernel(x_ref, w0_ref, b0_ref, wihr_ref, blr_ref, whh_ref,
                  wconv_ref, bconv_ref, whead_ref, bhead_ref, out_ref, hseq_ref):
    # x_ref    : (S, 3, TB, nIn)  seq-major input; rows within a position are
    #                             (branch, t) branch-major
    # w0_ref   : (nIn, 8H)  fc_in folded into layer-0 proj (i/f/o cols pre-scaled 0.5)
    # b0_ref   : (1, 8H)
    # wihr_ref : (max(depth-1,1), 2H, 8H)  layers >= 1 input projections
    # blr_ref  : (max(depth-1,1), 1, 8H)
    # whh_ref  : (depth, 2, H, 4H)  recurrent weights (0=fwd, 1=bwd), scaled cols
    # wconv_ref: (2H, 12*128)  all conv taps, 128-lane padded
    # bconv_ref: (3, 1, 128)
    # whead_ref: (9*128, 128)  fc1@fc2@fc3 pre-composed, per-(branch,conv) row blocks
    # bhead_ref: (1, 128)
    # out_ref  : (TB, 128)  first N_CLS lanes are the real logits
    # hseq_ref : (S, 3*TB, 2H)  VMEM scratch holding the current layer's output
    f32 = jnp.float32
    S, nbr, TB, n_in = x_ref.shape
    B = nbr * TB
    depth = whh_ref.shape[0]
    H = whh_ref.shape[2]
    H2, H4, H8 = 2 * H, 4 * H, 8 * H

    x2d = x_ref[...].reshape(S * B, n_in)

    # ---- depth x bidirectional LSTM layers (seq axis = S, batch = 3*TB) ----
    for l in range(depth):
        if l == 0:
            # fc_in folded into this projection (wrapper-side, float64)
            xproj = jnp.dot(x2d, w0_ref[...], preferred_element_type=f32) + b0_ref[...]
        else:
            cur2d = hseq_ref[...].reshape(S * B, H2)      # previous layer's output
            xproj = (jnp.dot(cur2d, wihr_ref[l - 1], preferred_element_type=f32)
                     + blr_ref[l - 1])
        xproj = xproj.reshape(S, B, H8)

        whh_pair = whh_ref[l]                 # read per layer: bounded live range
        whh_f = whh_pair[0]
        whh_b = whh_pair[1]

        h_f = jnp.zeros((B, H), f32); c_f = jnp.zeros((B, H), f32)
        h_b = jnp.zeros((B, H), f32); c_b = jnp.zeros((B, H), f32)

        for s in range(S):
            # two independent recurrence matmuls (fwd / bwd chains)
            pre_f = xproj[s, :, 0:H4] + jnp.dot(h_f, whh_f,
                                                preferred_element_type=f32)
            pre_b = xproj[S - 1 - s, :, H4:H8] + jnp.dot(h_b, whh_b,
                                                         preferred_element_type=f32)
            # ONE full-width tanh over the joined fwd|bwd gate slab (4H-aligned
            # lane concat).  i/f/o columns were pre-scaled by 0.5 in the wrapper,
            # so sigmoid(z) = 0.5*tanh(z/2)+0.5; the g gate stays tanh.
            th = jnp.tanh(jnp.concatenate([pre_f, pre_b], axis=-1))   # (B, 8H)

            # forward direction (PyTorch gate order i, f, g, o)
            i_g = 0.5 * th[:, 0:H] + 0.5
            f_g = 0.5 * th[:, H:2 * H] + 0.5
            g_g = th[:, 2 * H:3 * H]
            o_g = 0.5 * th[:, 3 * H:4 * H] + 0.5
            c_f = f_g * c_f + i_g * g_g
            h_f = o_g * jnp.tanh(c_f)
            # backward direction
            i_g = 0.5 * th[:, H4:H4 + H] + 0.5
            f_g = 0.5 * th[:, H4 + H:H4 + 2 * H] + 0.5
            g_g = th[:, H4 + 2 * H:H4 + 3 * H]
            o_g = 0.5 * th[:, H4 + 3 * H:H4 + 4 * H] + 0.5
            c_b = f_g * c_b + i_g * g_g
            h_b = o_g * jnp.tanh(c_b)

            # stream straight into VMEM scratch (no Python-list stacking)
            hseq_ref[s, :, 0:H] = h_f
            hseq_ref[S - 1 - s, :, H:H2] = h_b

    # ---- conv13/14/15 + ReLU + global max-pool (conv_and_pool) ----
    # All 12 taps fused into ONE matmul; tap structure applied as seq-axis shifts.
    cur2d = hseq_ref[...].reshape(S * B, H2)
    n_slots = sum(KS)
    z = jnp.dot(cur2d, wconv_ref[...], preferred_element_type=f32)
    z = z.reshape(S, B, n_slots * CO_PAD)
    pooled = []
    slot = 0
    for kidx, k in enumerate(KS):
        m = None
        for j in range(S - k + 1):                         # valid windows over S
            o = z[j, :, slot * CO_PAD:(slot + 1) * CO_PAD]
            for dk in range(1, k):
                o = o + z[j + dk, :, (slot + dk) * CO_PAD:(slot + dk + 1) * CO_PAD]
            m = o if m is None else jnp.maximum(m, o)
        # bias + ReLU once, after the max (both commute with max)
        pooled.append(jnp.maximum(m + bconv_ref[kidx], 0.0))          # (3*TB, 128)
        slot += k

    # TODO(synk): nn.Dropout(0.5) training-mode stochastic masking not implemented
    # (eval-mode identity).

    # ---- collapsed affine head: fc1 @ fc2 @ fc3 pre-composed -> one K=1152 matmul
    head_in = jnp.concatenate(
        [pooled[kidx][b * TB:(b + 1) * TB, :]
         for b in range(NUM_BRANCH) for kidx in range(NC)], axis=-1)  # (TB, 9*128)
    out_ref[...] = (jnp.dot(head_in, whead_ref[...], preferred_element_type=f32)
                    + bhead_ref[...])


# ----------------------------------- wrapper ----------------------------------
def _gate_scale_1dir(H):
    # i/f/o columns * 0.5 so the kernel can use a single tanh; g column unscaled.
    s = np.full((4 * H,), 0.5, dtype=np.float64)
    s[2 * H:3 * H] = 1.0
    return s


def _pick_t_block(T):
    best = None
    for tb in range(8, min(T, 64) + 1, 8):
        if T % tb == 0:
            best = tb
    return best if best is not None else T


def turnip_forward(x_list, params):
    """x_list: list of NUM_BRANCH arrays, each (T, b, nIn) -- what Turnip.forward gets."""
    assert len(x_list) == NUM_BRANCH, "fc_out(900) requires exactly 3 branches"
    T, S, n_in = x_list[0].shape
    assert S >= max(KS), "conv height (original batch dim) must be >= 5"
    f32 = jnp.float32
    f64 = np.float64

    H2 = params["fc_in_w"].shape[0]
    H = H2 // 2
    depth = len(params["lstm"])

    def n64(a):
        return np.asarray(a, dtype=f64)

    # ---- input packing: (3, T, S, nIn) -> (S, branch, T, nIn) ----
    xs = jnp.stack([x.astype(f32) for x in x_list], axis=0)
    x_arr = jnp.transpose(xs, (2, 0, 1, 3))

    gs4 = _gate_scale_1dir(H)
    gs8 = np.concatenate([gs4, gs4])

    # ---- fc_in folded into layer-0 input projection (float64 on host) ----
    win_t = n64(params["fc_in_w"]).T                                   # (nIn, 2H)
    bin_ = n64(params["fc_in_b"])
    lp0 = params["lstm"][0]
    wih0 = np.concatenate([n64(lp0["wih_f"]).T, n64(lp0["wih_b"]).T], axis=1)
    bl0 = np.concatenate([n64(lp0["bih_f"]) + n64(lp0["bhh_f"]),
                          n64(lp0["bih_b"]) + n64(lp0["bhh_b"])])
    w0 = ((win_t @ wih0) * gs8).astype(np.float32)                     # (nIn, 8H)
    b0 = ((bin_ @ wih0 + bl0) * gs8).reshape(1, 8 * H).astype(np.float32)

    # ---- layers >= 1 input projections (gate-scaled) ----
    wihr_l, blr_l = [], []
    for lp in params["lstm"][1:]:
        w = np.concatenate([n64(lp["wih_f"]).T, n64(lp["wih_b"]).T], axis=1) * gs8
        b = np.concatenate([n64(lp["bih_f"]) + n64(lp["bhh_f"]),
                            n64(lp["bih_b"]) + n64(lp["bhh_b"])]) * gs8
        wihr_l.append(w)
        blr_l.append(b.reshape(1, 8 * H))
    if not wihr_l:                                # depth == 1: dummy, never read
        wihr_l.append(np.zeros((H2, 8 * H), f64))
        blr_l.append(np.zeros((1, 8 * H), f64))
    wihr = np.stack(wihr_l).astype(np.float32)
    blr = np.stack(blr_l).astype(np.float32)

    # ---- recurrent weights (gate-scaled) ----
    whh = np.stack([np.stack([n64(lp["whh_f"]).T * gs4,
                              n64(lp["whh_b"]).T * gs4], axis=0)
                    for lp in params["lstm"]], axis=0).astype(np.float32)

    # ---- conv taps packed as one (2H, 12*128) matrix ----
    blocks = []
    for w in params["conv_w"]:                                         # (100,1,k,2H)
        wnp = n64(w)
        for dk in range(wnp.shape[2]):
            blocks.append(np.pad(wnp[:, 0, dk, :].T, ((0, 0), (0, CO_PAD - CO))))
    wconv = np.concatenate(blocks, axis=1).astype(np.float32)
    bconv = np.stack([np.pad(n64(b), (0, CO_PAD - CO)).reshape(1, CO_PAD)
                      for b in params["conv_b"]], axis=0).astype(np.float32)

    # ---- fc1 @ fc2 @ fc3 head pre-composed (exact in eval mode, float64) ----
    w1t = n64(params["fc1_w"]).T
    w2t = n64(params["fc2_w"]).T
    w3t = n64(params["fc3_w"]).T
    b1 = n64(params["fc1_b"]); b2 = n64(params["fc2_b"]); b3 = n64(params["fc3_b"])
    wc = w1t @ w2t @ w3t                                               # (900, 4)
    bc = (b1 @ w2t + b2) @ w3t + b3
    whead = np.zeros((NUM_BRANCH * NC * CO_PAD, OUT_PAD), f64)
    for b in range(NUM_BRANCH):
        for kidx in range(NC):
            row = (b * NC + kidx) * CO_PAD
            src = b * NC * CO + kidx * CO
            whead[row:row + CO, :N_CLS] = wc[src:src + CO, :]
    whead = whead.astype(np.float32)
    bhead = np.zeros((1, OUT_PAD), f64)
    bhead[0, :N_CLS] = bc
    bhead = bhead.astype(np.float32)

    w0, b0, wihr, blr, whh, wconv, bconv, whead, bhead = map(
        jnp.asarray, (w0, b0, wihr, blr, whh, wconv, bconv, whead, bhead))

    TB = _pick_t_block(T)
    grid = (T // TB,)

    in_specs = [
        pl.BlockSpec((S, NUM_BRANCH, TB, n_in), lambda i: (0, 0, i, 0)),
        pl.BlockSpec(w0.shape, lambda i: (0, 0)),
        pl.BlockSpec(b0.shape, lambda i: (0, 0)),
        pl.BlockSpec(wihr.shape, lambda i: (0, 0, 0)),
        pl.BlockSpec(blr.shape, lambda i: (0, 0, 0)),
        pl.BlockSpec(whh.shape, lambda i: (0, 0, 0, 0)),
        pl.BlockSpec(wconv.shape, lambda i: (0, 0)),
        pl.BlockSpec(bconv.shape, lambda i: (0, 0, 0)),
        pl.BlockSpec(whead.shape, lambda i: (0, 0)),
        pl.BlockSpec(bhead.shape, lambda i: (0, 0)),
    ]
    out = pl.pallas_call(
        turnip_kernel,
        out_shape=jax.ShapeDtypeStruct((T, OUT_PAD), f32),
        grid=grid,
        in_specs=in_specs,
        out_specs=pl.BlockSpec((TB, OUT_PAD), lambda i: (i, 0)),
        scratch_shapes=[pltpu.VMEM((S, NUM_BRANCH * TB, H2), f32)],
        compiler_params=pltpu.CompilerParams(
            dimension_semantics=("parallel",),
            vmem_limit_bytes=48 * 1024 * 1024),
    )(x_arr, w0, b0, wihr, blr, whh, wconv, bconv, whead, bhead)
    return out[:, :N_CLS]


# ----------------------------- pure-JAX reference -----------------------------
def _sigmoid(z):
    return 1.0 / (1.0 + jnp.exp(-z))


def _lstm_layer_ref(x, lp):
    S, B, _ = x.shape
    H = lp["whh_f"].shape[1]

    def run(xseq, wih, whh, bih, bhh):
        def step(carry, xt):
            h, c = carry
            g = xt @ wih.T + bih + h @ whh.T + bhh
            i = _sigmoid(g[:, 0:H])
            f = _sigmoid(g[:, H:2 * H])
            gg = jnp.tanh(g[:, 2 * H:3 * H])
            o = _sigmoid(g[:, 3 * H:4 * H])
            c = f * c + i * gg
            h = o * jnp.tanh(c)
            return (h, c), h
        init = (jnp.zeros((B, H), x.dtype), jnp.zeros((B, H), x.dtype))
        _, hs = lax.scan(step, init, xseq)
        return hs

    h_f = run(x, lp["wih_f"], lp["whh_f"], lp["bih_f"], lp["bhh_f"])
    h_b = run(x[::-1], lp["wih_b"], lp["whh_b"], lp["bih_b"], lp["bhh_b"])[::-1]
    return jnp.concatenate([h_f, h_b], axis=-1)


def reference_forward(x_list, params):
    """Pure-JAX mirror of Turnip.forward (eval-mode dropout)."""
    feats_per_branch = []
    for xi in x_list:
        T, S, n_in = xi.shape
        y = xi.reshape(T * S, n_in) @ params["fc_in_w"].T + params["fc_in_b"]
        y = y.reshape(T, S, -1)
        y = jnp.transpose(y, (1, 0, 2))            # permute(1,0,2): LSTM seq = S
        for lp in params["lstm"]:
            y = _lstm_layer_ref(y, lp)
        y = jnp.transpose(y, (1, 0, 2))            # back to (T, S, 2H)
        y = y[:, None, :, :]                       # unsqueeze(1)
        feats = []
        for w, b in zip(params["conv_w"], params["conv_b"]):
            c = lax.conv_general_dilated(y, w, (1, 1), "VALID",
                                         dimension_numbers=("NCHW", "OIHW", "NCHW"))
            c = jnp.maximum(c + b[None, :, None, None], 0.0)[:, :, :, 0]
            feats.append(jnp.max(c, axis=2))       # max_pool1d over full length
        feats_per_branch.append(jnp.concatenate(feats, axis=1))         # (T, 300)
    out = jnp.concatenate(feats_per_branch, axis=1)                     # (T, 900)
    out = out @ params["fc1_w"].T + params["fc1_b"]
    out = out @ params["fc2_w"].T + params["fc2_b"]
    out = out @ params["fc3_w"].T + params["fc3_b"]
    return out


if __name__ == "__main__":
    key = jax.random.PRNGKey(0)
    # timesteps T, "batch" S (LSTM seq / conv height, must be >= 5), nIn, nHidden, depth
    T, S, NIN, NH, DEPTH = 8, 8, 32, 32, 2
    H2 = 2 * NH
    kit = iter(list(jax.random.split(key, 48)))

    def rnd(shape, scale=0.1):
        return jax.random.normal(next(kit), shape, jnp.float32) * scale

    x_list = [jax.random.normal(next(kit), (T, S, NIN), jnp.float32)
              for _ in range(NUM_BRANCH)]

    lstm_layers = []
    for _ in range(DEPTH):
        lstm_layers.append(dict(
            wih_f=rnd((4 * NH, H2)), whh_f=rnd((4 * NH, NH)),
            bih_f=rnd((4 * NH,)), bhh_f=rnd((4 * NH,)),
            wih_b=rnd((4 * NH, H2)), whh_b=rnd((4 * NH, NH)),
            bih_b=rnd((4 * NH,)), bhh_b=rnd((4 * NH,))))

    params = dict(
        fc_in_w=rnd((H2, NIN)), fc_in_b=rnd((H2,)),
        lstm=lstm_layers,
        conv_w=[rnd((CO, 1, k, H2)) for k in KS],
        conv_b=[rnd((CO,)) for _ in KS],
        fc1_w=rnd((300, 3 * 300)), fc1_b=rnd((300,)),
        fc2_w=rnd((100, 300)), fc2_b=rnd((100,)),
        fc3_w=rnd((N_CLS, 100)), fc3_b=rnd((N_CLS,)))

    out = jax.block_until_ready(turnip_forward(x_list, params))
    with jax.default_matmul_precision("highest"):
        ref = jax.block_until_ready(reference_forward(x_list, params))

    assert out.shape == (T, N_CLS), out.shape
    max_err = float(jnp.max(jnp.abs(out - ref)))
    # Kernel matmuls run at DEFAULT (single bf16-pass) MXU precision per the perf
    # review; the reference is full-f32, so the tolerance is bf16-pass level.
    assert jnp.allclose(out, ref, atol=5e-2, rtol=5e-2), \
        f"mismatch vs reference (max abs err {max_err})"
    print("KERNEL_OK")
</pallas_src>

<mosaic_0001>
module attributes {stable_mosaic.version = 11 : i64} {
  func.func @turnip_kernel(%arg0: i32, %arg1: memref<8x3x8x32xf32, #tpu.memory_space<vmem>>, %arg2: memref<32x256xf32, #tpu.memory_space<vmem>>, %arg3: memref<1x256xf32, #tpu.memory_space<vmem>>, %arg4: memref<1x64x256xf32, #tpu.memory_space<vmem>>, %arg5: memref<1x1x256xf32, #tpu.memory_space<vmem>>, %arg6: memref<2x2x32x128xf32, #tpu.memory_space<vmem>>, %arg7: memref<64x1536xf32, #tpu.memory_space<vmem>>, %arg8: memref<3x1x128xf32, #tpu.memory_space<vmem>>, %arg9: memref<1152x128xf32, #tpu.memory_space<vmem>>, %arg10: memref<1x128xf32, #tpu.memory_space<vmem>>, %arg11: memref<8x128xf32, #tpu.memory_space<vmem>>, %arg12: memref<8x24x64xf32, #tpu.memory_space<vmem>>) attributes {dimension_semantics = [#tpu.dimension_semantics<parallel>], iteration_bounds = array<i64: 1>, scalar_prefetch = 0 : i64, scratch_operands = 1 : i64, tpu.core_type = #tpu.core_type<tc>, window_params = [{transform_indices = @transform_0, window_bounds = array<i64: 8, 3, 8, 32>}, {pipeline_mode = #tpu.pipeline_mode<synchronous>, transform_indices = @transform_1, window_bounds = array<i64: 32, 256>}, {pipeline_mode = #tpu.pipeline_mode<synchronous>, transform_indices = @transform_2, window_bounds = array<i64: 1, 256>}, {pipeline_mode = #tpu.pipeline_mode<synchronous>, transform_indices = @transform_3, window_bounds = array<i64: 1, 64, 256>}, {pipeline_mode = #tpu.pipeline_mode<synchronous>, transform_indices = @transform_4, window_bounds = array<i64: 1, 1, 256>}, {pipeline_mode = #tpu.pipeline_mode<synchronous>, transform_indices = @transform_5, window_bounds = array<i64: 2, 2, 32, 128>}, {pipeline_mode = #tpu.pipeline_mode<synchronous>, transform_indices = @transform_6, window_bounds = array<i64: 64, 1536>}, {pipeline_mode = #tpu.pipeline_mode<synchronous>, transform_indices = @transform_7, window_bounds = array<i64: 3, 1, 128>}, {pipeline_mode = #tpu.pipeline_mode<synchronous>, transform_indices = @transform_8, window_bounds = array<i64: 1152, 128>}, {pipeline_mode = #tpu.pipeline_mode<synchronous>, transform_indices = @transform_9, window_bounds = array<i64: 1, 128>}, {transform_indices = @transform_10, window_bounds = array<i64: 8, 128>}]} {
    %c0 = arith.constant 0 : index
    %c0_0 = arith.constant 0 : index
    %c0_1 = arith.constant 0 : index
    %c0_2 = arith.constant 0 : index
    %0 = vector.load %arg1[%c0, %c0_0, %c0_1, %c0_2] : memref<8x3x8x32xf32, #tpu.memory_space<vmem>>, vector<8x3x8x32xf32>
    %1 = vector.shape_cast %0 : vector<8x3x8x32xf32> to vector<192x32xf32>
    %c0_3 = arith.constant 0 : index
    %c0_4 = arith.constant 0 : index
    %2 = vector.load %arg2[%c0_3, %c0_4] : memref<32x256xf32, #tpu.memory_space<vmem>>, vector<32x256xf32>
    %cst = arith.constant dense<0.000000e+00> : vector<192x256xf32>
    %3 = tpu.matmul %1, %2, %cst {dimension_numbers = #tpu.dot_dimension_numbers<[1], [0], [0], [1], [0, 0, 1, 1], [], []>} : vector<192x32xf32>, vector<32x256xf32>, vector<192x256xf32> -> vector<192x256xf32>
    %c0_5 = arith.constant 0 : index
    %c0_6 = arith.constant 0 : index
    %4 = vector.load %arg3[%c0_5, %c0_6] : memref<1x256xf32, #tpu.memory_space<vmem>>, vector<1x256xf32>
    %5 = vector.broadcast %4 : vector<1x256xf32> to vector<192x256xf32>
    %6 = arith.addf %3, %5 : vector<192x256xf32>
    %7 = vector.shape_cast %6 : vector<192x256xf32> to vector<8x24x256xf32>
    %c0_7 = arith.constant 0 : index
    %c0_8 = arith.constant 0 : index
    %c0_9 = arith.constant 0 : index
    %c0_10 = arith.constant 0 : index
    %8 = vector.load %arg6[%c0_7, %c0_8, %c0_9, %c0_10] : memref<2x2x32x128xf32, #tpu.memory_space<vmem>>, vector<1x2x32x128xf32>
    %9 = vector.shape_cast %8 : vector<1x2x32x128xf32> to vector<2x32x128xf32>
    %10 = vector.extract_strided_slice %9 {offsets = [0, 0, 0], sizes = [1, 32, 128], strides = [1, 1, 1]} : vector<2x32x128xf32> to vector<1x32x128xf32>
    %11 = vector.shape_cast %10 : vector<1x32x128xf32> to vector<32x128xf32>
    %12 = vector.extract_strided_slice %9 {offsets = [1, 0, 0], sizes = [1, 32, 128], strides = [1, 1, 1]} : vector<2x32x128xf32> to vector<1x32x128xf32>
    %13 = vector.shape_cast %12 : vector<1x32x128xf32> to vector<32x128xf32>
    %cst_11 = arith.constant 0.000000e+00 : f32
    %14 = vector.broadcast %cst_11 : f32 to vector<24x32xf32>
    %cst_12 = arith.constant 0.000000e+00 : f32
    %15 = vector.broadcast %cst_12 : f32 to vector<24x32xf32>
    %cst_13 = arith.constant 0.000000e+00 : f32
    %16 = vector.broadcast %cst_13 : f32 to vector<24x32xf32>
    %cst_14 = arith.constant 0.000000e+00 : f32
    %17 = vector.broadcast %cst_14 : f32 to vector<24x32xf32>
    %18 = vector.extract_strided_slice %7 {offsets = [0, 0, 0], sizes = [1, 24, 128], strides = [1, 1, 1]} : vector<8x24x256xf32> to vector<1x24x128xf32>
    %19 = vector.shape_cast %18 : vector<1x24x128xf32> to vector<24x128xf32>
    %cst_15 = arith.constant dense<0.000000e+00> : vector<24x128xf32>
    %20 = tpu.matmul %14, %11, %cst_15 {dimension_numbers = #tpu.dot_dimension_numbers<[1], [0], [0], [1], [0, 0, 1, 1], [], []>} : vector<24x32xf32>, vector<32x128xf32>, vector<24x128xf32> -> vector<24x128xf32>
    %21 = arith.addf %19, %20 : vector<24x128xf32>
    %22 = vector.extract_strided_slice %7 {offsets = [7, 0, 128], sizes = [1, 24, 128], strides = [1, 1, 1]} : vector<8x24x256xf32> to vector<1x24x128xf32>
    %23 = vector.shape_cast %22 : vector<1x24x128xf32> to vector<24x128xf32>
    %cst_16 = arith.constant dense<0.000000e+00> : vector<24x128xf32>
    %24 = tpu.matmul %16, %13, %cst_16 {dimension_numbers = #tpu.dot_dimension_numbers<[1], [0], [0], [1], [0, 0, 1, 1], [], []>} : vector<24x32xf32>, vector<32x128xf32>, vector<24x128xf32> -> vector<24x128xf32>
    %25 = arith.addf %23, %24 : vector<24x128xf32>
    %26 = tpu.concatenate %21, %25 in 1 : vector<24x128xf32>, vector<24x128xf32> -> vector<24x256xf32>
    %27 = math.tanh %26 : vector<24x256xf32>
    %28 = vector.extract_strided_slice %27 {offsets = [0, 0], sizes = [24, 32], strides = [1, 1]} : vector<24x256xf32> to vector<24x32xf32>
    %cst_17 = arith.constant 5.000000e-01 : f32
    %29 = vector.broadcast %cst_17 : f32 to vector<24x32xf32>
    %30 = arith.mulf %29, %28 : vector<24x32xf32>
    %cst_18 = arith.constant 5.000000e-01 : f32
    %31 = vector.broadcast %cst_18 : f32 to vector<24x32xf32>
    %32 = arith.addf %30, %31 : vector<24x32xf32>
    %33 = vector.extract_strided_slice %27 {offsets = [0, 32], sizes = [24, 32], strides = [1, 1]} : vector<24x256xf32> to vector<24x32xf32>
    %cst_19 = arith.constant 5.000000e-01 : f32
    %34 = vector.broadcast %cst_19 : f32 to vector<24x32xf32>
    %35 = arith.mulf %34, %33 : vector<24x32xf32>
    %cst_20 = arith.constant 5.000000e-01 : f32
    %36 = vector.broadcast %cst_20 : f32 to vector<24x32xf32>
    %37 = arith.addf %35, %36 : vector<24x32xf32>
    %38 = vector.extract_strided_slice %27 {offsets = [0, 64], sizes = [24, 32], strides = [1, 1]} : vector<24x256xf32> to vector<24x32xf32>
    %39 = vector.extract_strided_slice %27 {offsets = [0, 96], sizes = [24, 32], strides = [1, 1]} : vector<24x256xf32> to vector<24x32xf32>
    %cst_21 = arith.constant 5.000000e-01 : f32
    %40 = vector.broadcast %cst_21 : f32 to vector<24x32xf32>
    %41 = arith.mulf %40, %39 : vector<24x32xf32>
    %cst_22 = arith.constant 5.000000e-01 : f32
    %42 = vector.broadcast %cst_22 : f32 to vector<24x32xf32>
    %43 = arith.addf %41, %42 : vector<24x32xf32>
    %44 = arith.mulf %37, %15 : vector<24x32xf32>
    %45 = arith.mulf %32, %38 : vector<24x32xf32>
    %46 = arith.addf %44, %45 : vector<24x32xf32>
    %47 = math.tanh %46 : vector<24x32xf32>
    %48 = arith.mulf %43, %47 : vector<24x32xf32>
    %49 = vector.extract_strided_slice %27 {offsets = [0, 128], sizes = [24, 32], strides = [1, 1]} : vector<24x256xf32> to vector<24x32xf32>
    %cst_23 = arith.constant 5.000000e-01 : f32
    %50 = vector.broadcast %cst_23 : f32 to vector<24x32xf32>
    %51 = arith.mulf %50, %49 : vector<24x32xf32>
    %cst_24 = arith.constant 5.000000e-01 : f32
    %52 = vector.broadcast %cst_24 : f32 to vector<24x32xf32>
    %53 = arith.addf %51, %52 : vector<24x32xf32>
    %54 = vector.extract_strided_slice %27 {offsets = [0, 160], sizes = [24, 32], strides = [1, 1]} : vector<24x256xf32> to vector<24x32xf32>
    %cst_25 = arith.constant 5.000000e-01 : f32
    %55 = vector.broadcast %cst_25 : f32 to vector<24x32xf32>
    %56 = arith.mulf %55, %54 : vector<24x32xf32>
    %cst_26 = arith.constant 5.000000e-01 : f32
    %57 = vector.broadcast %cst_26 : f32 to vector<24x32xf32>
    %58 = arith.addf %56, %57 : vector<24x32xf32>
    %59 = vector.extract_strided_slice %27 {offsets = [0, 192], sizes = [24, 32], strides = [1, 1]} : vector<24x256xf32> to vector<24x32xf32>
    %60 = vector.extract_strided_slice %27 {offsets = [0, 224], sizes = [24, 32], strides = [1, 1]} : vector<24x256xf32> to vector<24x32xf32>
    %cst_27 = arith.constant 5.000000e-01 : f32
    %61 = vector.broadcast %cst_27 : f32 to vector<24x32xf32>
    %62 = arith.mulf %61, %60 : vector<24x32xf32>
    %cst_28 = arith.constant 5.000000e-01 : f32
    %63 = vector.broadcast %cst_28 : f32 to vector<24x32xf32>
    %64 = arith.addf %62, %63 : vector<24x32xf32>
    %65 = arith.mulf %58, %17 : vector<24x32xf32>
    %66 = arith.mulf %53, %59 : vector<24x32xf32>
    %67 = arith.addf %65, %66 : vector<24x32xf32>
    %68 = math.tanh %67 : vector<24x32xf32>
    %69 = arith.mulf %64, %68 : vector<24x32xf32>
    %c0_29 = arith.constant 0 : index
    %c0_30 = arith.constant 0 : index
    %c0_31 = arith.constant 0 : index
    %70 = vector.load %arg12[%c0_29, %c0_30, %c0_31] : memref<8x24x64xf32, #tpu.memory_space<vmem>>, vector<1x24x32xf32>
    %71 = vector.shape_cast %70 : vector<1x24x32xf32> to vector<24x32xf32>
    %72 = vector.shape_cast %48 : vector<24x32xf32> to vector<1x24x32xf32>
    tpu.vector_store %arg12[%c0_29, %c0_30, %c0_31], %72 {strides = array<i32>} : memref<8x24x64xf32, #tpu.memory_space<vmem>>, vector<1x24x32xf32>,
    %c7 = arith.constant 7 : index
    %c0_32 = arith.constant 0 : index
    %c32 = arith.constant 32 : index
    %73 = vector.load %arg12[%c7, %c0_32, %c32] : memref<8x24x64xf32, #tpu.memory_space<vmem>>, vector<1x24x32xf32>
    %74 = vector.shape_cast %73 : vector<1x24x32xf32> to vector<24x32xf32>
    %75 = vector.shape_cast %69 : vector<24x32xf32> to vector<1x24x32xf32>
    tpu.vector_store %arg12[%c7, %c0_32, %c32], %75 {strides = array<i32>} : memref<8x24x64xf32, #tpu.memory_space<vmem>>, vector<1x24x32xf32>,
    %76 = vector.extract_strided_slice %7 {offsets = [1, 0, 0], sizes = [1, 24, 128], strides = [1, 1, 1]} : vector<8x24x256xf32> to vector<1x24x128xf32>
    %77 = vector.shape_cast %76 : vector<1x24x128xf32> to vector<24x128xf32>
    %cst_33 = arith.constant dense<0.000000e+00> : vector<24x128xf32>
    %78 = tpu.matmul %48, %11, %cst_33 {dimension_numbers = #tpu.dot_dimension_numbers<[1], [0], [0], [1], [0, 0, 1, 1], [], []>} : vector<24x32xf32>, vector<32x128xf32>, vector<24x128xf32> -> vector<24x128xf32>
    %79 = arith.addf %77, %78 : vector<24x128xf32>
    %80 = vector.extract_strided_slice %7 {offsets = [6, 0, 128], sizes = [1, 24, 128], strides = [1, 1, 1]} : vector<8x24x256xf32> to vector<1x24x128xf32>
    %81 = vector.shape_cast %80 : vector<1x24x128xf32> to vector<24x128xf32>
    %cst_34 = arith.constant dense<0.000000e+00> : vector<24x128xf32>
    %82 = tpu.matmul %69, %13, %cst_34 {dimension_numbers = #tpu.dot_dimension_numbers<[1], [0], [0], [1], [0, 0, 1, 1], [], []>} : vector<24x32xf32>, vector<32x128xf32>, vector<24x128xf32> -> vector<24x128xf32>
    %83 = arith.addf %81, %82 : vector<24x128xf32>
    %84 = tpu.concatenate %79, %83 in 1 : vector<24x128xf32>, vector<24x128xf32> -> vector<24x256xf32>
    %85 = math.tanh %84 : vector<24x256xf32>
    %86 = vector.extract_strided_slice %85 {offsets = [0, 0], sizes = [24, 32], strides = [1, 1]} : vector<24x256xf32> to vector<24x32xf32>
    %cst_35 = arith.constant 5.000000e-01 : f32
    %87 = vector.broadcast %cst_35 : f32 to vector<24x32xf32>
    %88 = arith.mulf %87, %86 : vector<24x32xf32>
    %cst_36 = arith.constant 5.000000e-01 : f32
    %89 = vector.broadcast %cst_36 : f32 to vector<24x32xf32>
    %90 = arith.addf %88, %89 : vector<24x32xf32>
    %91 = vector.extract_strided_slice %85 {offsets = [0, 32], sizes = [24, 32], strides = [1, 1]} : vector<24x256xf32> to vector<24x32xf32>
    %cst_37 = arith.constant 5.000000e-01 : f32
    %92 = vector.broadcast %cst_37 : f32 to vector<24x32xf32>
    %93 = arith.mulf %92, %91 : vector<24x32xf32>
    %cst_38 = arith.constant 5.000000e-01 : f32
    %94 = vector.broadcast %cst_38 : f32 to vector<24x32xf32>
    %95 = arith.addf %93, %94 : vector<24x32xf32>
    %96 = vector.extract_strided_slice %85 {offsets = [0, 64], sizes = [24, 32], strides = [1, 1]} : vector<24x256xf32> to vector<24x32xf32>
    %97 = vector.extract_strided_slice %85 {offsets = [0, 96], sizes = [24, 32], strides = [1, 1]} : vector<24x256xf32> to vector<24x32xf32>
    %cst_39 = arith.constant 5.000000e-01 : f32
    %98 = vector.broadcast %cst_39 : f32 to vector<24x32xf32>
    %99 = arith.mulf %98, %97 : vector<24x32xf32>
    %cst_40 = arith.constant 5.000000e-01 : f32
    %100 = vector.broadcast %cst_40 : f32 to vector<24x32xf32>
    %101 = arith.addf %99, %100 : vector<24x32xf32>
    %102 = arith.mulf %95, %46 : vector<24x32xf32>
    %103 = arith.mulf %90, %96 : vector<24x32xf32>
    %104 = arith.addf %102, %103 : vector<24x32xf32>
    %105 = math.tanh %104 : vector<24x32xf32>
    %106 = arith.mulf %101, %105 : vector<24x32xf32>
    %107 = vector.extract_strided_slice %85 {offsets = [0, 128], sizes = [24, 32], strides = [1, 1]} : vector<24x256xf32> to vector<24x32xf32>
    %cst_41 = arith.constant 5.000000e-01 : f32
    %108 = vector.broadcast %cst_41 : f32 to vector<24x32xf32>
    %109 = arith.mulf %108, %107 : vector<24x32xf32>
    %cst_42 = arith.constant 5.000000e-01 : f32
    %110 = vector.broadcast %cst_42 : f32 to vector<24x32xf32>
    %111 = arith.addf %109, %110 : vector<24x32xf32>
    %112 = vector.extract_strided_slice %85 {offsets = [0, 160], sizes = [24, 32], strides = [1, 1]} : vector<24x256xf32> to vector<24x32xf32>
    %cst_43 = arith.constant 5.000000e-01 : f32
    %113 = vector.broadcast %cst_43 : f32 to vector<24x32xf32>
    %114 = arith.mulf %113, %112 : vector<24x32xf32>
    %cst_44 = arith.constant 5.000000e-01 : f32
    %115 = vector.broadcast %cst_44 : f32 to vector<24x32xf32>
    %116 = arith.addf %114, %115 : vector<24x32xf32>
    %117 = vector.extract_strided_slice %85 {offsets = [0, 192], sizes = [24, 32], strides = [1, 1]} : vector<24x256xf32> to vector<24x32xf32>
    %118 = vector.extract_strided_slice %85 {offsets = [0, 224], sizes = [24, 32], strides = [1, 1]} : vector<24x256xf32> to vector<24x32xf32>
    %cst_45 = arith.constant 5.000000e-01 : f32
    %119 = vector.broadcast %cst_45 : f32 to vector<24x32xf32>
    %120 = arith.mulf %119, %118 : vector<24x32xf32>
    %cst_46 = arith.constant 5.000000e-01 : f32
    %121 = vector.broadcast %cst_46 : f32 to vector<24x32xf32>
    %122 = arith.addf %120, %121 : vector<24x32xf32>
    %123 = arith.mulf %116, %67 : vector<24x32xf32>
    %124 = arith.mulf %111, %117 : vector<24x32xf32>
    %125 = arith.addf %123, %124 : vector<24x32xf32>
    %126 = math.tanh %125 : vector<24x32xf32>
    %127 = arith.mulf %122, %126 : vector<24x32xf32>
    %c1 = arith.constant 1 : index
    %c0_47 = arith.constant 0 : index
    %c0_48 = arith.constant 0 : index
    %128 = vector.load %arg12[%c1, %c0_47, %c0_48] : memref<8x24x64xf32, #tpu.memory_space<vmem>>, vector<1x24x32xf32>
    %129 = vector.shape_cast %128 : vector<1x24x32xf32> to vector<24x32xf32>
    %130 = vector.shape_cast %106 : vector<24x32xf32> to vector<1x24x32xf32>
    tpu.vector_store %arg12[%c1, %c0_47, %c0_48], %130 {strides = array<i32>} : memref<8x24x64xf32, #tpu.memory_space<vmem>>, vector<1x24x32xf32>,
    %c6 = arith.constant 6 : index
    %c0_49 = arith.constant 0 : index
    %c32_50 = arith.constant 32 : index
    %131 = vector.load %arg12[%c6, %c0_49, %c32_50] : memref<8x24x64xf32, #tpu.memory_space<vmem>>, vector<1x24x32xf32>
    %132 = vector.shape_cast %131 : vector<1x24x32xf32> to vector<24x32xf32>
    %133 = vector.shape_cast %127 : vector<24x32xf32> to vector<1x24x32xf32>
    tpu.vector_store %arg12[%c6, %c0_49, %c32_50], %133 {strides = array<i32>} : memref<8x24x64xf32, #tpu.memory_space<vmem>>, vector<1x24x32xf32>,
    %134 = vector.extract_strided_slice %7 {offsets = [2, 0, 0], sizes = [1, 24, 128], strides = [1, 1, 1]} : vector<8x24x256xf32> to vector<1x24x128xf32>
    %135 = vector.shape_cast %134 : vector<1x24x128xf32> to vector<24x128xf32>
    %cst_51 = arith.constant dense<0.000000e+00> : vector<24x128xf32>
    %136 = tpu.matmul %106, %11, %cst_51 {dimension_numbers = #tpu.dot_dimension_numbers<[1], [0], [0], [1], [0, 0, 1, 1], [], []>} : vector<24x32xf32>, vector<32x128xf32>, vector<24x128xf32> -> vector<24x128xf32>
    %137 = arith.addf %135, %136 : vector<24x128xf32>
    %138 = vector.extract_strided_slice %7 {offsets = [5, 0, 128], sizes = [1, 24, 128], strides = [1, 1, 1]} : vector<8x24x256xf32> to vector<1x24x128xf32>
    %139 = vector.shape_cast %138 : vector<1x24x128xf32> to vector<24x128xf32>
    %cst_52 = arith.constant dense<0.000000e+00> : vector<24x128xf32>
    %140 = tpu.matmul %127, %13, %cst_52 {dimension_numbers = #tpu.dot_dimension_numbers<[1], [0], [0], [1], [0, 0, 1, 1], [], []>} : vector<24x32xf32>, vector<32x128xf32>, vector<24x128xf32> -> vector<24x128xf32>
    %141 = arith.addf %139, %140 : vector<24x128xf32>
    %142 = tpu.concatenate %137, %141 in 1 : vector<24x128xf32>, vector<24x128xf32> -> vector<24x256xf32>
    %143 = math.tanh %142 : vector<24x256xf32>
    %144 = vector.extract_strided_slice %143 {offsets = [0, 0], sizes = [24, 32], strides = [1, 1]} : vector<24x256xf32> to vector<24x32xf32>
    %cst_53 = arith.constant 5.000000e-01 : f32
    %145 = vector.broadcast %cst_53 : f32 to vector<24x32xf32>
    %146 = arith.mulf %145, %144 : vector<24x32xf32>
    %cst_54 = arith.constant 5.000000e-01 : f32
    %147 = vector.broadcast %cst_54 : f32 to vector<24x32xf32>
    %148 = arith.addf %146, %147 : vector<24x32xf32>
    %149 = vector.extract_strided_slice %143 {offsets = [0, 32], sizes = [24, 32], strides = [1, 1]} : vector<24x256xf32> to vector<24x32xf32>
    %cst_55 = arith.constant 5.000000e-01 : f32
    %150 = vector.broadcast %cst_55 : f32 to vector<24x32xf32>
    %151 = arith.mulf %150, %149 : vector<24x32xf32>
    %cst_56 = arith.constant 5.000000e-01 : f32
    %152 = vector.broadcast %cst_56 : f32 to vector<24x32xf32>
    %153 = arith.addf %151, %152 : vector<24x32xf32>
    %154 = vector.extract_strided_slice %143 {offsets = [0, 64], sizes = [24, 32], strides = [1, 1]} : vector<24x256xf32> to vector<24x32xf32>
    %155 = vector.extract_strided_slice %143 {offsets = [0, 96], sizes = [24, 32], strides = [1, 1]} : vector<24x256xf32> to vector<24x32xf32>
    %cst_57 = arith.constant 5.000000e-01 : f32
    %156 = vector.broadcast %cst_57 : f32 to vector<24x32xf32>
    %157 = arith.mulf %156, %155 : vector<24x32xf32>
    %cst_58 = arith.constant 5.000000e-01 : f32
    %158 = vector.broadcast %cst_58 : f32 to vector<24x32xf32>
    %159 = arith.addf %157, %158 : vector<24x32xf32>
    %160 = arith.mulf %153, %104 : vector<24x32xf32>
    %161 = arith.mulf %148, %154 : vector<24x32xf32>
    %162 = arith.addf %160, %161 : vector<24x32xf32>
    %163 = math.tanh %162 : vector<24x32xf32>
    %164 = arith.mulf %159, %163 : vector<24x32xf32>
    %165 = vector.extract_strided_slice %143 {offsets = [0, 128], sizes = [24, 32], strides = [1, 1]} : vector<24x256xf32> to vector<24x32xf32>
    %cst_59 = arith.constant 5.000000e-01 : f32
    %166 = vector.broadcast %cst_59 : f32 to vector<24x32xf32>
    %167 = arith.mulf %166, %165 : vector<24x32xf32>
    %cst_60 = arith.constant 5.000000e-01 : f32
    %168 = vector.broadcast %cst_60 : f32 to vector<24x32xf32>
    %169 = arith.addf %167, %168 : vector<24x32xf32>
    %170 = vector.extract_strided_slice %143 {offsets = [0, 160], sizes = [24, 32], strides = [1, 1]} : vector<24x256xf32> to vector<24x32xf32>
    %cst_61 = arith.constant 5.000000e-01 : f32
    %171 = vector.broadcast %cst_61 : f32 to vector<24x32xf32>
    %172 = arith.mulf %171, %170 : vector<24x32xf32>
    %cst_62 = arith.constant 5.000000e-01 : f32
    %173 = vector.broadcast %cst_62 : f32 to vector<24x32xf32>
    %174 = arith.addf %172, %173 : vector<24x32xf32>
    %175 = vector.extract_strided_slice %143 {offsets = [0, 192], sizes = [24, 32], strides = [1, 1]} : vector<24x256xf32> to vector<24x32xf32>
    %176 = vector.extract_strided_slice %143 {offsets = [0, 224], sizes = [24, 32], strides = [1, 1]} : vector<24x256xf32> to vector<24x32xf32>
    %cst_63 = arith.constant 5.000000e-01 : f32
    %177 = vector.broadcast %cst_63 : f32 to vector<24x32xf32>
    %178 = arith.mulf %177, %176 : vector<24x32xf32>
    %cst_64 = arith.constant 5.000000e-01 : f32
    %179 = vector.broadcast %cst_64 : f32 to vector<24x32xf32>
    %180 = arith.addf %178, %179 : vector<24x32xf32>
    %181 = arith.mulf %174, %125 : vector<24x32xf32>
    %182 = arith.mulf %169, %175 : vector<24x32xf32>
    %183 = arith.addf %181, %182 : vector<24x32xf32>
    %184 = math.tanh %183 : vector<24x32xf32>
    %185 = arith.mulf %180, %184 : vector<24x32xf32>
    %c2 = arith.constant 2 : index
    %c0_65 = arith.constant 0 : index
    %c0_66 = arith.constant 0 : index
    %186 = vector.load %arg12[%c2, %c0_65, %c0_66] : memref<8x24x64xf32, #tpu.memory_space<vmem>>, vector<1x24x32xf32>
    %187 = vector.shape_cast %186 : vector<1x24x32xf32> to vector<24x32xf32>
    %188 = vector.shape_cast %164 : vector<24x32xf32> to vector<1x24x32xf32>
    tpu.vector_store %arg12[%c2, %c0_65, %c0_66], %188 {strides = array<i32>} : memref<8x24x64xf32, #tpu.memory_space<vmem>>, vector<1x24x32xf32>,
    %c5 = arith.constant 5 : index
    %c0_67 = arith.constant 0 : index
    %c32_68 = arith.constant 32 : index
    %189 = vector.load %arg12[%c5, %c0_67, %c32_68] : memref<8x24x64xf32, #tpu.memory_space<vmem>>, vector<1x24x32xf32>
    %190 = vector.shape_cast %189 : vector<1x24x32xf32> to vector<24x32xf32>
    %191 = vector.shape_cast %185 : vector<24x32xf32> to vector<1x24x32xf32>
    tpu.vector_store %arg12[%c5, %c0_67, %c32_68], %191 {strides = array<i32>} : memref<8x24x64xf32, #tpu.memory_space<vmem>>, vector<1x24x32xf32>,
    %192 = vector.extract_strided_slice %7 {offsets = [3, 0, 0], sizes = [1, 24, 128], strides = [1, 1, 1]} : vector<8x24x256xf32> to vector<1x24x128xf32>
    %193 = vector.shape_cast %192 : vector<1x24x128xf32> to vector<24x128xf32>
    %cst_69 = arith.constant dense<0.000000e+00> : vector<24x128xf32>
    %194 = tpu.matmul %164, %11, %cst_69 {dimension_numbers = #tpu.dot_dimension_numbers<[1], [0], [0], [1], [0, 0, 1, 1], [], []>} : vector<24x32xf32>, vector<32x128xf32>, vector<24x128xf32> -> vector<24x128xf32>
    %195 = arith.addf %193, %194 : vector<24x128xf32>
    %196 = vector.extract_strided_slice %7 {offsets = [4, 0, 128], sizes = [1, 24, 128], strides = [1, 1, 1]} : vector<8x24x256xf32> to vector<1x24x128xf32>
    %197 = vector.shape_cast %196 : vector<1x24x128xf32> to vector<24x128xf32>
    %cst_70 = arith.constant dense<0.000000e+00> : vector<24x128xf32>
    %198 = tpu.matmul %185, %13, %cst_70 {dimension_numbers = #tpu.dot_dimension_numbers<[1], [0], [0], [1], [0, 0, 1, 1], [], []>} : vector<24x32xf32>, vector<32x128xf32>, vector<24x128xf32> -> vector<24x128xf32>
    %199 = arith.addf %197, %198 : vector<24x128xf32>
    %200 = tpu.concatenate %195, %199 in 1 : vector<24x128xf32>, vector<24x128xf32> -> vector<24x256xf32>
    %201 = math.tanh %200 : vector<24x256xf32>
    %202 = vector.extract_strided_slice %201 {offsets = [0, 0], sizes = [24, 32], strides = [1, 1]} : vector<24x256xf32> to vector<24x32xf32>
    %cst_71 = arith.constant 5.000000e-01 : f32
    %203 = vector.broadcast %cst_71 : f32 to vector<24x32xf32>
    %204 = arith.mulf %203, %202 : vector<24x32xf32>
    %cst_72 = arith.constant 5.000000e-01 : f32
    %205 = vector.broadcast %cst_72 : f32 to vector<24x32xf32>
    %206 = arith.addf %204, %205 : vector<24x32xf32>
    %207 = vector.extract_strided_slice %201 {offsets = [0, 32], sizes = [24, 32], strides = [1, 1]} : vector<24x256xf32> to vector<24x32xf32>
    %cst_73 = arith.constant 5.000000e-01 : f32
    %208 = vector.broadcast %cst_73 : f32 to vector<24x32xf32>
    %209 = arith.mulf %208, %207 : vector<24x32xf32>
    %cst_74 = arith.constant 5.000000e-01 : f32
    %210 = vector.broadcast %cst_74 : f32 to vector<24x32xf32>
    %211 = arith.addf %209, %210 : vector<24x32xf32>
    %212 = vector.extract_strided_slice %201 {offsets = [0, 64], sizes = [24, 32], strides = [1, 1]} : vector<24x256xf32> to vector<24x32xf32>
    %213 = vector.extract_strided_slice %201 {offsets = [0, 96], sizes = [24, 32], strides = [1, 1]} : vector<24x256xf32> to vector<24x32xf32>
    %cst_75 = arith.constant 5.000000e-01 : f32
    %214 = vector.broadcast %cst_75 : f32 to vector<24x32xf32>
    %215 = arith.mulf %214, %213 : vector<24x32xf32>
    %cst_76 = arith.constant 5.000000e-01 : f32
    %216 = vector.broadcast %cst_76 : f32 to vector<24x32xf32>
    %217 = arith.addf %215, %216 : vector<24x32xf32>
    %218 = arith.mulf %211, %162 : vector<24x32xf32>
    %219 = arith.mulf %206, %212 : vector<24x32xf32>
    %220 = arith.addf %218, %219 : vector<24x32xf32>
    %221 = math.tanh %220 : vector<24x32xf32>
    %222 = arith.mulf %217, %221 : vector<24x32xf32>
    %223 = vector.extract_strided_slice %201 {offsets = [0, 128], sizes = [24, 32], strides = [1, 1]} : vector<24x256xf32> to vector<24x32xf32>
    %cst_77 = arith.constant 5.000000e-01 : f32
    %224 = vector.broadcast %cst_77 : f32 to vector<24x32xf32>
    %225 = arith.mulf %224, %223 : vector<24x32xf32>
    %cst_78 = arith.constant 5.000000e-01 : f32
    %226 = vector.broadcast %cst_78 : f32 to vector<24x32xf32>
    %227 = arith.addf %225, %226 : vector<24x32xf32>
    %228 = vector.extract_strided_slice %201 {offsets = [0, 160], sizes = [24, 32], strides = [1, 1]} : vector<24x256xf32> to vector<24x32xf32>
    %cst_79 = arith.constant 5.000000e-01 : f32
    %229 = vector.broadcast %cst_79 : f32 to vector<24x32xf32>
    %230 = arith.mulf %229, %228 : vector<24x32xf32>
    %cst_80 = arith.constant 5.000000e-01 : f32
    %231 = vector.broadcast %cst_80 : f32 to vector<24x32xf32>
    %232 = arith.addf %230, %231 : vector<24x32xf32>
    %233 = vector.extract_strided_slice %201 {offsets = [0, 192], sizes = [24, 32], strides = [1, 1]} : vector<24x256xf32> to vector<24x32xf32>
    %234 = vector.extract_strided_slice %201 {offsets = [0, 224], sizes = [24, 32], strides = [1, 1]} : vector<24x256xf32> to vector<24x32xf32>
    %cst_81 = arith.constant 5.000000e-01 : f32
    %235 = vector.broadcast %cst_81 : f32 to vector<24x32xf32>
    %236 = arith.mulf %235, %234 : vector<24x32xf32>
    %cst_82 = arith.constant 5.000000e-01 : f32
    %237 = vector.broadcast %cst_82 : f32 to vector<24x32xf32>
    %238 = arith.addf %236, %237 : vector<24x32xf32>
    %239 = arith.mulf %232, %183 : vector<24x32xf32>
    %240 = arith.mulf %227, %233 : vector<24x32xf32>
    %241 = arith.addf %239, %240 : vector<24x32xf32>
    %242 = math.tanh %241 : vector<24x32xf32>
    %243 = arith.mulf %238, %242 : vector<24x32xf32>
    %c3 = arith.constant 3 : index
    %c0_83 = arith.constant 0 : index
    %c0_84 = arith.constant 0 : index
    %244 = vector.load %arg12[%c3, %c0_83, %c0_84] : memref<8x24x64xf32, #tpu.memory_space<vmem>>, vector<1x24x32xf32>
    %245 = vector.shape_cast %244 : vector<1x24x32xf32> to vector<24x32xf32>
    %246 = vector.shape_cast %222 : vector<24x32xf32> to vector<1x24x32xf32>
    tpu.vector_store %arg12[%c3, %c0_83, %c0_84], %246 {strides = array<i32>} : memref<8x24x64xf32, #tpu.memory_space<vmem>>, vector<1x24x32xf32>,
    %c4 = arith.constant 4 : index
    %c0_85 = arith.constant 0 : index
    %c32_86 = arith.constant 32 : index
    %247 = vector.load %arg12[%c4, %c0_85, %c32_86] : memref<8x24x64xf32, #tpu.memory_space<vmem>>, vector<1x24x32xf32>
    %248 = vector.shape_cast %247 : vector<1x24x32xf32> to vector<24x32xf32>
    %249 = vector.shape_cast %243 : vector<24x32xf32> to vector<1x24x32xf32>
    tpu.vector_store %arg12[%c4, %c0_85, %c32_86], %249 {strides = array<i32>} : memref<8x24x64xf32, #tpu.memory_space<vmem>>, vector<1x24x32xf32>,
    %250 = vector.extract_strided_slice %7 {offsets = [4, 0, 0], sizes = [1, 24, 128], strides = [1, 1, 1]} : vector<8x24x256xf32> to vector<1x24x128xf32>
    %251 = vector.shape_cast %250 : vector<1x24x128xf32> to vector<24x128xf32>
    %cst_87 = arith.constant dense<0.000000e+00> : vector<24x128xf32>
    %252 = tpu.matmul %222, %11, %cst_87 {dimension_numbers = #tpu.dot_dimension_numbers<[1], [0], [0], [1], [0, 0, 1, 1], [], []>} : vector<24x32xf32>, vector<32x128xf32>, vector<24x128xf32> -> vector<24x128xf32>
    %253 = arith.addf %251, %252 : vector<24x128xf32>
    %254 = vector.extract_strided_slice %7 {offsets = [3, 0, 128], sizes = [1, 24, 128], strides = [1, 1, 1]} : vector<8x24x256xf32> to vector<1x24x128xf32>
    %255 = vector.shape_cast %254 : vector<1x24x128xf32> to vector<24x128xf32>
    %cst_88 = arith.constant dense<0.000000e+00> : vector<24x128xf32>
    %256 = tpu.matmul %243, %13, %cst_88 {dimension_numbers = #tpu.dot_dimension_numbers<[1], [0], [0], [1], [0, 0, 1, 1], [], []>} : vector<24x32xf32>, vector<32x128xf32>, vector<24x128xf32> -> vector<24x128xf32>
    %257 = arith.addf %255, %256 : vector<24x128xf32>
    %258 = tpu.concatenate %253, %257 in 1 : vector<24x128xf32>, vector<24x128xf32> -> vector<24x256xf32>
    %259 = math.tanh %258 : vector<24x256xf32>
    %260 = vector.extract_strided_slice %259 {offsets = [0, 0], sizes = [24, 32], strides = [1, 1]} : vector<24x256xf32> to vector<24x32xf32>
    %cst_89 = arith.constant 5.000000e-01 : f32
    %261 = vector.broadcast %cst_89 : f32 to vector<24x32xf32>
    %262 = arith.mulf %261, %260 : vector<24x32xf32>
    %cst_90 = arith.constant 5.000000e-01 : f32
    %263 = vector.broadcast %cst_90 : f32 to vector<24x32xf32>
    %264 = arith.addf %262, %263 : vector<24x32xf32>
    %265 = vector.extract_strided_slice %259 {offsets = [0, 32], sizes = [24, 32], strides = [1, 1]} : vector<24x256xf32> to vector<24x32xf32>
    %cst_91 = arith.constant 5.000000e-01 : f32
    %266 = vector.broadcast %cst_91 : f32 to vector<24x32xf32>
    %267 = arith.mulf %266, %265 : vector<24x32xf32>
    %cst_92 = arith.constant 5.000000e-01 : f32
    %268 = vector.broadcast %cst_92 : f32 to vector<24x32xf32>
    %269 = arith.addf %267, %268 : vector<24x32xf32>
    %270 = vector.extract_strided_slice %259 {offsets = [0, 64], sizes = [24, 32], strides = [1, 1]} : vector<24x256xf32> to vector<24x32xf32>
    %271 = vector.extract_strided_slice %259 {offsets = [0, 96], sizes = [24, 32], strides = [1, 1]} : vector<24x256xf32> to vector<24x32xf32>
    %cst_93 = arith.constant 5.000000e-01 : f32
    %272 = vector.broadcast %cst_93 : f32 to vector<24x32xf32>
    %273 = arith.mulf %272, %271 : vector<24x32xf32>
    %cst_94 = arith.constant 5.000000e-01 : f32
    %274 = vector.broadcast %cst_94 : f32 to vector<24x32xf32>
    %275 = arith.addf %273, %274 : vector<24x32xf32>
    %276 = arith.mulf %269, %220 : vector<24x32xf32>
    %277 = arith.mulf %264, %270 : vector<24x32xf32>
    %278 = arith.addf %276, %277 : vector<24x32xf32>
    %279 = math.tanh %278 : vector<24x32xf32>
    %280 = arith.mulf %275, %279 : vector<24x32xf32>
    %281 = vector.extract_strided_slice %259 {offsets = [0, 128], sizes = [24, 32], strides = [1, 1]} : vector<24x256xf32> to vector<24x32xf32>
    %cst_95 = arith.constant 5.000000e-01 : f32
    %282 = vector.broadcast %cst_95 : f32 to vector<24x32xf32>
    %283 = arith.mulf %282, %281 : vector<24x32xf32>
    %cst_96 = arith.constant 5.000000e-01 : f32
    %284 = vector.broadcast %cst_96 : f32 to vector<24x32xf32>
    %285 = arith.addf %283, %284 : vector<24x32xf32>
    %286 = vector.extract_strided_slice %259 {offsets = [0, 160], sizes = [24, 32], strides = [1, 1]} : vector<24x256xf32> to vector<24x32xf32>
    %cst_97 = arith.constant 5.000000e-01 : f32
    %287 = vector.broadcast %cst_97 : f32 to vector<24x32xf32>
    %288 = arith.mulf %287, %286 : vector<24x32xf32>
    %cst_98 = arith.constant 5.000000e-01 : f32
    %289 = vector.broadcast %cst_98 : f32 to vector<24x32xf32>
    %290 = arith.addf %288, %289 : vector<24x32xf32>
    %291 = vector.extract_strided_slice %259 {offsets = [0, 192], sizes = [24, 32], strides = [1, 1]} : vector<24x256xf32> to vector<24x32xf32>
    %292 = vector.extract_strided_slice %259 {offsets = [0, 224], sizes = [24, 32], strides = [1, 1]} : vector<24x256xf32> to vector<24x32xf32>
    %cst_99 = arith.constant 5.000000e-01 : f32
    %293 = vector.broadcast %cst_99 : f32 to vector<24x32xf32>
    %294 = arith.mulf %293, %292 : vector<24x32xf32>
    %cst_100 = arith.constant 5.000000e-01 : f32
    %295 = vector.broadcast %cst_100 : f32 to vector<24x32xf32>
    %296 = arith.addf %294, %295 : vector<24x32xf32>
    %297 = arith.mulf %290, %241 : vector<24x32xf32>
    %298 = arith.mulf %285, %291 : vector<24x32xf32>
    %299 = arith.addf %297, %298 : vector<24x32xf32>
    %300 = math.tanh %299 : vector<24x32xf32>
    %301 = arith.mulf %296, %300 : vector<24x32xf32>
    %c4_101 = arith.constant 4 : index
    %c0_102 = arith.constant 0 : index
    %c0_103 = arith.constant 0 : index
    %302 = vector.load %arg12[%c4_101, %c0_102, %c0_103] : memref<8x24x64xf32, #tpu.memory_space<vmem>>, vector<1x24x32xf32>
    %303 = vector.shape_cast %302 : vector<1x24x32xf32> to vector<24x32xf32>
    %304 = vector.shape_cast %280 : vector<24x32xf32> to vector<1x24x32xf32>
    tpu.vector_store %arg12[%c4_101, %c0_102, %c0_103], %304 {strides = array<i32>} : memref<8x24x64xf32, #tpu.memory_space<vmem>>, vector<1x24x32xf32>,
    %c3_104 = arith.constant 3 : index
    %c0_105 = arith.constant 0 : index
    %c32_106 = arith.constant 32 : index
    %305 = vector.load %arg12[%c3_104, %c0_105, %c32_106] : memref<8x24x64xf32, #tpu.memory_space<vmem>>, vector<1x24x32xf32>
    %306 = vector.shape_cast %305 : vector<1x24x32xf32> to vector<24x32xf32>
    %307 = vector.shape_cast %301 : vector<24x32xf32> to vector<1x24x32xf32>
    tpu.vector_store %arg12[%c3_104, %c0_105, %c32_106], %307 {strides = array<i32>} : memref<8x24x64xf32, #tpu.memory_space<vmem>>, vector<1x24x32xf32>,
    %308 = vector.extract_strided_slice %7 {offsets = [5, 0, 0], sizes = [1, 24, 128], strides = [1, 1, 1]} : vector<8x24x256xf32> to vector<1x24x128xf32>
    %309 = vector.shape_cast %308 : vector<1x24x128xf32> to vector<24x128xf32>
    %cst_107 = arith.constant dense<0.000000e+00> : vector<24x128xf32>
    %310 = tpu.matmul %280, %11, %cst_107 {dimension_numbers = #tpu.dot_dimension_numbers<[1], [0], [0], [1], [0, 0, 1, 1], [], []>} : vector<24x32xf32>, vector<32x128xf32>, vector<24x128xf32> -> vector<24x128xf32>
    %311 = arith.addf %309, %310 : vector<24x128xf32>
    %312 = vector.extract_strided_slice %7 {offsets = [2, 0, 128], sizes = [1, 24, 128], strides = [1, 1, 1]} : vector<8x24x256xf32> to vector<1x24x128xf32>
    %313 = vector.shape_cast %312 : vector<1x24x128xf32> to vector<24x128xf32>
    %cst_108 = arith.constant dense<0.000000e+00> : vector<24x128xf32>
    %314 = tpu.matmul %301, %13, %cst_108 {dimension_numbers = #tpu.dot_dimension_numbers<[1], [0], [0], [1], [0, 0, 1, 1], [], []>} : vector<24x32xf32>, vector<32x128xf32>, vector<24x128xf32> -> vector<24x128xf32>
    %315 = arith.addf %313, %314 : vector<24x128xf32>
    %316 = tpu.concatenate %311, %315 in 1 : vector<24x128xf32>, vector<24x128xf32> -> vector<24x256xf32>
    %317 = math.tanh %316 : vector<24x256xf32>
    %318 = vector.extract_strided_slice %317 {offsets = [0, 0], sizes = [24, 32], strides = [1, 1]} : vector<24x256xf32> to vector<24x32xf32>
    %cst_109 = arith.constant 5.000000e-01 : f32
    %319 = vector.broadcast %cst_109 : f32 to vector<24x32xf32>
    %320 = arith.mulf %319, %318 : vector<24x32xf32>
    %cst_110 = arith.constant 5.000000e-01 : f32
    %321 = vector.broadcast %cst_110 : f32 to vector<24x32xf32>
    %322 = arith.addf %320, %321 : vector<24x32xf32>
    %323 = vector.extract_strided_slice %317 {offsets = [0, 32], sizes = [24, 32], strides = [1, 1]} : vector<24x256xf32> to vector<24x32xf32>
    %cst_111 = arith.constant 5.000000e-01 : f32
    %324 = vector.broadcast %cst_111 : f32 to vector<24x32xf32>
    %325 = arith.mulf %324, %323 : vector<24x32xf32>
    %cst_112 = arith.constant 5.000000e-01 : f32
    %326 = vector.broadcast %cst_112 : f32 to vector<24x32xf32>
    %327 = arith.addf %325, %326 : vector<24x32xf32>
    %328 = vector.extract_strided_slice %317 {offsets = [0, 64], sizes = [24, 32], strides = [1, 1]} : vector<24x256xf32> to vector<24x32xf32>
    %329 = vector.extract_strided_slice %317 {offsets = [0, 96], sizes = [24, 32], strides = [1, 1]} : vector<24x256xf32> to vector<24x32xf32>
    %cst_113 = arith.constant 5.000000e-01 : f32
    %330 = vector.broadcast %cst_113 : f32 to vector<24x32xf32>
    %331 = arith.mulf %330, %329 : vector<24x32xf32>
    %cst_114 = arith.constant 5.000000e-01 : f32
    %332 = vector.broadcast %cst_114 : f32 to vector<24x32xf32>
    %333 = arith.addf %331, %332 : vector<24x32xf32>
    %334 = arith.mulf %327, %278 : vector<24x32xf32>
    %335 = arith.mulf %322, %328 : vector<24x32xf32>
    %336 = arith.addf %334, %335 : vector<24x32xf32>
    %337 = math.tanh %336 : vector<24x32xf32>
    %338 = arith.mulf %333, %337 : vector<24x32xf32>
    %339 = vector.extract_strided_slice %317 {offsets = [0, 128], sizes = [24, 32], strides = [1, 1]} : vector<24x256xf32> to vector<24x32xf32>
    %cst_115 = arith.constant 5.000000e-01 : f32
    %340 = vector.broadcast %cst_115 : f32 to vector<24x32xf32>
    %341 = arith.mulf %340, %339 : vector<24x32xf32>
    %cst_116 = arith.constant 5.000000e-01 : f32
    %342 = vector.broadcast %cst_116 : f32 to vector<24x32xf32>
    %343 = arith.addf %341, %342 : vector<24x32xf32>
    %344 = vector.extract_strided_slice %317 {offsets = [0, 160], sizes = [24, 32], strides = [1, 1]} : vector<24x256xf32> to vector<24x32xf32>
    %cst_117 = arith.constant 5.000000e-01 : f32
    %345 = vector.broadcast %cst_117 : f32 to vector<24x32xf32>
    %346 = arith.mulf %345, %344 : vector<24x32xf32>
    %cst_118 = arith.constant 5.000000e-01 : f32
    %347 = vector.broadcast %cst_118 : f32 to vector<24x32xf32>
    %348 = arith.addf %346, %347 : vector<24x32xf32>
    %349 = vector.extract_strided_slice %317 {offsets = [0, 192], sizes = [24, 32], strides = [1, 1]} : vector<24x256xf32> to vector<24x32xf32>
    %350 = vector.extract_strided_slice %317 {offsets = [0, 224], sizes = [24, 32], strides = [1, 1]} : vector<24x256xf32> to vector<24x32xf32>
    %cst_119 = arith.constant 5.000000e-01 : f32
    %351 = vector.broadcast %cst_119 : f32 to vector<24x32xf32>
    %352 = arith.mulf %351, %350 : vector<24x32xf32>
    %cst_120 = arith.constant 5.000000e-01 : f32
    %353 = vector.broadcast %cst_120 : f32 to vector<24x32xf32>
    %354 = arith.addf %352, %353 : vector<24x32xf32>
    %355 = arith.mulf %348, %299 : vector<24x32xf32>
    %356 = arith.mulf %343, %349 : vector<24x32xf32>
    %357 = arith.addf %355, %356 : vector<24x32xf32>
    %358 = math.tanh %357 : vector<24x32xf32>
    %359 = arith.mulf %354, %358 : vector<24x32xf32>
    %c5_121 = arith.constant 5 : index
    %c0_122 = arith.constant 0 : index
    %c0_123 = arith.constant 0 : index
    %360 = vector.load %arg12[%c5_121, %c0_122, %c0_123] : memref<8x24x64xf32, #tpu.memory_space<vmem>>, vector<1x24x32xf32>
    %361 = vector.shape_cast %360 : vector<1x24x32xf32> to vector<24x32xf32>
    %362 = vector.shape_cast %338 : vector<24x32xf32> to vector<1x24x32xf32>
    tpu.vector_store %arg12[%c5_121, %c0_122, %c0_123], %362 {strides = array<i32>} : memref<8x24x64xf32, #tpu.memory_space<vmem>>, vector<1x24x32xf32>,
    %c2_124 = arith.constant 2 : index
    %c0_125 = arith.constant 0 : index
    %c32_126 = arith.constant 32 : index
    %363 = vector.load %arg12[%c2_124, %c0_125, %c32_126] : memref<8x24x64xf32, #tpu.memory_space<vmem>>, vector<1x24x32xf32>
    %364 = vector.shape_cast %363 : vector<1x24x32xf32> to vector<24x32xf32>
    %365 = vector.shape_cast %359 : vector<24x32xf32> to vector<1x24x32xf32>
    tpu.vector_store %arg12[%c2_124, %c0_125, %c32_126], %365 {strides = array<i32>} : memref<8x24x64xf32, #tpu.memory_space<vmem>>, vector<1x24x32xf32>,
    %366 = vector.extract_strided_slice %7 {offsets = [6, 0, 0], sizes = [1, 24, 128], strides = [1, 1, 1]} : vector<8x24x256xf32> to vector<1x24x128xf32>
    %367 = vector.shape_cast %366 : vector<1x24x128xf32> to vector<24x128xf32>
    %cst_127 = arith.constant dense<0.000000e+00> : vector<24x128xf32>
    %368 = tpu.matmul %338, %11, %cst_127 {dimension_numbers = #tpu.dot_dimension_numbers<[1], [0], [0], [1], [0, 0, 1, 1], [], []>} : vector<24x32xf32>, vector<32x128xf32>, vector<24x128xf32> -> vector<24x128xf32>
    %369 = arith.addf %367, %368 : vector<24x128xf32>
    %370 = vector.extract_strided_slice %7 {offsets = [1, 0, 128], sizes = [1, 24, 128], strides = [1, 1, 1]} : vector<8x24x256xf32> to vector<1x24x128xf32>
    %371 = vector.shape_cast %370 : vector<1x24x128xf32> to vector<24x128xf32>
    %cst_128 = arith.constant dense<0.000000e+00> : vector<24x128xf32>
    %372 = tpu.matmul %359, %13, %cst_128 {dimension_numbers = #tpu.dot_dimension_numbers<[1], [0], [0], [1], [0, 0, 1, 1], [], []>} : vector<24x32xf32>, vector<32x128xf32>, vector<24x128xf32> -> vector<24x128xf32>
    %373 = arith.addf %371, %372 : vector<24x128xf32>
    %374 = tpu.concatenate %369, %373 in 1 : vector<24x128xf32>, vector<24x128xf32> -> vector<24x256xf32>
    %375 = math.tanh %374 : vector<24x256xf32>
    %376 = vector.extract_strided_slice %375 {offsets = [0, 0], sizes = [24, 32], strides = [1, 1]} : vector<24x256xf32> to vector<24x32xf32>
    %cst_129 = arith.constant 5.000000e-01 : f32
    %377 = vector.broadcast %cst_129 : f32 to vector<24x32xf32>
    %378 = arith.mulf %377, %376 : vector<24x32xf32>
    %cst_130 = arith.constant 5.000000e-01 : f32
    %379 = vector.broadcast %cst_130 : f32 to vector<24x32xf32>
    %380 = arith.addf %378, %379 : vector<24x32xf32>
    %381 = vector.extract_strided_slice %375 {offsets = [0, 32], sizes = [24, 32], strides = [1, 1]} : vector<24x256xf32> to vector<24x32xf32>
    %cst_131 = arith.constant 5.000000e-01 : f32
    %382 = vector.broadcast %cst_131 : f32 to vector<24x32xf32>
    %383 = arith.mulf %382, %381 : vector<24x32xf32>
    %cst_132 = arith.constant 5.000000e-01 : f32
    %384 = vector.broadcast %cst_132 : f32 to vector<24x32xf32>
    %385 = arith.addf %383, %384 : vector<24x32xf32>
    %386 = vector.extract_strided_slice %375 {offsets = [0, 64], sizes = [24, 32], strides = [1, 1]} : vector<24x256xf32> to vector<24x32xf32>
    %387 = vector.extract_strided_slice %375 {offsets = [0, 96], sizes = [24, 32], strides = [1, 1]} : vector<24x256xf32> to vector<24x32xf32>
    %cst_133 = arith.constant 5.000000e-01 : f32
    %388 = vector.broadcast %cst_133 : f32 to vector<24x32xf32>
    %389 = arith.mulf %388, %387 : vector<24x32xf32>
    %cst_134 = arith.constant 5.000000e-01 : f32
    %390 = vector.broadcast %cst_134 : f32 to vector<24x32xf32>
    %391 = arith.addf %389, %390 : vector<24x32xf32>
    %392 = arith.mulf %385, %336 : vector<24x32xf32>
    %393 = arith.mulf %380, %386 : vector<24x32xf32>
    %394 = arith.addf %392, %393 : vector<24x32xf32>
    %395 = math.tanh %394 : vector<24x32xf32>
    %396 = arith.mulf %391, %395 : vector<24x32xf32>
    %397 = vector.extract_strided_slice %375 {offsets = [0, 128], sizes = [24, 32], strides = [1, 1]} : vector<24x256xf32> to vector<24x32xf32>
    %cst_135 = arith.constant 5.000000e-01 : f32
    %398 = vector.broadcast %cst_135 : f32 to vector<24x32xf32>
    %399 = arith.mulf %398, %397 : vector<24x32xf32>
    %cst_136 = arith.constant 5.000000e-01 : f32
    %400 = vector.broadcast %cst_136 : f32 to vector<24x32xf32>
    %401 = arith.addf %399, %400 : vector<24x32xf32>
    %402 = vector.extract_strided_slice %375 {offsets = [0, 160], sizes = [24, 32], strides = [1, 1]} : vector<24x256xf32> to vector<24x32xf32>
    %cst_137 = arith.constant 5.000000e-01 : f32
    %403 = vector.broadcast %cst_137 : f32 to vector<24x32xf32>
    %404 = arith.mulf %403, %402 : vector<24x32xf32>
    %cst_138 = arith.constant 5.000000e-01 : f32
    %405 = vector.broadcast %cst_138 : f32 to vector<24x32xf32>
    %406 = arith.addf %404, %405 : vector<24x32xf32>
    %407 = vector.extract_strided_slice %375 {offsets = [0, 192], sizes = [24, 32], strides = [1, 1]} : vector<24x256xf32> to vector<24x32xf32>
    %408 = vector.extract_strided_slice %375 {offsets = [0, 224], sizes = [24, 32], strides = [1, 1]} : vector<24x256xf32> to vector<24x32xf32>
    %cst_139 = arith.constant 5.000000e-01 : f32
    %409 = vector.broadcast %cst_139 : f32 to vector<24x32xf32>
    %410 = arith.mulf %409, %408 : vector<24x32xf32>
    %cst_140 = arith.constant 5.000000e-01 : f32
    %411 = vector.broadcast %cst_140 : f32 to vector<24x32xf32>
    %412 = arith.addf %410, %411 : vector<24x32xf32>
    %413 = arith.mulf %406, %357 : vector<24x32xf32>
    %414 = arith.mulf %401, %407 : vector<24x32xf32>
    %415 = arith.addf %413, %414 : vector<24x32xf32>
    %416 = math.tanh %415 : vector<24x32xf32>
    %417 = arith.mulf %412, %416 : vector<24x32xf32>
    %c6_141 = arith.constant 6 : index
    %c0_142 = arith.constant 0 : index
    %c0_143 = arith.constant 0 : index
    %418 = vector.load %arg12[%c6_141, %c0_142, %c0_143] : memref<8x24x64xf32, #tpu.memory_space<vmem>>, vector<1x24x32xf32>
    %419 = vector.shape_cast %418 : vector<1x24x32xf32> to vector<24x32xf32>
    %420 = vector.shape_cast %396 : vector<24x32xf32> to vector<1x24x32xf32>
    tpu.vector_store %arg12[%c6_141, %c0_142, %c0_143], %420 {strides = array<i32>} : memref<8x24x64xf32, #tpu.memory_space<vmem>>, vector<1x24x32xf32>,
    %c1_144 = arith.constant 1 : index
    %c0_145 = arith.constant 0 : index
    %c32_146 = arith.constant 32 : index
    %421 = vector.load %arg12[%c1_144, %c0_145, %c32_146] : memref<8x24x64xf32, #tpu.memory_space<vmem>>, vector<1x24x32xf32>
    %422 = vector.shape_cast %421 : vector<1x24x32xf32> to vector<24x32xf32>
    %423 = vector.shape_cast %417 : vector<24x32xf32> to vector<1x24x32xf32>
    tpu.vector_store %arg12[%c1_144, %c0_145, %c32_146], %423 {strides = array<i32>} : memref<8x24x64xf32, #tpu.memory_space<vmem>>, vector<1x24x32xf32>,
    %424 = vector.extract_strided_slice %7 {offsets = [7, 0, 0], sizes = [1, 24, 128], strides = [1, 1, 1]} : vector<8x24x256xf32> to vector<1x24x128xf32>
    %425 = vector.shape_cast %424 : vector<1x24x128xf32> to vector<24x128xf32>
    %cst_147 = arith.constant dense<0.000000e+00> : vector<24x128xf32>
    %426 = tpu.matmul %396, %11, %cst_147 {dimension_numbers = #tpu.dot_dimension_numbers<[1], [0], [0], [1], [0, 0, 1, 1], [], []>} : vector<24x32xf32>, vector<32x128xf32>, vector<24x128xf32> -> vector<24x128xf32>
    %427 = arith.addf %425, %426 : vector<24x128xf32>
    %428 = vector.extract_strided_slice %7 {offsets = [0, 0, 128], sizes = [1, 24, 128], strides = [1, 1, 1]} : vector<8x24x256xf32> to vector<1x24x128xf32>
    %429 = vector.shape_cast %428 : vector<1x24x128xf32> to vector<24x128xf32>
    %cst_148 = arith.constant dense<0.000000e+00> : vector<24x128xf32>
    %430 = tpu.matmul %417, %13, %cst_148 {dimension_numbers = #tpu.dot_dimension_numbers<[1], [0], [0], [1], [0, 0, 1, 1], [], []>} : vector<24x32xf32>, vector<32x128xf32>, vector<24x128xf32> -> vector<24x128xf32>
    %431 = arith.addf %429, %430 : vector<24x128xf32>
    %432 = tpu.concatenate %427, %431 in 1 : vector<24x128xf32>, vector<24x128xf32> -> vector<24x256xf32>
    %433 = math.tanh %432 : vector<24x256xf32>
    %434 = vector.extract_strided_slice %433 {offsets = [0, 0], sizes = [24, 32], strides = [1, 1]} : vector<24x256xf32> to vector<24x32xf32>
    %cst_149 = arith.constant 5.000000e-01 : f32
    %435 = vector.broadcast %cst_149 : f32 to vector<24x32xf32>
    %436 = arith.mulf %435, %434 : vector<24x32xf32>
    %cst_150 = arith.constant 5.000000e-01 : f32
    %437 = vector.broadcast %cst_150 : f32 to vector<24x32xf32>
    %438 = arith.addf %436, %437 : vector<24x32xf32>
    %439 = vector.extract_strided_slice %433 {offsets = [0, 32], sizes = [24, 32], strides = [1, 1]} : vector<24x256xf32> to vector<24x32xf32>
    %cst_151 = arith.constant 5.000000e-01 : f32
    %440 = vector.broadcast %cst_151 : f32 to vector<24x32xf32>
    %441 = arith.mulf %440, %439 : vector<24x32xf32>
    %cst_152 = arith.constant 5.000000e-01 : f32
    %442 = vector.broadcast %cst_152 : f32 to vector<24x32xf32>
    %443 = arith.addf %441, %442 : vector<24x32xf32>
    %444 = vector.extract_strided_slice %433 {offsets = [0, 64], sizes = [24, 32], strides = [1, 1]} : vector<24x256xf32> to vector<24x32xf32>
    %445 = vector.extract_strided_slice %433 {offsets = [0, 96], sizes = [24, 32], strides = [1, 1]} : vector<24x256xf32> to vector<24x32xf32>
    %cst_153 = arith.constant 5.000000e-01 : f32
    %446 = vector.broadcast %cst_153 : f32 to vector<24x32xf32>
    %447 = arith.mulf %446, %445 : vector<24x32xf32>
    %cst_154 = arith.constant 5.000000e-01 : f32
    %448 = vector.broadcast %cst_154 : f32 to vector<24x32xf32>
    %449 = arith.addf %447, %448 : vector<24x32xf32>
    %450 = arith.mulf %443, %394 : vector<24x32xf32>
    %451 = arith.mulf %438, %444 : vector<24x32xf32>
    %452 = arith.addf %450, %451 : vector<24x32xf32>
    %453 = math.tanh %452 : vector<24x32xf32>
    %454 = arith.mulf %449, %453 : vector<24x32xf32>
    %455 = vector.extract_strided_slice %433 {offsets = [0, 128], sizes = [24, 32], strides = [1, 1]} : vector<24x256xf32> to vector<24x32xf32>
    %cst_155 = arith.constant 5.000000e-01 : f32
    %456 = vector.broadcast %cst_155 : f32 to vector<24x32xf32>
    %457 = arith.mulf %456, %455 : vector<24x32xf32>
    %cst_156 = arith.constant 5.000000e-01 : f32
    %458 = vector.broadcast %cst_156 : f32 to vector<24x32xf32>
    %459 = arith.addf %457, %458 : vector<24x32xf32>
    %460 = vector.extract_strided_slice %433 {offsets = [0, 160], sizes = [24, 32], strides = [1, 1]} : vector<24x256xf32> to vector<24x32xf32>
    %cst_157 = arith.constant 5.000000e-01 : f32
    %461 = vector.broadcast %cst_157 : f32 to vector<24x32xf32>
    %462 = arith.mulf %461, %460 : vector<24x32xf32>
    %cst_158 = arith.constant 5.000000e-01 : f32
    %463 = vector.broadcast %cst_158 : f32 to vector<24x32xf32>
    %464 = arith.addf %462, %463 : vector<24x32xf32>
    %465 = vector.extract_strided_slice %433 {offsets = [0, 192], sizes = [24, 32], strides = [1, 1]} : vector<24x256xf32> to vector<24x32xf32>
    %466 = vector.extract_strided_slice %433 {offsets = [0, 224], sizes = [24, 32], strides = [1, 1]} : vector<24x256xf32> to vector<24x32xf32>
    %cst_159 = arith.constant 5.000000e-01 : f32
    %467 = vector.broadcast %cst_159 : f32 to vector<24x32xf32>
    %468 = arith.mulf %467, %466 : vector<24x32xf32>
    %cst_160 = arith.constant 5.000000e-01 : f32
    %469 = vector.broadcast %cst_160 : f32 to vector<24x32xf32>
    %470 = arith.addf %468, %469 : vector<24x32xf32>
    %471 = arith.mulf %464, %415 : vector<24x32xf32>
    %472 = arith.mulf %459, %465 : vector<24x32xf32>
    %473 = arith.addf %471, %472 : vector<24x32xf32>
    %474 = math.tanh %473 : vector<24x32xf32>
    %475 = arith.mulf %470, %474 : vector<24x32xf32>
    %c7_161 = arith.constant 7 : index
    %c0_162 = arith.constant 0 : index
    %c0_163 = arith.constant 0 : index
    %476 = vector.load %arg12[%c7_161, %c0_162, %c0_163] : memref<8x24x64xf32, #tpu.memory_space<vmem>>, vector<1x24x32xf32>
    %477 = vector.shape_cast %476 : vector<1x24x32xf32> to vector<24x32xf32>
    %478 = vector.shape_cast %454 : vector<24x32xf32> to vector<1x24x32xf32>
    tpu.vector_store %arg12[%c7_161, %c0_162, %c0_163], %478 {strides = array<i32>} : memref<8x24x64xf32, #tpu.memory_space<vmem>>, vector<1x24x32xf32>,
    %c0_164 = arith.constant 0 : index
    %c0_165 = arith.constant 0 : index
    %c32_166 = arith.constant 32 : index
    %479 = vector.load %arg12[%c0_164, %c0_165, %c32_166] : memref<8x24x64xf32, #tpu.memory_space<vmem>>, vector<1x24x32xf32>
    %480 = vector.shape_cast %479 : vector<1x24x32xf32> to vector<24x32xf32>
    %481 = vector.shape_cast %475 : vector<24x32xf32> to vector<1x24x32xf32>
    tpu.vector_store %arg12[%c0_164, %c0_165, %c32_166], %481 {strides = array<i32>} : memref<8x24x64xf32, #tpu.memory_space<vmem>>, vector<1x24x32xf32>,
    %c0_167 = arith.constant 0 : index
    %c0_168 = arith.constant 0 : index
    %c0_169 = arith.constant 0 : index
    %482 = vector.load %arg12[%c0_167, %c0_168, %c0_169] : memref<8x24x64xf32, #tpu.memory_space<vmem>>, vector<8x24x64xf32>
    %483 = vector.shape_cast %482 : vector<8x24x64xf32> to vector<192x64xf32>
    %c0_170 = arith.constant 0 : index
    %c0_171 = arith.constant 0 : index
    %c0_172 = arith.constant 0 : index
    %484 = vector.load %arg4[%c0_170, %c0_171, %c0_172] : memref<1x64x256xf32, #tpu.memory_space<vmem>>, vector<1x64x256xf32>
    %485 = vector.shape_cast %484 : vector<1x64x256xf32> to vector<64x256xf32>
    %cst_173 = arith.constant dense<0.000000e+00> : vector<192x256xf32>
    %486 = tpu.matmul %483, %485, %cst_173 {dimension_numbers = #tpu.dot_dimension_numbers<[1], [0], [0], [1], [0, 0, 1, 1], [], []>} : vector<192x64xf32>, vector<64x256xf32>, vector<192x256xf32> -> vector<192x256xf32>
    %c0_174 = arith.constant 0 : index
    %c0_175 = arith.constant 0 : index
    %c0_176 = arith.constant 0 : index
    %487 = vector.load %arg5[%c0_174, %c0_175, %c0_176] : memref<1x1x256xf32, #tpu.memory_space<vmem>>, vector<1x1x256xf32>
    %488 = vector.shape_cast %487 : vector<1x1x256xf32> to vector<1x256xf32>
    %489 = vector.broadcast %488 : vector<1x256xf32> to vector<192x256xf32>
    %490 = arith.addf %486, %489 : vector<192x256xf32>
    %491 = vector.shape_cast %490 : vector<192x256xf32> to vector<8x24x256xf32>
    %c1_177 = arith.constant 1 : index
    %c0_178 = arith.constant 0 : index
    %c0_179 = arith.constant 0 : index
    %c0_180 = arith.constant 0 : index
    %492 = vector.load %arg6[%c1_177, %c0_178, %c0_179, %c0_180] : memref<2x2x32x128xf32, #tpu.memory_space<vmem>>, vector<1x2x32x128xf32>
    %493 = vector.shape_cast %492 : vector<1x2x32x128xf32> to vector<2x32x128xf32>
    %494 = vector.extract_strided_slice %493 {offsets = [0, 0, 0], sizes = [1, 32, 128], strides = [1, 1, 1]} : vector<2x32x128xf32> to vector<1x32x128xf32>
    %495 = vector.shape_cast %494 : vector<1x32x128xf32> to vector<32x128xf32>
    %496 = vector.extract_strided_slice %493 {offsets = [1, 0, 0], sizes = [1, 32, 128], strides = [1, 1, 1]} : vector<2x32x128xf32> to vector<1x32x128xf32>
    %497 = vector.shape_cast %496 : vector<1x32x128xf32> to vector<32x128xf32>
    %cst_181 = arith.constant 0.000000e+00 : f32
    %498 = vector.broadcast %cst_181 : f32 to vector<24x32xf32>
    %cst_182 = arith.constant 0.000000e+00 : f32
    %499 = vector.broadcast %cst_182 : f32 to vector<24x32xf32>
    %cst_183 = arith.constant 0.000000e+00 : f32
    %500 = vector.broadcast %cst_183 : f32 to vector<24x32xf32>
    %cst_184 = arith.constant 0.000000e+00 : f32
    %501 = vector.broadcast %cst_184 : f32 to vector<24x32xf32>
    %502 = vector.extract_strided_slice %491 {offsets = [0, 0, 0], sizes = [1, 24, 128], strides = [1, 1, 1]} : vector<8x24x256xf32> to vector<1x24x128xf32>
    %503 = vector.shape_cast %502 : vector<1x24x128xf32> to vector<24x128xf32>
    %cst_185 = arith.constant dense<0.000000e+00> : vector<24x128xf32>
    %504 = tpu.matmul %498, %495, %cst_185 {dimension_numbers = #tpu.dot_dimension_numbers<[1], [0], [0], [1], [0, 0, 1, 1], [], []>} : vector<24x32xf32>, vector<32x128xf32>, vector<24x128xf32> -> vector<24x128xf32>
    %505 = arith.addf %503, %504 : vector<24x128xf32>
    %506 = vector.extract_strided_slice %491 {offsets = [7, 0, 128], sizes = [1, 24, 128], strides = [1, 1, 1]} : vector<8x24x256xf32> to vector<1x24x128xf32>
    %507 = vector.shape_cast %506 : vector<1x24x128xf32> to vector<24x128xf32>
    %cst_186 = arith.constant dense<0.000000e+00> : vector<24x128xf32>
    %508 = tpu.matmul %500, %497, %cst_186 {dimension_numbers = #tpu.dot_dimension_numbers<[1], [0], [0], [1], [0, 0, 1, 1], [], []>} : vector<24x32xf32>, vector<32x128xf32>, vector<24x128xf32> -> vector<24x128xf32>
    %509 = arith.addf %507, %508 : vector<24x128xf32>
    %510 = tpu.concatenate %505, %509 in 1 : vector<24x128xf32>, vector<24x128xf32> -> vector<24x256xf32>
    %511 = math.tanh %510 : vector<24x256xf32>
    %512 = vector.extract_strided_slice %511 {offsets = [0, 0], sizes = [24, 32], strides = [1, 1]} : vector<24x256xf32> to vector<24x32xf32>
    %cst_187 = arith.constant 5.000000e-01 : f32
    %513 = vector.broadcast %cst_187 : f32 to vector<24x32xf32>
    %514 = arith.mulf %513, %512 : vector<24x32xf32>
    %cst_188 = arith.constant 5.000000e-01 : f32
    %515 = vector.broadcast %cst_188 : f32 to vector<24x32xf32>
    %516 = arith.addf %514, %515 : vector<24x32xf32>
    %517 = vector.extract_strided_slice %511 {offsets = [0, 32], sizes = [24, 32], strides = [1, 1]} : vector<24x256xf32> to vector<24x32xf32>
    %cst_189 = arith.constant 5.000000e-01 : f32
    %518 = vector.broadcast %cst_189 : f32 to vector<24x32xf32>
    %519 = arith.mulf %518, %517 : vector<24x32xf32>
    %cst_190 = arith.constant 5.000000e-01 : f32
    %520 = vector.broadcast %cst_190 : f32 to vector<24x32xf32>
    %521 = arith.addf %519, %520 : vector<24x32xf32>
    %522 = vector.extract_strided_slice %511 {offsets = [0, 64], sizes = [24, 32], strides = [1, 1]} : vector<24x256xf32> to vector<24x32xf32>
    %523 = vector.extract_strided_slice %511 {offsets = [0, 96], sizes = [24, 32], strides = [1, 1]} : vector<24x256xf32> to vector<24x32xf32>
    %cst_191 = arith.constant 5.000000e-01 : f32
    %524 = vector.broadcast %cst_191 : f32 to vector<24x32xf32>
    %525 = arith.mulf %524, %523 : vector<24x32xf32>
    %cst_192 = arith.constant 5.000000e-01 : f32
    %526 = vector.broadcast %cst_192 : f32 to vector<24x32xf32>
    %527 = arith.addf %525, %526 : vector<24x32xf32>
    %528 = arith.mulf %521, %499 : vector<24x32xf32>
    %529 = arith.mulf %516, %522 : vector<24x32xf32>
    %530 = arith.addf %528, %529 : vector<24x32xf32>
    %531 = math.tanh %530 : vector<24x32xf32>
    %532 = arith.mulf %527, %531 : vector<24x32xf32>
    %533 = vector.extract_strided_slice %511 {offsets = [0, 128], sizes = [24, 32], strides = [1, 1]} : vector<24x256xf32> to vector<24x32xf32>
    %cst_193 = arith.constant 5.000000e-01 : f32
    %534 = vector.broadcast %cst_193 : f32 to vector<24x32xf32>
    %535 = arith.mulf %534, %533 : vector<24x32xf32>
    %cst_194 = arith.constant 5.000000e-01 : f32
    %536 = vector.broadcast %cst_194 : f32 to vector<24x32xf32>
    %537 = arith.addf %535, %536 : vector<24x32xf32>
    %538 = vector.extract_strided_slice %511 {offsets = [0, 160], sizes = [24, 32], strides = [1, 1]} : vector<24x256xf32> to vector<24x32xf32>
    %cst_195 = arith.constant 5.000000e-01 : f32
    %539 = vector.broadcast %cst_195 : f32 to vector<24x32xf32>
    %540 = arith.mulf %539, %538 : vector<24x32xf32>
    %cst_196 = arith.constant 5.000000e-01 : f32
    %541 = vector.broadcast %cst_196 : f32 to vector<24x32xf32>
    %542 = arith.addf %540, %541 : vector<24x32xf32>
    %543 = vector.extract_strided_slice %511 {offsets = [0, 192], sizes = [24, 32], strides = [1, 1]} : vector<24x256xf32> to vector<24x32xf32>
    %544 = vector.extract_strided_slice %511 {offsets = [0, 224], sizes = [24, 32], strides = [1, 1]} : vector<24x256xf32> to vector<24x32xf32>
    %cst_197 = arith.constant 5.000000e-01 : f32
    %545 = vector.broadcast %cst_197 : f32 to vector<24x32xf32>
    %546 = arith.mulf %545, %544 : vector<24x32xf32>
    %cst_198 = arith.constant 5.000000e-01 : f32
    %547 = vector.broadcast %cst_198 : f32 to vector<24x32xf32>
    %548 = arith.addf %546, %547 : vector<24x32xf32>
    %549 = arith.mulf %542, %501 : vector<24x32xf32>
    %550 = arith.mulf %537, %543 : vector<24x32xf32>
    %551 = arith.addf %549, %550 : vector<24x32xf32>
    %552 = math.tanh %551 : vector<24x32xf32>
    %553 = arith.mulf %548, %552 : vector<24x32xf32>
    %c0_199 = arith.constant 0 : index
    %c0_200 = arith.constant 0 : index
    %c0_201 = arith.constant 0 : index
    %554 = vector.load %arg12[%c0_199, %c0_200, %c0_201] : memref<8x24x64xf32, #tpu.memory_space<vmem>>, vector<1x24x32xf32>
    %555 = vector.shape_cast %554 : vector<1x24x32xf32> to vector<24x32xf32>
    %556 = vector.shape_cast %532 : vector<24x32xf32> to vector<1x24x32xf32>
    tpu.vector_store %arg12[%c0_199, %c0_200, %c0_201], %556 {strides = array<i32>} : memref<8x24x64xf32, #tpu.memory_space<vmem>>, vector<1x24x32xf32>,
    %c7_202 = arith.constant 7 : index
    %c0_203 = arith.constant 0 : index
    %c32_204 = arith.constant 32 : index
    %557 = vector.load %arg12[%c7_202, %c0_203, %c32_204] : memref<8x24x64xf32, #tpu.memory_space<vmem>>, vector<1x24x32xf32>
    %558 = vector.shape_cast %557 : vector<1x24x32xf32> to vector<24x32xf32>
    %559 = vector.shape_cast %553 : vector<24x32xf32> to vector<1x24x32xf32>
    tpu.vector_store %arg12[%c7_202, %c0_203, %c32_204], %559 {strides = array<i32>} : memref<8x24x64xf32, #tpu.memory_space<vmem>>, vector<1x24x32xf32>,
    %560 = vector.extract_strided_slice %491 {offsets = [1, 0, 0], sizes = [1, 24, 128], strides = [1, 1, 1]} : vector<8x24x256xf32> to vector<1x24x128xf32>
    %561 = vector.shape_cast %560 : vector<1x24x128xf32> to vector<24x128xf32>
    %cst_205 = arith.constant dense<0.000000e+00> : vector<24x128xf32>
    %562 = tpu.matmul %532, %495, %cst_205 {dimension_numbers = #tpu.dot_dimension_numbers<[1], [0], [0], [1], [0, 0, 1, 1], [], []>} : vector<24x32xf32>, vector<32x128xf32>, vector<24x128xf32> -> vector<24x128xf32>
    %563 = arith.addf %561, %562 : vector<24x128xf32>
    %564 = vector.extract_strided_slice %491 {offsets = [6, 0, 128], sizes = [1, 24, 128], strides = [1, 1, 1]} : vector<8x24x256xf32> to vector<1x24x128xf32>
    %565 = vector.shape_cast %564 : vector<1x24x128xf32> to vector<24x128xf32>
    %cst_206 = arith.constant dense<0.000000e+00> : vector<24x128xf32>
    %566 = tpu.matmul %553, %497, %cst_206 {dimension_numbers = #tpu.dot_dimension_numbers<[1], [0], [0], [1], [0, 0, 1, 1], [], []>} : vector<24x32xf32>, vector<32x128xf32>, vector<24x128xf32> -> vector<24x128xf32>
    %567 = arith.addf %565, %566 : vector<24x128xf32>
    %568 = tpu.concatenate %563, %567 in 1 : vector<24x128xf32>, vector<24x128xf32> -> vector<24x256xf32>
    %569 = math.tanh %568 : vector<24x256xf32>
    %570 = vector.extract_strided_slice %569 {offsets = [0, 0], sizes = [24, 32], strides = [1, 1]} : vector<24x256xf32> to vector<24x32xf32>
    %cst_207 = arith.constant 5.000000e-01 : f32
    %571 = vector.broadcast %cst_207 : f32 to vector<24x32xf32>
    %572 = arith.mulf %571, %570 : vector<24x32xf32>
    %cst_208 = arith.constant 5.000000e-01 : f32
    %573 = vector.broadcast %cst_208 : f32 to vector<24x32xf32>
    %574 = arith.addf %572, %573 : vector<24x32xf32>
    %575 = vector.extract_strided_slice %569 {offsets = [0, 32], sizes = [24, 32], strides = [1, 1]} : vector<24x256xf32> to vector<24x32xf32>
    %cst_209 = arith.constant 5.000000e-01 : f32
    %576 = vector.broadcast %cst_209 : f32 to vector<24x32xf32>
    %577 = arith.mulf %576, %575 : vector<24x32xf32>
    %cst_210 = arith.constant 5.000000e-01 : f32
    %578 = vector.broadcast %cst_210 : f32 to vector<24x32xf32>
    %579 = arith.addf %577, %578 : vector<24x32xf32>
    %580 = vector.extract_strided_slice %569 {offsets = [0, 64], sizes = [24, 32], strides = [1, 1]} : vector<24x256xf32> to vector<24x32xf32>
    %581 = vector.extract_strided_slice %569 {offsets = [0, 96], sizes = [24, 32], strides = [1, 1]} : vector<24x256xf32> to vector<24x32xf32>
    %cst_211 = arith.constant 5.000000e-01 : f32
    %582 = vector.broadcast %cst_211 : f32 to vector<24x32xf32>
    %583 = arith.mulf %582, %581 : vector<24x32xf32>
    %cst_212 = arith.constant 5.000000e-01 : f32
    %584 = vector.broadcast %cst_212 : f32 to vector<24x32xf32>
    %585 = arith.addf %583, %584 : vector<24x32xf32>
    %586 = arith.mulf %579, %530 : vector<24x32xf32>
    %587 = arith.mulf %574, %580 : vector<24x32xf32>
    %588 = arith.addf %586, %587 : vector<24x32xf32>
    %589 = math.tanh %588 : vector<24x32xf32>
    %590 = arith.mulf %585, %589 : vector<24x32xf32>
    %591 = vector.extract_strided_slice %569 {offsets = [0, 128], sizes = [24, 32], strides = [1, 1]} : vector<24x256xf32> to vector<24x32xf32>
    %cst_213 = arith.constant 5.000000e-01 : f32
    %592 = vector.broadcast %cst_213 : f32 to vector<24x32xf32>
    %593 = arith.mulf %592, %591 : vector<24x32xf32>
    %cst_214 = arith.constant 5.000000e-01 : f32
    %594 = vector.broadcast %cst_214 : f32 to vector<24x32xf32>
    %595 = arith.addf %593, %594 : vector<24x32xf32>
    %596 = vector.extract_strided_slice %569 {offsets = [0, 160], sizes = [24, 32], strides = [1, 1]} : vector<24x256xf32> to vector<24x32xf32>
    %cst_215 = arith.constant 5.000000e-01 : f32
    %597 = vector.broadcast %cst_215 : f32 to vector<24x32xf32>
    %598 = arith.mulf %597, %596 : vector<24x32xf32>
    %cst_216 = arith.constant 5.000000e-01 : f32
    %599 = vector.broadcast %cst_216 : f32 to vector<24x32xf32>
    %600 = arith.addf %598, %599 : vector<24x32xf32>
    %601 = vector.extract_strided_slice %569 {offsets = [0, 192], sizes = [24, 32], strides = [1, 1]} : vector<24x256xf32> to vector<24x32xf32>
    %602 = vector.extract_strided_slice %569 {offsets = [0, 224], sizes = [24, 32], strides = [1, 1]} : vector<24x256xf32> to vector<24x32xf32>
    %cst_217 = arith.constant 5.000000e-01 : f32
    %603 = vector.broadcast %cst_217 : f32 to vector<24x32xf32>
    %604 = arith.mulf %603, %602 : vector<24x32xf32>
    %cst_218 = arith.constant 5.000000e-01 : f32
    %605 = vector.broadcast %cst_218 : f32 to vector<24x32xf32>
    %606 = arith.addf %604, %605 : vector<24x32xf32>
    %607 = arith.mulf %600, %551 : vector<24x32xf32>
    %608 = arith.mulf %595, %601 : vector<24x32xf32>
    %609 = arith.addf %607, %608 : vector<24x32xf32>
    %610 = math.tanh %609 : vector<24x32xf32>
    %611 = arith.mulf %606, %610 : vector<24x32xf32>
    %c1_219 = arith.constant 1 : index
    %c0_220 = arith.constant 0 : index
    %c0_221 = arith.constant 0 : index
    %612 = vector.load %arg12[%c1_219, %c0_220, %c0_221] : memref<8x24x64xf32, #tpu.memory_space<vmem>>, vector<1x24x32xf32>
    %613 = vector.shape_cast %612 : vector<1x24x32xf32> to vector<24x32xf32>
    %614 = vector.shape_cast %590 : vector<24x32xf32> to vector<1x24x32xf32>
    tpu.vector_store %arg12[%c1_219, %c0_220, %c0_221], %614 {strides = array<i32>} : memref<8x24x64xf32, #tpu.memory_space<vmem>>, vector<1x24x32xf32>,
    %c6_222 = arith.constant 6 : index
    %c0_223 = arith.constant 0 : index
    %c32_224 = arith.constant 32 : index
    %615 = vector.load %arg12[%c6_222, %c0_223, %c32_224] : memref<8x24x64xf32, #tpu.memory_space<vmem>>, vector<1x24x32xf32>
    %616 = vector.shape_cast %615 : vector<1x24x32xf32> to vector<24x32xf32>
    %617 = vector.shape_cast %611 : vector<24x32xf32> to vector<1x24x32xf32>
    tpu.vector_store %arg12[%c6_222, %c0_223, %c32_224], %617 {strides = array<i32>} : memref<8x24x64xf32, #tpu.memory_space<vmem>>, vector<1x24x32xf32>,
    %618 = vector.extract_strided_slice %491 {offsets = [2, 0, 0], sizes = [1, 24, 128], strides = [1, 1, 1]} : vector<8x24x256xf32> to vector<1x24x128xf32>
    %619 = vector.shape_cast %618 : vector<1x24x128xf32> to vector<24x128xf32>
    %cst_225 = arith.constant dense<0.000000e+00> : vector<24x128xf32>
    %620 = tpu.matmul %590, %495, %cst_225 {dimension_numbers = #tpu.dot_dimension_numbers<[1], [0], [0], [1], [0, 0, 1, 1], [], []>} : vector<24x32xf32>, vector<32x128xf32>, vector<24x128xf32> -> vector<24x128xf32>
    %621 = arith.addf %619, %620 : vector<24x128xf32>
    %622 = vector.extract_strided_slice %491 {offsets = [5, 0, 128], sizes = [1, 24, 128], strides = [1, 1, 1]} : vector<8x24x256xf32> to vector<1x24x128xf32>
    %623 = vector.shape_cast %622 : vector<1x24x128xf32> to vector<24x128xf32>
    %cst_226 = arith.constant dense<0.000000e+00> : vector<24x128xf32>
    %624 = tpu.matmul %611, %497, %cst_226 {dimension_numbers = #tpu.dot_dimension_numbers<[1], [0], [0], [1], [0, 0, 1, 1], [], []>} : vector<24x32xf32>, vector<32x128xf32>, vector<24x128xf32> -> vector<24x128xf32>
    %625 = arith.addf %623, %624 : vector<24x128xf32>
    %626 = tpu.concatenate %621, %625 in 1 : vector<24x128xf32>, vector<24x128xf32> -> vector<24x256xf32>
    %627 = math.tanh %626 : vector<24x256xf32>
    %628 = vector.extract_strided_slice %627 {offsets = [0, 0], sizes = [24, 32], strides = [1, 1]} : vector<24x256xf32> to vector<24x32xf32>
    %cst_227 = arith.constant 5.000000e-01 : f32
    %629 = vector.broadcast %cst_227 : f32 to vector<24x32xf32>
    %630 = arith.mulf %629, %628 : vector<24x32xf32>
    %cst_228 = arith.constant 5.000000e-01 : f32
    %631 = vector.broadcast %cst_228 : f32 to vector<24x32xf32>
    %632 = arith.addf %630, %631 : vector<24x32xf32>
    %633 = vector.extract_strided_slice %627 {offsets = [0, 32], sizes = [24, 32], strides = [1, 1]} : vector<24x256xf32> to vector<24x32xf32>
    %cst_229 = arith.constant 5.000000e-01 : f32
    %634 = vector.broadcast %cst_229 : f32 to vector<24x32xf32>
    %635 = arith.mulf %634, %633 : vector<24x32xf32>
    %cst_230 = arith.constant 5.000000e-01 : f32
    %636 = vector.broadcast %cst_230 : f32 to vector<24x32xf32>
    %637 = arith.addf %635, %636 : vector<24x32xf32>
    %638 = vector.extract_strided_slice %627 {offsets = [0, 64], sizes = [24, 32], strides = [1, 1]} : vector<24x256xf32> to vector<24x32xf32>
    %639 = vector.extract_strided_slice %627 {offsets = [0, 96], sizes = [24, 32], strides = [1, 1]} : vector<24x256xf32> to vector<24x32xf32>
    %cst_231 = arith.constant 5.000000e-01 : f32
    %640 = vector.broadcast %cst_231 : f32 to vector<24x32xf32>
    %641 = arith.mulf %640, %639 : vector<24x32xf32>
    %cst_232 = arith.constant 5.000000e-01 : f32
    %642 = vector.broadcast %cst_232 : f32 to vector<24x32xf32>
    %643 = arith.addf %641, %642 : vector<24x32xf32>
    %644 = arith.mulf %637, %588 : vector<24x32xf32>
    %645 = arith.mulf %632, %638 : vector<24x32xf32>
    %646 = arith.addf %644, %645 : vector<24x32xf32>
    %647 = math.tanh %646 : vector<24x32xf32>
    %648 = arith.mulf %643, %647 : vector<24x32xf32>
    %649 = vector.extract_strided_slice %627 {offsets = [0, 128], sizes = [24, 32], strides = [1, 1]} : vector<24x256xf32> to vector<24x32xf32>
    %cst_233 = arith.constant 5.000000e-01 : f32
    %650 = vector.broadcast %cst_233 : f32 to vector<24x32xf32>
    %651 = arith.mulf %650, %649 : vector<24x32xf32>
    %cst_234 = arith.constant 5.000000e-01 : f32
    %652 = vector.broadcast %cst_234 : f32 to vector<24x32xf32>
    %653 = arith.addf %651, %652 : vector<24x32xf32>
    %654 = vector.extract_strided_slice %627 {offsets = [0, 160], sizes = [24, 32], strides = [1, 1]} : vector<24x256xf32> to vector<24x32xf32>
    %cst_235 = arith.constant 5.000000e-01 : f32
    %655 = vector.broadcast %cst_235 : f32 to vector<24x32xf32>
    %656 = arith.mulf %655, %654 : vector<24x32xf32>
    %cst_236 = arith.constant 5.000000e-01 : f32
    %657 = vector.broadcast %cst_236 : f32 to vector<24x32xf32>
    %658 = arith.addf %656, %657 : vector<24x32xf32>
    %659 = vector.extract_strided_slice %627 {offsets = [0, 192], sizes = [24, 32], strides = [1, 1]} : vector<24x256xf32> to vector<24x32xf32>
    %660 = vector.extract_strided_slice %627 {offsets = [0, 224], sizes = [24, 32], strides = [1, 1]} : vector<24x256xf32> to vector<24x32xf32>
    %cst_237 = arith.constant 5.000000e-01 : f32
    %661 = vector.broadcast %cst_237 : f32 to vector<24x32xf32>
    %662 = arith.mulf %661, %660 : vector<24x32xf32>
    %cst_238 = arith.constant 5.000000e-01 : f32
    %663 = vector.broadcast %cst_238 : f32 to vector<24x32xf32>
    %664 = arith.addf %662, %663 : vector<24x32xf32>
    %665 = arith.mulf %658, %609 : vector<24x32xf32>
    %666 = arith.mulf %653, %659 : vector<24x32xf32>
    %667 = arith.addf %665, %666 : vector<24x32xf32>
    %668 = math.tanh %667 : vector<24x32xf32>
    %669 = arith.mulf %664, %668 : vector<24x32xf32>
    %c2_239 = arith.constant 2 : index
    %c0_240 = arith.constant 0 : index
    %c0_241 = arith.constant 0 : index
    %670 = vector.load %arg12[%c2_239, %c0_240, %c0_241] : memref<8x24x64xf32, #tpu.memory_space<vmem>>, vector<1x24x32xf32>
    %671 = vector.shape_cast %670 : vector<1x24x32xf32> to vector<24x32xf32>
    %672 = vector.shape_cast %648 : vector<24x32xf32> to vector<1x24x32xf32>
    tpu.vector_store %arg12[%c2_239, %c0_240, %c0_241], %672 {strides = array<i32>} : memref<8x24x64xf32, #tpu.memory_space<vmem>>, vector<1x24x32xf32>,
    %c5_242 = arith.constant 5 : index
    %c0_243 = arith.constant 0 : index
    %c32_244 = arith.constant 32 : index
    %673 = vector.load %arg12[%c5_242, %c0_243, %c32_244] : memref<8x24x64xf32, #tpu.memory_space<vmem>>, vector<1x24x32xf32>
    %674 = vector.shape_cast %673 : vector<1x24x32xf32> to vector<24x32xf32>
    %675 = vector.shape_cast %669 : vector<24x32xf32> to vector<1x24x32xf32>
    tpu.vector_store %arg12[%c5_242, %c0_243, %c32_244], %675 {strides = array<i32>} : memref<8x24x64xf32, #tpu.memory_space<vmem>>, vector<1x24x32xf32>,
    %676 = vector.extract_strided_slice %491 {offsets = [3, 0, 0], sizes = [1, 24, 128], strides = [1, 1, 1]} : vector<8x24x256xf32> to vector<1x24x128xf32>
    %677 = vector.shape_cast %676 : vector<1x24x128xf32> to vector<24x128xf32>
    %cst_245 = arith.constant dense<0.000000e+00> : vector<24x128xf32>
    %678 = tpu.matmul %648, %495, %cst_245 {dimension_numbers = #tpu.dot_dimension_numbers<[1], [0], [0], [1], [0, 0, 1, 1], [], []>} : vector<24x32xf32>, vector<32x128xf32>, vector<24x128xf32> -> vector<24x128xf32>
    %679 = arith.addf %677, %678 : vector<24x128xf32>
    %680 = vector.extract_strided_slice %491 {offsets = [4, 0, 128], sizes = [1, 24, 128], strides = [1, 1, 1]} : vector<8x24x256xf32> to vector<1x24x128xf32>
    %681 = vector.shape_cast %680 : vector<1x24x128xf32> to vector<24x128xf32>
    %cst_246 = arith.constant dense<0.000000e+00> : vector<24x128xf32>
    %682 = tpu.matmul %669, %497, %cst_246 {dimension_numbers = #tpu.dot_dimension_numbers<[1], [0], [0], [1], [0, 0, 1, 1], [], []>} : vector<24x32xf32>, vector<32x128xf32>, vector<24x128xf32> -> vector<24x128xf32>
    %683 = arith.addf %681, %682 : vector<24x128xf32>
    %684 = tpu.concatenate %679, %683 in 1 : vector<24x128xf32>, vector<24x128xf32> -> vector<24x256xf32>
    %685 = math.tanh %684 : vector<24x256xf32>
    %686 = vector.extract_strided_slice %685 {offsets = [0, 0], sizes = [24, 32], strides = [1, 1]} : vector<24x256xf32> to vector<24x32xf32>
    %cst_247 = arith.constant 5.000000e-01 : f32
    %687 = vector.broadcast %cst_247 : f32 to vector<24x32xf32>
    %688 = arith.mulf %687, %686 : vector<24x32xf32>
    %cst_248 = arith.constant 5.000000e-01 : f32
    %689 = vector.broadcast %cst_248 : f32 to vector<24x32xf32>
    %690 = arith.addf %688, %689 : vector<24x32xf32>
    %691 = vector.extract_strided_slice %685 {offsets = [0, 32], sizes = [24, 32], strides = [1, 1]} : vector<24x256xf32> to vector<24x32xf32>
    %cst_249 = arith.constant 5.000000e-01 : f32
    %692 = vector.broadcast %cst_249 : f32 to vector<24x32xf32>
    %693 = arith.mulf %692, %691 : vector<24x32xf32>
    %cst_250 = arith.constant 5.000000e-01 : f32
    %694 = vector.broadcast %cst_250 : f32 to vector<24x32xf32>
    %695 = arith.addf %693, %694 : vector<24x32xf32>
    %696 = vector.extract_strided_slice %685 {offsets = [0, 64], sizes = [24, 32], strides = [1, 1]} : vector<24x256xf32> to vector<24x32xf32>
    %697 = vector.extract_strided_slice %685 {offsets = [0, 96], sizes = [24, 32], strides = [1, 1]} : vector<24x256xf32> to vector<24x32xf32>
    %cst_251 = arith.constant 5.000000e-01 : f32
    %698 = vector.broadcast %cst_251 : f32 to vector<24x32xf32>
    %699 = arith.mulf %698, %697 : vector<24x32xf32>
    %cst_252 = arith.constant 5.000000e-01 : f32
    %700 = vector.broadcast %cst_252 : f32 to vector<24x32xf32>
    %701 = arith.addf %699, %700 : vector<24x32xf32>
    %702 = arith.mulf %695, %646 : vector<24x32xf32>
    %703 = arith.mulf %690, %696 : vector<24x32xf32>
    %704 = arith.addf %702, %703 : vector<24x32xf32>
    %705 = math.tanh %704 : vector<24x32xf32>
    %706 = arith.mulf %701, %705 : vector<24x32xf32>
    %707 = vector.extract_strided_slice %685 {offsets = [0, 128], sizes = [24, 32], strides = [1, 1]} : vector<24x256xf32> to vector<24x32xf32>
    %cst_253 = arith.constant 5.000000e-01 : f32
    %708 = vector.broadcast %cst_253 : f32 to vector<24x32xf32>
    %709 = arith.mulf %708, %707 : vector<24x32xf32>
    %cst_254 = arith.constant 5.000000e-01 : f32
    %710 = vector.broadcast %cst_254 : f32 to vector<24x32xf32>
    %711 = arith.addf %709, %710 : vector<24x32xf32>
    %712 = vector.extract_strided_slice %685 {offsets = [0, 160], sizes = [24, 32], strides = [1, 1]} : vector<24x256xf32> to vector<24x32xf32>
    %cst_255 = arith.constant 5.000000e-01 : f32
    %713 = vector.broadcast %cst_255 : f32 to vector<24x32xf32>
    %714 = arith.mulf %713, %712 : vector<24x32xf32>
    %cst_256 = arith.constant 5.000000e-01 : f32
    %715 = vector.broadcast %cst_256 : f32 to vector<24x32xf32>
    %716 = arith.addf %714, %715 : vector<24x32xf32>
    %717 = vector.extract_strided_slice %685 {offsets = [0, 192], sizes = [24, 32], strides = [1, 1]} : vector<24x256xf32> to vector<24x32xf32>
    %718 = vector.extract_strided_slice %685 {offsets = [0, 224], sizes = [24, 32], strides = [1, 1]} : vector<24x256xf32> to vector<24x32xf32>
    %cst_257 = arith.constant 5.000000e-01 : f32
    %719 = vector.broadcast %cst_257 : f32 to vector<24x32xf32>
    %720 = arith.mulf %719, %718 : vector<24x32xf32>
    %cst_258 = arith.constant 5.000000e-01 : f32
    %721 = vector.broadcast %cst_258 : f32 to vector<24x32xf32>
    %722 = arith.addf %720, %721 : vector<24x32xf32>
    %723 = arith.mulf %716, %667 : vector<24x32xf32>
    %724 = arith.mulf %711, %717 : vector<24x32xf32>
    %725 = arith.addf %723, %724 : vector<24x32xf32>
    %726 = math.tanh %725 : vector<24x32xf32>
    %727 = arith.mulf %722, %726 : vector<24x32xf32>
    %c3_259 = arith.constant 3 : index
    %c0_260 = arith.constant 0 : index
    %c0_261 = arith.constant 0 : index
    %728 = vector.load %arg12[%c3_259, %c0_260, %c0_261] : memref<8x24x64xf32, #tpu.memory_space<vmem>>, vector<1x24x32xf32>
    %729 = vector.shape_cast %728 : vector<1x24x32xf32> to vector<24x32xf32>
    %730 = vector.shape_cast %706 : vector<24x32xf32> to vector<1x24x32xf32>
    tpu.vector_store %arg12[%c3_259, %c0_260, %c0_261], %730 {strides = array<i32>} : memref<8x24x64xf32, #tpu.memory_space<vmem>>, vector<1x24x32xf32>,
    %c4_262 = arith.constant 4 : index
    %c0_263 = arith.constant 0 : index
    %c32_264 = arith.constant 32 : index
    %731 = vector.load %arg12[%c4_262, %c0_263, %c32_264] : memref<8x24x64xf32, #tpu.memory_space<vmem>>, vector<1x24x32xf32>
    %732 = vector.shape_cast %731 : vector<1x24x32xf32> to vector<24x32xf32>
    %733 = vector.shape_cast %727 : vector<24x32xf32> to vector<1x24x32xf32>
    tpu.vector_store %arg12[%c4_262, %c0_263, %c32_264], %733 {strides = array<i32>} : memref<8x24x64xf32, #tpu.memory_space<vmem>>, vector<1x24x32xf32>,
    %734 = vector.extract_strided_slice %491 {offsets = [4, 0, 0], sizes = [1, 24, 128], strides = [1, 1, 1]} : vector<8x24x256xf32> to vector<1x24x128xf32>
    %735 = vector.shape_cast %734 : vector<1x24x128xf32> to vector<24x128xf32>
    %cst_265 = arith.constant dense<0.000000e+00> : vector<24x128xf32>
    %736 = tpu.matmul %706, %495, %cst_265 {dimension_numbers = #tpu.dot_dimension_numbers<[1], [0], [0], [1], [0, 0, 1, 1], [], []>} : vector<24x32xf32>, vector<32x128xf32>, vector<24x128xf32> -> vector<24x128xf32>
    %737 = arith.addf %735, %736 : vector<24x128xf32>
    %738 = vector.extract_strided_slice %491 {offsets = [3, 0, 128], sizes = [1, 24, 128], strides = [1, 1, 1]} : vector<8x24x256xf32> to vector<1x24x128xf32>
    %739 = vector.shape_cast %738 : vector<1x24x128xf32> to vector<24x128xf32>
    %cst_266 = arith.constant dense<0.000000e+00> : vector<24x128xf32>
    %740 = tpu.matmul %727, %497, %cst_266 {dimension_numbers = #tpu.dot_dimension_numbers<[1], [0], [0], [1], [0, 0, 1, 1], [], []>} : vector<24x32xf32>, vector<32x128xf32>, vector<24x128xf32> -> vector<24x128xf32>
    %741 = arith.addf %739, %740 : vector<24x128xf32>
    %742 = tpu.concatenate %737, %741 in 1 : vector<24x128xf32>, vector<24x128xf32> -> vector<24x256xf32>
    %743 = math.tanh %742 : vector<24x256xf32>
    %744 = vector.extract_strided_slice %743 {offsets = [0, 0], sizes = [24, 32], strides = [1, 1]} : vector<24x256xf32> to vector<24x32xf32>
    %cst_267 = arith.constant 5.000000e-01 : f32
    %745 = vector.broadcast %cst_267 : f32 to vector<24x32xf32>
    %746 = arith.mulf %745, %744 : vector<24x32xf32>
    %cst_268 = arith.constant 5.000000e-01 : f32
    %747 = vector.broadcast %cst_268 : f32 to vector<24x32xf32>
    %748 = arith.addf %746, %747 : vector<24x32xf32>
    %749 = vector.extract_strided_slice %743 {offsets = [0, 32], sizes = [24, 32], strides = [1, 1]} : vector<24x256xf32> to vector<24x32xf32>
    %cst_269 = arith.constant 5.000000e-01 : f32
    %750 = vector.broadcast %cst_269 : f32 to vector<24x32xf32>
    %751 = arith.mulf %750, %749 : vector<24x32xf32>
    %cst_270 = arith.constant 5.000000e-01 : f32
    %752 = vector.broadcast %cst_270 : f32 to vector<24x32xf32>
    %753 = arith.addf %751, %752 : vector<24x32xf32>
    %754 = vector.extract_strided_slice %743 {offsets = [0, 64], sizes = [24, 32], strides = [1, 1]} : vector<24x256xf32> to vector<24x32xf32>
    %755 = vector.extract_strided_slice %743 {offsets = [0, 96], sizes = [24, 32], strides = [1, 1]} : vector<24x256xf32> to vector<24x32xf32>
    %cst_271 = arith.constant 5.000000e-01 : f32
    %756 = vector.broadcast %cst_271 : f32 to vector<24x32xf32>
    %757 = arith.mulf %756, %755 : vector<24x32xf32>
    %cst_272 = arith.constant 5.000000e-01 : f32
    %758 = vector.broadcast %cst_272 : f32 to vector<24x32xf32>
    %759 = arith.addf %757, %758 : vector<24x32xf32>
    %760 = arith.mulf %753, %704 : vector<24x32xf32>
    %761 = arith.mulf %748, %754 : vector<24x32xf32>
    %762 = arith.addf %760, %761 : vector<24x32xf32>
    %763 = math.tanh %762 : vector<24x32xf32>
    %764 = arith.mulf %759, %763 : vector<24x32xf32>
    %765 = vector.extract_strided_slice %743 {offsets = [0, 128], sizes = [24, 32], strides = [1, 1]} : vector<24x256xf32> to vector<24x32xf32>
    %cst_273 = arith.constant 5.000000e-01 : f32
    %766 = vector.broadcast %cst_273 : f32 to vector<24x32xf32>
    %767 = arith.mulf %766, %765 : vector<24x32xf32>
    %cst_274 = arith.constant 5.000000e-01 : f32
    %768 = vector.broadcast %cst_274 : f32 to vector<24x32xf32>
    %769 = arith.addf %767, %768 : vector<24x32xf32>
    %770 = vector.extract_strided_slice %743 {offsets = [0, 160], sizes = [24, 32], strides = [1, 1]} : vector<24x256xf32> to vector<24x32xf32>
    %cst_275 = arith.constant 5.000000e-01 : f32
    %771 = vector.broadcast %cst_275 : f32 to vector<24x32xf32>
    %772 = arith.mulf %771, %770 : vector<24x32xf32>
    %cst_276 = arith.constant 5.000000e-01 : f32
    %773 = vector.broadcast %cst_276 : f32 to vector<24x32xf32>
    %774 = arith.addf %772, %773 : vector<24x32xf32>
    %775 = vector.extract_strided_slice %743 {offsets = [0, 192], sizes = [24, 32], strides = [1, 1]} : vector<24x256xf32> to vector<24x32xf32>
    %776 = vector.extract_strided_slice %743 {offsets = [0, 224], sizes = [24, 32], strides = [1, 1]} : vector<24x256xf32> to vector<24x32xf32>
    %cst_277 = arith.constant 5.000000e-01 : f32
    %777 = vector.broadcast %cst_277 : f32 to vector<24x32xf32>
    %778 = arith.mulf %777, %776 : vector<24x32xf32>
    %cst_278 = arith.constant 5.000000e-01 : f32
    %779 = vector.broadcast %cst_278 : f32 to vector<24x32xf32>
    %780 = arith.addf %778, %779 : vector<24x32xf32>
    %781 = arith.mulf %774, %725 : vector<24x32xf32>
    %782 = arith.mulf %769, %775 : vector<24x32xf32>
    %783 = arith.addf %781, %782 : vector<24x32xf32>
    %784 = math.tanh %783 : vector<24x32xf32>
    %785 = arith.mulf %780, %784 : vector<24x32xf32>
    %c4_279 = arith.constant 4 : index
    %c0_280 = arith.constant 0 : index
    %c0_281 = arith.constant 0 : index
    %786 = vector.load %arg12[%c4_279, %c0_280, %c0_281] : memref<8x24x64xf32, #tpu.memory_space<vmem>>, vector<1x24x32xf32>
    %787 = vector.shape_cast %786 : vector<1x24x32xf32> to vector<24x32xf32>
    %788 = vector.shape_cast %764 : vector<24x32xf32> to vector<1x24x32xf32>
    tpu.vector_store %arg12[%c4_279, %c0_280, %c0_281], %788 {strides = array<i32>} : memref<8x24x64xf32, #tpu.memory_space<vmem>>, vector<1x24x32xf32>,
    %c3_282 = arith.constant 3 : index
    %c0_283 = arith.constant 0 : index
    %c32_284 = arith.constant 32 : index
    %789 = vector.load %arg12[%c3_282, %c0_283, %c32_284] : memref<8x24x64xf32, #tpu.memory_space<vmem>>, vector<1x24x32xf32>
    %790 = vector.shape_cast %789 : vector<1x24x32xf32> to vector<24x32xf32>
    %791 = vector.shape_cast %785 : vector<24x32xf32> to vector<1x24x32xf32>
    tpu.vector_store %arg12[%c3_282, %c0_283, %c32_284], %791 {strides = array<i32>} : memref<8x24x64xf32, #tpu.memory_space<vmem>>, vector<1x24x32xf32>,
    %792 = vector.extract_strided_slice %491 {offsets = [5, 0, 0], sizes = [1, 24, 128], strides = [1, 1, 1]} : vector<8x24x256xf32> to vector<1x24x128xf32>
    %793 = vector.shape_cast %792 : vector<1x24x128xf32> to vector<24x128xf32>
    %cst_285 = arith.constant dense<0.000000e+00> : vector<24x128xf32>
    %794 = tpu.matmul %764, %495, %cst_285 {dimension_numbers = #tpu.dot_dimension_numbers<[1], [0], [0], [1], [0, 0, 1, 1], [], []>} : vector<24x32xf32>, vector<32x128xf32>, vector<24x128xf32> -> vector<24x128xf32>
    %795 = arith.addf %793, %794 : vector<24x128xf32>
    %796 = vector.extract_strided_slice %491 {offsets = [2, 0, 128], sizes = [1, 24, 128], strides = [1, 1, 1]} : vector<8x24x256xf32> to vector<1x24x128xf32>
    %797 = vector.shape_cast %796 : vector<1x24x128xf32> to vector<24x128xf32>
    %cst_286 = arith.constant dense<0.000000e+00> : vector<24x128xf32>
    %798 = tpu.matmul %785, %497, %cst_286 {dimension_numbers = #tpu.dot_dimension_numbers<[1], [0], [0], [1], [0, 0, 1, 1], [], []>} : vector<24x32xf32>, vector<32x128xf32>, vector<24x128xf32> -> vector<24x128xf32>
    %799 = arith.addf %797, %798 : vector<24x128xf32>
    %800 = tpu.concatenate %795, %799 in 1 : vector<24x128xf32>, vector<24x128xf32> -> vector<24x256xf32>
    %801 = math.tanh %800 : vector<24x256xf32>
    %802 = vector.extract_strided_slice %801 {offsets = [0, 0], sizes = [24, 32], strides = [1, 1]} : vector<24x256xf32> to vector<24x32xf32>
    %cst_287 = arith.constant 5.000000e-01 : f32
    %803 = vector.broadcast %cst_287 : f32 to vector<24x32xf32>
    %804 = arith.mulf %803, %802 : vector<24x32xf32>
    %cst_288 = arith.constant 5.000000e-01 : f32
    %805 = vector.broadcast %cst_288 : f32 to vector<24x32xf32>
    %806 = arith.addf %804, %805 : vector<24x32xf32>
    %807 = vector.extract_strided_slice %801 {offsets = [0, 32], sizes = [24, 32], strides = [1, 1]} : vector<24x256xf32> to vector<24x32xf32>
    %cst_289 = arith.constant 5.000000e-01 : f32
    %808 = vector.broadcast %cst_289 : f32 to vector<24x32xf32>
    %809 = arith.mulf %808, %807 : vector<24x32xf32>
    %cst_290 = arith.constant 5.000000e-01 : f32
    %810 = vector.broadcast %cst_290 : f32 to vector<24x32xf32>
    %811 = arith.addf %809, %810 : vector<24x32xf32>
    %812 = vector.extract_strided_slice %801 {offsets = [0, 64], sizes = [24, 32], strides = [1, 1]} : vector<24x256xf32> to vector<24x32xf32>
    %813 = vector.extract_strided_slice %801 {offsets = [0, 96], sizes = [24, 32], strides = [1, 1]} : vector<24x256xf32> to vector<24x32xf32>
    %cst_291 = arith.constant 5.000000e-01 : f32
    %814 = vector.broadcast %cst_291 : f32 to vector<24x32xf32>
    %815 = arith.mulf %814, %813 : vector<24x32xf32>
    %cst_292 = arith.constant 5.000000e-01 : f32
    %816 = vector.broadcast %cst_292 : f32 to vector<24x32xf32>
    %817 = arith.addf %815, %816 : vector<24x32xf32>
    %818 = arith.mulf %811, %762 : vector<24x32xf32>
    %819 = arith.mulf %806, %812 : vector<24x32xf32>
    %820 = arith.addf %818, %819 : vector<24x32xf32>
    %821 = math.tanh %820 : vector<24x32xf32>
    %822 = arith.mulf %817, %821 : vector<24x32xf32>
    %823 = vector.extract_strided_slice %801 {offsets = [0, 128], sizes = [24, 32], strides = [1, 1]} : vector<24x256xf32> to vector<24x32xf32>
    %cst_293 = arith.constant 5.000000e-01 : f32
    %824 = vector.broadcast %cst_293 : f32 to vector<24x32xf32>
    %825 = arith.mulf %824, %823 : vector<24x32xf32>
    %cst_294 = arith.constant 5.000000e-01 : f32
    %826 = vector.broadcast %cst_294 : f32 to vector<24x32xf32>
    %827 = arith.addf %825, %826 : vector<24x32xf32>
    %828 = vector.extract_strided_slice %801 {offsets = [0, 160], sizes = [24, 32], strides = [1, 1]} : vector<24x256xf32> to vector<24x32xf32>
    %cst_295 = arith.constant 5.000000e-01 : f32
    %829 = vector.broadcast %cst_295 : f32 to vector<24x32xf32>
    %830 = arith.mulf %829, %828 : vector<24x32xf32>
    %cst_296 = arith.constant 5.000000e-01 : f32
    %831 = vector.broadcast %cst_296 : f32 to vector<24x32xf32>
    %832 = arith.addf %830, %831 : vector<24x32xf32>
    %833 = vector.extract_strided_slice %801 {offsets = [0, 192], sizes = [24, 32], strides = [1, 1]} : vector<24x256xf32> to vector<24x32xf32>
    %834 = vector.extract_strided_slice %801 {offsets = [0, 224], sizes = [24, 32], strides = [1, 1]} : vector<24x256xf32> to vector<24x32xf32>
    %cst_297 = arith.constant 5.000000e-01 : f32
    %835 = vector.broadcast %cst_297 : f32 to vector<24x32xf32>
    %836 = arith.mulf %835, %834 : vector<24x32xf32>
    %cst_298 = arith.constant 5.000000e-01 : f32
    %837 = vector.broadcast %cst_298 : f32 to vector<24x32xf32>
    %838 = arith.addf %836, %837 : vector<24x32xf32>
    %839 = arith.mulf %832, %783 : vector<24x32xf32>
    %840 = arith.mulf %827, %833 : vector<24x32xf32>
    %841 = arith.addf %839, %840 : vector<24x32xf32>
    %842 = math.tanh %841 : vector<24x32xf32>
    %843 = arith.mulf %838, %842 : vector<24x32xf32>
    %c5_299 = arith.constant 5 : index
    %c0_300 = arith.constant 0 : index
    %c0_301 = arith.constant 0 : index
    %844 = vector.load %arg12[%c5_299, %c0_300, %c0_301] : memref<8x24x64xf32, #tpu.memory_space<vmem>>, vector<1x24x32xf32>
    %845 = vector.shape_cast %844 : vector<1x24x32xf32> to vector<24x32xf32>
    %846 = vector.shape_cast %822 : vector<24x32xf32> to vector<1x24x32xf32>
    tpu.vector_store %arg12[%c5_299, %c0_300, %c0_301], %846 {strides = array<i32>} : memref<8x24x64xf32, #tpu.memory_space<vmem>>, vector<1x24x32xf32>,
    %c2_302 = arith.constant 2 : index
    %c0_303 = arith.constant 0 : index
    %c32_304 = arith.constant 32 : index
    %847 = vector.load %arg12[%c2_302, %c0_303, %c32_304] : memref<8x24x64xf32, #tpu.memory_space<vmem>>, vector<1x24x32xf32>
    %848 = vector.shape_cast %847 : vector<1x24x32xf32> to vector<24x32xf32>
    %849 = vector.shape_cast %843 : vector<24x32xf32> to vector<1x24x32xf32>
    tpu.vector_store %arg12[%c2_302, %c0_303, %c32_304], %849 {strides = array<i32>} : memref<8x24x64xf32, #tpu.memory_space<vmem>>, vector<1x24x32xf32>,
    %850 = vector.extract_strided_slice %491 {offsets = [6, 0, 0], sizes = [1, 24, 128], strides = [1, 1, 1]} : vector<8x24x256xf32> to vector<1x24x128xf32>
    %851 = vector.shape_cast %850 : vector<1x24x128xf32> to vector<24x128xf32>
    %cst_305 = arith.constant dense<0.000000e+00> : vector<24x128xf32>
    %852 = tpu.matmul %822, %495, %cst_305 {dimension_numbers = #tpu.dot_dimension_numbers<[1], [0], [0], [1], [0, 0, 1, 1], [], []>} : vector<24x32xf32>, vector<32x128xf32>, vector<24x128xf32> -> vector<24x128xf32>
    %853 = arith.addf %851, %852 : vector<24x128xf32>
    %854 = vector.extract_strided_slice %491 {offsets = [1, 0, 128], sizes = [1, 24, 128], strides = [1, 1, 1]} : vector<8x24x256xf32> to vector<1x24x128xf32>
    %855 = vector.shape_cast %854 : vector<1x24x128xf32> to vector<24x128xf32>
    %cst_306 = arith.constant dense<0.000000e+00> : vector<24x128xf32>
    %856 = tpu.matmul %843, %497, %cst_306 {dimension_numbers = #tpu.dot_dimension_numbers<[1], [0], [0], [1], [0, 0, 1, 1], [], []>} : vector<24x32xf32>, vector<32x128xf32>, vector<24x128xf32> -> vector<24x128xf32>
    %857 = arith.addf %855, %856 : vector<24x128xf32>
    %858 = tpu.concatenate %853, %857 in 1 : vector<24x128xf32>, vector<24x128xf32> -> vector<24x256xf32>
    %859 = math.tanh %858 : vector<24x256xf32>
    %860 = vector.extract_strided_slice %859 {offsets = [0, 0], sizes = [24, 32], strides = [1, 1]} : vector<24x256xf32> to vector<24x32xf32>
    %cst_307 = arith.constant 5.000000e-01 : f32
    %861 = vector.broadcast %cst_307 : f32 to vector<24x32xf32>
    %862 = arith.mulf %861, %860 : vector<24x32xf32>
    %cst_308 = arith.constant 5.000000e-01 : f32
    %863 = vector.broadcast %cst_308 : f32 to vector<24x32xf32>
    %864 = arith.addf %862, %863 : vector<24x32xf32>
    %865 = vector.extract_strided_slice %859 {offsets = [0, 32], sizes = [24, 32], strides = [1, 1]} : vector<24x256xf32> to vector<24x32xf32>
    %cst_309 = arith.constant 5.000000e-01 : f32
    %866 = vector.broadcast %cst_309 : f32 to vector<24x32xf32>
    %867 = arith.mulf %866, %865 : vector<24x32xf32>
    %cst_310 = arith.constant 5.000000e-01 : f32
    %868 = vector.broadcast %cst_310 : f32 to vector<24x32xf32>
    %869 = arith.addf %867, %868 : vector<24x32xf32>
    %870 = vector.extract_strided_slice %859 {offsets = [0, 64], sizes = [24, 32], strides = [1, 1]} : vector<24x256xf32> to vector<24x32xf32>
    %871 = vector.extract_strided_slice %859 {offsets = [0, 96], sizes = [24, 32], strides = [1, 1]} : vector<24x256xf32> to vector<24x32xf32>
    %cst_311 = arith.constant 5.000000e-01 : f32
    %872 = vector.broadcast %cst_311 : f32 to vector<24x32xf32>
    %873 = arith.mulf %872, %871 : vector<24x32xf32>
    %cst_312 = arith.constant 5.000000e-01 : f32
    %874 = vector.broadcast %cst_312 : f32 to vector<24x32xf32>
    %875 = arith.addf %873, %874 : vector<24x32xf32>
    %876 = arith.mulf %869, %820 : vector<24x32xf32>
    %877 = arith.mulf %864, %870 : vector<24x32xf32>
    %878 = arith.addf %876, %877 : vector<24x32xf32>
    %879 = math.tanh %878 : vector<24x32xf32>
    %880 = arith.mulf %875, %879 : vector<24x32xf32>
    %881 = vector.extract_strided_slice %859 {offsets = [0, 128], sizes = [24, 32], strides = [1, 1]} : vector<24x256xf32> to vector<24x32xf32>
    %cst_313 = arith.constant 5.000000e-01 : f32
    %882 = vector.broadcast %cst_313 : f32 to vector<24x32xf32>
    %883 = arith.mulf %882, %881 : vector<24x32xf32>
    %cst_314 = arith.constant 5.000000e-01 : f32
    %884 = vector.broadcast %cst_314 : f32 to vector<24x32xf32>
    %885 = arith.addf %883, %884 : vector<24x32xf32>
    %886 = vector.extract_strided_slice %859 {offsets = [0, 160], sizes = [24, 32], strides = [1, 1]} : vector<24x256xf32> to vector<24x32xf32>
    %cst_315 = arith.constant 5.000000e-01 : f32
    %887 = vector.broadcast %cst_315 : f32 to vector<24x32xf32>
    %888 = arith.mulf %887, %886 : vector<24x32xf32>
    %cst_316 = arith.constant 5.000000e-01 : f32
    %889 = vector.broadcast %cst_316 : f32 to vector<24x32xf32>
    %890 = arith.addf %888, %889 : vector<24x32xf32>
    %891 = vector.extract_strided_slice %859 {offsets = [0, 192], sizes = [24, 32], strides = [1, 1]} : vector<24x256xf32> to vector<24x32xf32>
    %892 = vector.extract_strided_slice %859 {offsets = [0, 224], sizes = [24, 32], strides = [1, 1]} : vector<24x256xf32> to vector<24x32xf32>
    %cst_317 = arith.constant 5.000000e-01 : f32
    %893 = vector.broadcast %cst_317 : f32 to vector<24x32xf32>
    %894 = arith.mulf %893, %892 : vector<24x32xf32>
    %cst_318 = arith.constant 5.000000e-01 : f32
    %895 = vector.broadcast %cst_318 : f32 to vector<24x32xf32>
    %896 = arith.addf %894, %895 : vector<24x32xf32>
    %897 = arith.mulf %890, %841 : vector<24x32xf32>
    %898 = arith.mulf %885, %891 : vector<24x32xf32>
    %899 = arith.addf %897, %898 : vector<24x32xf32>
    %900 = math.tanh %899 : vector<24x32xf32>
    %901 = arith.mulf %896, %900 : vector<24x32xf32>
    %c6_319 = arith.constant 6 : index
    %c0_320 = arith.constant 0 : index
    %c0_321 = arith.constant 0 : index
    %902 = vector.load %arg12[%c6_319, %c0_320, %c0_321] : memref<8x24x64xf32, #tpu.memory_space<vmem>>, vector<1x24x32xf32>
    %903 = vector.shape_cast %902 : vector<1x24x32xf32> to vector<24x32xf32>
    %904 = vector.shape_cast %880 : vector<24x32xf32> to vector<1x24x32xf32>
    tpu.vector_store %arg12[%c6_319, %c0_320, %c0_321], %904 {strides = array<i32>} : memref<8x24x64xf32, #tpu.memory_space<vmem>>, vector<1x24x32xf32>,
    %c1_322 = arith.constant 1 : index
    %c0_323 = arith.constant 0 : index
    %c32_324 = arith.constant 32 : index
    %905 = vector.load %arg12[%c1_322, %c0_323, %c32_324] : memref<8x24x64xf32, #tpu.memory_space<vmem>>, vector<1x24x32xf32>
    %906 = vector.shape_cast %905 : vector<1x24x32xf32> to vector<24x32xf32>
    %907 = vector.shape_cast %901 : vector<24x32xf32> to vector<1x24x32xf32>
    tpu.vector_store %arg12[%c1_322, %c0_323, %c32_324], %907 {strides = array<i32>} : memref<8x24x64xf32, #tpu.memory_space<vmem>>, vector<1x24x32xf32>,
    %908 = vector.extract_strided_slice %491 {offsets = [7, 0, 0], sizes = [1, 24, 128], strides = [1, 1, 1]} : vector<8x24x256xf32> to vector<1x24x128xf32>
    %909 = vector.shape_cast %908 : vector<1x24x128xf32> to vector<24x128xf32>
    %cst_325 = arith.constant dense<0.000000e+00> : vector<24x128xf32>
    %910 = tpu.matmul %880, %495, %cst_325 {dimension_numbers = #tpu.dot_dimension_numbers<[1], [0], [0], [1], [0, 0, 1, 1], [], []>} : vector<24x32xf32>, vector<32x128xf32>, vector<24x128xf32> -> vector<24x128xf32>
    %911 = arith.addf %909, %910 : vector<24x128xf32>
    %912 = vector.extract_strided_slice %491 {offsets = [0, 0, 128], sizes = [1, 24, 128], strides = [1, 1, 1]} : vector<8x24x256xf32> to vector<1x24x128xf32>
    %913 = vector.shape_cast %912 : vector<1x24x128xf32> to vector<24x128xf32>
    %cst_326 = arith.constant dense<0.000000e+00> : vector<24x128xf32>
    %914 = tpu.matmul %901, %497, %cst_326 {dimension_numbers = #tpu.dot_dimension_numbers<[1], [0], [0], [1], [0, 0, 1, 1], [], []>} : vector<24x32xf32>, vector<32x128xf32>, vector<24x128xf32> -> vector<24x128xf32>
    %915 = arith.addf %913, %914 : vector<24x128xf32>
    %916 = tpu.concatenate %911, %915 in 1 : vector<24x128xf32>, vector<24x128xf32> -> vector<24x256xf32>
    %917 = math.tanh %916 : vector<24x256xf32>
    %918 = vector.extract_strided_slice %917 {offsets = [0, 0], sizes = [24, 32], strides = [1, 1]} : vector<24x256xf32> to vector<24x32xf32>
    %cst_327 = arith.constant 5.000000e-01 : f32
    %919 = vector.broadcast %cst_327 : f32 to vector<24x32xf32>
    %920 = arith.mulf %919, %918 : vector<24x32xf32>
    %cst_328 = arith.constant 5.000000e-01 : f32
    %921 = vector.broadcast %cst_328 : f32 to vector<24x32xf32>
    %922 = arith.addf %920, %921 : vector<24x32xf32>
    %923 = vector.extract_strided_slice %917 {offsets = [0, 32], sizes = [24, 32], strides = [1, 1]} : vector<24x256xf32> to vector<24x32xf32>
    %cst_329 = arith.constant 5.000000e-01 : f32
    %924 = vector.broadcast %cst_329 : f32 to vector<24x32xf32>
    %925 = arith.mulf %924, %923 : vector<24x32xf32>
    %cst_330 = arith.constant 5.000000e-01 : f32
    %926 = vector.broadcast %cst_330 : f32 to vector<24x32xf32>
    %927 = arith.addf %925, %926 : vector<24x32xf32>
    %928 = vector.extract_strided_slice %917 {offsets = [0, 64], sizes = [24, 32], strides = [1, 1]} : vector<24x256xf32> to vector<24x32xf32>
    %929 = vector.extract_strided_slice %917 {offsets = [0, 96], sizes = [24, 32], strides = [1, 1]} : vector<24x256xf32> to vector<24x32xf32>
    %cst_331 = arith.constant 5.000000e-01 : f32
    %930 = vector.broadcast %cst_331 : f32 to vector<24x32xf32>
    %931 = arith.mulf %930, %929 : vector<24x32xf32>
    %cst_332 = arith.constant 5.000000e-01 : f32
    %932 = vector.broadcast %cst_332 : f32 to vector<24x32xf32>
    %933 = arith.addf %931, %932 : vector<24x32xf32>
    %934 = arith.mulf %927, %878 : vector<24x32xf32>
    %935 = arith.mulf %922, %928 : vector<24x32xf32>
    %936 = arith.addf %934, %935 : vector<24x32xf32>
    %937 = math.tanh %936 : vector<24x32xf32>
    %938 = arith.mulf %933, %937 : vector<24x32xf32>
    %939 = vector.extract_strided_slice %917 {offsets = [0, 128], sizes = [24, 32], strides = [1, 1]} : vector<24x256xf32> to vector<24x32xf32>
    %cst_333 = arith.constant 5.000000e-01 : f32
    %940 = vector.broadcast %cst_333 : f32 to vector<24x32xf32>
    %941 = arith.mulf %940, %939 : vector<24x32xf32>
    %cst_334 = arith.constant 5.000000e-01 : f32
    %942 = vector.broadcast %cst_334 : f32 to vector<24x32xf32>
    %943 = arith.addf %941, %942 : vector<24x32xf32>
    %944 = vector.extract_strided_slice %917 {offsets = [0, 160], sizes = [24, 32], strides = [1, 1]} : vector<24x256xf32> to vector<24x32xf32>
    %cst_335 = arith.constant 5.000000e-01 : f32
    %945 = vector.broadcast %cst_335 : f32 to vector<24x32xf32>
    %946 = arith.mulf %945, %944 : vector<24x32xf32>
    %cst_336 = arith.constant 5.000000e-01 : f32
    %947 = vector.broadcast %cst_336 : f32 to vector<24x32xf32>
    %948 = arith.addf %946, %947 : vector<24x32xf32>
    %949 = vector.extract_strided_slice %917 {offsets = [0, 192], sizes = [24, 32], strides = [1, 1]} : vector<24x256xf32> to vector<24x32xf32>
    %950 = vector.extract_strided_slice %917 {offsets = [0, 224], sizes = [24, 32], strides = [1, 1]} : vector<24x256xf32> to vector<24x32xf32>
    %cst_337 = arith.constant 5.000000e-01 : f32
    %951 = vector.broadcast %cst_337 : f32 to vector<24x32xf32>
    %952 = arith.mulf %951, %950 : vector<24x32xf32>
    %cst_338 = arith.constant 5.000000e-01 : f32
    %953 = vector.broadcast %cst_338 : f32 to vector<24x32xf32>
    %954 = arith.addf %952, %953 : vector<24x32xf32>
    %955 = arith.mulf %948, %899 : vector<24x32xf32>
    %956 = arith.mulf %943, %949 : vector<24x32xf32>
    %957 = arith.addf %955, %956 : vector<24x32xf32>
    %958 = math.tanh %957 : vector<24x32xf32>
    %959 = arith.mulf %954, %958 : vector<24x32xf32>
    %c7_339 = arith.constant 7 : index
    %c0_340 = arith.constant 0 : index
    %c0_341 = arith.constant 0 : index
    %960 = vector.load %arg12[%c7_339, %c0_340, %c0_341] : memref<8x24x64xf32, #tpu.memory_space<vmem>>, vector<1x24x32xf32>
    %961 = vector.shape_cast %960 : vector<1x24x32xf32> to vector<24x32xf32>
    %962 = vector.shape_cast %938 : vector<24x32xf32> to vector<1x24x32xf32>
    tpu.vector_store %arg12[%c7_339, %c0_340, %c0_341], %962 {strides = array<i32>} : memref<8x24x64xf32, #tpu.memory_space<vmem>>, vector<1x24x32xf32>,
    %c0_342 = arith.constant 0 : index
    %c0_343 = arith.constant 0 : index
    %c32_344 = arith.constant 32 : index
    %963 = vector.load %arg12[%c0_342, %c0_343, %c32_344] : memref<8x24x64xf32, #tpu.memory_space<vmem>>, vector<1x24x32xf32>
    %964 = vector.shape_cast %963 : vector<1x24x32xf32> to vector<24x32xf32>
    %965 = vector.shape_cast %959 : vector<24x32xf32> to vector<1x24x32xf32>
    tpu.vector_store %arg12[%c0_342, %c0_343, %c32_344], %965 {strides = array<i32>} : memref<8x24x64xf32, #tpu.memory_space<vmem>>, vector<1x24x32xf32>,
    %c0_345 = arith.constant 0 : index
    %c0_346 = arith.constant 0 : index
    %c0_347 = arith.constant 0 : index
    %966 = vector.load %arg12[%c0_345, %c0_346, %c0_347] : memref<8x24x64xf32, #tpu.memory_space<vmem>>, vector<8x24x64xf32>
    %967 = vector.shape_cast %966 : vector<8x24x64xf32> to vector<192x64xf32>
    %c0_348 = arith.constant 0 : index
    %c0_349 = arith.constant 0 : index
    %968 = vector.load %arg7[%c0_348, %c0_349] : memref<64x1536xf32, #tpu.memory_space<vmem>>, vector<64x1536xf32>
    %cst_350 = arith.constant dense<0.000000e+00> : vector<192x1536xf32>
    %969 = tpu.matmul %967, %968, %cst_350 {dimension_numbers = #tpu.dot_dimension_numbers<[1], [0], [0], [1], [0, 0, 1, 1], [], []>} : vector<192x64xf32>, vector<64x1536xf32>, vector<192x1536xf32> -> vector<192x1536xf32>
    %970 = vector.shape_cast %969 : vector<192x1536xf32> to vector<8x24x1536xf32>
    %971 = vector.extract_strided_slice %970 {offsets = [0, 0, 0], sizes = [1, 24, 128], strides = [1, 1, 1]} : vector<8x24x1536xf32> to vector<1x24x128xf32>
    %972 = vector.shape_cast %971 : vector<1x24x128xf32> to vector<24x128xf32>
    %973 = vector.extract_strided_slice %970 {offsets = [1, 0, 128], sizes = [1, 24, 128], strides = [1, 1, 1]} : vector<8x24x1536xf32> to vector<1x24x128xf32>
    %974 = vector.shape_cast %973 : vector<1x24x128xf32> to vector<24x128xf32>
    %975 = arith.addf %972, %974 : vector<24x128xf32>
    %976 = vector.extract_strided_slice %970 {offsets = [2, 0, 256], sizes = [1, 24, 128], strides = [1, 1, 1]} : vector<8x24x1536xf32> to vector<1x24x128xf32>
    %977 = vector.shape_cast %976 : vector<1x24x128xf32> to vector<24x128xf32>
    %978 = arith.addf %975, %977 : vector<24x128xf32>
    %979 = vector.extract_strided_slice %970 {offsets = [1, 0, 0], sizes = [1, 24, 128], strides = [1, 1, 1]} : vector<8x24x1536xf32> to vector<1x24x128xf32>
    %980 = vector.shape_cast %979 : vector<1x24x128xf32> to vector<24x128xf32>
    %981 = vector.extract_strided_slice %970 {offsets = [2, 0, 128], sizes = [1, 24, 128], strides = [1, 1, 1]} : vector<8x24x1536xf32> to vector<1x24x128xf32>
    %982 = vector.shape_cast %981 : vector<1x24x128xf32> to vector<24x128xf32>
    %983 = arith.addf %980, %982 : vector<24x128xf32>
    %984 = vector.extract_strided_slice %970 {offsets = [3, 0, 256], sizes = [1, 24, 128], strides = [1, 1, 1]} : vector<8x24x1536xf32> to vector<1x24x128xf32>
    %985 = vector.shape_cast %984 : vector<1x24x128xf32> to vector<24x128xf32>
    %986 = arith.addf %983, %985 : vector<24x128xf32>
    %987 = arith.maximumf %978, %986 : vector<24x128xf32>
    %988 = vector.extract_strided_slice %970 {offsets = [2, 0, 0], sizes = [1, 24, 128], strides = [1, 1, 1]} : vector<8x24x1536xf32> to vector<1x24x128xf32>
    %989 = vector.shape_cast %988 : vector<1x24x128xf32> to vector<24x128xf32>
    %990 = vector.extract_strided_slice %970 {offsets = [3, 0, 128], sizes = [1, 24, 128], strides = [1, 1, 1]} : vector<8x24x1536xf32> to vector<1x24x128xf32>
    %991 = vector.shape_cast %990 : vector<1x24x128xf32> to vector<24x128xf32>
    %992 = arith.addf %989, %991 : vector<24x128xf32>
    %993 = vector.extract_strided_slice %970 {offsets = [4, 0, 256], sizes = [1, 24, 128], strides = [1, 1, 1]} : vector<8x24x1536xf32> to vector<1x24x128xf32>
    %994 = vector.shape_cast %993 : vector<1x24x128xf32> to vector<24x128xf32>
    %995 = arith.addf %992, %994 : vector<24x128xf32>
    %996 = arith.maximumf %987, %995 : vector<24x128xf32>
    %997 = vector.extract_strided_slice %970 {offsets = [3, 0, 0], sizes = [1, 24, 128], strides = [1, 1, 1]} : vector<8x24x1536xf32> to vector<1x24x128xf32>
    %998 = vector.shape_cast %997 : vector<1x24x128xf32> to vector<24x128xf32>
    %999 = vector.extract_strided_slice %970 {offsets = [4, 0, 128], sizes = [1, 24, 128], strides = [1, 1, 1]} : vector<8x24x1536xf32> to vector<1x24x128xf32>
    %1000 = vector.shape_cast %999 : vector<1x24x128xf32> to vector<24x128xf32>
    %1001 = arith.addf %998, %1000 : vector<24x128xf32>
    %1002 = vector.extract_strided_slice %970 {offsets = [5, 0, 256], sizes = [1, 24, 128], strides = [1, 1, 1]} : vector<8x24x1536xf32> to vector<1x24x128xf32>
    %1003 = vector.shape_cast %1002 : vector<1x24x128xf32> to vector<24x128xf32>
    %1004 = arith.addf %1001, %1003 : vector<24x128xf32>
    %1005 = arith.maximumf %996, %1004 : vector<24x128xf32>
    %1006 = vector.extract_strided_slice %970 {offsets = [4, 0, 0], sizes = [1, 24, 128], strides = [1, 1, 1]} : vector<8x24x1536xf32> to vector<1x24x128xf32>
    %1007 = vector.shape_cast %1006 : vector<1x24x128xf32> to vector<24x128xf32>
    %1008 = vector.extract_strided_slice %970 {offsets = [5, 0, 128], sizes = [1, 24, 128], strides = [1, 1, 1]} : vector<8x24x1536xf32> to vector<1x24x128xf32>
    %1009 = vector.shape_cast %1008 : vector<1x24x128xf32> to vector<24x128xf32>
    %1010 = arith.addf %1007, %1009 : vector<24x128xf32>
    %1011 = vector.extract_strided_slice %970 {offsets = [6, 0, 256], sizes = [1, 24, 128], strides = [1, 1, 1]} : vector<8x24x1536xf32> to vector<1x24x128xf32>
    %1012 = vector.shape_cast %1011 : vector<1x24x128xf32> to vector<24x128xf32>
    %1013 = arith.addf %1010, %1012 : vector<24x128xf32>
    %1014 = arith.maximumf %1005, %1013 : vector<24x128xf32>
    %1015 = vector.extract_strided_slice %970 {offsets = [5, 0, 0], sizes = [1, 24, 128], strides = [1, 1, 1]} : vector<8x24x1536xf32> to vector<1x24x128xf32>
    %1016 = vector.shape_cast %1015 : vector<1x24x128xf32> to vector<24x128xf32>
    %1017 = vector.extract_strided_slice %970 {offsets = [6, 0, 128], sizes = [1, 24, 128], strides = [1, 1, 1]} : vector<8x24x1536xf32> to vector<1x24x128xf32>
    %1018 = vector.shape_cast %1017 : vector<1x24x128xf32> to vector<24x128xf32>
    %1019 = arith.addf %1016, %1018 : vector<24x128xf32>
    %1020 = vector.extract_strided_slice %970 {offsets = [7, 0, 256], sizes = [1, 24, 128], strides = [1, 1, 1]} : vector<8x24x1536xf32> to vector<1x24x128xf32>
    %1021 = vector.shape_cast %1020 : vector<1x24x128xf32> to vector<24x128xf32>
    %1022 = arith.addf %1019, %1021 : vector<24x128xf32>
    %1023 = arith.maximumf %1014, %1022 : vector<24x128xf32>
    %c0_351 = arith.constant 0 : index
    %c0_352 = arith.constant 0 : index
    %c0_353 = arith.constant 0 : index
    %1024 = vector.load %arg8[%c0_351, %c0_352, %c0_353] : memref<3x1x128xf32, #tpu.memory_space<vmem>>, vector<1x1x128xf32>
    %1025 = vector.shape_cast %1024 : vector<1x1x128xf32> to vector<1x128xf32>
    %1026 = vector.broadcast %1025 : vector<1x128xf32> to vector<24x128xf32>
    %1027 = arith.addf %1023, %1026 : vector<24x128xf32>
    %cst_354 = arith.constant 0.000000e+00 : f32
    %1028 = vector.broadcast %cst_354 : f32 to vector<24x128xf32>
    %1029 = arith.maximumf %1027, %1028 : vector<24x128xf32>
    %1030 = vector.extract_strided_slice %970 {offsets = [0, 0, 384], sizes = [1, 24, 128], strides = [1, 1, 1]} : vector<8x24x1536xf32> to vector<1x24x128xf32>
    %1031 = vector.shape_cast %1030 : vector<1x24x128xf32> to vector<24x128xf32>
    %1032 = vector.extract_strided_slice %970 {offsets = [1, 0, 512], sizes = [1, 24, 128], strides = [1, 1, 1]} : vector<8x24x1536xf32> to vector<1x24x128xf32>
    %1033 = vector.shape_cast %1032 : vector<1x24x128xf32> to vector<24x128xf32>
    %1034 = arith.addf %1031, %1033 : vector<24x128xf32>
    %1035 = vector.extract_strided_slice %970 {offsets = [2, 0, 640], sizes = [1, 24, 128], strides = [1, 1, 1]} : vector<8x24x1536xf32> to vector<1x24x128xf32>
    %1036 = vector.shape_cast %1035 : vector<1x24x128xf32> to vector<24x128xf32>
    %1037 = arith.addf %1034, %1036 : vector<24x128xf32>
    %1038 = vector.extract_strided_slice %970 {offsets = [3, 0, 768], sizes = [1, 24, 128], strides = [1, 1, 1]} : vector<8x24x1536xf32> to vector<1x24x128xf32>
    %1039 = vector.shape_cast %1038 : vector<1x24x128xf32> to vector<24x128xf32>
    %1040 = arith.addf %1037, %1039 : vector<24x128xf32>
    %1041 = vector.extract_strided_slice %970 {offsets = [1, 0, 384], sizes = [1, 24, 128], strides = [1, 1, 1]} : vector<8x24x1536xf32> to vector<1x24x128xf32>
    %1042 = vector.shape_cast %1041 : vector<1x24x128xf32> to vector<24x128xf32>
    %1043 = vector.extract_strided_slice %970 {offsets = [2, 0, 512], sizes = [1, 24, 128], strides = [1, 1, 1]} : vector<8x24x1536xf32> to vector<1x24x128xf32>
    %1044 = vector.shape_cast %1043 : vector<1x24x128xf32> to vector<24x128xf32>
    %1045 = arith.addf %1042, %1044 : vector<24x128xf32>
    %1046 = vector.extract_strided_slice %970 {offsets = [3, 0, 640], sizes = [1, 24, 128], strides = [1, 1, 1]} : vector<8x24x1536xf32> to vector<1x24x128xf32>
    %1047 = vector.shape_cast %1046 : vector<1x24x128xf32> to vector<24x128xf32>
    %1048 = arith.addf %1045, %1047 : vector<24x128xf32>
    %1049 = vector.extract_strided_slice %970 {offsets = [4, 0, 768], sizes = [1, 24, 128], strides = [1, 1, 1]} : vector<8x24x1536xf32> to vector<1x24x128xf32>
    %1050 = vector.shape_cast %1049 : vector<1x24x128xf32> to vector<24x128xf32>
    %1051 = arith.addf %1048, %1050 : vector<24x128xf32>
    %1052 = arith.maximumf %1040, %1051 : vector<24x128xf32>
    %1053 = vector.extract_strided_slice %970 {offsets = [2, 0, 384], sizes = [1, 24, 128], strides = [1, 1, 1]} : vector<8x24x1536xf32> to vector<1x24x128xf32>
    %1054 = vector.shape_cast %1053 : vector<1x24x128xf32> to vector<24x128xf32>
    %1055 = vector.extract_strided_slice %970 {offsets = [3, 0, 512], sizes = [1, 24, 128], strides = [1, 1, 1]} : vector<8x24x1536xf32> to vector<1x24x128xf32>
    %1056 = vector.shape_cast %1055 : vector<1x24x128xf32> to vector<24x128xf32>
    %1057 = arith.addf %1054, %1056 : vector<24x128xf32>
    %1058 = vector.extract_strided_slice %970 {offsets = [4, 0, 640], sizes = [1, 24, 128], strides = [1, 1, 1]} : vector<8x24x1536xf32> to vector<1x24x128xf32>
    %1059 = vector.shape_cast %1058 : vector<1x24x128xf32> to vector<24x128xf32>
    %1060 = arith.addf %1057, %1059 : vector<24x128xf32>
    %1061 = vector.extract_strided_slice %970 {offsets = [5, 0, 768], sizes = [1, 24, 128], strides = [1, 1, 1]} : vector<8x24x1536xf32> to vector<1x24x128xf32>
    %1062 = vector.shape_cast %1061 : vector<1x24x128xf32> to vector<24x128xf32>
    %1063 = arith.addf %1060, %1062 : vector<24x128xf32>
    %1064 = arith.maximumf %1052, %1063 : vector<24x128xf32>
    %1065 = vector.extract_strided_slice %970 {offsets = [3, 0, 384], sizes = [1, 24, 128], strides = [1, 1, 1]} : vector<8x24x1536xf32> to vector<1x24x128xf32>
    %1066 = vector.shape_cast %1065 : vector<1x24x128xf32> to vector<24x128xf32>
    %1067 = vector.extract_strided_slice %970 {offsets = [4, 0, 512], sizes = [1, 24, 128], strides = [1, 1, 1]} : vector<8x24x1536xf32> to vector<1x24x128xf32>
    %1068 = vector.shape_cast %1067 : vector<1x24x128xf32> to vector<24x128xf32>
    %1069 = arith.addf %1066, %1068 : vector<24x128xf32>
    %1070 = vector.extract_strided_slice %970 {offsets = [5, 0, 640], sizes = [1, 24, 128], strides = [1, 1, 1]} : vector<8x24x1536xf32> to vector<1x24x128xf32>
    %1071 = vector.shape_cast %1070 : vector<1x24x128xf32> to vector<24x128xf32>
    %1072 = arith.addf %1069, %1071 : vector<24x128xf32>
    %1073 = vector.extract_strided_slice %970 {offsets = [6, 0, 768], sizes = [1, 24, 128], strides = [1, 1, 1]} : vector<8x24x1536xf32> to vector<1x24x128xf32>
    %1074 = vector.shape_cast %1073 : vector<1x24x128xf32> to vector<24x128xf32>
    %1075 = arith.addf %1072, %1074 : vector<24x128xf32>
    %1076 = arith.maximumf %1064, %1075 : vector<24x128xf32>
    %1077 = vector.extract_strided_slice %970 {offsets = [4, 0, 384], sizes = [1, 24, 128], strides = [1, 1, 1]} : vector<8x24x1536xf32> to vector<1x24x128xf32>
    %1078 = vector.shape_cast %1077 : vector<1x24x128xf32> to vector<24x128xf32>
    %1079 = vector.extract_strided_slice %970 {offsets = [5, 0, 512], sizes = [1, 24, 128], strides = [1, 1, 1]} : vector<8x24x1536xf32> to vector<1x24x128xf32>
    %1080 = vector.shape_cast %1079 : vector<1x24x128xf32> to vector<24x128xf32>
    %1081 = arith.addf %1078, %1080 : vector<24x128xf32>
    %1082 = vector.extract_strided_slice %970 {offsets = [6, 0, 640], sizes = [1, 24, 128], strides = [1, 1, 1]} : vector<8x24x1536xf32> to vector<1x24x128xf32>
    %1083 = vector.shape_cast %1082 : vector<1x24x128xf32> to vector<24x128xf32>
    %1084 = arith.addf %1081, %1083 : vector<24x128xf32>
    %1085 = vector.extract_strided_slice %970 {offsets = [7, 0, 768], sizes = [1, 24, 128], strides = [1, 1, 1]} : vector<8x24x1536xf32> to vector<1x24x128xf32>
    %1086 = vector.shape_cast %1085 : vector<1x24x128xf32> to vector<24x128xf32>
    %1087 = arith.addf %1084, %1086 : vector<24x128xf32>
    %1088 = arith.maximumf %1076, %1087 : vector<24x128xf32>
    %c1_355 = arith.constant 1 : index
    %c0_356 = arith.constant 0 : index
    %c0_357 = arith.constant 0 : index
    %1089 = vector.load %arg8[%c1_355, %c0_356, %c0_357] : memref<3x1x128xf32, #tpu.memory_space<vmem>>, vector<1x1x128xf32>
    %1090 = vector.shape_cast %1089 : vector<1x1x128xf32> to vector<1x128xf32>
    %1091 = vector.broadcast %1090 : vector<1x128xf32> to vector<24x128xf32>
    %1092 = arith.addf %1088, %1091 : vector<24x128xf32>
    %cst_358 = arith.constant 0.000000e+00 : f32
    %1093 = vector.broadcast %cst_358 : f32 to vector<24x128xf32>
    %1094 = arith.maximumf %1092, %1093 : vector<24x128xf32>
    %1095 = vector.extract_strided_slice %970 {offsets = [0, 0, 896], sizes = [1, 24, 128], strides = [1, 1, 1]} : vector<8x24x1536xf32> to vector<1x24x128xf32>
    %1096 = vector.shape_cast %1095 : vector<1x24x128xf32> to vector<24x128xf32>
    %1097 = vector.extract_strided_slice %970 {offsets = [1, 0, 1024], sizes = [1, 24, 128], strides = [1, 1, 1]} : vector<8x24x1536xf32> to vector<1x24x128xf32>
    %1098 = vector.shape_cast %1097 : vector<1x24x128xf32> to vector<24x128xf32>
    %1099 = arith.addf %1096, %1098 : vector<24x128xf32>
    %1100 = vector.extract_strided_slice %970 {offsets = [2, 0, 1152], sizes = [1, 24, 128], strides = [1, 1, 1]} : vector<8x24x1536xf32> to vector<1x24x128xf32>
    %1101 = vector.shape_cast %1100 : vector<1x24x128xf32> to vector<24x128xf32>
    %1102 = arith.addf %1099, %1101 : vector<24x128xf32>
    %1103 = vector.extract_strided_slice %970 {offsets = [3, 0, 1280], sizes = [1, 24, 128], strides = [1, 1, 1]} : vector<8x24x1536xf32> to vector<1x24x128xf32>
    %1104 = vector.shape_cast %1103 : vector<1x24x128xf32> to vector<24x128xf32>
    %1105 = arith.addf %1102, %1104 : vector<24x128xf32>
    %1106 = vector.extract_strided_slice %970 {offsets = [4, 0, 1408], sizes = [1, 24, 128], strides = [1, 1, 1]} : vector<8x24x1536xf32> to vector<1x24x128xf32>
    %1107 = vector.shape_cast %1106 : vector<1x24x128xf32> to vector<24x128xf32>
    %1108 = arith.addf %1105, %1107 : vector<24x128xf32>
    %1109 = vector.extract_strided_slice %970 {offsets = [1, 0, 896], sizes = [1, 24, 128], strides = [1, 1, 1]} : vector<8x24x1536xf32> to vector<1x24x128xf32>
    %1110 = vector.shape_cast %1109 : vector<1x24x128xf32> to vector<24x128xf32>
    %1111 = vector.extract_strided_slice %970 {offsets = [2, 0, 1024], sizes = [1, 24, 128], strides = [1, 1, 1]} : vector<8x24x1536xf32> to vector<1x24x128xf32>
    %1112 = vector.shape_cast %1111 : vector<1x24x128xf32> to vector<24x128xf32>
    %1113 = arith.addf %1110, %1112 : vector<24x128xf32>
    %1114 = vector.extract_strided_slice %970 {offsets = [3, 0, 1152], sizes = [1, 24, 128], strides = [1, 1, 1]} : vector<8x24x1536xf32> to vector<1x24x128xf32>
    %1115 = vector.shape_cast %1114 : vector<1x24x128xf32> to vector<24x128xf32>
    %1116 = arith.addf %1113, %1115 : vector<24x128xf32>
    %1117 = vector.extract_strided_slice %970 {offsets = [4, 0, 1280], sizes = [1, 24, 128], strides = [1, 1, 1]} : vector<8x24x1536xf32> to vector<1x24x128xf32>
    %1118 = vector.shape_cast %1117 : vector<1x24x128xf32> to vector<24x128xf32>
    %1119 = arith.addf %1116, %1118 : vector<24x128xf32>
    %1120 = vector.extract_strided_slice %970 {offsets = [5, 0, 1408], sizes = [1, 24, 128], strides = [1, 1, 1]} : vector<8x24x1536xf32> to vector<1x24x128xf32>
    %1121 = vector.shape_cast %1120 : vector<1x24x128xf32> to vector<24x128xf32>
    %1122 = arith.addf %1119, %1121 : vector<24x128xf32>
    %1123 = arith.maximumf %1108, %1122 : vector<24x128xf32>
    %1124 = vector.extract_strided_slice %970 {offsets = [2, 0, 896], sizes = [1, 24, 128], strides = [1, 1, 1]} : vector<8x24x1536xf32> to vector<1x24x128xf32>
    %1125 = vector.shape_cast %1124 : vector<1x24x128xf32> to vector<24x128xf32>
    %1126 = vector.extract_strided_slice %970 {offsets = [3, 0, 1024], sizes = [1, 24, 128], strides = [1, 1, 1]} : vector<8x24x1536xf32> to vector<1x24x128xf32>
    %1127 = vector.shape_cast %1126 : vector<1x24x128xf32> to vector<24x128xf32>
    %1128 = arith.addf %1125, %1127 : vector<24x128xf32>
    %1129 = vector.extract_strided_slice %970 {offsets = [4, 0, 1152], sizes = [1, 24, 128], strides = [1, 1, 1]} : vector<8x24x1536xf32> to vector<1x24x128xf32>
    %1130 = vector.shape_cast %1129 : vector<1x24x128xf32> to vector<24x128xf32>
    %1131 = arith.addf %1128, %1130 : vector<24x128xf32>
    %1132 = vector.extract_strided_slice %970 {offsets = [5, 0, 1280], sizes = [1, 24, 128], strides = [1, 1, 1]} : vector<8x24x1536xf32> to vector<1x24x128xf32>
    %1133 = vector.shape_cast %1132 : vector<1x24x128xf32> to vector<24x128xf32>
    %1134 = arith.addf %1131, %1133 : vector<24x128xf32>
    %1135 = vector.extract_strided_slice %970 {offsets = [6, 0, 1408], sizes = [1, 24, 128], strides = [1, 1, 1]} : vector<8x24x1536xf32> to vector<1x24x128xf32>
    %1136 = vector.shape_cast %1135 : vector<1x24x128xf32> to vector<24x128xf32>
    %1137 = arith.addf %1134, %1136 : vector<24x128xf32>
    %1138 = arith.maximumf %1123, %1137 : vector<24x128xf32>
    %1139 = vector.extract_strided_slice %970 {offsets = [3, 0, 896], sizes = [1, 24, 128], strides = [1, 1, 1]} : vector<8x24x1536xf32> to vector<1x24x128xf32>
    %1140 = vector.shape_cast %1139 : vector<1x24x128xf32> to vector<24x128xf32>
    %1141 = vector.extract_strided_slice %970 {offsets = [4, 0, 1024], sizes = [1, 24, 128], strides = [1, 1, 1]} : vector<8x24x1536xf32> to vector<1x24x128xf32>
    %1142 = vector.shape_cast %1141 : vector<1x24x128xf32> to vector<24x128xf32>
    %1143 = arith.addf %1140, %1142 : vector<24x128xf32>
    %1144 = vector.extract_strided_slice %970 {offsets = [5, 0, 1152], sizes = [1, 24, 128], strides = [1, 1, 1]} : vector<8x24x1536xf32> to vector<1x24x128xf32>
    %1145 = vector.shape_cast %1144 : vector<1x24x128xf32> to vector<24x128xf32>
    %1146 = arith.addf %1143, %1145 : vector<24x128xf32>
    %1147 = vector.extract_strided_slice %970 {offsets = [6, 0, 1280], sizes = [1, 24, 128], strides = [1, 1, 1]} : vector<8x24x1536xf32> to vector<1x24x128xf32>
    %1148 = vector.shape_cast %1147 : vector<1x24x128xf32> to vector<24x128xf32>
    %1149 = arith.addf %1146, %1148 : vector<24x128xf32>
    %1150 = vector.extract_strided_slice %970 {offsets = [7, 0, 1408], sizes = [1, 24, 128], strides = [1, 1, 1]} : vector<8x24x1536xf32> to vector<1x24x128xf32>
    %1151 = vector.shape_cast %1150 : vector<1x24x128xf32> to vector<24x128xf32>
    %1152 = arith.addf %1149, %1151 : vector<24x128xf32>
    %1153 = arith.maximumf %1138, %1152 : vector<24x128xf32>
    %c2_359 = arith.constant 2 : index
    %c0_360 = arith.constant 0 : index
    %c0_361 = arith.constant 0 : index
    %1154 = vector.load %arg8[%c2_359, %c0_360, %c0_361] : memref<3x1x128xf32, #tpu.memory_space<vmem>>, vector<1x1x128xf32>
    %1155 = vector.shape_cast %1154 : vector<1x1x128xf32> to vector<1x128xf32>
    %1156 = vector.broadcast %1155 : vector<1x128xf32> to vector<24x128xf32>
    %1157 = arith.addf %1153, %1156 : vector<24x128xf32>
    %cst_362 = arith.constant 0.000000e+00 : f32
    %1158 = vector.broadcast %cst_362 : f32 to vector<24x128xf32>
    %1159 = arith.maximumf %1157, %1158 : vector<24x128xf32>
    %1160 = vector.extract_strided_slice %1029 {offsets = [0, 0], sizes = [8, 128], strides = [1, 1]} : vector<24x128xf32> to vector<8x128xf32>
    %1161 = vector.extract_strided_slice %1094 {offsets = [0, 0], sizes = [8, 128], strides = [1, 1]} : vector<24x128xf32> to vector<8x128xf32>
    %1162 = vector.extract_strided_slice %1159 {offsets = [0, 0], sizes = [8, 128], strides = [1, 1]} : vector<24x128xf32> to vector<8x128xf32>
    %1163 = vector.extract_strided_slice %1029 {offsets = [8, 0], sizes = [8, 128], strides = [1, 1]} : vector<24x128xf32> to vector<8x128xf32>
    %1164 = vector.extract_strided_slice %1094 {offsets = [8, 0], sizes = [8, 128], strides = [1, 1]} : vector<24x128xf32> to vector<8x128xf32>
    %1165 = vector.extract_strided_slice %1159 {offsets = [8, 0], sizes = [8, 128], strides = [1, 1]} : vector<24x128xf32> to vector<8x128xf32>
    %1166 = vector.extract_strided_slice %1029 {offsets = [16, 0], sizes = [8, 128], strides = [1, 1]} : vector<24x128xf32> to vector<8x128xf32>
    %1167 = vector.extract_strided_slice %1094 {offsets = [16, 0], sizes = [8, 128], strides = [1, 1]} : vector<24x128xf32> to vector<8x128xf32>
    %1168 = vector.extract_strided_slice %1159 {offsets = [16, 0], sizes = [8, 128], strides = [1, 1]} : vector<24x128xf32> to vector<8x128xf32>
    %1169 = tpu.concatenate %1160, %1161, %1162, %1163, %1164, %1165, %1166, %1167, %1168 in 1 : vector<8x128xf32>, vector<8x128xf32>, vector<8x128xf32>, vector<8x128xf32>, vector<8x128xf32>, vector<8x128xf32>, vector<8x128xf32>, vector<8x128xf32>, vector<8x128xf32> -> vector<8x1152xf32>
    %c0_363 = arith.constant 0 : index
    %c0_364 = arith.constant 0 : index
    %1170 = vector.load %arg9[%c0_363, %c0_364] : memref<1152x128xf32, #tpu.memory_space<vmem>>, vector<1152x128xf32>
    %cst_365 = arith.constant dense<0.000000e+00> : vector<8x128xf32>
    %1171 = tpu.matmul %1169, %1170, %cst_365 {dimension_numbers = #tpu.dot_dimension_numbers<[1], [0], [0], [1], [0, 0, 1, 1], [], []>} : vector<8x1152xf32>, vector<1152x128xf32>, vector<8x128xf32> -> vector<8x128xf32>
    %c0_366 = arith.constant 0 : index
    %c0_367 = arith.constant 0 : index
    %1172 = vector.load %arg10[%c0_366, %c0_367] : memref<1x128xf32, #tpu.memory_space<vmem>>, vector<1x128xf32>
    %1173 = vector.broadcast %1172 : vector<1x128xf32> to vector<8x128xf32>
    %1174 = arith.addf %1171, %1173 : vector<8x128xf32>
    %c0_368 = arith.constant 0 : index
    %c0_369 = arith.constant 0 : index
    %1175 = vector.load %arg11[%c0_368, %c0_369] : memref<8x128xf32, #tpu.memory_space<vmem>>, vector<8x128xf32>
    tpu.vector_store %arg11[%c0_368, %c0_369], %1174 {strides = array<i32>} : memref<8x128xf32, #tpu.memory_space<vmem>>, vector<8x128xf32>,
    return
  }
  func.func @transform_0(%arg0: i32) -> (i32, i32, i32, i32) {
    %c0_i32 = arith.constant 0 : i32
    %c0_i32_0 = arith.constant 0 : i32
    %c0_i32_1 = arith.constant 0 : i32
    %c0_i32_2 = arith.constant 0 : i32
    return %c0_i32, %c0_i32_0, %arg0, %c0_i32_1 : i32, i32, i32, i32
  }
  func.func @transform_1(%arg0: i32) -> (i32, i32) {
    %c0_i32 = arith.constant 0 : i32
    %c0_i32_0 = arith.constant 0 : i32
    %c0_i32_1 = arith.constant 0 : i32
    return %c0_i32, %c0_i32_0 : i32, i32
  }
  func.func @transform_2(%arg0: i32) -> (i32, i32) {
    %c0_i32 = arith.constant 0 : i32
    %c0_i32_0 = arith.constant 0 : i32
    %c0_i32_1 = arith.constant 0 : i32
    return %c0_i32, %c0_i32_0 : i32, i32
  }
  func.func @transform_3(%arg0: i32) -> (i32, i32, i32) {
    %c0_i32 = arith.constant 0 : i32
    %c0_i32_0 = arith.constant 0 : i32
    %c0_i32_1 = arith.constant 0 : i32
    %c0_i32_2 = arith.constant 0 : i32
    return %c0_i32, %c0_i32_0, %c0_i32_1 : i32, i32, i32
  }
  func.func @transform_4(%arg0: i32) -> (i32, i32, i32) {
    %c0_i32 = arith.constant 0 : i32
    %c0_i32_0 = arith.constant 0 : i32
    %c0_i32_1 = arith.constant 0 : i32
    %c0_i32_2 = arith.constant 0 : i32
    return %c0_i32, %c0_i32_0, %c0_i32_1 : i32, i32, i32
  }
  func.func @transform_5(%arg0: i32) -> (i32, i32, i32, i32) {
    %c0_i32 = arith.constant 0 : i32
    %c0_i32_0 = arith.constant 0 : i32
    %c0_i32_1 = arith.constant 0 : i32
    %c0_i32_2 = arith.constant 0 : i32
    %c0_i32_3 = arith.constant 0 : i32
    return %c0_i32, %c0_i32_0, %c0_i32_1, %c0_i32_2 : i32, i32, i32, i32
  }
  func.func @transform_6(%arg0: i32) -> (i32, i32) {
    %c0_i32 = arith.constant 0 : i32
    %c0_i32_0 = arith.constant 0 : i32
    %c0_i32_1 = arith.constant 0 : i32
    return %c0_i32, %c0_i32_0 : i32, i32
  }
  func.func @transform_7(%arg0: i32) -> (i32, i32, i32) {
    %c0_i32 = arith.constant 0 : i32
    %c0_i32_0 = arith.constant 0 : i32
    %c0_i32_1 = arith.constant 0 : i32
    %c0_i32_2 = arith.constant 0 : i32
    return %c0_i32, %c0_i32_0, %c0_i32_1 : i32, i32, i32
  }
  func.func @transform_8(%arg0: i32) -> (i32, i32) {
    %c0_i32 = arith.constant 0 : i32
    %c0_i32_0 = arith.constant 0 : i32
    %c0_i32_1 = arith.constant 0 : i32
    return %c0_i32, %c0_i32_0 : i32, i32
  }
  func.func @transform_9(%arg0: i32) -> (i32, i32) {
    %c0_i32 = arith.constant 0 : i32
    %c0_i32_0 = arith.constant 0 : i32
    %c0_i32_1 = arith.constant 0 : i32
    return %c0_i32, %c0_i32_0 : i32, i32
  }
  func.func @transform_10(%arg0: i32) -> (i32, i32) {
    %c0_i32 = arith.constant 0 : i32
    %c0_i32_0 = arith.constant 0 : i32
    return %arg0, %c0_i32 : i32, i32
  }
}

</mosaic_0001>

<llo_original>
// kernel: tpu_custom_call.1
$region0: #{tpu_custom_call.1}
  #allocation0 [shape = 'u32[]', space=smem, size = 0x4, offset = 0x4, fixed_abs, tag = 'smem constant byte address 0x4 - core index']
  #allocation1 [shape = 'u32[144,128]{1,0:T(1,128)}', space=vmem, size = 0x12000, scoped, tag = 'internal scratch']
  #allocation2 [shape = 'f32[8,24,64]{2,1,0:T(8,128)}', space=vmem, size = 0x18000, scoped, tag = 'scratch operand']
  %s0 = inlined_call_operand.hbm [shape: f32[8,3,8,32], index: 0, kind: input, shape index: {}]
  %s1 = inlined_call_operand.hbm [shape: f32[32,256], index: 1, kind: input, shape index: {}]
  %s2 = inlined_call_operand.vmem [shape: f32[1,256], index: 2, kind: input, shape index: {}]
  %s3 = inlined_call_operand.hbm [shape: f32[1,64,256], index: 3, kind: input, shape index: {}]
  %s4 = inlined_call_operand.vmem [shape: f32[1,1,256], index: 4, kind: input, shape index: {}]
  %s5 = inlined_call_operand.hbm [shape: f32[2,2,32,128], index: 5, kind: input, shape index: {}]
  %s6 = inlined_call_operand.hbm [shape: f32[64,1536], index: 6, kind: input, shape index: {}]
  %s7 = inlined_call_operand.vmem [shape: f32[3,1,128], index: 7, kind: input, shape index: {}]
  %s8 = inlined_call_operand.hbm [shape: f32[1152,128], index: 8, kind: input, shape index: {}]
  %s9 = inlined_call_operand.vmem [shape: f32[1,128], index: 9, kind: input, shape index: {}]
  %s10 = inlined_call_operand.hbm [shape: f32[8,128], index: 10, kind: output, shape index: {}]
  %s11 = sld [smem:[#allocation0]]
  $region74: #{tpu_custom_call.1} parent=0
    _
  %s13 = ssub.s32 1, %s11
  %s14 = scalar_select 0, %s13, %s11
  $region1: #{tpu_custom_call.1} parent=0
    #allocation3 [shape = 'u8[98304]{0}', space=vmem, size = 0x18000, scoped, tag = 'input window, operand 0, single buffered']
    #allocation4 [shape = 's32[1]{0}', space=sflag, size = 0x4, scoped, tag = 'scoped memory for tpu_custom_call.1']
    #allocation5 [shape = 's32[1]{0}', space=sflag, size = 0x4, scoped, tag = 'scoped memory for tpu_custom_call.1']
    #allocation6 [shape = 'u8[32768]{0}', space=vmem, size = 0x8000, scoped, tag = 'input window, operand 1, single buffered']
    #allocation7 [shape = 's32[1]{0}', space=sflag, size = 0x4, scoped, tag = 'scoped memory for tpu_custom_call.1']
    #allocation8 [shape = 'u8[65536]{0}', space=vmem, size = 0x10000, scoped, tag = 'input window, operand 3, single buffered']
    #allocation9 [shape = 'u8[65536]{0}', space=vmem, size = 0x10000, scoped, tag = 'input window, operand 5, single buffered']
    #allocation10 [shape = 's32[1]{0}', space=sflag, size = 0x4, scoped, tag = 'scoped memory for tpu_custom_call.1']
    #allocation11 [shape = 'u8[393216]{0}', space=vmem, size = 0x60000, scoped, tag = 'input window, operand 6, single buffered']
    #allocation12 [shape = 'u8[589824]{0}', space=vmem, size = 0x90000, scoped, tag = 'input window, operand 8, single buffered']
    #allocation13 [shape = 's32[1]{0}', space=sflag, size = 0x4, scoped, tag = 'scoped memory for tpu_custom_call.1']
    #allocation14 [shape = 'u8[4096]{0}', space=vmem, size = 0x1000, scoped, tag = 'output window, operand 0, single buffered']
    %15 = vsyncpa [#allocation4], 0
    %16 = vsyncpa [#allocation7], 0
    %17 = vsyncpa [#allocation10], 0
    %18 = vsyncpa [#allocation13], 0
    %19 = vsyncpa [#allocation5], 0
    // Predicated region
    $region2: #{tpu_custom_call.1} parent=1 // pred_check
      _
    $region3: #{tpu_custom_call.1} parent=1 // pred_check_branch
      %21 = sbr.rel (0) target = $region5
    $region4: #{tpu_custom_call.1} parent=1 // pred_region
      %s23 = ssub.s32 3072, 3072
      %24 = vsyncadd [#allocation4], %s23
      %s25 = sshll.u32 [#allocation3], 4
      %s26 = int_to_ptr.vmem [resolvable:$true] %s25
      %31 = dma.hbm_to_vmem [thread:$0]  %s0, 3072, %s26, [#allocation4], 128, 128, 8
    $region5: #{tpu_custom_call.1} parent=1 // pred_fallthru
      _
    // Predicated region
    $region6: #{tpu_custom_call.1} parent=1 // pred_check
      _
    $region7: #{tpu_custom_call.1} parent=1 // pred_check_branch
      %33 = sbr.rel (0) target = $region9
    $region8: #{tpu_custom_call.1} parent=1 // pred_region
      %s35 = ssub.s32 1024, 1024
      %36 = vsyncadd [#allocation7], %s35
      %s37 = sshll.u32 [#allocation6], 4
      %s38 = int_to_ptr.vmem [resolvable:$true] %s37
      %43 = dma.hbm_to_vmem [thread:$0]  %s1, 1024, %s38, [#allocation7], 256, 256, 16
    $region9: #{tpu_custom_call.1} parent=1 // pred_fallthru
      _
    // Predicated region
    $region10: #{tpu_custom_call.1} parent=1 // pred_check
      _
    $region11: #{tpu_custom_call.1} parent=1 // pred_check_branch
      %45 = sbr.rel (0) target = $region13
    $region12: #{tpu_custom_call.1} parent=1 // pred_region
      _
    $region13: #{tpu_custom_call.1} parent=1 // pred_fallthru
      _
    // Predicated region
    $region14: #{tpu_custom_call.1} parent=1 // pred_check
      _
    $region15: #{tpu_custom_call.1} parent=1 // pred_check_branch
      %47 = sbr.rel (0) target = $region17
    $region16: #{tpu_custom_call.1} parent=1 // pred_region
      %s49 = ssub.s32 2048, 2048
      %50 = vsyncadd [#allocation7], %s49
      %s51 = sshll.u32 [#allocation8], 4
      %s52 = int_to_ptr.vmem [resolvable:$true] %s51
      %57 = dma.hbm_to_vmem [thread:$0]  %s3, 2048, %s52, [#allocation7], 256, 256, 16
    $region17: #{tpu_custom_call.1} parent=1 // pred_fallthru
      _
    // Predicated region
    $region18: #{tpu_custom_call.1} parent=1 // pred_check
      _
    $region19: #{tpu_custom_call.1} parent=1 // pred_check_branch
      %59 = sbr.rel (0) target = $region21
    $region20: #{tpu_custom_call.1} parent=1 // pred_region
      _
    $region21: #{tpu_custom_call.1} parent=1 // pred_fallthru
      _
    // Predicated region
    $region22: #{tpu_custom_call.1} parent=1 // pred_check
      _
    $region23: #{tpu_custom_call.1} parent=1 // pred_check_branch
      %61 = sbr.rel (0) target = $region25
    $region24: #{tpu_custom_call.1} parent=1 // pred_region
      %s63 = ssub.s32 2048, 2048
      %64 = vsyncadd [#allocation10], %s63
      %s65 = sshll.u32 [#allocation9], 4
      %s66 = int_to_ptr.vmem [resolvable:$true] %s65
      %71 = dma.hbm_to_vmem [thread:$0]  %s5, 2048, %s66, [#allocation10], 128, 128, 8
    $region25: #{tpu_custom_call.1} parent=1 // pred_fallthru
      _
    // Predicated region
    $region26: #{tpu_custom_call.1} parent=1 // pred_check
      _
    $region27: #{tpu_custom_call.1} parent=1 // pred_check_branch
      %73 = sbr.rel (0) target = $region29
    $region28: #{tpu_custom_call.1} parent=1 // pred_region
      %s75 = ssub.s32 12288, 12288
      %76 = vsyncadd [#allocation10], %s75
      %s77 = sshll.u32 [#allocation11], 4
      %s78 = int_to_ptr.vmem [resolvable:$true] %s77
      %83 = dma.hbm_to_vmem [thread:$0]  %s6, 12288, %s78, [#allocation10], 1536, 1536, 96
    $region29: #{tpu_custom_call.1} parent=1 // pred_fallthru
      _
    // Predicated region
    $region30: #{tpu_custom_call.1} parent=1 // pred_check
      _
    $region31: #{tpu_custom_call.1} parent=1 // pred_check_branch
      %85 = sbr.rel (0) target = $region33
    $region32: #{tpu_custom_call.1} parent=1 // pred_region
      _
    $region33: #{tpu_custom_call.1} parent=1 // pred_fallthru
      _
    // Predicated region
    $region34: #{tpu_custom_call.1} parent=1 // pred_check
      _
    $region35: #{tpu_custom_call.1} parent=1 // pred_check_branch
      %87 = sbr.rel (0) target = $region37
    $region36: #{tpu_custom_call.1} parent=1 // pred_region
      %s89 = ssub.s32 18432, 18432
      %90 = vsyncadd [#allocation13], %s89
      %s91 = sshll.u32 [#allocation12], 4
      %s92 = int_to_ptr.vmem [resolvable:$true] %s91
      %97 = dma.hbm_to_vmem [thread:$0]  %s8, 18432, %s92, [#allocation13], 128, 128, 8
    $region37: #{tpu_custom_call.1} parent=1 // pred_fallthru
      _
    // Predicated region
    $region38: #{tpu_custom_call.1} parent=1 // pred_check
      _
    $region39: #{tpu_custom_call.1} parent=1 // pred_check_branch
      %99 = sbr.rel (0) target = $region41
    $region40: #{tpu_custom_call.1} parent=1 // pred_region
      _
    $region41: #{tpu_custom_call.1} parent=1 // pred_fallthru
      _
    // Predicated region
    $region42: #{tpu_custom_call.1} parent=1 // pred_check
      _
    $region43: #{tpu_custom_call.1} parent=1 // pred_check_branch
      %101 = sbr.rel (0) target = $region45
    $region44: #{tpu_custom_call.1} parent=1 // pred_region
      %102 = dma.done [#allocation4], 3072
    $region45: #{tpu_custom_call.1} parent=1 // pred_fallthru
      _
    // Predicated region
    $region46: #{tpu_custom_call.1} parent=1 // pred_check
      _
    $region47: #{tpu_custom_call.1} parent=1 // pred_check_branch
      %104 = sbr.rel (0) target = $region49
    $region48: #{tpu_custom_call.1} parent=1 // pred_region
      %105 = dma.done [#allocation7], 1024
    $region49: #{tpu_custom_call.1} parent=1 // pred_fallthru
      _
    // Predicated region
    $region50: #{tpu_custom_call.1} parent=1 // pred_check
      _
    $region51: #{tpu_custom_call.1} parent=1 // pred_check_branch
      %107 = sbr.rel (0) target = $region53
    $region52: #{tpu_custom_call.1} parent=1 // pred_region
      %108 = dma.done [#allocation7], 2048
    $region53: #{tpu_custom_call.1} parent=1 // pred_fallthru
      _
    // Predicated region
    $region54: #{tpu_custom_call.1} parent=1 // pred_check
      _
    $region55: #{tpu_custom_call.1} parent=1 // pred_check_branch
      %110 = sbr.rel (0) target = $region57
    $region56: #{tpu_custom_call.1} parent=1 // pred_region
      %111 = dma.done [#allocation10], 2048
    $region57: #{tpu_custom_call.1} parent=1 // pred_fallthru
      _
    // Predicated region
    $region58: #{tpu_custom_call.1} parent=1 // pred_check
      _
    $region59: #{tpu_custom_call.1} parent=1 // pred_check_branch
      %113 = sbr.rel (0) target = $region61
    $region60: #{tpu_custom_call.1} parent=1 // pred_region
      %114 = dma.done [#allocation10], 12288
    $region61: #{tpu_custom_call.1} parent=1 // pred_fallthru
      _
    // Predicated region
    $region62: #{tpu_custom_call.1} parent=1 // pred_check
      _
    $region63: #{tpu_custom_call.1} parent=1 // pred_check_branch
      %116 = sbr.rel (0) target = $region65
    $region64: #{tpu_custom_call.1} parent=1 // pred_region
      %117 = dma.done [#allocation13], 18432
    $region65: #{tpu_custom_call.1} parent=1 // pred_fallthru
      _
    %v118 = vld [vmem:[#allocation3] sm:$0xff]
    %v119 = vld [vmem:[#allocation3 + $0x8] sm:$0xff]
    %v120 = vld [vmem:[#allocation3 + $0x10] sm:$0xff]
    %v121 = vld [vmem:[#allocation3 + $0x18] sm:$0xff]
    %v122 = vld [vmem:[#allocation3 + $0x20] sm:$0xff]
    %v123 = vld [vmem:[#allocation3 + $0x28] sm:$0xff]
    %v124 = vld [vmem:[#allocation3 + $0x30] sm:$0xff]
    %v125 = vld [vmem:[#allocation3 + $0x38] sm:$0xff]
    %v126 = vld [vmem:[#allocation3 + $0x40] sm:$0xff]
    %v127 = vld [vmem:[#allocation3 + $0x48] sm:$0xff]
    %v128 = vld [vmem:[#allocation3 + $0x50] sm:$0xff]
    %v129 = vld [vmem:[#allocation3 + $0x58] sm:$0xff]
    %v130 = vld [vmem:[#allocation3 + $0x60] sm:$0xff]
    %v131 = vld [vmem:[#allocation3 + $0x68] sm:$0xff]
    %v132 = vld [vmem:[#allocation3 + $0x70] sm:$0xff]
    %v133 = vld [vmem:[#allocation3 + $0x78] sm:$0xff]
    %v134 = vld [vmem:[#allocation3 + $0x80] sm:$0xff]
    %v135 = vld [vmem:[#allocation3 + $0x88] sm:$0xff]
    %v136 = vld [vmem:[#allocation3 + $0x90] sm:$0xff]
    %v137 = vld [vmem:[#allocation3 + $0x98] sm:$0xff]
    %v138 = vld [vmem:[#allocation3 + $0xa0] sm:$0xff]
    %v139 = vld [vmem:[#allocation3 + $0xa8] sm:$0xff]
    %v140 = vld [vmem:[#allocation3 + $0xb0] sm:$0xff]
    %v141 = vld [vmem:[#allocation3 + $0xb8] sm:$0xff]
    %v142 = vld [vmem:[#allocation6] sm:$0xff]
    %v143 = vld [vmem:[#allocation6 + $0x8] sm:$0xff]
    %v144 = vld [vmem:[#allocation6 + $0x10] sm:$0xff]
    %v145 = vld [vmem:[#allocation6 + $0x18] sm:$0xff]
    %v146 = vld [vmem:[#allocation6 + $0x20] sm:$0xff]
    %v147 = vld [vmem:[#allocation6 + $0x28] sm:$0xff]
    %v148 = vld [vmem:[#allocation6 + $0x30] sm:$0xff]
    %v149 = vld [vmem:[#allocation6 + $0x38] sm:$0xff]
    %v150 = vld [vmem:[%s2] sm:$0x3]
    %v152 = vlaneseq
    %v153 = vshrl.u32 %v152, 7
    %v154 = vsub.s32 0, %v153
    %v155 = vrot.slane %v150, %v154
    %v156 = vlaneseq
    %v157 = vshrl.u32 %v156, 7
    %v158 = vsub.s32 1, %v157
    %v159 = vrot.slane %v150, %v158
    %vm162 = vcmask 261120
    %v164 = vsel %vm162, %v118, 0
    %v167 = vsel %vm162, %v119, 0
    %v170 = vsel %vm162, %v120, 0
    %v173 = vsel %vm162, %v121, 0
    %v176 = vsel %vm162, %v122, 0
    %v179 = vsel %vm162, %v123, 0
    %v182 = vsel %vm162, %v124, 0
    %v185 = vsel %vm162, %v125, 0
    %v188 = vsel %vm162, %v126, 0
    %v191 = vsel %vm162, %v127, 0
    %v194 = vsel %vm162, %v128, 0
    %v197 = vsel %vm162, %v129, 0
    %v200 = vsel %vm162, %v130, 0
    %v203 = vsel %vm162, %v131, 0
    %v206 = vsel %vm162, %v132, 0
    %v209 = vsel %vm162, %v133, 0
    %v212 = vsel %vm162, %v134, 0
    %v215 = vsel %vm162, %v135, 0
    %v218 = vsel %vm162, %v136, 0
    %v221 = vsel %vm162, %v137, 0
    %v224 = vsel %vm162, %v138, 0
    %v227 = vsel %vm162, %v139, 0
    %v230 = vsel %vm162, %v140, 0
    %v233 = vsel %vm162, %v141, 0
    %235 = vmatprep.subr.mxu0 0.0
    %236 = vmatpush1.msra.mxu0 0.0
    %237 = vmatprep.subr.mxu0 0.0
    %238 = vmatpush1.msra.mxu0 0.0
    %239 = vmatprep.subr.mxu0 0.0
    %240 = vmatpush1.msra.mxu0 0.0
    %241 = vmatprep.subr.mxu0 0.0
    %242 = vmatpush1.msra.mxu0 0.0
    %243 = vmatprep.subr.mxu0 0.0
    %244 = vmatpush1.msra.mxu0 0.0
    %245 = vmatprep.subr.mxu0 0.0
    %246 = vmatpush1.msra.mxu0 0.0
    %247 = vmatprep.subr.mxu0 0.0
    %248 = vmatpush1.msra.mxu0 0.0
    %249 = vmatprep.subr.mxu0 0.0
    %250 = vmatpush1.msra.mxu0 0.0
    %251 = vmatprep.subr.mxu0 0.0
    %252 = vmatpush1.msra.mxu0 0.0
    %253 = vmatprep.subr.mxu0 0.0
    %254 = vmatpush1.msra.mxu0 0.0
    %255 = vmatprep.subr.mxu0 0.0
    %256 = vmatpush1.msra.mxu0 0.0
    %257 = vmatprep.subr.mxu0 0.0
    %258 = vmatpush1.msra.mxu0 0.0
    %259 = vmatprep.subr.mxu0 %v149
    %260 = vmatpush1.msra.mxu0 %v148
    %261 = vmatprep.subr.mxu0 %v147
    %262 = vmatpush1.msra.mxu0 %v146
    %263 = vmatprep.subr.mxu0 %v145
    %264 = vmatpush1.msra.mxu0 %v144
    %265 = vmatprep.subr.mxu0 %v143
    %266 = vmatpush1.msra.mxu0 %v142
    %267 = vmatprep.subr.mxu0 0.0
    %268 = vmatpush2.msra.mxu0 0.0
    %269 = vmatprep.subr.mxu0 0.0
    %270 = vmatpush2.msra.mxu0 0.0
    %271 = vmatprep.subr.mxu0 0.0
    %272 = vmatpush2.msra.mxu0 0.0
    %273 = vmatprep.subr.mxu0 0.0
    %274 = vmatpush2.msra.mxu0 0.0
    %275 = vmatprep.subr.mxu0 0.0
    %276 = vmatpush2.msra.mxu0 0.0
    %277 = vmatprep.subr.mxu0 0.0
    %278 = vmatpush2.msra.mxu0 0.0
    %279 = vmatprep.subr.mxu0 0.0
    %280 = vmatpush2.msra.mxu0 0.0
    %281 = vmatprep.subr.mxu0 0.0
    %282 = vmatpush2.msra.mxu0 0.0
    %283 = vmatprep.subr.mxu0 0.0
    %284 = vmatpush2.msra.mxu0 0.0
    %285 = vmatprep.subr.mxu0 0.0
    %286 = vmatpush2.msra.mxu0 0.0
    %287 = vmatprep.subr.mxu0 0.0
    %288 = vmatpush2.msra.mxu0 0.0
    %289 = vmatprep.subr.mxu0 0.0
    %290 = vmatpush2.msra.mxu0 0.0
    %291 = vmatprep.subr.mxu0 0.0
    %292 = vmatpush2.msra.mxu0 0.0
    %293 = vmatprep.subr.mxu0 0.0
    %294 = vmatpush2.msra.mxu0 0.0
    %295 = vmatprep.subr.mxu0 0.0
    %296 = vmatpush2.msra.mxu0 0.0
    %297 = vmatprep.subr.mxu0 0.0
    %298 = vmatpush2.msra.mxu0 0.0
    %299 = vmatprep.mubr.f32.mxu0 0.0
    %300 = vmatmul.mubr.f32.gmra.mxu0 %v164
    %v301 = vpop.f32.mrf.mxu0
    %v302 = vadd.f32 %v155, %v301
    %v303 = vpop.f32.mrf.mxu0
    %v304 = vadd.f32 %v159, %v303
    %305 = vmatprep.mubr.f32.mxu0 0.0
    %306 = vmatmul.mubr.f32.gmra.mxu0 %v167
    %v307 = vpop.f32.mrf.mxu0
    %v308 = vadd.f32 %v155, %v307
    %v309 = vpop.f32.mrf.mxu0
    %v310 = vadd.f32 %v159, %v309
    %311 = vmatprep.mubr.f32.mxu0 0.0
    %312 = vmatmul.mubr.f32.gmra.mxu0 %v170
    %v313 = vpop.f32.mrf.mxu0
    %v314 = vadd.f32 %v155, %v313
    %v315 = vpop.f32.mrf.mxu0
    %v316 = vadd.f32 %v159, %v315
    %317 = vmatprep.mubr.f32.mxu0 0.0
    %318 = vmatmul.mubr.f32.gmra.mxu0 %v173
    %v319 = vpop.f32.mrf.mxu0
    %v320 = vadd.f32 %v155, %v319
    %v321 = vpop.f32.mrf.mxu0
    %v322 = vadd.f32 %v159, %v321
    %323 = vmatprep.mubr.f32.mxu0 0.0
    %324 = vmatmul.mubr.f32.gmra.mxu0 %v176
    %v325 = vpop.f32.mrf.mxu0
    %v326 = vadd.f32 %v155, %v325
    %v327 = vpop.f32.mrf.mxu0
    %v328 = vadd.f32 %v159, %v327
    %329 = vmatprep.mubr.f32.mxu0 0.0
    %330 = vmatmul.mubr.f32.gmra.mxu0 %v179
    %v331 = vpop.f32.mrf.mxu0
    %v332 = vadd.f32 %v155, %v331
    %v333 = vpop.f32.mrf.mxu0
    %v334 = vadd.f32 %v159, %v333
    %335 = vmatprep.mubr.f32.mxu0 0.0
    %336 = vmatmul.mubr.f32.gmra.mxu0 %v182
    %v337 = vpop.f32.mrf.mxu0
    %v338 = vadd.f32 %v155, %v337
    %v339 = vpop.f32.mrf.mxu0
    %v340 = vadd.f32 %v159, %v339
    %341 = vmatprep.mubr.f32.mxu0 0.0
    %342 = vmatmul.mubr.f32.gmra.mxu0 %v185
    %v343 = vpop.f32.mrf.mxu0
    %v344 = vadd.f32 %v155, %v343
    %v345 = vpop.f32.mrf.mxu0
    %v346 = vadd.f32 %v159, %v345
    %347 = vmatprep.mubr.f32.mxu0 0.0
    %348 = vmatmul.mubr.f32.gmra.mxu0 %v188
    %v349 = vpop.f32.mrf.mxu0
    %v350 = vadd.f32 %v155, %v349
    %v351 = vpop.f32.mrf.mxu0
    %v352 = vadd.f32 %v159, %v351
    %353 = vmatprep.mubr.f32.mxu0 0.0
    %354 = vmatmul.mubr.f32.gmra.mxu0 %v191
    %v355 = vpop.f32.mrf.mxu0
    %v356 = vadd.f32 %v155, %v355
    %v357 = vpop.f32.mrf.mxu0
    %v358 = vadd.f32 %v159, %v357
    %359 = vmatprep.mubr.f32.mxu0 0.0
    %360 = vmatmul.mubr.f32.gmra.mxu0 %v194
    %v361 = vpop.f32.mrf.mxu0
    %v362 = vadd.f32 %v155, %v361
    %v363 = vpop.f32.mrf.mxu0
    %v364 = vadd.f32 %v159, %v363
    %365 = vmatprep.mubr.f32.mxu0 0.0
    %366 = vmatmul.mubr.f32.gmra.mxu0 %v197
    %v367 = vpop.f32.mrf.mxu0
    %v368 = vadd.f32 %v155, %v367
    %v369 = vpop.f32.mrf.mxu0
    %v370 = vadd.f32 %v159, %v369
    %371 = vmatprep.mubr.f32.mxu0 0.0
    %372 = vmatmul.mubr.f32.gmra.mxu0 %v200
    %v373 = vpop.f32.mrf.mxu0
    %v374 = vadd.f32 %v155, %v373
    %v375 = vpop.f32.mrf.mxu0
    %v376 = vadd.f32 %v159, %v375
    %377 = vmatprep.mubr.f32.mxu0 0.0
    %378 = vmatmul.mubr.f32.gmra.mxu0 %v203
    %v379 = vpop.f32.mrf.mxu0
    %v380 = vadd.f32 %v155, %v379
    %v381 = vpop.f32.mrf.mxu0
    %v382 = vadd.f32 %v159, %v381
    %383 = vmatprep.mubr.f32.mxu0 0.0
    %384 = vmatmul.mubr.f32.gmra.mxu0 %v206
    %v385 = vpop.f32.mrf.mxu0
    %v386 = vadd.f32 %v155, %v385
    %v387 = vpop.f32.mrf.mxu0
    %v388 = vadd.f32 %v159, %v387
    %389 = vmatprep.mubr.f32.mxu0 0.0
    %390 = vmatmul.mubr.f32.gmra.mxu0 %v209
    %v391 = vpop.f32.mrf.mxu0
    %v392 = vadd.f32 %v155, %v391
    %v393 = vpop.f32.mrf.mxu0
    %v394 = vadd.f32 %v159, %v393
    %395 = vmatprep.mubr.f32.mxu0 0.0
    %396 = vmatmul.mubr.f32.gmra.mxu0 %v212
    %v397 = vpop.f32.mrf.mxu0
    %v398 = vadd.f32 %v155, %v397
    %v399 = vpop.f32.mrf.mxu0
    %v400 = vadd.f32 %v159, %v399
    %401 = vmatprep.mubr.f32.mxu0 0.0
    %402 = vmatmul.mubr.f32.gmra.mxu0 %v215
    %v403 = vpop.f32.mrf.mxu0
    %v404 = vadd.f32 %v155, %v403
    %v405 = vpop.f32.mrf.mxu0
    %v406 = vadd.f32 %v159, %v405
    %407 = vmatprep.mubr.f32.mxu0 0.0
    %408 = vmatmul.mubr.f32.gmra.mxu0 %v218
    %v409 = vpop.f32.mrf.mxu0
    %v410 = vadd.f32 %v155, %v409
    %v411 = vpop.f32.mrf.mxu0
    %v412 = vadd.f32 %v159, %v411
    %413 = vmatprep.mubr.f32.mxu0 0.0
    %414 = vmatmul.mubr.f32.gmra.mxu0 %v221
    %v415 = vpop.f32.mrf.mxu0
    %v416 = vadd.f32 %v155, %v415
    %v417 = vpop.f32.mrf.mxu0
    %v418 = vadd.f32 %v159, %v417
    %419 = vmatprep.mubr.f32.mxu0 0.0
    %420 = vmatmul.mubr.f32.gmra.mxu0 %v224
    %v421 = vpop.f32.mrf.mxu0
    %v422 = vadd.f32 %v155, %v421
    %v423 = vpop.f32.mrf.mxu0
    %v424 = vadd.f32 %v159, %v423
    %425 = vmatprep.mubr.f32.mxu0 0.0
    %426 = vmatmul.mubr.f32.gmra.mxu0 %v227
    %v427 = vpop.f32.mrf.mxu0
    %v428 = vadd.f32 %v155, %v427
    %v429 = vpop.f32.mrf.mxu0
    %v430 = vadd.f32 %v159, %v429
    %431 = vmatprep.mubr.f32.mxu0 0.0
    %432 = vmatmul.mubr.f32.gmra.mxu0 %v230
    %v433 = vpop.f32.mrf.mxu0
    %v434 = vadd.f32 %v155, %v433
    %v435 = vpop.f32.mrf.mxu0
    %v436 = vadd.f32 %v159, %v435
    %437 = vmatprep.mubr.f32.mxu0 0.0
    %438 = vmatmul.mubr.f32.gmra.mxu0 %v233
    %v439 = vpop.f32.mrf.mxu0
    %v440 = vadd.f32 %v155, %v439
    %v441 = vpop.f32.mrf.mxu0
    %v442 = vadd.f32 %v159, %v441
    %443 = vdwg.mxu0
    %v444 = vld [vmem:[#allocation9] sm:$0xff]
    %v445 = vld [vmem:[#allocation9 + $0x8] sm:$0xff]
    %v446 = vld [vmem:[#allocation9 + $0x10] sm:$0xff]
    %v447 = vld [vmem:[#allocation9 + $0x18] sm:$0xff]
    %v448 = vld [vmem:[#allocation9 + $0x20] sm:$0xff]
    %v449 = vld [vmem:[#allocation9 + $0x28] sm:$0xff]
    %v450 = vld [vmem:[#allocation9 + $0x30] sm:$0xff]
    %v451 = vld [vmem:[#allocation9 + $0x38] sm:$0xff]
    %v453 = vsel %vm162, 0.0, 0
    %455 = vmatprep.subr.mxu0 0.0
    %456 = vmatpush1.msra.mxu0 0.0
    %457 = vmatprep.subr.mxu0 0.0
    %458 = vmatpush1.msra.mxu0 0.0
    %459 = vmatprep.subr.mxu0 0.0
    %460 = vmatpush1.msra.mxu0 0.0
    %461 = vmatprep.subr.mxu0 0.0
    %462 = vmatpush1.msra.mxu0 0.0
    %463 = vmatprep.subr.mxu0 0.0
    %464 = vmatpush1.msra.mxu0 0.0
    %465 = vmatprep.subr.mxu0 0.0
    %466 = vmatpush1.msra.mxu0 0.0
    %467 = vmatprep.subr.mxu0 0.0
    %468 = vmatpush1.msra.mxu0 0.0
    %469 = vmatprep.subr.mxu0 0.0
    %470 = vmatpush1.msra.mxu0 0.0
    %471 = vmatprep.subr.mxu0 0.0
    %472 = vmatpush1.msra.mxu0 0.0
    %473 = vmatprep.subr.mxu0 0.0
    %474 = vmatpush1.msra.mxu0 0.0
    %475 = vmatprep.subr.mxu0 0.0
    %476 = vmatpush1.msra.mxu0 0.0
    %477 = vmatprep.subr.mxu0 0.0
    %478 = vmatpush1.msra.mxu0 0.0
    %479 = vmatprep.subr.mxu0 0.0
    %480 = vmatpush1.msra.mxu0 %v447
    %481 = vmatprep.subr.mxu0 0.0
    %482 = vmatpush1.msra.mxu0 %v446
    %483 = vmatprep.subr.mxu0 0.0
    %484 = vmatpush1.msra.mxu0 %v445
    %485 = vmatprep.subr.mxu0 0.0
    %486 = vmatpush1.msra.mxu0 %v444
    %487 = vmatprep.subr.mxu0 0.0
    %488 = vmatpush2.msra.mxu0 0.0
    %489 = vmatprep.subr.mxu0 0.0
    %490 = vmatpush2.msra.mxu0 0.0
    %491 = vmatprep.subr.mxu0 0.0
    %492 = vmatpush2.msra.mxu0 0.0
    %493 = vmatprep.subr.mxu0 0.0
    %494 = vmatpush2.msra.mxu0 0.0
    %495 = vmatprep.subr.mxu0 0.0
    %496 = vmatpush2.msra.mxu0 0.0
    %497 = vmatprep.subr.mxu0 0.0
    %498 = vmatpush2.msra.mxu0 0.0
    %499 = vmatprep.subr.mxu0 0.0
    %500 = vmatpush2.msra.mxu0 0.0
    %501 = vmatprep.subr.mxu0 0.0
    %502 = vmatpush2.msra.mxu0 0.0
    %503 = vmatprep.subr.mxu0 0.0
    %504 = vmatpush2.msra.mxu0 0.0
    %505 = vmatprep.subr.mxu0 0.0
    %506 = vmatpush2.msra.mxu0 0.0
    %507 = vmatprep.subr.mxu0 0.0
    %508 = vmatpush2.msra.mxu0 0.0
    %509 = vmatprep.subr.mxu0 0.0
    %510 = vmatpush2.msra.mxu0 0.0
    %511 = vmatprep.subr.mxu0 0.0
    %512 = vmatpush2.msra.mxu0 0.0
    %513 = vmatprep.subr.mxu0 0.0
    %514 = vmatpush2.msra.mxu0 0.0
    %515 = vmatprep.subr.mxu0 0.0
    %516 = vmatpush2.msra.mxu0 0.0
    %517 = vmatprep.subr.mxu0 0.0
    %518 = vmatpush2.msra.mxu0 0.0
    %519 = vmatprep.mubr.f32.mxu0 0.0
    %520 = vmatmul.mubr.f32.gmra.mxu0 %v453
    %v521 = vpop.f32.mrf.mxu0
    %v522 = vadd.f32 0.0, %v521
    %v523 = vpop.f32.mrf.mxu0
    %524 = vmatprep.mubr.f32.mxu0 0.0
    %525 = vmatmul.mubr.f32.gmra.mxu0 %v453
    %v526 = vpop.f32.mrf.mxu0
    %v527 = vadd.f32 0.0, %v526
    %v528 = vpop.f32.mrf.mxu0
    %529 = vmatprep.mubr.f32.mxu0 0.0
    %530 = vmatmul.mubr.f32.gmra.mxu0 %v453
    %v531 = vpop.f32.mrf.mxu0
    %v532 = vadd.f32 0.0, %v531
    %v533 = vpop.f32.mrf.mxu0
    %534 = vdwg.mxu0
    %v535 = vadd.f32 %v302, %v522
    %v536 = vadd.f32 %v308, %v527
    %v537 = vadd.f32 %v314, %v532
    %538 = vmatprep.subr.mxu0 0.0
    %539 = vmatpush1.msra.mxu0 0.0
    %540 = vmatprep.subr.mxu0 0.0
    %541 = vmatpush1.msra.mxu0 0.0
    %542 = vmatprep.subr.mxu0 0.0
    %543 = vmatpush1.msra.mxu0 0.0
    %544 = vmatprep.subr.mxu0 0.0
    %545 = vmatpush1.msra.mxu0 0.0
    %546 = vmatprep.subr.mxu0 0.0
    %547 = vmatpush1.msra.mxu0 0.0
    %548 = vmatprep.subr.mxu0 0.0
    %549 = vmatpush1.msra.mxu0 0.0
    %550 = vmatprep.subr.mxu0 0.0
    %551 = vmatpush1.msra.mxu0 0.0
    %552 = vmatprep.subr.mxu0 0.0
    %553 = vmatpush1.msra.mxu0 0.0
    %554 = vmatprep.subr.mxu0 0.0
    %555 = vmatpush1.msra.mxu0 0.0
    %556 = vmatprep.subr.mxu0 0.0
    %557 = vmatpush1.msra.mxu0 0.0
    %558 = vmatprep.subr.mxu0 0.0
    %559 = vmatpush1.msra.mxu0 0.0
    %560 = vmatprep.subr.mxu0 0.0
    %561 = vmatpush1.msra.mxu0 0.0
    %562 = vmatprep.subr.mxu0 0.0
    %563 = vmatpush1.msra.mxu0 %v451
    %564 = vmatprep.subr.mxu0 0.0
    %565 = vmatpush1.msra.mxu0 %v450
    %566 = vmatprep.subr.mxu0 0.0
    %567 = vmatpush1.msra.mxu0 %v449
    %568 = vmatprep.subr.mxu0 0.0
    %569 = vmatpush1.msra.mxu0 %v448
    %570 = vmatprep.subr.mxu0 0.0
    %571 = vmatpush2.msra.mxu0 0.0
    %572 = vmatprep.subr.mxu0 0.0
    %573 = vmatpush2.msra.mxu0 0.0
    %574 = vmatprep.subr.mxu0 0.0
    %575 = vmatpush2.msra.mxu0 0.0
    %576 = vmatprep.subr.mxu0 0.0
    %577 = vmatpush2.msra.mxu0 0.0
    %578 = vmatprep.subr.mxu0 0.0
    %579 = vmatpush2.msra.mxu0 0.0
    %580 = vmatprep.subr.mxu0 0.0
    %581 = vmatpush2.msra.mxu0 0.0
    %582 = vmatprep.subr.mxu0 0.0
    %583 = vmatpush2.msra.mxu0 0.0
    %584 = vmatprep.subr.mxu0 0.0
    %585 = vmatpush2.msra.mxu0 0.0
    %586 = vmatprep.subr.mxu0 0.0
    %587 = vmatpush2.msra.mxu0 0.0
    %588 = vmatprep.subr.mxu0 0.0
    %589 = vmatpush2.msra.mxu0 0.0
    %590 = vmatprep.subr.mxu0 0.0
    %591 = vmatpush2.msra.mxu0 0.0
    %592 = vmatprep.subr.mxu0 0.0
    %593 = vmatpush2.msra.mxu0 0.0
    %594 = vmatprep.subr.mxu0 0.0
    %595 = vmatpush2.msra.mxu0 0.0
    %596 = vmatprep.subr.mxu0 0.0
    %597 = vmatpush2.msra.mxu0 0.0
    %598 = vmatprep.subr.mxu0 0.0
    %599 = vmatpush2.msra.mxu0 0.0
    %600 = vmatprep.subr.mxu0 0.0
    %601 = vmatpush2.msra.mxu0 0.0
    %602 = vmatprep.mubr.f32.mxu0 0.0
    %603 = vmatmul.mubr.f32.gmra.mxu0 %v453
    %v604 = vpop.f32.mrf.mxu0
    %v605 = vadd.f32 0.0, %v604
    %v606 = vpop.f32.mrf.mxu0
    %607 = vmatprep.mubr.f32.mxu0 0.0
    %608 = vmatmul.mubr.f32.gmra.mxu0 %v453
    %v609 = vpop.f32.mrf.mxu0
    %v610 = vadd.f32 0.0, %v609
    %v611 = vpop.f32.mrf.mxu0
    %612 = vmatprep.mubr.f32.mxu0 0.0
    %613 = vmatmul.mubr.f32.gmra.mxu0 %v453
    %v614 = vpop.f32.mrf.mxu0
    %v615 = vadd.f32 0.0, %v614
    %v616 = vpop.f32.mrf.mxu0
    %617 = vdwg.mxu0
    %v618 = vadd.f32 %v430, %v605
    %v619 = vadd.f32 %v436, %v610
    %v620 = vadd.f32 %v442, %v615
    %v621 = vtanh.pop %v535
    %v622 = vtanh.pop %v618
    %v623 = vtanh.pop %v536
    %v624 = vtanh.pop %v619
    %v625 = vtanh.pop %v537
    %v626 = vtanh.pop %v620
    %v627 = vmul.f32 %v621, 0.5
    %v628 = vmul.f32 %v623, 0.5
    %v629 = vmul.f32 %v625, 0.5
    %v630 = vadd.f32 %v627, 0.5
    %v631 = vadd.f32 %v628, 0.5
    %v632 = vadd.f32 %v629, 0.5
    %v633 = vmul.f32 %v630, 0.0
    %v634 = vmul.f32 %v631, 0.0
    %v635 = vmul.f32 %v632, 0.0
    %639 = vrot.lane.b32.xlu0 %v621, 64
    %v640 = vpop.permute.xlu0 %639
    %641 = vrot.lane.b32.xlu0 %v623, 64
    %v642 = vpop.permute.xlu0 %641
    %643 = vrot.lane.b32.xlu0 %v625, 64
    %v644 = vpop.permute.xlu0 %643
    %v648 = vmul.f32 %v630, %v640
    %v649 = vmul.f32 %v631, %v642
    %v650 = vmul.f32 %v632, %v644
    %654 = vrot.lane.b32.xlu0 %v648, 32
    %v655 = vpop.permute.xlu0 %654
    %656 = vrot.lane.b32.xlu0 %v649, 32
    %v657 = vpop.permute.xlu0 %656
    %658 = vrot.lane.b32.xlu0 %v650, 32
    %v659 = vpop.permute.xlu0 %658
    %v663 = vadd.f32 %v633, %v655
    %v664 = vadd.f32 %v634, %v657
    %v665 = vadd.f32 %v635, %v659
    %v666 = vtanh.pop %v663
    %v667 = vtanh.pop %v664
    %v668 = vtanh.pop %v665
    %672 = vrot.lane.b32.xlu0 %v666, 64
    %v673 = vpop.permute.xlu0 %672
    %674 = vrot.lane.b32.xlu0 %v667, 64
    %v675 = vpop.permute.xlu0 %674
    %676 = vrot.lane.b32.xlu0 %v668, 64
    %v677 = vpop.permute.xlu0 %676
    %v681 = vmul.f32 %v630, %v673
    %v682 = vmul.f32 %v631, %v675
    %v683 = vmul.f32 %v632, %v677
    %v684 = vmul.f32 %v622, 0.5
    %v685 = vmul.f32 %v624, 0.5
    %v686 = vmul.f32 %v626, 0.5
    %v687 = vadd.f32 %v684, 0.5
    %v688 = vadd.f32 %v685, 0.5
    %v689 = vadd.f32 %v686, 0.5
    %v690 = vmul.f32 %v687, 0.0
    %v691 = vmul.f32 %v688, 0.0
    %v692 = vmul.f32 %v689, 0.0
    %696 = vrot.lane.b32.xlu0 %v622, 64
    %v697 = vpop.permute.xlu0 %696
    %698 = vrot.lane.b32.xlu0 %v624, 64
    %v699 = vpop.permute.xlu0 %698
    %700 = vrot.lane.b32.xlu0 %v626, 64
    %v701 = vpop.permute.xlu0 %700
    %v705 = vmul.f32 %v687, %v697
    %v706 = vmul.f32 %v688, %v699
    %v707 = vmul.f32 %v689, %v701
    %711 = vrot.lane.b32.xlu0 %v705, 32
    %v712 = vpop.permute.xlu0 %711
    %713 = vrot.lane.b32.xlu0 %v706, 32
    %v714 = vpop.permute.xlu0 %713
    %715 = vrot.lane.b32.xlu0 %v707, 32
    %v716 = vpop.permute.xlu0 %715
    %v720 = vadd.f32 %v690, %v712
    %v721 = vadd.f32 %v691, %v714
    %v722 = vadd.f32 %v692, %v716
    %v723 = vtanh.pop %v720
    %v724 = vtanh.pop %v721
    %v725 = vtanh.pop %v722
    %729 = vrot.lane.b32.xlu0 %v723, 64
    %v730 = vpop.permute.xlu0 %729
    %731 = vrot.lane.b32.xlu0 %v724, 64
    %v732 = vpop.permute.xlu0 %731
    %733 = vrot.lane.b32.xlu0 %v725, 64
    %v734 = vpop.permute.xlu0 %733
    %v738 = vmul.f32 %v687, %v730
    %v739 = vmul.f32 %v688, %v732
    %v740 = vmul.f32 %v689, %v734
    %744 = vrot.lane.b32.xlu0 %v681, 32
    %v745 = vpop.permute.xlu0 %744
    %746 = vrot.lane.b32.xlu0 %v682, 32
    %v747 = vpop.permute.xlu0 %746
    %748 = vrot.lane.b32.xlu0 %v683, 32
    %v749 = vpop.permute.xlu0 %748
    %753 = vst.msk [vmem:[#allocation2] sm:$0xff] %vm162, %v745
    %754 = vst.msk [vmem:[#allocation2 + $0x8] sm:$0xff] %vm162, %v747
    %755 = vst.msk [vmem:[#allocation2 + $0x10] sm:$0xff] %vm162, %v749
    %759 = vrot.lane.b32.xlu0 %v738, 64
    %v760 = vpop.permute.xlu0 %759
    %761 = vrot.lane.b32.xlu0 %v739, 64
    %v762 = vpop.permute.xlu0 %761
    %763 = vrot.lane.b32.xlu0 %v740, 64
    %v764 = vpop.permute.xlu0 %763
    %s768 = scalar_lea.vmem [#allocation2], 168
    %vm769 = vcmask 523520
    %770 = vst.msk [vmem:[%s768] sm:$0xff] %vm769, %v760
    %771 = vst.msk [vmem:[%s768 + $0x8] sm:$0xff] %vm769, %v762
    %772 = vst.msk [vmem:[%s768 + $0x10] sm:$0xff] %vm769, %v764
    %v773 = vsel %vm162, %v745, 0
    %v775 = vsel %vm162, %v747, 0
    %v777 = vsel %vm162, %v749, 0
    %779 = vmatprep.subr.mxu0 0.0
    %780 = vmatpush1.msra.mxu0 0.0
    %781 = vmatprep.subr.mxu0 0.0
    %782 = vmatpush1.msra.mxu0 0.0
    %783 = vmatprep.subr.mxu0 0.0
    %784 = vmatpush1.msra.mxu0 0.0
    %785 = vmatprep.subr.mxu0 0.0
    %786 = vmatpush1.msra.mxu0 0.0
    %787 = vmatprep.subr.mxu0 0.0
    %788 = vmatpush1.msra.mxu0 0.0
    %789 = vmatprep.subr.mxu0 0.0
    %790 = vmatpush1.msra.mxu0 0.0
    %791 = vmatprep.subr.mxu0 0.0
    %792 = vmatpush1.msra.mxu0 0.0
    %793 = vmatprep.subr.mxu0 0.0
    %794 = vmatpush1.msra.mxu0 0.0
    %795 = vmatprep.subr.mxu0 0.0
    %796 = vmatpush1.msra.mxu0 0.0
    %797 = vmatprep.subr.mxu0 0.0
    %798 = vmatpush1.msra.mxu0 0.0
    %799 = vmatprep.subr.mxu0 0.0
    %800 = vmatpush1.msra.mxu0 0.0
    %801 = vmatprep.subr.mxu0 0.0
    %802 = vmatpush1.msra.mxu0 0.0
    %803 = vmatprep.subr.mxu0 0.0
    %804 = vmatpush1.msra.mxu0 %v447
    %805 = vmatprep.subr.mxu0 0.0
    %806 = vmatpush1.msra.mxu0 %v446
    %807 = vmatprep.subr.mxu0 0.0
    %808 = vmatpush1.msra.mxu0 %v445
    %809 = vmatprep.subr.mxu0 0.0
    %810 = vmatpush1.msra.mxu0 %v444
    %811 = vmatprep.subr.mxu0 0.0
    %812 = vmatpush2.msra.mxu0 0.0
    %813 = vmatprep.subr.mxu0 0.0
    %814 = vmatpush2.msra.mxu0 0.0
    %815 = vmatprep.subr.mxu0 0.0
    %816 = vmatpush2.msra.mxu0 0.0
    %817 = vmatprep.subr.mxu0 0.0
    %818 = vmatpush2.msra.mxu0 0.0
    %819 = vmatprep.subr.mxu0 0.0
    %820 = vmatpush2.msra.mxu0 0.0
    %821 = vmatprep.subr.mxu0 0.0
    %822 = vmatpush2.msra.mxu0 0.0
    %823 = vmatprep.subr.mxu0 0.0
    %824 = vmatpush2.msra.mxu0 0.0
    %825 = vmatprep.subr.mxu0 0.0
    %826 = vmatpush2.msra.mxu0 0.0
    %827 = vmatprep.subr.mxu0 0.0
    %828 = vmatpush2.msra.mxu0 0.0
    %829 = vmatprep.subr.mxu0 0.0
    %830 = vmatpush2.msra.mxu0 0.0
    %831 = vmatprep.subr.mxu0 0.0
    %832 = vmatpush2.msra.mxu0 0.0
    %833 = vmatprep.subr.mxu0 0.0
    %834 = vmatpush2.msra.mxu0 0.0
    %835 = vmatprep.subr.mxu0 0.0
    %836 = vmatpush2.msra.mxu0 0.0
    %837 = vmatprep.subr.mxu0 0.0
    %838 = vmatpush2.msra.mxu0 0.0
    %839 = vmatprep.subr.mxu0 0.0
    %840 = vmatpush2.msra.mxu0 0.0
    %841 = vmatprep.subr.mxu0 0.0
    %842 = vmatpush2.msra.mxu0 0.0
    %843 = vmatprep.mubr.f32.mxu0 0.0
    %844 = vmatmul.mubr.f32.gmra.mxu0 %v773
    %v845 = vpop.f32.mrf.mxu0
    %v846 = vadd.f32 0.0, %v845
    %v847 = vpop.f32.mrf.mxu0
    %848 = vmatprep.mubr.f32.mxu0 0.0
    %849 = vmatmul.mubr.f32.gmra.mxu0 %v775
    %v850 = vpop.f32.mrf.mxu0
    %v851 = vadd.f32 0.0, %v850
    %v852 = vpop.f32.mrf.mxu0
    %853 = vmatprep.mubr.f32.mxu0 0.0
    %854 = vmatmul.mubr.f32.gmra.mxu0 %v777
    %v855 = vpop.f32.mrf.mxu0
    %v856 = vadd.f32 0.0, %v855
    %v857 = vpop.f32.mrf.mxu0
    %858 = vdwg.mxu0
    %v859 = vadd.f32 %v320, %v846
    %v860 = vadd.f32 %v326, %v851
    %v861 = vadd.f32 %v332, %v856
    %862 = vrot.lane.b32.xlu0 %v738, 32
    %v863 = vpop.permute.xlu0 %862
    %864 = vrot.lane.b32.xlu0 %v739, 32
    %v865 = vpop.permute.xlu0 %864
    %866 = vrot.lane.b32.xlu0 %v740, 32
    %v867 = vpop.permute.xlu0 %866
    %v868 = vsel %vm162, %v863, 0
    %v870 = vsel %vm162, %v865, 0
    %v872 = vsel %vm162, %v867, 0
    %874 = vmatprep.subr.mxu0 0.0
    %875 = vmatpush1.msra.mxu0 0.0
    %876 = vmatprep.subr.mxu0 0.0
    %877 = vmatpush1.msra.mxu0 0.0
    %878 = vmatprep.subr.mxu0 0.0
    %879 = vmatpush1.msra.mxu0 0.0
    %880 = vmatprep.subr.mxu0 0.0
    %881 = vmatpush1.msra.mxu0 0.0
    %882 = vmatprep.subr.mxu0 0.0
    %883 = vmatpush1.msra.mxu0 0.0
    %884 = vmatprep.subr.mxu0 0.0
    %885 = vmatpush1.msra.mxu0 0.0
    %886 = vmatprep.subr.mxu0 0.0
    %887 = vmatpush1.msra.mxu0 0.0
    %888 = vmatprep.subr.mxu0 0.0
    %889 = vmatpush1.msra.mxu0 0.0
    %890 = vmatprep.subr.mxu0 0.0
    %891 = vmatpush1.msra.mxu0 0.0
    %892 = vmatprep.subr.mxu0 0.0
    %893 = vmatpush1.msra.mxu0 0.0
    %894 = vmatprep.subr.mxu0 0.0
    %895 = vmatpush1.msra.mxu0 0.0
    %896 = vmatprep.subr.mxu0 0.0
    %897 = vmatpush1.msra.mxu0 0.0
    %898 = vmatprep.subr.mxu0 0.0
    %899 = vmatpush1.msra.mxu0 %v451
    %900 = vmatprep.subr.mxu0 0.0
    %901 = vmatpush1.msra.mxu0 %v450
    %902 = vmatprep.subr.mxu0 0.0
    %903 = vmatpush1.msra.mxu0 %v449
    %904 = vmatprep.subr.mxu0 0.0
    %905 = vmatpush1.msra.mxu0 %v448
    %906 = vmatprep.subr.mxu0 0.0
    %907 = vmatpush2.msra.mxu0 0.0
    %908 = vmatprep.subr.mxu0 0.0
    %909 = vmatpush2.msra.mxu0 0.0
    %910 = vmatprep.subr.mxu0 0.0
    %911 = vmatpush2.msra.mxu0 0.0
    %912 = vmatprep.subr.mxu0 0.0
    %913 = vmatpush2.msra.mxu0 0.0
    %914 = vmatprep.subr.mxu0 0.0
    %915 = vmatpush2.msra.mxu0 0.0
    %916 = vmatprep.subr.mxu0 0.0
    %917 = vmatpush2.msra.mxu0 0.0
    %918 = vmatprep.subr.mxu0 0.0
    %919 = vmatpush2.msra.mxu0 0.0
    %920 = vmatprep.subr.mxu0 0.0
    %921 = vmatpush2.msra.mxu0 0.0
    %922 = vmatprep.subr.mxu0 0.0
    %923 = vmatpush2.msra.mxu0 0.0
    %924 = vmatprep.subr.mxu0 0.0
    %925 = vmatpush2.msra.mxu0 0.0
    %926 = vmatprep.subr.mxu0 0.0
    %927 = vmatpush2.msra.mxu0 0.0
    %928 = vmatprep.subr.mxu0 0.0
    %929 = vmatpush2.msra.mxu0 0.0
    %930 = vmatprep.subr.mxu0 0.0
    %931 = vmatpush2.msra.mxu0 0.0
    %932 = vmatprep.subr.mxu0 0.0
    %933 = vmatpush2.msra.mxu0 0.0
    %934 = vmatprep.subr.mxu0 0.0
    %935 = vmatpush2.msra.mxu0 0.0
    %936 = vmatprep.subr.mxu0 0.0
    %937 = vmatpush2.msra.mxu0 0.0
    %938 = vmatprep.mubr.f32.mxu0 0.0
    %939 = vmatmul.mubr.f32.gmra.mxu0 %v868
    %v940 = vpop.f32.mrf.mxu0
    %v941 = vadd.f32 0.0, %v940
    %v942 = vpop.f32.mrf.mxu0
    %943 = vmatprep.mubr.f32.mxu0 0.0
    %944 = vmatmul.mubr.f32.gmra.mxu0 %v870
    %v945 = vpop.f32.mrf.mxu0
    %v946 = vadd.f32 0.0, %v945
    %v947 = vpop.f32.mrf.mxu0
    %948 = vmatprep.mubr.f32.mxu0 0.0
    %949 = vmatmul.mubr.f32.gmra.mxu0 %v872
    %v950 = vpop.f32.mrf.mxu0
    %v951 = vadd.f32 0.0, %v950
    %v952 = vpop.f32.mrf.mxu0
    %953 = vdwg.mxu0
    %v954 = vadd.f32 %v412, %v941
    %v955 = vadd.f32 %v418, %v946
    %v956 = vadd.f32 %v424, %v951
    %v957 = vtanh.pop %v859
    %v958 = vtanh.pop %v954
    %v959 = vtanh.pop %v860
    %v960 = vtanh.pop %v955
    %v961 = vtanh.pop %v861
    %v962 = vtanh.pop %v956
    %v963 = vmul.f32 %v957, 0.5
    %v964 = vmul.f32 %v959, 0.5
    %v965 = vmul.f32 %v961, 0.5
    %v966 = vadd.f32 %v963, 0.5
    %v967 = vadd.f32 %v964, 0.5
    %v968 = vadd.f32 %v965, 0.5
    %v969 = vmul.f32 %v966, %v663
    %v970 = vmul.f32 %v967, %v664
    %v971 = vmul.f32 %v968, %v665
    %975 = vrot.lane.b32.xlu0 %v957, 64
    %v976 = vpop.permute.xlu0 %975
    %977 = vrot.lane.b32.xlu0 %v959, 64
    %v978 = vpop.permute.xlu0 %977
    %979 = vrot.lane.b32.xlu0 %v961, 64
    %v980 = vpop.permute.xlu0 %979
    %v984 = vmul.f32 %v966, %v976
    %v985 = vmul.f32 %v967, %v978
    %v986 = vmul.f32 %v968, %v980
    %990 = vrot.lane.b32.xlu0 %v984, 32
    %v991 = vpop.permute.xlu0 %990
    %992 = vrot.lane.b32.xlu0 %v985, 32
    %v993 = vpop.permute.xlu0 %992
    %994 = vrot.lane.b32.xlu0 %v986, 32
    %v995 = vpop.permute.xlu0 %994
    %v999 = vadd.f32 %v969, %v991
    %v1000 = vadd.f32 %v970, %v993
    %v1001 = vadd.f32 %v971, %v995
    %v1002 = vtanh.pop %v999
    %v1003 = vtanh.pop %v1000
    %v1004 = vtanh.pop %v1001
    %1008 = vrot.lane.b32.xlu0 %v1002, 64
    %v1009 = vpop.permute.xlu0 %1008
    %1010 = vrot.lane.b32.xlu0 %v1003, 64
    %v1011 = vpop.permute.xlu0 %1010
    %1012 = vrot.lane.b32.xlu0 %v1004, 64
    %v1013 = vpop.permute.xlu0 %1012
    %v1017 = vmul.f32 %v966, %v1009
    %v1018 = vmul.f32 %v967, %v1011
    %v1019 = vmul.f32 %v968, %v1013
    %v1020 = vmul.f32 %v958, 0.5
    %v1021 = vmul.f32 %v960, 0.5
    %v1022 = vmul.f32 %v962, 0.5
    %v1023 = vadd.f32 %v1020, 0.5
    %v1024 = vadd.f32 %v1021, 0.5
    %v1025 = vadd.f32 %v1022, 0.5
    %v1026 = vmul.f32 %v1023, %v720
    %v1027 = vmul.f32 %v1024, %v721
    %v1028 = vmul.f32 %v1025, %v722
    %1032 = vrot.lane.b32.xlu0 %v958, 64
    %v1033 = vpop.permute.xlu0 %1032
    %1034 = vrot.lane.b32.xlu0 %v960, 64
    %v1035 = vpop.permute.xlu0 %1034
    %1036 = vrot.lane.b32.xlu0 %v962, 64
    %v1037 = vpop.permute.xlu0 %1036
    %v1041 = vmul.f32 %v1023, %v1033
    %v1042 = vmul.f32 %v1024, %v1035
    %v1043 = vmul.f32 %v1025, %v1037
    %1047 = vrot.lane.b32.xlu0 %v1041, 32
    %v1048 = vpop.permute.xlu0 %1047
    %1049 = vrot.lane.b32.xlu0 %v1042, 32
    %v1050 = vpop.permute.xlu0 %1049
    %1051 = vrot.lane.b32.xlu0 %v1043, 32
    %v1052 = vpop.permute.xlu0 %1051
    %v1056 = vadd.f32 %v1026, %v1048
    %v1057 = vadd.f32 %v1027, %v1050
    %v1058 = vadd.f32 %v1028, %v1052
    %v1059 = vtanh.pop %v1056
    %v1060 = vtanh.pop %v1057
    %v1061 = vtanh.pop %v1058
    %1065 = vrot.lane.b32.xlu0 %v1059, 64
    %v1066 = vpop.permute.xlu0 %1065
    %1067 = vrot.lane.b32.xlu0 %v1060, 64
    %v1068 = vpop.permute.xlu0 %1067
    %1069 = vrot.lane.b32.xlu0 %v1061, 64
    %v1070 = vpop.permute.xlu0 %1069
    %v1074 = vmul.f32 %v1023, %v1066
    %v1075 = vmul.f32 %v1024, %v1068
    %v1076 = vmul.f32 %v1025, %v1070
    %1080 = vrot.lane.b32.xlu0 %v1017, 32
    %v1081 = vpop.permute.xlu0 %1080
    %1082 = vrot.lane.b32.xlu0 %v1018, 32
    %v1083 = vpop.permute.xlu0 %1082
    %1084 = vrot.lane.b32.xlu0 %v1019, 32
    %v1085 = vpop.permute.xlu0 %1084
    %s1089 = scalar_lea.vmem [#allocation2], 24
    %1090 = vst.msk [vmem:[%s1089] sm:$0xff] %vm162, %v1081
    %1091 = vst.msk [vmem:[%s1089 + $0x8] sm:$0xff] %vm162, %v1083
    %1092 = vst.msk [vmem:[%s1089 + $0x10] sm:$0xff] %vm162, %v1085
    %1096 = vrot.lane.b32.xlu0 %v1074, 64
    %v1097 = vpop.permute.xlu0 %1096
    %1098 = vrot.lane.b32.xlu0 %v1075, 64
    %v1099 = vpop.permute.xlu0 %1098
    %1100 = vrot.lane.b32.xlu0 %v1076, 64
    %v1101 = vpop.permute.xlu0 %1100
    %s1105 = scalar_lea.vmem [#allocation2], 144
    %1106 = vst.msk [vmem:[%s1105] sm:$0xff] %vm769, %v1097
    %1107 = vst.msk [vmem:[%s1105 + $0x8] sm:$0xff] %vm769, %v1099
    %1108 = vst.msk [vmem:[%s1105 + $0x10] sm:$0xff] %vm769, %v1101
    %v1109 = vsel %vm162, %v1081, 0
    %v1111 = vsel %vm162, %v1083, 0
    %v1113 = vsel %vm162, %v1085, 0
    %1115 = vmatprep.subr.mxu0 0.0
    %1116 = vmatpush1.msra.mxu0 0.0
    %1117 = vmatprep.subr.mxu0 0.0
    %1118 = vmatpush1.msra.mxu0 0.0
    %1119 = vmatprep.subr.mxu0 0.0
    %1120 = vmatpush1.msra.mxu0 0.0
    %1121 = vmatprep.subr.mxu0 0.0
    %1122 = vmatpush1.msra.mxu0 0.0
    %1123 = vmatprep.subr.mxu0 0.0
    %1124 = vmatpush1.msra.mxu0 0.0
    %1125 = vmatprep.subr.mxu0 0.0
    %1126 = vmatpush1.msra.mxu0 0.0
    %1127 = vmatprep.subr.mxu0 0.0
    %1128 = vmatpush1.msra.mxu0 0.0
    %1129 = vmatprep.subr.mxu0 0.0
    %1130 = vmatpush1.msra.mxu0 0.0
    %1131 = vmatprep.subr.mxu0 0.0
    %1132 = vmatpush1.msra.mxu0 0.0
    %1133 = vmatprep.subr.mxu0 0.0
    %1134 = vmatpush1.msra.mxu0 0.0
    %1135 = vmatprep.subr.mxu0 0.0
    %1136 = vmatpush1.msra.mxu0 0.0
    %1137 = vmatprep.subr.mxu0 0.0
    %1138 = vmatpush1.msra.mxu0 0.0
    %1139 = vmatprep.subr.mxu0 0.0
    %1140 = vmatpush1.msra.mxu0 %v447
    %1141 = vmatprep.subr.mxu0 0.0
    %1142 = vmatpush1.msra.mxu0 %v446
    %1143 = vmatprep.subr.mxu0 0.0
    %1144 = vmatpush1.msra.mxu0 %v445
    %1145 = vmatprep.subr.mxu0 0.0
    %1146 = vmatpush1.msra.mxu0 %v444
    %1147 = vmatprep.subr.mxu0 0.0
    %1148 = vmatpush2.msra.mxu0 0.0
    %1149 = vmatprep.subr.mxu0 0.0
    %1150 = vmatpush2.msra.mxu0 0.0
    %1151 = vmatprep.subr.mxu0 0.0
    %1152 = vmatpush2.msra.mxu0 0.0
    %1153 = vmatprep.subr.mxu0 0.0
    %1154 = vmatpush2.msra.mxu0 0.0
    %1155 = vmatprep.subr.mxu0 0.0
    %1156 = vmatpush2.msra.mxu0 0.0
    %1157 = vmatprep.subr.mxu0 0.0
    %1158 = vmatpush2.msra.mxu0 0.0
    %1159 = vmatprep.subr.mxu0 0.0
    %1160 = vmatpush2.msra.mxu0 0.0
    %1161 = vmatprep.subr.mxu0 0.0
    %1162 = vmatpush2.msra.mxu0 0.0
    %1163 = vmatprep.subr.mxu0 0.0
    %1164 = vmatpush2.msra.mxu0 0.0
    %1165 = vmatprep.subr.mxu0 0.0
    %1166 = vmatpush2.msra.mxu0 0.0
    %1167 = vmatprep.subr.mxu0 0.0
    %1168 = vmatpush2.msra.mxu0 0.0
    %1169 = vmatprep.subr.mxu0 0.0
    %1170 = vmatpush2.msra.mxu0 0.0
    %1171 = vmatprep.subr.mxu0 0.0
    %1172 = vmatpush2.msra.mxu0 0.0
    %1173 = vmatprep.subr.mxu0 0.0
    %1174 = vmatpush2.msra.mxu0 0.0
    %1175 = vmatprep.subr.mxu0 0.0
    %1176 = vmatpush2.msra.mxu0 0.0
    %1177 = vmatprep.subr.mxu0 0.0
    %1178 = vmatpush2.msra.mxu0 0.0
    %1179 = vmatprep.mubr.f32.mxu0 0.0
    %1180 = vmatmul.mubr.f32.gmra.mxu0 %v1109
    %v1181 = vpop.f32.mrf.mxu0
    %v1182 = vadd.f32 0.0, %v1181
    %v1183 = vpop.f32.mrf.mxu0
    %1184 = vmatprep.mubr.f32.mxu0 0.0
    %1185 = vmatmul.mubr.f32.gmra.mxu0 %v1111
    %v1186 = vpop.f32.mrf.mxu0
    %v1187 = vadd.f32 0.0, %v1186
    %v1188 = vpop.f32.mrf.mxu0
    %1189 = vmatprep.mubr.f32.mxu0 0.0
    %1190 = vmatmul.mubr.f32.gmra.mxu0 %v1113
    %v1191 = vpop.f32.mrf.mxu0
    %v1192 = vadd.f32 0.0, %v1191
    %v1193 = vpop.f32.mrf.mxu0
    %1194 = vdwg.mxu0
    %v1195 = vadd.f32 %v338, %v1182
    %v1196 = vadd.f32 %v344, %v1187
    %v1197 = vadd.f32 %v350, %v1192
    %1198 = vrot.lane.b32.xlu0 %v1074, 32
    %v1199 = vpop.permute.xlu0 %1198
    %1200 = vrot.lane.b32.xlu0 %v1075, 32
    %v1201 = vpop.permute.xlu0 %1200
    %1202 = vrot.lane.b32.xlu0 %v1076, 32
    %v1203 = vpop.permute.xlu0 %1202
    %v1204 = vsel %vm162, %v1199, 0
    %v1206 = vsel %vm162, %v1201, 0
    %v1208 = vsel %vm162, %v1203, 0
    %1210 = vmatprep.subr.mxu0 0.0
    %1211 = vmatpush1.msra.mxu0 0.0
    %1212 = vmatprep.subr.mxu0 0.0
    %1213 = vmatpush1.msra.mxu0 0.0
    %1214 = vmatprep.subr.mxu0 0.0
    %1215 = vmatpush1.msra.mxu0 0.0
    %1216 = vmatprep.subr.mxu0 0.0
    %1217 = vmatpush1.msra.mxu0 0.0
    %1218 = vmatprep.subr.mxu0 0.0
    %1219 = vmatpush1.msra.mxu0 0.0
    %1220 = vmatprep.subr.mxu0 0.0
    %1221 = vmatpush1.msra.mxu0 0.0
    %1222 = vmatprep.subr.mxu0 0.0
    %1223 = vmatpush1.msra.mxu0 0.0
    %1224 = vmatprep.subr.mxu0 0.0
    %1225 = vmatpush1.msra.mxu0 0.0
    %1226 = vmatprep.subr.mxu0 0.0
    %1227 = vmatpush1.msra.mxu0 0.0
    %1228 = vmatprep.subr.mxu0 0.0
    %1229 = vmatpush1.msra.mxu0 0.0
    %1230 = vmatprep.subr.mxu0 0.0
    %1231 = vmatpush1.msra.mxu0 0.0
    %1232 = vmatprep.subr.mxu0 0.0
    %1233 = vmatpush1.msra.mxu0 0.0
    %1234 = vmatprep.subr.mxu0 0.0
    %1235 = vmatpush1.msra.mxu0 %v451
    %1236 = vmatprep.subr.mxu0 0.0
    %1237 = vmatpush1.msra.mxu0 %v450
    %1238 = vmatprep.subr.mxu0 0.0
    %1239 = vmatpush1.msra.mxu0 %v449
    %1240 = vmatprep.subr.mxu0 0.0
    %1241 = vmatpush1.msra.mxu0 %v448
    %1242 = vmatprep.subr.mxu0 0.0
    %1243 = vmatpush2.msra.mxu0 0.0
    %1244 = vmatprep.subr.mxu0 0.0
    %1245 = vmatpush2.msra.mxu0 0.0
    %1246 = vmatprep.subr.mxu0 0.0
    %1247 = vmatpush2.msra.mxu0 0.0
    %1248 = vmatprep.subr.mxu0 0.0
    %1249 = vmatpush2.msra.mxu0 0.0
    %1250 = vmatprep.subr.mxu0 0.0
    %1251 = vmatpush2.msra.mxu0 0.0
    %1252 = vmatprep.subr.mxu0 0.0
    %1253 = vmatpush2.msra.mxu0 0.0
    %1254 = vmatprep.subr.mxu0 0.0
    %1255 = vmatpush2.msra.mxu0 0.0
    %1256 = vmatprep.subr.mxu0 0.0
    %1257 = vmatpush2.msra.mxu0 0.0
    %1258 = vmatprep.subr.mxu0 0.0
    %1259 = vmatpush2.msra.mxu0 0.0
    %1260 = vmatprep.subr.mxu0 0.0
    %1261 = vmatpush2.msra.mxu0 0.0
    %1262 = vmatprep.subr.mxu0 0.0
    %1263 = vmatpush2.msra.mxu0 0.0
    %1264 = vmatprep.subr.mxu0 0.0
    %1265 = vmatpush2.msra.mxu0 0.0
    %1266 = vmatprep.subr.mxu0 0.0
    %1267 = vmatpush2.msra.mxu0 0.0
    %1268 = vmatprep.subr.mxu0 0.0
    %1269 = vmatpush2.msra.mxu0 0.0
    %1270 = vmatprep.subr.mxu0 0.0
    %1271 = vmatpush2.msra.mxu0 0.0
    %1272 = vmatprep.subr.mxu0 0.0
    %1273 = vmatpush2.msra.mxu0 0.0
    %1274 = vmatprep.mubr.f32.mxu0 0.0
    %1275 = vmatmul.mubr.f32.gmra.mxu0 %v1204
    %v1276 = vpop.f32.mrf.mxu0
    %v1277 = vadd.f32 0.0, %v1276
    %v1278 = vpop.f32.mrf.mxu0
    %1279 = vmatprep.mubr.f32.mxu0 0.0
    %1280 = vmatmul.mubr.f32.gmra.mxu0 %v1206
    %v1281 = vpop.f32.mrf.mxu0
    %v1282 = vadd.f32 0.0, %v1281
    %v1283 = vpop.f32.mrf.mxu0
    %1284 = vmatprep.mubr.f32.mxu0 0.0
    %1285 = vmatmul.mubr.f32.gmra.mxu0 %v1208
    %v1286 = vpop.f32.mrf.mxu0
    %v1287 = vadd.f32 0.0, %v1286
    %v1288 = vpop.f32.mrf.mxu0
    %1289 = vdwg.mxu0
    %v1290 = vadd.f32 %v394, %v1277
    %v1291 = vadd.f32 %v400, %v1282
    %v1292 = vadd.f32 %v406, %v1287
    %v1293 = vtanh.pop %v1195
    %v1294 = vtanh.pop %v1290
    %v1295 = vtanh.pop %v1196
    %v1296 = vtanh.pop %v1291
    %v1297 = vtanh.pop %v1197
    %v1298 = vtanh.pop %v1292
    %v1299 = vmul.f32 %v1293, 0.5
    %v1300 = vmul.f32 %v1295, 0.5
    %v1301 = vmul.f32 %v1297, 0.5
    %v1302 = vadd.f32 %v1299, 0.5
    %v1303 = vadd.f32 %v1300, 0.5
    %v1304 = vadd.f32 %v1301, 0.5
    %v1305 = vmul.f32 %v1302, %v999
    %v1306 = vmul.f32 %v1303, %v1000
    %v1307 = vmul.f32 %v1304, %v1001
    %1311 = vrot.lane.b32.xlu0 %v1293, 64
    %v1312 = vpop.permute.xlu0 %1311
    %1313 = vrot.lane.b32.xlu0 %v1295, 64
    %v1314 = vpop.permute.xlu0 %1313
    %1315 = vrot.lane.b32.xlu0 %v1297, 64
    %v1316 = vpop.permute.xlu0 %1315
    %v1320 = vmul.f32 %v1302, %v1312
    %v1321 = vmul.f32 %v1303, %v1314
    %v1322 = vmul.f32 %v1304, %v1316
    %1326 = vrot.lane.b32.xlu0 %v1320, 32
    %v1327 = vpop.permute.xlu0 %1326
    %1328 = vrot.lane.b32.xlu0 %v1321, 32
    %v1329 = vpop.permute.xlu0 %1328
    %1330 = vrot.lane.b32.xlu0 %v1322, 32
    %v1331 = vpop.permute.xlu0 %1330
    %v1335 = vadd.f32 %v1305, %v1327
    %v1336 = vadd.f32 %v1306, %v1329
    %v1337 = vadd.f32 %v1307, %v1331
    %v1338 = vtanh.pop %v1335
    %v1339 = vtanh.pop %v1336
    %v1340 = vtanh.pop %v1337
    %1344 = vrot.lane.b32.xlu0 %v1338, 64
    %v1345 = vpop.permute.xlu0 %1344
    %1346 = vrot.lane.b32.xlu0 %v1339, 64
    %v1347 = vpop.permute.xlu0 %1346
    %1348 = vrot.lane.b32.xlu0 %v1340, 64
    %v1349 = vpop.permute.xlu0 %1348
    %v1353 = vmul.f32 %v1302, %v1345
    %v1354 = vmul.f32 %v1303, %v1347
    %v1355 = vmul.f32 %v1304, %v1349
    %v1356 = vmul.f32 %v1294, 0.5
    %v1357 = vmul.f32 %v1296, 0.5
    %v1358 = vmul.f32 %v1298, 0.5
    %v1359 = vadd.f32 %v1356, 0.5
    %v1360 = vadd.f32 %v1357, 0.5
    %v1361 = vadd.f32 %v1358, 0.5
    %v1362 = vmul.f32 %v1359, %v1056
    %v1363 = vmul.f32 %v1360, %v1057
    %v1364 = vmul.f32 %v1361, %v1058
    %1368 = vrot.lane.b32.xlu0 %v1294, 64
    %v1369 = vpop.permute.xlu0 %1368
    %1370 = vrot.lane.b32.xlu0 %v1296, 64
    %v1371 = vpop.permute.xlu0 %1370
    %1372 = vrot.lane.b32.xlu0 %v1298, 64
    %v1373 = vpop.permute.xlu0 %1372
    %v1377 = vmul.f32 %v1359, %v1369
    %v1378 = vmul.f32 %v1360, %v1371
    %v1379 = vmul.f32 %v1361, %v1373
    %1383 = vrot.lane.b32.xlu0 %v1377, 32
    %v1384 = vpop.permute.xlu0 %1383
    %1385 = vrot.lane.b32.xlu0 %v1378, 32
    %v1386 = vpop.permute.xlu0 %1385
    %1387 = vrot.lane.b32.xlu0 %v1379, 32
    %v1388 = vpop.permute.xlu0 %1387
    %v1392 = vadd.f32 %v1362, %v1384
    %v1393 = vadd.f32 %v1363, %v1386
    %v1394 = vadd.f32 %v1364, %v1388
    %v1395 = vtanh.pop %v1392
    %v1396 = vtanh.pop %v1393
    %v1397 = vtanh.pop %v1394
    %1401 = vrot.lane.b32.xlu0 %v1395, 64
    %v1402 = vpop.permute.xlu0 %1401
    %1403 = vrot.lane.b32.xlu0 %v1396, 64
    %v1404 = vpop.permute.xlu0 %1403
    %1405 = vrot.lane.b32.xlu0 %v1397, 64
    %v1406 = vpop.permute.xlu0 %1405
    %v1410 = vmul.f32 %v1359, %v1402
    %v1411 = vmul.f32 %v1360, %v1404
    %v1412 = vmul.f32 %v1361, %v1406
    %1416 = vrot.lane.b32.xlu0 %v1353, 32
    %v1417 = vpop.permute.xlu0 %1416
    %1418 = vrot.lane.b32.xlu0 %v1354, 32
    %v1419 = vpop.permute.xlu0 %1418
    %1420 = vrot.lane.b32.xlu0 %v1355, 32
    %v1421 = vpop.permute.xlu0 %1420
    %s1425 = scalar_lea.vmem [#allocation2], 48
    %1426 = vst.msk [vmem:[%s1425] sm:$0xff] %vm162, %v1417
    %1427 = vst.msk [vmem:[%s1425 + $0x8] sm:$0xff] %vm162, %v1419
    %1428 = vst.msk [vmem:[%s1425 + $0x10] sm:$0xff] %vm162, %v1421
    %1432 = vrot.lane.b32.xlu0 %v1410, 64
    %v1433 = vpop.permute.xlu0 %1432
    %1434 = vrot.lane.b32.xlu0 %v1411, 64
    %v1435 = vpop.permute.xlu0 %1434
    %1436 = vrot.lane.b32.xlu0 %v1412, 64
    %v1437 = vpop.permute.xlu0 %1436
    %s1441 = scalar_lea.vmem [#allocation2], 120
    %1442 = vst.msk [vmem:[%s1441] sm:$0xff] %vm769, %v1433
    %1443 = vst.msk [vmem:[%s1441 + $0x8] sm:$0xff] %vm769, %v1435
    %1444 = vst.msk [vmem:[%s1441 + $0x10] sm:$0xff] %vm769, %v1437
    %v1445 = vsel %vm162, %v1417, 0
    %v1447 = vsel %vm162, %v1419, 0
    %v1449 = vsel %vm162, %v1421, 0
    %1451 = vmatprep.subr.mxu0 0.0
    %1452 = vmatpush1.msra.mxu0 0.0
    %1453 = vmatprep.subr.mxu0 0.0
    %1454 = vmatpush1.msra.mxu0 0.0
    %1455 = vmatprep.subr.mxu0 0.0
    %1456 = vmatpush1.msra.mxu0 0.0
    %1457 = vmatprep.subr.mxu0 0.0
    %1458 = vmatpush1.msra.mxu0 0.0
    %1459 = vmatprep.subr.mxu0 0.0
    %1460 = vmatpush1.msra.mxu0 0.0
    %1461 = vmatprep.subr.mxu0 0.0
    %1462 = vmatpush1.msra.mxu0 0.0
    %1463 = vmatprep.subr.mxu0 0.0
    %1464 = vmatpush1.msra.mxu0 0.0
    %1465 = vmatprep.subr.mxu0 0.0
    %1466 = vmatpush1.msra.mxu0 0.0
    %1467 = vmatprep.subr.mxu0 0.0
    %1468 = vmatpush1.msra.mxu0 0.0
    %1469 = vmatprep.subr.mxu0 0.0
    %1470 = vmatpush1.msra.mxu0 0.0
    %1471 = vmatprep.subr.mxu0 0.0
    %1472 = vmatpush1.msra.mxu0 0.0
    %1473 = vmatprep.subr.mxu0 0.0
    %1474 = vmatpush1.msra.mxu0 0.0
    %1475 = vmatprep.subr.mxu0 0.0
    %1476 = vmatpush1.msra.mxu0 %v447
    %1477 = vmatprep.subr.mxu0 0.0
    %1478 = vmatpush1.msra.mxu0 %v446
    %1479 = vmatprep.subr.mxu0 0.0
    %1480 = vmatpush1.msra.mxu0 %v445
    %1481 = vmatprep.subr.mxu0 0.0
    %1482 = vmatpush1.msra.mxu0 %v444
    %1483 = vmatprep.subr.mxu0 0.0
    %1484 = vmatpush2.msra.mxu0 0.0
    %1485 = vmatprep.subr.mxu0 0.0
    %1486 = vmatpush2.msra.mxu0 0.0
    %1487 = vmatprep.subr.mxu0 0.0
    %1488 = vmatpush2.msra.mxu0 0.0
    %1489 = vmatprep.subr.mxu0 0.0
    %1490 = vmatpush2.msra.mxu0 0.0
    %1491 = vmatprep.subr.mxu0 0.0
    %1492 = vmatpush2.msra.mxu0 0.0
    %1493 = vmatprep.subr.mxu0 0.0
    %1494 = vmatpush2.msra.mxu0 0.0
    %1495 = vmatprep.subr.mxu0 0.0
    %1496 = vmatpush2.msra.mxu0 0.0
    %1497 = vmatprep.subr.mxu0 0.0
    %1498 = vmatpush2.msra.mxu0 0.0
    %1499 = vmatprep.subr.mxu0 0.0
    %1500 = vmatpush2.msra.mxu0 0.0
    %1501 = vmatprep.subr.mxu0 0.0
    %1502 = vmatpush2.msra.mxu0 0.0
    %1503 = vmatprep.subr.mxu0 0.0
    %1504 = vmatpush2.msra.mxu0 0.0
    %1505 = vmatprep.subr.mxu0 0.0
    %1506 = vmatpush2.msra.mxu0 0.0
    %1507 = vmatprep.subr.mxu0 0.0
    %1508 = vmatpush2.msra.mxu0 0.0
    %1509 = vmatprep.subr.mxu0 0.0
    %1510 = vmatpush2.msra.mxu0 0.0
    %1511 = vmatprep.subr.mxu0 0.0
    %1512 = vmatpush2.msra.mxu0 0.0
    %1513 = vmatprep.subr.mxu0 0.0
    %1514 = vmatpush2.msra.mxu0 0.0
    %1515 = vmatprep.mubr.f32.mxu0 0.0
    %1516 = vmatmul.mubr.f32.gmra.mxu0 %v1445
    %v1517 = vpop.f32.mrf.mxu0
    %v1518 = vadd.f32 0.0, %v1517
    %v1519 = vpop.f32.mrf.mxu0
    %1520 = vmatprep.mubr.f32.mxu0 0.0
    %1521 = vmatmul.mubr.f32.gmra.mxu0 %v1447
    %v1522 = vpop.f32.mrf.mxu0
    %v1523 = vadd.f32 0.0, %v1522
    %v1524 = vpop.f32.mrf.mxu0
    %1525 = vmatprep.mubr.f32.mxu0 0.0
    %1526 = vmatmul.mubr.f32.gmra.mxu0 %v1449
    %v1527 = vpop.f32.mrf.mxu0
    %v1528 = vadd.f32 0.0, %v1527
    %v1529 = vpop.f32.mrf.mxu0
    %1530 = vdwg.mxu0
    %v1531 = vadd.f32 %v356, %v1518
    %v1532 = vadd.f32 %v362, %v1523
    %v1533 = vadd.f32 %v368, %v1528
    %1534 = vrot.lane.b32.xlu0 %v1410, 32
    %v1535 = vpop.permute.xlu0 %1534
    %1536 = vrot.lane.b32.xlu0 %v1411, 32
    %v1537 = vpop.permute.xlu0 %1536
    %1538 = vrot.lane.b32.xlu0 %v1412, 32
    %v1539 = vpop.permute.xlu0 %1538
    %v1540 = vsel %vm162, %v1535, 0
    %v1542 = vsel %vm162, %v1537, 0
    %v1544 = vsel %vm162, %v1539, 0
    %1546 = vmatprep.subr.mxu0 0.0
    %1547 = vmatpush1.msra.mxu0 0.0
    %1548 = vmatprep.subr.mxu0 0.0
    %1549 = vmatpush1.msra.mxu0 0.0
    %1550 = vmatprep.subr.mxu0 0.0
    %1551 = vmatpush1.msra.mxu0 0.0
    %1552 = vmatprep.subr.mxu0 0.0
    %1553 = vmatpush1.msra.mxu0 0.0
    %1554 = vmatprep.subr.mxu0 0.0
    %1555 = vmatpush1.msra.mxu0 0.0
    %1556 = vmatprep.subr.mxu0 0.0
    %1557 = vmatpush1.msra.mxu0 0.0
    %1558 = vmatprep.subr.mxu0 0.0
    %1559 = vmatpush1.msra.mxu0 0.0
    %1560 = vmatprep.subr.mxu0 0.0
    %1561 = vmatpush1.msra.mxu0 0.0
    %1562 = vmatprep.subr.mxu0 0.0
    %1563 = vmatpush1.msra.mxu0 0.0
    %1564 = vmatprep.subr.mxu0 0.0
    %1565 = vmatpush1.msra.mxu0 0.0
    %1566 = vmatprep.subr.mxu0 0.0
    %1567 = vmatpush1.msra.mxu0 0.0
    %1568 = vmatprep.subr.mxu0 0.0
    %1569 = vmatpush1.msra.mxu0 0.0
    %1570 = vmatprep.subr.mxu0 0.0
    %1571 = vmatpush1.msra.mxu0 %v451
    %1572 = vmatprep.subr.mxu0 0.0
    %1573 = vmatpush1.msra.mxu0 %v450
    %1574 = vmatprep.subr.mxu0 0.0
    %1575 = vmatpush1.msra.mxu0 %v449
    %1576 = vmatprep.subr.mxu0 0.0
    %1577 = vmatpush1.msra.mxu0 %v448
    %1578 = vmatprep.subr.mxu0 0.0
    %1579 = vmatpush2.msra.mxu0 0.0
    %1580 = vmatprep.subr.mxu0 0.0
    %1581 = vmatpush2.msra.mxu0 0.0
    %1582 = vmatprep.subr.mxu0 0.0
    %1583 = vmatpush2.msra.mxu0 0.0
    %1584 = vmatprep.subr.mxu0 0.0
    %1585 = vmatpush2.msra.mxu0 0.0
    %1586 = vmatprep.subr.mxu0 0.0
    %1587 = vmatpush2.msra.mxu0 0.0
    %1588 = vmatprep.subr.mxu0 0.0
    %1589 = vmatpush2.msra.mxu0 0.0
    %1590 = vmatprep.subr.mxu0 0.0
    %1591 = vmatpush2.msra.mxu0 0.0
    %1592 = vmatprep.subr.mxu0 0.0
    %1593 = vmatpush2.msra.mxu0 0.0
    %1594 = vmatprep.subr.mxu0 0.0
    %1595 = vmatpush2.msra.mxu0 0.0
    %1596 = vmatprep.subr.mxu0 0.0
    %1597 = vmatpush2.msra.mxu0 0.0
    %1598 = vmatprep.subr.mxu0 0.0
    %1599 = vmatpush2.msra.mxu0 0.0
    %1600 = vmatprep.subr.mxu0 0.0
    %1601 = vmatpush2.msra.mxu0 0.0
    %1602 = vmatprep.subr.mxu0 0.0
    %1603 = vmatpush2.msra.mxu0 0.0
    %1604 = vmatprep.subr.mxu0 0.0
    %1605 = vmatpush2.msra.mxu0 0.0
    %1606 = vmatprep.subr.mxu0 0.0
    %1607 = vmatpush2.msra.mxu0 0.0
    %1608 = vmatprep.subr.mxu0 0.0
    %1609 = vmatpush2.msra.mxu0 0.0
    %1610 = vmatprep.mubr.f32.mxu0 0.0
    %1611 = vmatmul.mubr.f32.gmra.mxu0 %v1540
    %v1612 = vpop.f32.mrf.mxu0
    %v1613 = vadd.f32 0.0, %v1612
    %v1614 = vpop.f32.mrf.mxu0
    %1615 = vmatprep.mubr.f32.mxu0 0.0
    %1616 = vmatmul.mubr.f32.gmra.mxu0 %v1542
    %v1617 = vpop.f32.mrf.mxu0
    %v1618 = vadd.f32 0.0, %v1617
    %v1619 = vpop.f32.mrf.mxu0
    %1620 = vmatprep.mubr.f32.mxu0 0.0
    %1621 = vmatmul.mubr.f32.gmra.mxu0 %v1544
    %v1622 = vpop.f32.mrf.mxu0
    %v1623 = vadd.f32 0.0, %v1622
    %v1624 = vpop.f32.mrf.mxu0
    %1625 = vdwg.mxu0
    %v1626 = vadd.f32 %v376, %v1613
    %v1627 = vadd.f32 %v382, %v1618
    %v1628 = vadd.f32 %v388, %v1623
    %v1629 = vtanh.pop %v1531
    %v1630 = vtanh.pop %v1626
    %v1631 = vtanh.pop %v1532
    %v1632 = vtanh.pop %v1627
    %v1633 = vtanh.pop %v1533
    %v1634 = vtanh.pop %v1628
    %v1635 = vmul.f32 %v1629, 0.5
    %v1636 = vmul.f32 %v1631, 0.5
    %v1637 = vmul.f32 %v1633, 0.5
    %v1638 = vadd.f32 %v1635, 0.5
    %v1639 = vadd.f32 %v1636, 0.5
    %v1640 = vadd.f32 %v1637, 0.5
    %v1641 = vmul.f32 %v1638, %v1335
    %v1642 = vmul.f32 %v1639, %v1336
    %v1643 = vmul.f32 %v1640, %v1337
    %1647 = vrot.lane.b32.xlu0 %v1629, 64
    %v1648 = vpop.permute.xlu0 %1647
    %1649 = vrot.lane.b32.xlu0 %v1631, 64
    %v1650 = vpop.permute.xlu0 %1649
    %1651 = vrot.lane.b32.xlu0 %v1633, 64
    %v1652 = vpop.permute.xlu0 %1651
    %v1656 = vmul.f32 %v1638, %v1648
    %v1657 = vmul.f32 %v1639, %v1650
    %v1658 = vmul.f32 %v1640, %v1652
    %1662 = vrot.lane.b32.xlu0 %v1656, 32
    %v1663 = vpop.permute.xlu0 %1662
    %1664 = vrot.lane.b32.xlu0 %v1657, 32
    %v1665 = vpop.permute.xlu0 %1664
    %1666 = vrot.lane.b32.xlu0 %v1658, 32
    %v1667 = vpop.permute.xlu0 %1666
    %v1671 = vadd.f32 %v1641, %v1663
    %v1672 = vadd.f32 %v1642, %v1665
    %v1673 = vadd.f32 %v1643, %v1667
    %v1674 = vtanh.pop %v1671
    %v1675 = vtanh.pop %v1672
    %v1676 = vtanh.pop %v1673
    %1680 = vrot.lane.b32.xlu0 %v1674, 64
    %v1681 = vpop.permute.xlu0 %1680
    %1682 = vrot.lane.b32.xlu0 %v1675, 64
    %v1683 = vpop.permute.xlu0 %1682
    %1684 = vrot.lane.b32.xlu0 %v1676, 64
    %v1685 = vpop.permute.xlu0 %1684
    %v1689 = vmul.f32 %v1638, %v1681
    %v1690 = vmul.f32 %v1639, %v1683
    %v1691 = vmul.f32 %v1640, %v1685
    %v1692 = vmul.f32 %v1630, 0.5
    %v1693 = vmul.f32 %v1632, 0.5
    %v1694 = vmul.f32 %v1634, 0.5
    %v1695 = vadd.f32 %v1692, 0.5
    %v1696 = vadd.f32 %v1693, 0.5
    %v1697 = vadd.f32 %v1694, 0.5
    %v1698 = vmul.f32 %v1695, %v1392
    %v1699 = vmul.f32 %v1696, %v1393
    %v1700 = vmul.f32 %v1697, %v1394
    %1704 = vrot.lane.b32.xlu0 %v1630, 64
    %v1705 = vpop.permute.xlu0 %1704
    %1706 = vrot.lane.b32.xlu0 %v1632, 64
    %v1707 = vpop.permute.xlu0 %1706
    %1708 = vrot.lane.b32.xlu0 %v1634, 64
    %v1709 = vpop.permute.xlu0 %1708
    %v1713 = vmul.f32 %v1695, %v1705
    %v1714 = vmul.f32 %v1696, %v1707
    %v1715 = vmul.f32 %v1697, %v1709
    %1719 = vrot.lane.b32.xlu0 %v1713, 32
    %v1720 = vpop.permute.xlu0 %1719
    %1721 = vrot.lane.b32.xlu0 %v1714, 32
    %v1722 = vpop.permute.xlu0 %1721
    %1723 = vrot.lane.b32.xlu0 %v1715, 32
    %v1724 = vpop.permute.xlu0 %1723
    %v1728 = vadd.f32 %v1698, %v1720
    %v1729 = vadd.f32 %v1699, %v1722
    %v1730 = vadd.f32 %v1700, %v1724
    %v1731 = vtanh.pop %v1728
    %v1732 = vtanh.pop %v1729
    %v1733 = vtanh.pop %v1730
    %1737 = vrot.lane.b32.xlu0 %v1731, 64
    %v1738 = vpop.permute.xlu0 %1737
    %1739 = vrot.lane.b32.xlu0 %v1732, 64
    %v1740 = vpop.permute.xlu0 %1739
    %1741 = vrot.lane.b32.xlu0 %v1733, 64
    %v1742 = vpop.permute.xlu0 %1741
    %v1746 = vmul.f32 %v1695, %v1738
    %v1747 = vmul.f32 %v1696, %v1740
    %v1748 = vmul.f32 %v1697, %v1742
    %1752 = vrot.lane.b32.xlu0 %v1689, 32
    %v1753 = vpop.permute.xlu0 %1752
    %1754 = vrot.lane.b32.xlu0 %v1690, 32
    %v1755 = vpop.permute.xlu0 %1754
    %1756 = vrot.lane.b32.xlu0 %v1691, 32
    %v1757 = vpop.permute.xlu0 %1756
    %s1761 = scalar_lea.vmem [#allocation2], 72
    %1762 = vst.msk [vmem:[%s1761] sm:$0xff] %vm162, %v1753
    %1763 = vst.msk [vmem:[%s1761 + $0x8] sm:$0xff] %vm162, %v1755
    %1764 = vst.msk [vmem:[%s1761 + $0x10] sm:$0xff] %vm162, %v1757
    %1768 = vrot.lane.b32.xlu0 %v1746, 64
    %v1769 = vpop.permute.xlu0 %1768
    %1770 = vrot.lane.b32.xlu0 %v1747, 64
    %v1771 = vpop.permute.xlu0 %1770
    %1772 = vrot.lane.b32.xlu0 %v1748, 64
    %v1773 = vpop.permute.xlu0 %1772
    %s1777 = scalar_lea.vmem [#allocation2], 96
    %1778 = vst.msk [vmem:[%s1777] sm:$0xff] %vm769, %v1769
    %1779 = vst.msk [vmem:[%s1777 + $0x8] sm:$0xff] %vm769, %v1771
    %1780 = vst.msk [vmem:[%s1777 + $0x10] sm:$0xff] %vm769, %v1773
    %v1781 = vsel %vm162, %v1753, 0
    %v1783 = vsel %vm162, %v1755, 0
    %v1785 = vsel %vm162, %v1757, 0
    %1787 = vmatprep.subr.mxu0 0.0
    %1788 = vmatpush1.msra.mxu0 0.0
    %1789 = vmatprep.subr.mxu0 0.0
    %1790 = vmatpush1.msra.mxu0 0.0
    %1791 = vmatprep.subr.mxu0 0.0
    %1792 = vmatpush1.msra.mxu0 0.0
    %1793 = vmatprep.subr.mxu0 0.0
    %1794 = vmatpush1.msra.mxu0 0.0
    %1795 = vmatprep.subr.mxu0 0.0
    %1796 = vmatpush1.msra.mxu0 0.0
    %1797 = vmatprep.subr.mxu0 0.0
    %1798 = vmatpush1.msra.mxu0 0.0
    %1799 = vmatprep.subr.mxu0 0.0
    %1800 = vmatpush1.msra.mxu0 0.0
    %1801 = vmatprep.subr.mxu0 0.0
    %1802 = vmatpush1.msra.mxu0 0.0
    %1803 = vmatprep.subr.mxu0 0.0
    %1804 = vmatpush1.msra.mxu0 0.0
    %1805 = vmatprep.subr.mxu0 0.0
    %1806 = vmatpush1.msra.mxu0 0.0
    %1807 = vmatprep.subr.mxu0 0.0
    %1808 = vmatpush1.msra.mxu0 0.0
    %1809 = vmatprep.subr.mxu0 0.0
    %1810 = vmatpush1.msra.mxu0 0.0
    %1811 = vmatprep.subr.mxu0 0.0
    %1812 = vmatpush1.msra.mxu0 %v447
    %1813 = vmatprep.subr.mxu0 0.0
    %1814 = vmatpush1.msra.mxu0 %v446
    %1815 = vmatprep.subr.mxu0 0.0
    %1816 = vmatpush1.msra.mxu0 %v445
    %1817 = vmatprep.subr.mxu0 0.0
    %1818 = vmatpush1.msra.mxu0 %v444
    %1819 = vmatprep.subr.mxu0 0.0
    %1820 = vmatpush2.msra.mxu0 0.0
    %1821 = vmatprep.subr.mxu0 0.0
    %1822 = vmatpush2.msra.mxu0 0.0
    %1823 = vmatprep.subr.mxu0 0.0
    %1824 = vmatpush2.msra.mxu0 0.0
    %1825 = vmatprep.subr.mxu0 0.0
    %1826 = vmatpush2.msra.mxu0 0.0
    %1827 = vmatprep.subr.mxu0 0.0
    %1828 = vmatpush2.msra.mxu0 0.0
    %1829 = vmatprep.subr.mxu0 0.0
    %1830 = vmatpush2.msra.mxu0 0.0
    %1831 = vmatprep.subr.mxu0 0.0
    %1832 = vmatpush2.msra.mxu0 0.0
    %1833 = vmatprep.subr.mxu0 0.0
    %1834 = vmatpush2.msra.mxu0 0.0
    %1835 = vmatprep.subr.mxu0 0.0
    %1836 = vmatpush2.msra.mxu0 0.0
    %1837 = vmatprep.subr.mxu0 0.0
    %1838 = vmatpush2.msra.mxu0 0.0
    %1839 = vmatprep.subr.mxu0 0.0
    %1840 = vmatpush2.msra.mxu0 0.0
    %1841 = vmatprep.subr.mxu0 0.0
    %1842 = vmatpush2.msra.mxu0 0.0
    %1843 = vmatprep.subr.mxu0 0.0
    %1844 = vmatpush2.msra.mxu0 0.0
    %1845 = vmatprep.subr.mxu0 0.0
    %1846 = vmatpush2.msra.mxu0 0.0
    %1847 = vmatprep.subr.mxu0 0.0
    %1848 = vmatpush2.msra.mxu0 0.0
    %1849 = vmatprep.subr.mxu0 0.0
    %1850 = vmatpush2.msra.mxu0 0.0
    %1851 = vmatprep.mubr.f32.mxu0 0.0
    %1852 = vmatmul.mubr.f32.gmra.mxu0 %v1781
    %v1853 = vpop.f32.mrf.mxu0
    %v1854 = vadd.f32 0.0, %v1853
    %v1855 = vpop.f32.mrf.mxu0
    %1856 = vmatprep.mubr.f32.mxu0 0.0
    %1857 = vmatmul.mubr.f32.gmra.mxu0 %v1783
    %v1858 = vpop.f32.mrf.mxu0
    %v1859 = vadd.f32 0.0, %v1858
    %v1860 = vpop.f32.mrf.mxu0
    %1861 = vmatprep.mubr.f32.mxu0 0.0
    %1862 = vmatmul.mubr.f32.gmra.mxu0 %v1785
    %v1863 = vpop.f32.mrf.mxu0
    %v1864 = vadd.f32 0.0, %v1863
    %v1865 = vpop.f32.mrf.mxu0
    %1866 = vdwg.mxu0
    %v1867 = vadd.f32 %v374, %v1854
    %v1868 = vadd.f32 %v380, %v1859
    %v1869 = vadd.f32 %v386, %v1864
    %1870 = vrot.lane.b32.xlu0 %v1746, 32
    %v1871 = vpop.permute.xlu0 %1870
    %1872 = vrot.lane.b32.xlu0 %v1747, 32
    %v1873 = vpop.permute.xlu0 %1872
    %1874 = vrot.lane.b32.xlu0 %v1748, 32
    %v1875 = vpop.permute.xlu0 %1874
    %v1876 = vsel %vm162, %v1871, 0
    %v1878 = vsel %vm162, %v1873, 0
    %v1880 = vsel %vm162, %v1875, 0
    %1882 = vmatprep.subr.mxu0 0.0
    %1883 = vmatpush1.msra.mxu0 0.0
    %1884 = vmatprep.subr.mxu0 0.0
    %1885 = vmatpush1.msra.mxu0 0.0
    %1886 = vmatprep.subr.mxu0 0.0
    %1887 = vmatpush1.msra.mxu0 0.0
    %1888 = vmatprep.subr.mxu0 0.0
    %1889 = vmatpush1.msra.mxu0 0.0
    %1890 = vmatprep.subr.mxu0 0.0
    %1891 = vmatpush1.msra.mxu0 0.0
    %1892 = vmatprep.subr.mxu0 0.0
    %1893 = vmatpush1.msra.mxu0 0.0
    %1894 = vmatprep.subr.mxu0 0.0
    %1895 = vmatpush1.msra.mxu0 0.0
    %1896 = vmatprep.subr.mxu0 0.0
    %1897 = vmatpush1.msra.mxu0 0.0
    %1898 = vmatprep.subr.mxu0 0.0
    %1899 = vmatpush1.msra.mxu0 0.0
    %1900 = vmatprep.subr.mxu0 0.0
    %1901 = vmatpush1.msra.mxu0 0.0
    %1902 = vmatprep.subr.mxu0 0.0
    %1903 = vmatpush1.msra.mxu0 0.0
    %1904 = vmatprep.subr.mxu0 0.0
    %1905 = vmatpush1.msra.mxu0 0.0
    %1906 = vmatprep.subr.mxu0 0.0
    %1907 = vmatpush1.msra.mxu0 %v451
    %1908 = vmatprep.subr.mxu0 0.0
    %1909 = vmatpush1.msra.mxu0 %v450
    %1910 = vmatprep.subr.mxu0 0.0
    %1911 = vmatpush1.msra.mxu0 %v449
    %1912 = vmatprep.subr.mxu0 0.0
    %1913 = vmatpush1.msra.mxu0 %v448
    %1914 = vmatprep.subr.mxu0 0.0
    %1915 = vmatpush2.msra.mxu0 0.0
    %1916 = vmatprep.subr.mxu0 0.0
    %1917 = vmatpush2.msra.mxu0 0.0
    %1918 = vmatprep.subr.mxu0 0.0
    %1919 = vmatpush2.msra.mxu0 0.0
    %1920 = vmatprep.subr.mxu0 0.0
    %1921 = vmatpush2.msra.mxu0 0.0
    %1922 = vmatprep.subr.mxu0 0.0
    %1923 = vmatpush2.msra.mxu0 0.0
    %1924 = vmatprep.subr.mxu0 0.0
    %1925 = vmatpush2.msra.mxu0 0.0
    %1926 = vmatprep.subr.mxu0 0.0
    %1927 = vmatpush2.msra.mxu0 0.0
    %1928 = vmatprep.subr.mxu0 0.0
    %1929 = vmatpush2.msra.mxu0 0.0
    %1930 = vmatprep.subr.mxu0 0.0
    %1931 = vmatpush2.msra.mxu0 0.0
    %1932 = vmatprep.subr.mxu0 0.0
    %1933 = vmatpush2.msra.mxu0 0.0
    %1934 = vmatprep.subr.mxu0 0.0
    %1935 = vmatpush2.msra.mxu0 0.0
    %1936 = vmatprep.subr.mxu0 0.0
    %1937 = vmatpush2.msra.mxu0 0.0
    %1938 = vmatprep.subr.mxu0 0.0
    %1939 = vmatpush2.msra.mxu0 0.0
    %1940 = vmatprep.subr.mxu0 0.0
    %1941 = vmatpush2.msra.mxu0 0.0
    %1942 = vmatprep.subr.mxu0 0.0
    %1943 = vmatpush2.msra.mxu0 0.0
    %1944 = vmatprep.subr.mxu0 0.0
    %1945 = vmatpush2.msra.mxu0 0.0
    %1946 = vmatprep.mubr.f32.mxu0 0.0
    %1947 = vmatmul.mubr.f32.gmra.mxu0 %v1876
    %v1948 = vpop.f32.mrf.mxu0
    %v1949 = vadd.f32 0.0, %v1948
    %v1950 = vpop.f32.mrf.mxu0
    %1951 = vmatprep.mubr.f32.mxu0 0.0
    %1952 = vmatmul.mubr.f32.gmra.mxu0 %v1878
    %v1953 = vpop.f32.mrf.mxu0
    %v1954 = vadd.f32 0.0, %v1953
    %v1955 = vpop.f32.mrf.mxu0
    %1956 = vmatprep.mubr.f32.mxu0 0.0
    %1957 = vmatmul.mubr.f32.gmra.mxu0 %v1880
    %v1958 = vpop.f32.mrf.mxu0
    %v1959 = vadd.f32 0.0, %v1958
    %v1960 = vpop.f32.mrf.mxu0
    %1961 = vdwg.mxu0
    %v1962 = vadd.f32 %v358, %v1949
    %v1963 = vadd.f32 %v364, %v1954
    %v1964 = vadd.f32 %v370, %v1959
    %v1965 = vtanh.pop %v1867
    %v1966 = vtanh.pop %v1962
    %v1967 = vtanh.pop %v1868
    %v1968 = vtanh.pop %v1963
    %v1969 = vtanh.pop %v1869
    %v1970 = vtanh.pop %v1964
    %v1971 = vmul.f32 %v1965, 0.5
    %v1972 = vmul.f32 %v1967, 0.5
    %v1973 = vmul.f32 %v1969, 0.5
    %v1974 = vadd.f32 %v1971, 0.5
    %v1975 = vadd.f32 %v1972, 0.5
    %v1976 = vadd.f32 %v1973, 0.5
    %v1977 = vmul.f32 %v1974, %v1671
    %v1978 = vmul.f32 %v1975, %v1672
    %v1979 = vmul.f32 %v1976, %v1673
    %1983 = vrot.lane.b32.xlu0 %v1965, 64
    %v1984 = vpop.permute.xlu0 %1983
    %1985 = vrot.lane.b32.xlu0 %v1967, 64
    %v1986 = vpop.permute.xlu0 %1985
    %1987 = vrot.lane.b32.xlu0 %v1969, 64
    %v1988 = vpop.permute.xlu0 %1987
    %v1992 = vmul.f32 %v1974, %v1984
    %v1993 = vmul.f32 %v1975, %v1986
    %v1994 = vmul.f32 %v1976, %v1988
    %1998 = vrot.lane.b32.xlu0 %v1992, 32
    %v1999 = vpop.permute.xlu0 %1998
    %2000 = vrot.lane.b32.xlu0 %v1993, 32
    %v2001 = vpop.permute.xlu0 %2000
    %2002 = vrot.lane.b32.xlu0 %v1994, 32
    %v2003 = vpop.permute.xlu0 %2002
    %v2007 = vadd.f32 %v1977, %v1999
    %v2008 = vadd.f32 %v1978, %v2001
    %v2009 = vadd.f32 %v1979, %v2003
    %v2010 = vtanh.pop %v2007
    %v2011 = vtanh.pop %v2008
    %v2012 = vtanh.pop %v2009
    %2016 = vrot.lane.b32.xlu0 %v2010, 64
    %v2017 = vpop.permute.xlu0 %2016
    %2018 = vrot.lane.b32.xlu0 %v2011, 64
    %v2019 = vpop.permute.xlu0 %2018
    %2020 = vrot.lane.b32.xlu0 %v2012, 64
    %v2021 = vpop.permute.xlu0 %2020
    %v2025 = vmul.f32 %v1974, %v2017
    %v2026 = vmul.f32 %v1975, %v2019
    %v2027 = vmul.f32 %v1976, %v2021
    %v2028 = vmul.f32 %v1966, 0.5
    %v2029 = vmul.f32 %v1968, 0.5
    %v2030 = vmul.f32 %v1970, 0.5
    %v2031 = vadd.f32 %v2028, 0.5
    %v2032 = vadd.f32 %v2029, 0.5
    %v2033 = vadd.f32 %v2030, 0.5
    %v2034 = vmul.f32 %v2031, %v1728
    %v2035 = vmul.f32 %v2032, %v1729
    %v2036 = vmul.f32 %v2033, %v1730
    %2040 = vrot.lane.b32.xlu0 %v1966, 64
    %v2041 = vpop.permute.xlu0 %2040
    %2042 = vrot.lane.b32.xlu0 %v1968, 64
    %v2043 = vpop.permute.xlu0 %2042
    %2044 = vrot.lane.b32.xlu0 %v1970, 64
    %v2045 = vpop.permute.xlu0 %2044
    %v2049 = vmul.f32 %v2031, %v2041
    %v2050 = vmul.f32 %v2032, %v2043
    %v2051 = vmul.f32 %v2033, %v2045
    %2055 = vrot.lane.b32.xlu0 %v2049, 32
    %v2056 = vpop.permute.xlu0 %2055
    %2057 = vrot.lane.b32.xlu0 %v2050, 32
    %v2058 = vpop.permute.xlu0 %2057
    %2059 = vrot.lane.b32.xlu0 %v2051, 32
    %v2060 = vpop.permute.xlu0 %2059
    %v2064 = vadd.f32 %v2034, %v2056
    %v2065 = vadd.f32 %v2035, %v2058
    %v2066 = vadd.f32 %v2036, %v2060
    %v2067 = vtanh.pop %v2064
    %v2068 = vtanh.pop %v2065
    %v2069 = vtanh.pop %v2066
    %2073 = vrot.lane.b32.xlu0 %v2067, 64
    %v2074 = vpop.permute.xlu0 %2073
    %2075 = vrot.lane.b32.xlu0 %v2068, 64
    %v2076 = vpop.permute.xlu0 %2075
    %2077 = vrot.lane.b32.xlu0 %v2069, 64
    %v2078 = vpop.permute.xlu0 %2077
    %v2082 = vmul.f32 %v2031, %v2074
    %v2083 = vmul.f32 %v2032, %v2076
    %v2084 = vmul.f32 %v2033, %v2078
    %2088 = vrot.lane.b32.xlu0 %v2025, 32
    %v2089 = vpop.permute.xlu0 %2088
    %2090 = vrot.lane.b32.xlu0 %v2026, 32
    %v2091 = vpop.permute.xlu0 %2090
    %2092 = vrot.lane.b32.xlu0 %v2027, 32
    %v2093 = vpop.permute.xlu0 %2092
    %2097 = vst.msk [vmem:[%s1777] sm:$0xff] %vm162, %v2089
    %2098 = vst.msk [vmem:[%s1777 + $0x8] sm:$0xff] %vm162, %v2091
    %2099 = vst.msk [vmem:[%s1777 + $0x10] sm:$0xff] %vm162, %v2093
    %2103 = vrot.lane.b32.xlu0 %v2082, 64
    %v2104 = vpop.permute.xlu0 %2103
    %2105 = vrot.lane.b32.xlu0 %v2083, 64
    %v2106 = vpop.permute.xlu0 %2105
    %2107 = vrot.lane.b32.xlu0 %v2084, 64
    %v2108 = vpop.permute.xlu0 %2107
    %2112 = vst.msk [vmem:[%s1761] sm:$0xff] %vm769, %v2104
    %2113 = vst.msk [vmem:[%s1761 + $0x8] sm:$0xff] %vm769, %v2106
    %2114 = vst.msk [vmem:[%s1761 + $0x10] sm:$0xff] %vm769, %v2108
    %v2115 = vsel %vm162, %v2089, 0
    %v2117 = vsel %vm162, %v2091, 0
    %v2119 = vsel %vm162, %v2093, 0
    %2121 = vmatprep.subr.mxu0 0.0
    %2122 = vmatpush1.msra.mxu0 0.0
    %2123 = vmatprep.subr.mxu0 0.0
    %2124 = vmatpush1.msra.mxu0 0.0
    %2125 = vmatprep.subr.mxu0 0.0
    %2126 = vmatpush1.msra.mxu0 0.0
    %2127 = vmatprep.subr.mxu0 0.0
    %2128 = vmatpush1.msra.mxu0 0.0
    %2129 = vmatprep.subr.mxu0 0.0
    %2130 = vmatpush1.msra.mxu0 0.0
    %2131 = vmatprep.subr.mxu0 0.0
    %2132 = vmatpush1.msra.mxu0 0.0
    %2133 = vmatprep.subr.mxu0 0.0
    %2134 = vmatpush1.msra.mxu0 0.0
    %2135 = vmatprep.subr.mxu0 0.0
    %2136 = vmatpush1.msra.mxu0 0.0
    %2137 = vmatprep.subr.mxu0 0.0
    %2138 = vmatpush1.msra.mxu0 0.0
    %2139 = vmatprep.subr.mxu0 0.0
    %2140 = vmatpush1.msra.mxu0 0.0
    %2141 = vmatprep.subr.mxu0 0.0
    %2142 = vmatpush1.msra.mxu0 0.0
    %2143 = vmatprep.subr.mxu0 0.0
    %2144 = vmatpush1.msra.mxu0 0.0
    %2145 = vmatprep.subr.mxu0 0.0
    %2146 = vmatpush1.msra.mxu0 %v447
    %2147 = vmatprep.subr.mxu0 0.0
    %2148 = vmatpush1.msra.mxu0 %v446
    %2149 = vmatprep.subr.mxu0 0.0
    %2150 = vmatpush1.msra.mxu0 %v445
    %2151 = vmatprep.subr.mxu0 0.0
    %2152 = vmatpush1.msra.mxu0 %v444
    %2153 = vmatprep.subr.mxu0 0.0
    %2154 = vmatpush2.msra.mxu0 0.0
    %2155 = vmatprep.subr.mxu0 0.0
    %2156 = vmatpush2.msra.mxu0 0.0
    %2157 = vmatprep.subr.mxu0 0.0
    %2158 = vmatpush2.msra.mxu0 0.0
    %2159 = vmatprep.subr.mxu0 0.0
    %2160 = vmatpush2.msra.mxu0 0.0
    %2161 = vmatprep.subr.mxu0 0.0
    %2162 = vmatpush2.msra.mxu0 0.0
    %2163 = vmatprep.subr.mxu0 0.0
    %2164 = vmatpush2.msra.mxu0 0.0
    %2165 = vmatprep.subr.mxu0 0.0
    %2166 = vmatpush2.msra.mxu0 0.0
    %2167 = vmatprep.subr.mxu0 0.0
    %2168 = vmatpush2.msra.mxu0 0.0
    %2169 = vmatprep.subr.mxu0 0.0
    %2170 = vmatpush2.msra.mxu0 0.0
    %2171 = vmatprep.subr.mxu0 0.0
    %2172 = vmatpush2.msra.mxu0 0.0
    %2173 = vmatprep.subr.mxu0 0.0
    %2174 = vmatpush2.msra.mxu0 0.0
    %2175 = vmatprep.subr.mxu0 0.0
    %2176 = vmatpush2.msra.mxu0 0.0
    %2177 = vmatprep.subr.mxu0 0.0
    %2178 = vmatpush2.msra.mxu0 0.0
    %2179 = vmatprep.subr.mxu0 0.0
    %2180 = vmatpush2.msra.mxu0 0.0
    %2181 = vmatprep.subr.mxu0 0.0
    %2182 = vmatpush2.msra.mxu0 0.0
    %2183 = vmatprep.subr.mxu0 0.0
    %2184 = vmatpush2.msra.mxu0 0.0
    %2185 = vmatprep.mubr.f32.mxu0 0.0
    %2186 = vmatmul.mubr.f32.gmra.mxu0 %v2115
    %v2187 = vpop.f32.mrf.mxu0
    %v2188 = vadd.f32 0.0, %v2187
    %v2189 = vpop.f32.mrf.mxu0
    %2190 = vmatprep.mubr.f32.mxu0 0.0
    %2191 = vmatmul.mubr.f32.gmra.mxu0 %v2117
    %v2192 = vpop.f32.mrf.mxu0
    %v2193 = vadd.f32 0.0, %v2192
    %v2194 = vpop.f32.mrf.mxu0
    %2195 = vmatprep.mubr.f32.mxu0 0.0
    %2196 = vmatmul.mubr.f32.gmra.mxu0 %v2119
    %v2197 = vpop.f32.mrf.mxu0
    %v2198 = vadd.f32 0.0, %v2197
    %v2199 = vpop.f32.mrf.mxu0
    %2200 = vdwg.mxu0
    %v2201 = vadd.f32 %v392, %v2188
    %v2202 = vadd.f32 %v398, %v2193
    %v2203 = vadd.f32 %v404, %v2198
    %2204 = vrot.lane.b32.xlu0 %v2082, 32
    %v2205 = vpop.permute.xlu0 %2204
    %2206 = vrot.lane.b32.xlu0 %v2083, 32
    %v2207 = vpop.permute.xlu0 %2206
    %2208 = vrot.lane.b32.xlu0 %v2084, 32
    %v2209 = vpop.permute.xlu0 %2208
    %v2210 = vsel %vm162, %v2205, 0
    %v2212 = vsel %vm162, %v2207, 0
    %v2214 = vsel %vm162, %v2209, 0
    %2216 = vmatprep.subr.mxu0 0.0
    %2217 = vmatpush1.msra.mxu0 0.0
    %2218 = vmatprep.subr.mxu0 0.0
    %2219 = vmatpush1.msra.mxu0 0.0
    %2220 = vmatprep.subr.mxu0 0.0
    %2221 = vmatpush1.msra.mxu0 0.0
    %2222 = vmatprep.subr.mxu0 0.0
    %2223 = vmatpush1.msra.mxu0 0.0
    %2224 = vmatprep.subr.mxu0 0.0
    %2225 = vmatpush1.msra.mxu0 0.0
    %2226 = vmatprep.subr.mxu0 0.0
    %2227 = vmatpush1.msra.mxu0 0.0
    %2228 = vmatprep.subr.mxu0 0.0
    %2229 = vmatpush1.msra.mxu0 0.0
    %2230 = vmatprep.subr.mxu0 0.0
    %2231 = vmatpush1.msra.mxu0 0.0
    %2232 = vmatprep.subr.mxu0 0.0
    %2233 = vmatpush1.msra.mxu0 0.0
    %2234 = vmatprep.subr.mxu0 0.0
    %2235 = vmatpush1.msra.mxu0 0.0
    %2236 = vmatprep.subr.mxu0 0.0
    %2237 = vmatpush1.msra.mxu0 0.0
    %2238 = vmatprep.subr.mxu0 0.0
    %2239 = vmatpush1.msra.mxu0 0.0
    %2240 = vmatprep.subr.mxu0 0.0
    %2241 = vmatpush1.msra.mxu0 %v451
    %2242 = vmatprep.subr.mxu0 0.0
    %2243 = vmatpush1.msra.mxu0 %v450
    %2244 = vmatprep.subr.mxu0 0.0
    %2245 = vmatpush1.msra.mxu0 %v449
    %2246 = vmatprep.subr.mxu0 0.0
    %2247 = vmatpush1.msra.mxu0 %v448
    %2248 = vmatprep.subr.mxu0 0.0
    %2249 = vmatpush2.msra.mxu0 0.0
    %2250 = vmatprep.subr.mxu0 0.0
    %2251 = vmatpush2.msra.mxu0 0.0
    %2252 = vmatprep.subr.mxu0 0.0
    %2253 = vmatpush2.msra.mxu0 0.0
    %2254 = vmatprep.subr.mxu0 0.0
    %2255 = vmatpush2.msra.mxu0 0.0
    %2256 = vmatprep.subr.mxu0 0.0
    %2257 = vmatpush2.msra.mxu0 0.0
    %2258 = vmatprep.subr.mxu0 0.0
    %2259 = vmatpush2.msra.mxu0 0.0
    %2260 = vmatprep.subr.mxu0 0.0
    %2261 = vmatpush2.msra.mxu0 0.0
    %2262 = vmatprep.subr.mxu0 0.0
    %2263 = vmatpush2.msra.mxu0 0.0
    %2264 = vmatprep.subr.mxu0 0.0
    %2265 = vmatpush2.msra.mxu0 0.0
    %2266 = vmatprep.subr.mxu0 0.0
    %2267 = vmatpush2.msra.mxu0 0.0
    %2268 = vmatprep.subr.mxu0 0.0
    %2269 = vmatpush2.msra.mxu0 0.0
    %2270 = vmatprep.subr.mxu0 0.0
    %2271 = vmatpush2.msra.mxu0 0.0
    %2272 = vmatprep.subr.mxu0 0.0
    %2273 = vmatpush2.msra.mxu0 0.0
    %2274 = vmatprep.subr.mxu0 0.0
    %2275 = vmatpush2.msra.mxu0 0.0
    %2276 = vmatprep.subr.mxu0 0.0
    %2277 = vmatpush2.msra.mxu0 0.0
    %2278 = vmatprep.subr.mxu0 0.0
    %2279 = vmatpush2.msra.mxu0 0.0
    %2280 = vmatprep.mubr.f32.mxu0 0.0
    %2281 = vmatmul.mubr.f32.gmra.mxu0 %v2210
    %v2282 = vpop.f32.mrf.mxu0
    %v2283 = vadd.f32 0.0, %v2282
    %v2284 = vpop.f32.mrf.mxu0
    %2285 = vmatprep.mubr.f32.mxu0 0.0
    %2286 = vmatmul.mubr.f32.gmra.mxu0 %v2212
    %v2287 = vpop.f32.mrf.mxu0
    %v2288 = vadd.f32 0.0, %v2287
    %v2289 = vpop.f32.mrf.mxu0
    %2290 = vmatprep.mubr.f32.mxu0 0.0
    %2291 = vmatmul.mubr.f32.gmra.mxu0 %v2214
    %v2292 = vpop.f32.mrf.mxu0
    %v2293 = vadd.f32 0.0, %v2292
    %v2294 = vpop.f32.mrf.mxu0
    %2295 = vdwg.mxu0
    %v2296 = vadd.f32 %v340, %v2283
    %v2297 = vadd.f32 %v346, %v2288
    %v2298 = vadd.f32 %v352, %v2293
    %v2299 = vtanh.pop %v2201
    %v2300 = vtanh.pop %v2296
    %v2301 = vtanh.pop %v2202
    %v2302 = vtanh.pop %v2297
    %v2303 = vtanh.pop %v2203
    %v2304 = vtanh.pop %v2298
    %v2305 = vmul.f32 %v2299, 0.5
    %v2306 = vmul.f32 %v2301, 0.5
    %v2307 = vmul.f32 %v2303, 0.5
    %v2308 = vadd.f32 %v2305, 0.5
    %v2309 = vadd.f32 %v2306, 0.5
    %v2310 = vadd.f32 %v2307, 0.5
    %v2311 = vmul.f32 %v2308, %v2007
    %v2312 = vmul.f32 %v2309, %v2008
    %v2313 = vmul.f32 %v2310, %v2009
    %2317 = vrot.lane.b32.xlu0 %v2299, 64
    %v2318 = vpop.permute.xlu0 %2317
    %2319 = vrot.lane.b32.xlu0 %v2301, 64
    %v2320 = vpop.permute.xlu0 %2319
    %2321 = vrot.lane.b32.xlu0 %v2303, 64
    %v2322 = vpop.permute.xlu0 %2321
    %v2326 = vmul.f32 %v2308, %v2318
    %v2327 = vmul.f32 %v2309, %v2320
    %v2328 = vmul.f32 %v2310, %v2322
    %2332 = vrot.lane.b32.xlu0 %v2326, 32
    %v2333 = vpop.permute.xlu0 %2332
    %2334 = vrot.lane.b32.xlu0 %v2327, 32
    %v2335 = vpop.permute.xlu0 %2334
    %2336 = vrot.lane.b32.xlu0 %v2328, 32
    %v2337 = vpop.permute.xlu0 %2336
    %v2341 = vadd.f32 %v2311, %v2333
    %v2342 = vadd.f32 %v2312, %v2335
    %v2343 = vadd.f32 %v2313, %v2337
    %v2344 = vtanh.pop %v2341
    %v2345 = vtanh.pop %v2342
    %v2346 = vtanh.pop %v2343
    %2350 = vrot.lane.b32.xlu0 %v2344, 64
    %v2351 = vpop.permute.xlu0 %2350
    %2352 = vrot.lane.b32.xlu0 %v2345, 64
    %v2353 = vpop.permute.xlu0 %2352
    %2354 = vrot.lane.b32.xlu0 %v2346, 64
    %v2355 = vpop.permute.xlu0 %2354
    %v2359 = vmul.f32 %v2308, %v2351
    %v2360 = vmul.f32 %v2309, %v2353
    %v2361 = vmul.f32 %v2310, %v2355
    %v2362 = vmul.f32 %v2300, 0.5
    %v2363 = vmul.f32 %v2302, 0.5
    %v2364 = vmul.f32 %v2304, 0.5
    %v2365 = vadd.f32 %v2362, 0.5
    %v2366 = vadd.f32 %v2363, 0.5
    %v2367 = vadd.f32 %v2364, 0.5
    %v2368 = vmul.f32 %v2365, %v2064
    %v2369 = vmul.f32 %v2366, %v2065
    %v2370 = vmul.f32 %v2367, %v2066
    %2374 = vrot.lane.b32.xlu0 %v2300, 64
    %v2375 = vpop.permute.xlu0 %2374
    %2376 = vrot.lane.b32.xlu0 %v2302, 64
    %v2377 = vpop.permute.xlu0 %2376
    %2378 = vrot.lane.b32.xlu0 %v2304, 64
    %v2379 = vpop.permute.xlu0 %2378
    %v2383 = vmul.f32 %v2365, %v2375
    %v2384 = vmul.f32 %v2366, %v2377
    %v2385 = vmul.f32 %v2367, %v2379
    %2389 = vrot.lane.b32.xlu0 %v2383, 32
    %v2390 = vpop.permute.xlu0 %2389
    %2391 = vrot.lane.b32.xlu0 %v2384, 32
    %v2392 = vpop.permute.xlu0 %2391
    %2393 = vrot.lane.b32.xlu0 %v2385, 32
    %v2394 = vpop.permute.xlu0 %2393
    %v2398 = vadd.f32 %v2368, %v2390
    %v2399 = vadd.f32 %v2369, %v2392
    %v2400 = vadd.f32 %v2370, %v2394
    %v2401 = vtanh.pop %v2398
    %v2402 = vtanh.pop %v2399
    %v2403 = vtanh.pop %v2400
    %2407 = vrot.lane.b32.xlu0 %v2401, 64
    %v2408 = vpop.permute.xlu0 %2407
    %2409 = vrot.lane.b32.xlu0 %v2402, 64
    %v2410 = vpop.permute.xlu0 %2409
    %2411 = vrot.lane.b32.xlu0 %v2403, 64
    %v2412 = vpop.permute.xlu0 %2411
    %v2416 = vmul.f32 %v2365, %v2408
    %v2417 = vmul.f32 %v2366, %v2410
    %v2418 = vmul.f32 %v2367, %v2412
    %2422 = vrot.lane.b32.xlu0 %v2359, 32
    %v2423 = vpop.permute.xlu0 %2422
    %2424 = vrot.lane.b32.xlu0 %v2360, 32
    %v2425 = vpop.permute.xlu0 %2424
    %2426 = vrot.lane.b32.xlu0 %v2361, 32
    %v2427 = vpop.permute.xlu0 %2426
    %2431 = vst.msk [vmem:[%s1441] sm:$0xff] %vm162, %v2423
    %2432 = vst.msk [vmem:[%s1441 + $0x8] sm:$0xff] %vm162, %v2425
    %2433 = vst.msk [vmem:[%s1441 + $0x10] sm:$0xff] %vm162, %v2427
    %2437 = vrot.lane.b32.xlu0 %v2416, 64
    %v2438 = vpop.permute.xlu0 %2437
    %2439 = vrot.lane.b32.xlu0 %v2417, 64
    %v2440 = vpop.permute.xlu0 %2439
    %2441 = vrot.lane.b32.xlu0 %v2418, 64
    %v2442 = vpop.permute.xlu0 %2441
    %2446 = vst.msk [vmem:[%s1425] sm:$0xff] %vm769, %v2438
    %2447 = vst.msk [vmem:[%s1425 + $0x8] sm:$0xff] %vm769, %v2440
    %2448 = vst.msk [vmem:[%s1425 + $0x10] sm:$0xff] %vm769, %v2442
    %v2449 = vsel %vm162, %v2423, 0
    %v2451 = vsel %vm162, %v2425, 0
    %v2453 = vsel %vm162, %v2427, 0
    %2455 = vmatprep.subr.mxu0 0.0
    %2456 = vmatpush1.msra.mxu0 0.0
    %2457 = vmatprep.subr.mxu0 0.0
    %2458 = vmatpush1.msra.mxu0 0.0
    %2459 = vmatprep.subr.mxu0 0.0
    %2460 = vmatpush1.msra.mxu0 0.0
    %2461 = vmatprep.subr.mxu0 0.0
    %2462 = vmatpush1.msra.mxu0 0.0
    %2463 = vmatprep.subr.mxu0 0.0
    %2464 = vmatpush1.msra.mxu0 0.0
    %2465 = vmatprep.subr.mxu0 0.0
    %2466 = vmatpush1.msra.mxu0 0.0
    %2467 = vmatprep.subr.mxu0 0.0
    %2468 = vmatpush1.msra.mxu0 0.0
    %2469 = vmatprep.subr.mxu0 0.0
    %2470 = vmatpush1.msra.mxu0 0.0
    %2471 = vmatprep.subr.mxu0 0.0
    %2472 = vmatpush1.msra.mxu0 0.0
    %2473 = vmatprep.subr.mxu0 0.0
    %2474 = vmatpush1.msra.mxu0 0.0
    %2475 = vmatprep.subr.mxu0 0.0
    %2476 = vmatpush1.msra.mxu0 0.0
    %2477 = vmatprep.subr.mxu0 0.0
    %2478 = vmatpush1.msra.mxu0 0.0
    %2479 = vmatprep.subr.mxu0 0.0
    %2480 = vmatpush1.msra.mxu0 %v447
    %2481 = vmatprep.subr.mxu0 0.0
    %2482 = vmatpush1.msra.mxu0 %v446
    %2483 = vmatprep.subr.mxu0 0.0
    %2484 = vmatpush1.msra.mxu0 %v445
    %2485 = vmatprep.subr.mxu0 0.0
    %2486 = vmatpush1.msra.mxu0 %v444
    %2487 = vmatprep.subr.mxu0 0.0
    %2488 = vmatpush2.msra.mxu0 0.0
    %2489 = vmatprep.subr.mxu0 0.0
    %2490 = vmatpush2.msra.mxu0 0.0
    %2491 = vmatprep.subr.mxu0 0.0
    %2492 = vmatpush2.msra.mxu0 0.0
    %2493 = vmatprep.subr.mxu0 0.0
    %2494 = vmatpush2.msra.mxu0 0.0
    %2495 = vmatprep.subr.mxu0 0.0
    %2496 = vmatpush2.msra.mxu0 0.0
    %2497 = vmatprep.subr.mxu0 0.0
    %2498 = vmatpush2.msra.mxu0 0.0
    %2499 = vmatprep.subr.mxu0 0.0
    %2500 = vmatpush2.msra.mxu0 0.0
    %2501 = vmatprep.subr.mxu0 0.0
    %2502 = vmatpush2.msra.mxu0 0.0
    %2503 = vmatprep.subr.mxu0 0.0
    %2504 = vmatpush2.msra.mxu0 0.0
    %2505 = vmatprep.subr.mxu0 0.0
    %2506 = vmatpush2.msra.mxu0 0.0
    %2507 = vmatprep.subr.mxu0 0.0
    %2508 = vmatpush2.msra.mxu0 0.0
    %2509 = vmatprep.subr.mxu0 0.0
    %2510 = vmatpush2.msra.mxu0 0.0
    %2511 = vmatprep.subr.mxu0 0.0
    %2512 = vmatpush2.msra.mxu0 0.0
    %2513 = vmatprep.subr.mxu0 0.0
    %2514 = vmatpush2.msra.mxu0 0.0
    %2515 = vmatprep.subr.mxu0 0.0
    %2516 = vmatpush2.msra.mxu0 0.0
    %2517 = vmatprep.subr.mxu0 0.0
    %2518 = vmatpush2.msra.mxu0 0.0
    %2519 = vmatprep.mubr.f32.mxu0 0.0
    %2520 = vmatmul.mubr.f32.gmra.mxu0 %v2449
    %v2521 = vpop.f32.mrf.mxu0
    %v2522 = vadd.f32 0.0, %v2521
    %v2523 = vpop.f32.mrf.mxu0
    %2524 = vmatprep.mubr.f32.mxu0 0.0
    %2525 = vmatmul.mubr.f32.gmra.mxu0 %v2451
    %v2526 = vpop.f32.mrf.mxu0
    %v2527 = vadd.f32 0.0, %v2526
    %v2528 = vpop.f32.mrf.mxu0
    %2529 = vmatprep.mubr.f32.mxu0 0.0
    %2530 = vmatmul.mubr.f32.gmra.mxu0 %v2453
    %v2531 = vpop.f32.mrf.mxu0
    %v2532 = vadd.f32 0.0, %v2531
    %v2533 = vpop.f32.mrf.mxu0
    %2534 = vdwg.mxu0
    %v2535 = vadd.f32 %v410, %v2522
    %v2536 = vadd.f32 %v416, %v2527
    %v2537 = vadd.f32 %v422, %v2532
    %2538 = vrot.lane.b32.xlu0 %v2416, 32
    %v2539 = vpop.permute.xlu0 %2538
    %2540 = vrot.lane.b32.xlu0 %v2417, 32
    %v2541 = vpop.permute.xlu0 %2540
    %2542 = vrot.lane.b32.xlu0 %v2418, 32
    %v2543 = vpop.permute.xlu0 %2542
    %v2544 = vsel %vm162, %v2539, 0
    %v2546 = vsel %vm162, %v2541, 0
    %v2548 = vsel %vm162, %v2543, 0
    %2550 = vmatprep.subr.mxu0 0.0
    %2551 = vmatpush1.msra.mxu0 0.0
    %2552 = vmatprep.subr.mxu0 0.0
    %2553 = vmatpush1.msra.mxu0 0.0
    %2554 = vmatprep.subr.mxu0 0.0
    %2555 = vmatpush1.msra.mxu0 0.0
    %2556 = vmatprep.subr.mxu0 0.0
    %2557 = vmatpush1.msra.mxu0 0.0
    %2558 = vmatprep.subr.mxu0 0.0
    %2559 = vmatpush1.msra.mxu0 0.0
    %2560 = vmatprep.subr.mxu0 0.0
    %2561 = vmatpush1.msra.mxu0 0.0
    %2562 = vmatprep.subr.mxu0 0.0
    %2563 = vmatpush1.msra.mxu0 0.0
    %2564 = vmatprep.subr.mxu0 0.0
    %2565 = vmatpush1.msra.mxu0 0.0
    %2566 = vmatprep.subr.mxu0 0.0
    %2567 = vmatpush1.msra.mxu0 0.0
    %2568 = vmatprep.subr.mxu0 0.0
    %2569 = vmatpush1.msra.mxu0 0.0
    %2570 = vmatprep.subr.mxu0 0.0
    %2571 = vmatpush1.msra.mxu0 0.0
    %2572 = vmatprep.subr.mxu0 0.0
    %2573 = vmatpush1.msra.mxu0 0.0
    %2574 = vmatprep.subr.mxu0 0.0
    %2575 = vmatpush1.msra.mxu0 %v451
    %2576 = vmatprep.subr.mxu0 0.0
    %2577 = vmatpush1.msra.mxu0 %v450
    %2578 = vmatprep.subr.mxu0 0.0
    %2579 = vmatpush1.msra.mxu0 %v449
    %2580 = vmatprep.subr.mxu0 0.0
    %2581 = vmatpush1.msra.mxu0 %v448
    %2582 = vmatprep.subr.mxu0 0.0
    %2583 = vmatpush2.msra.mxu0 0.0
    %2584 = vmatprep.subr.mxu0 0.0
    %2585 = vmatpush2.msra.mxu0 0.0
    %2586 = vmatprep.subr.mxu0 0.0
    %2587 = vmatpush2.msra.mxu0 0.0
    %2588 = vmatprep.subr.mxu0 0.0
    %2589 = vmatpush2.msra.mxu0 0.0
    %2590 = vmatprep.subr.mxu0 0.0
    %2591 = vmatpush2.msra.mxu0 0.0
    %2592 = vmatprep.subr.mxu0 0.0
    %2593 = vmatpush2.msra.mxu0 0.0
    %2594 = vmatprep.subr.mxu0 0.0
    %2595 = vmatpush2.msra.mxu0 0.0
    %2596 = vmatprep.subr.mxu0 0.0
    %2597 = vmatpush2.msra.mxu0 0.0
    %2598 = vmatprep.subr.mxu0 0.0
    %2599 = vmatpush2.msra.mxu0 0.0
    %2600 = vmatprep.subr.mxu0 0.0
    %2601 = vmatpush2.msra.mxu0 0.0
    %2602 = vmatprep.subr.mxu0 0.0
    %2603 = vmatpush2.msra.mxu0 0.0
    %2604 = vmatprep.subr.mxu0 0.0
    %2605 = vmatpush2.msra.mxu0 0.0
    %2606 = vmatprep.subr.mxu0 0.0
    %2607 = vmatpush2.msra.mxu0 0.0
    %2608 = vmatprep.subr.mxu0 0.0
    %2609 = vmatpush2.msra.mxu0 0.0
    %2610 = vmatprep.subr.mxu0 0.0
    %2611 = vmatpush2.msra.mxu0 0.0
    %2612 = vmatprep.subr.mxu0 0.0
    %2613 = vmatpush2.msra.mxu0 0.0
    %2614 = vmatprep.mubr.f32.mxu0 0.0
    %2615 = vmatmul.mubr.f32.gmra.mxu0 %v2544
    %v2616 = vpop.f32.mrf.mxu0
    %v2617 = vadd.f32 0.0, %v2616
    %v2618 = vpop.f32.mrf.mxu0
    %2619 = vmatprep.mubr.f32.mxu0 0.0
    %2620 = vmatmul.mubr.f32.gmra.mxu0 %v2546
    %v2621 = vpop.f32.mrf.mxu0
    %v2622 = vadd.f32 0.0, %v2621
    %v2623 = vpop.f32.mrf.mxu0
    %2624 = vmatprep.mubr.f32.mxu0 0.0
    %2625 = vmatmul.mubr.f32.gmra.mxu0 %v2548
    %v2626 = vpop.f32.mrf.mxu0
    %v2627 = vadd.f32 0.0, %v2626
    %v2628 = vpop.f32.mrf.mxu0
    %2629 = vdwg.mxu0
    %v2630 = vadd.f32 %v322, %v2617
    %v2631 = vadd.f32 %v328, %v2622
    %v2632 = vadd.f32 %v334, %v2627
    %v2633 = vtanh.pop %v2535
    %v2634 = vtanh.pop %v2630
    %v2635 = vtanh.pop %v2536
    %v2636 = vtanh.pop %v2631
    %v2637 = vtanh.pop %v2537
    %v2638 = vtanh.pop %v2632
    %v2639 = vmul.f32 %v2633, 0.5
    %v2640 = vmul.f32 %v2635, 0.5
    %v2641 = vmul.f32 %v2637, 0.5
    %v2642 = vadd.f32 %v2639, 0.5
    %v2643 = vadd.f32 %v2640, 0.5
    %v2644 = vadd.f32 %v2641, 0.5
    %v2645 = vmul.f32 %v2642, %v2341
    %v2646 = vmul.f32 %v2643, %v2342
    %v2647 = vmul.f32 %v2644, %v2343
    %2651 = vrot.lane.b32.xlu0 %v2633, 64
    %v2652 = vpop.permute.xlu0 %2651
    %2653 = vrot.lane.b32.xlu0 %v2635, 64
    %v2654 = vpop.permute.xlu0 %2653
    %2655 = vrot.lane.b32.xlu0 %v2637, 64
    %v2656 = vpop.permute.xlu0 %2655
    %v2660 = vmul.f32 %v2642, %v2652
    %v2661 = vmul.f32 %v2643, %v2654
    %v2662 = vmul.f32 %v2644, %v2656
    %2666 = vrot.lane.b32.xlu0 %v2660, 32
    %v2667 = vpop.permute.xlu0 %2666
    %2668 = vrot.lane.b32.xlu0 %v2661, 32
    %v2669 = vpop.permute.xlu0 %2668
    %2670 = vrot.lane.b32.xlu0 %v2662, 32
    %v2671 = vpop.permute.xlu0 %2670
    %v2675 = vadd.f32 %v2645, %v2667
    %v2676 = vadd.f32 %v2646, %v2669
    %v2677 = vadd.f32 %v2647, %v2671
    %v2678 = vtanh.pop %v2675
    %v2679 = vtanh.pop %v2676
    %v2680 = vtanh.pop %v2677
    %2684 = vrot.lane.b32.xlu0 %v2678, 64
    %v2685 = vpop.permute.xlu0 %2684
    %2686 = vrot.lane.b32.xlu0 %v2679, 64
    %v2687 = vpop.permute.xlu0 %2686
    %2688 = vrot.lane.b32.xlu0 %v2680, 64
    %v2689 = vpop.permute.xlu0 %2688
    %v2693 = vmul.f32 %v2642, %v2685
    %v2694 = vmul.f32 %v2643, %v2687
    %v2695 = vmul.f32 %v2644, %v2689
    %v2696 = vmul.f32 %v2634, 0.5
    %v2697 = vmul.f32 %v2636, 0.5
    %v2698 = vmul.f32 %v2638, 0.5
    %v2699 = vadd.f32 %v2696, 0.5
    %v2700 = vadd.f32 %v2697, 0.5
    %v2701 = vadd.f32 %v2698, 0.5
    %v2702 = vmul.f32 %v2699, %v2398
    %v2703 = vmul.f32 %v2700, %v2399
    %v2704 = vmul.f32 %v2701, %v2400
    %2708 = vrot.lane.b32.xlu0 %v2634, 64
    %v2709 = vpop.permute.xlu0 %2708
    %2710 = vrot.lane.b32.xlu0 %v2636, 64
    %v2711 = vpop.permute.xlu0 %2710
    %2712 = vrot.lane.b32.xlu0 %v2638, 64
    %v2713 = vpop.permute.xlu0 %2712
    %v2717 = vmul.f32 %v2699, %v2709
    %v2718 = vmul.f32 %v2700, %v2711
    %v2719 = vmul.f32 %v2701, %v2713
    %2723 = vrot.lane.b32.xlu0 %v2717, 32
    %v2724 = vpop.permute.xlu0 %2723
    %2725 = vrot.lane.b32.xlu0 %v2718, 32
    %v2726 = vpop.permute.xlu0 %2725
    %2727 = vrot.lane.b32.xlu0 %v2719, 32
    %v2728 = vpop.permute.xlu0 %2727
    %v2732 = vadd.f32 %v2702, %v2724
    %v2733 = vadd.f32 %v2703, %v2726
    %v2734 = vadd.f32 %v2704, %v2728
    %v2735 = vtanh.pop %v2732
    %v2736 = vtanh.pop %v2733
    %v2737 = vtanh.pop %v2734
    %2741 = vrot.lane.b32.xlu0 %v2735, 64
    %v2742 = vpop.permute.xlu0 %2741
    %2743 = vrot.lane.b32.xlu0 %v2736, 64
    %v2744 = vpop.permute.xlu0 %2743
    %2745 = vrot.lane.b32.xlu0 %v2737, 64
    %v2746 = vpop.permute.xlu0 %2745
    %v2750 = vmul.f32 %v2699, %v2742
    %v2751 = vmul.f32 %v2700, %v2744
    %v2752 = vmul.f32 %v2701, %v2746
    %2756 = vrot.lane.b32.xlu0 %v2693, 32
    %v2757 = vpop.permute.xlu0 %2756
    %2758 = vrot.lane.b32.xlu0 %v2694, 32
    %v2759 = vpop.permute.xlu0 %2758
    %2760 = vrot.lane.b32.xlu0 %v2695, 32
    %v2761 = vpop.permute.xlu0 %2760
    %2765 = vst.msk [vmem:[%s1105] sm:$0xff] %vm162, %v2757
    %2766 = vst.msk [vmem:[%s1105 + $0x8] sm:$0xff] %vm162, %v2759
    %2767 = vst.msk [vmem:[%s1105 + $0x10] sm:$0xff] %vm162, %v2761
    %2771 = vrot.lane.b32.xlu0 %v2750, 64
    %v2772 = vpop.permute.xlu0 %2771
    %2773 = vrot.lane.b32.xlu0 %v2751, 64
    %v2774 = vpop.permute.xlu0 %2773
    %2775 = vrot.lane.b32.xlu0 %v2752, 64
    %v2776 = vpop.permute.xlu0 %2775
    %2780 = vst.msk [vmem:[%s1089] sm:$0xff] %vm769, %v2772
    %2781 = vst.msk [vmem:[%s1089 + $0x8] sm:$0xff] %vm769, %v2774
    %2782 = vst.msk [vmem:[%s1089 + $0x10] sm:$0xff] %vm769, %v2776
    %v2783 = vsel %vm162, %v2757, 0
    %v2785 = vsel %vm162, %v2759, 0
    %v2787 = vsel %vm162, %v2761, 0
    %2789 = vmatprep.subr.mxu0 0.0
    %2790 = vmatpush1.msra.mxu0 0.0
    %2791 = vmatprep.subr.mxu0 0.0
    %2792 = vmatpush1.msra.mxu0 0.0
    %2793 = vmatprep.subr.mxu0 0.0
    %2794 = vmatpush1.msra.mxu0 0.0
    %2795 = vmatprep.subr.mxu0 0.0
    %2796 = vmatpush1.msra.mxu0 0.0
    %2797 = vmatprep.subr.mxu0 0.0
    %2798 = vmatpush1.msra.mxu0 0.0
    %2799 = vmatprep.subr.mxu0 0.0
    %2800 = vmatpush1.msra.mxu0 0.0
    %2801 = vmatprep.subr.mxu0 0.0
    %2802 = vmatpush1.msra.mxu0 0.0
    %2803 = vmatprep.subr.mxu0 0.0
    %2804 = vmatpush1.msra.mxu0 0.0
    %2805 = vmatprep.subr.mxu0 0.0
    %2806 = vmatpush1.msra.mxu0 0.0
    %2807 = vmatprep.subr.mxu0 0.0
    %2808 = vmatpush1.msra.mxu0 0.0
    %2809 = vmatprep.subr.mxu0 0.0
    %2810 = vmatpush1.msra.mxu0 0.0
    %2811 = vmatprep.subr.mxu0 0.0
    %2812 = vmatpush1.msra.mxu0 0.0
    %2813 = vmatprep.subr.mxu0 0.0
    %2814 = vmatpush1.msra.mxu0 %v447
    %2815 = vmatprep.subr.mxu0 0.0
    %2816 = vmatpush1.msra.mxu0 %v446
    %2817 = vmatprep.subr.mxu0 0.0
    %2818 = vmatpush1.msra.mxu0 %v445
    %2819 = vmatprep.subr.mxu0 0.0
    %2820 = vmatpush1.msra.mxu0 %v444
    %2821 = vmatprep.subr.mxu0 0.0
    %2822 = vmatpush2.msra.mxu0 0.0
    %2823 = vmatprep.subr.mxu0 0.0
    %2824 = vmatpush2.msra.mxu0 0.0
    %2825 = vmatprep.subr.mxu0 0.0
    %2826 = vmatpush2.msra.mxu0 0.0
    %2827 = vmatprep.subr.mxu0 0.0
    %2828 = vmatpush2.msra.mxu0 0.0
    %2829 = vmatprep.subr.mxu0 0.0
    %2830 = vmatpush2.msra.mxu0 0.0
    %2831 = vmatprep.subr.mxu0 0.0
    %2832 = vmatpush2.msra.mxu0 0.0
    %2833 = vmatprep.subr.mxu0 0.0
    %2834 = vmatpush2.msra.mxu0 0.0
    %2835 = vmatprep.subr.mxu0 0.0
    %2836 = vmatpush2.msra.mxu0 0.0
    %2837 = vmatprep.subr.mxu0 0.0
    %2838 = vmatpush2.msra.mxu0 0.0
    %2839 = vmatprep.subr.mxu0 0.0
    %2840 = vmatpush2.msra.mxu0 0.0
    %2841 = vmatprep.subr.mxu0 0.0
    %2842 = vmatpush2.msra.mxu0 0.0
    %2843 = vmatprep.subr.mxu0 0.0
    %2844 = vmatpush2.msra.mxu0 0.0
    %2845 = vmatprep.subr.mxu0 0.0
    %2846 = vmatpush2.msra.mxu0 0.0
    %2847 = vmatprep.subr.mxu0 0.0
    %2848 = vmatpush2.msra.mxu0 0.0
    %2849 = vmatprep.subr.mxu0 0.0
    %2850 = vmatpush2.msra.mxu0 0.0
    %2851 = vmatprep.subr.mxu0 0.0
    %2852 = vmatpush2.msra.mxu0 0.0
    %2853 = vmatprep.mubr.f32.mxu0 0.0
    %2854 = vmatmul.mubr.f32.gmra.mxu0 %v2783
    %v2855 = vpop.f32.mrf.mxu0
    %v2856 = vadd.f32 0.0, %v2855
    %v2857 = vpop.f32.mrf.mxu0
    %2858 = vmatprep.mubr.f32.mxu0 0.0
    %2859 = vmatmul.mubr.f32.gmra.mxu0 %v2785
    %v2860 = vpop.f32.mrf.mxu0
    %v2861 = vadd.f32 0.0, %v2860
    %v2862 = vpop.f32.mrf.mxu0
    %2863 = vmatprep.mubr.f32.mxu0 0.0
    %2864 = vmatmul.mubr.f32.gmra.mxu0 %v2787
    %v2865 = vpop.f32.mrf.mxu0
    %v2866 = vadd.f32 0.0, %v2865
    %v2867 = vpop.f32.mrf.mxu0
    %2868 = vdwg.mxu0
    %v2869 = vadd.f32 %v428, %v2856
    %v2870 = vadd.f32 %v434, %v2861
    %v2871 = vadd.f32 %v440, %v2866
    %2872 = vrot.lane.b32.xlu0 %v2750, 32
    %v2873 = vpop.permute.xlu0 %2872
    %2874 = vrot.lane.b32.xlu0 %v2751, 32
    %v2875 = vpop.permute.xlu0 %2874
    %2876 = vrot.lane.b32.xlu0 %v2752, 32
    %v2877 = vpop.permute.xlu0 %2876
    %v2878 = vsel %vm162, %v2873, 0
    %v2880 = vsel %vm162, %v2875, 0
    %v2882 = vsel %vm162, %v2877, 0
    %2884 = vmatprep.subr.mxu0 0.0
    %2885 = vmatpush1.msra.mxu0 0.0
    %2886 = vmatprep.subr.mxu0 0.0
    %2887 = vmatpush1.msra.mxu0 0.0
    %2888 = vmatprep.subr.mxu0 0.0
    %2889 = vmatpush1.msra.mxu0 0.0
    %2890 = vmatprep.subr.mxu0 0.0
    %2891 = vmatpush1.msra.mxu0 0.0
    %2892 = vmatprep.subr.mxu0 0.0
    %2893 = vmatpush1.msra.mxu0 0.0
    %2894 = vmatprep.subr.mxu0 0.0
    %2895 = vmatpush1.msra.mxu0 0.0
    %2896 = vmatprep.subr.mxu0 0.0
    %2897 = vmatpush1.msra.mxu0 0.0
    %2898 = vmatprep.subr.mxu0 0.0
    %2899 = vmatpush1.msra.mxu0 0.0
    %2900 = vmatprep.subr.mxu0 0.0
    %2901 = vmatpush1.msra.mxu0 0.0
    %2902 = vmatprep.subr.mxu0 0.0
    %2903 = vmatpush1.msra.mxu0 0.0
    %2904 = vmatprep.subr.mxu0 0.0
    %2905 = vmatpush1.msra.mxu0 0.0
    %2906 = vmatprep.subr.mxu0 0.0
    %2907 = vmatpush1.msra.mxu0 0.0
    %2908 = vmatprep.subr.mxu0 0.0
    %2909 = vmatpush1.msra.mxu0 %v451
    %2910 = vmatprep.subr.mxu0 0.0
    %2911 = vmatpush1.msra.mxu0 %v450
    %2912 = vmatprep.subr.mxu0 0.0
    %2913 = vmatpush1.msra.mxu0 %v449
    %2914 = vmatprep.subr.mxu0 0.0
    %2915 = vmatpush1.msra.mxu0 %v448
    %2916 = vmatprep.subr.mxu0 0.0
    %2917 = vmatpush2.msra.mxu0 0.0
    %2918 = vmatprep.subr.mxu0 0.0
    %2919 = vmatpush2.msra.mxu0 0.0
    %2920 = vmatprep.subr.mxu0 0.0
    %2921 = vmatpush2.msra.mxu0 0.0
    %2922 = vmatprep.subr.mxu0 0.0
    %2923 = vmatpush2.msra.mxu0 0.0
    %2924 = vmatprep.subr.mxu0 0.0
    %2925 = vmatpush2.msra.mxu0 0.0
    %2926 = vmatprep.subr.mxu0 0.0
    %2927 = vmatpush2.msra.mxu0 0.0
    %2928 = vmatprep.subr.mxu0 0.0
    %2929 = vmatpush2.msra.mxu0 0.0
    %2930 = vmatprep.subr.mxu0 0.0
    %2931 = vmatpush2.msra.mxu0 0.0
    %2932 = vmatprep.subr.mxu0 0.0
    %2933 = vmatpush2.msra.mxu0 0.0
    %2934 = vmatprep.subr.mxu0 0.0
    %2935 = vmatpush2.msra.mxu0 0.0
    %2936 = vmatprep.subr.mxu0 0.0
    %2937 = vmatpush2.msra.mxu0 0.0
    %2938 = vmatprep.subr.mxu0 0.0
    %2939 = vmatpush2.msra.mxu0 0.0
    %2940 = vmatprep.subr.mxu0 0.0
    %2941 = vmatpush2.msra.mxu0 0.0
    %2942 = vmatprep.subr.mxu0 0.0
    %2943 = vmatpush2.msra.mxu0 0.0
    %2944 = vmatprep.subr.mxu0 0.0
    %2945 = vmatpush2.msra.mxu0 0.0
    %2946 = vmatprep.subr.mxu0 0.0
    %2947 = vmatpush2.msra.mxu0 0.0
    %2948 = vmatprep.mubr.f32.mxu0 0.0
    %2949 = vmatmul.mubr.f32.gmra.mxu0 %v2878
    %v2950 = vpop.f32.mrf.mxu0
    %v2951 = vadd.f32 0.0, %v2950
    %v2952 = vpop.f32.mrf.mxu0
    %2953 = vmatprep.mubr.f32.mxu0 0.0
    %2954 = vmatmul.mubr.f32.gmra.mxu0 %v2880
    %v2955 = vpop.f32.mrf.mxu0
    %v2956 = vadd.f32 0.0, %v2955
    %v2957 = vpop.f32.mrf.mxu0
    %2958 = vmatprep.mubr.f32.mxu0 0.0
    %2959 = vmatmul.mubr.f32.gmra.mxu0 %v2882
    %v2960 = vpop.f32.mrf.mxu0
    %v2961 = vadd.f32 0.0, %v2960
    %v2962 = vpop.f32.mrf.mxu0
    %2963 = vdwg.mxu0
    %v2964 = vadd.f32 %v304, %v2951
    %v2965 = vadd.f32 %v310, %v2956
    %v2966 = vadd.f32 %v316, %v2961
    %v2967 = vtanh.pop %v2869
    %v2968 = vtanh.pop %v2964
    %v2969 = vtanh.pop %v2870
    %v2970 = vtanh.pop %v2965
    %v2971 = vtanh.pop %v2871
    %v2972 = vtanh.pop %v2966
    %v2973 = vmul.f32 %v2967, 0.5
    %v2974 = vmul.f32 %v2969, 0.5
    %v2975 = vmul.f32 %v2971, 0.5
    %v2976 = vadd.f32 %v2973, 0.5
    %v2977 = vadd.f32 %v2974, 0.5
    %v2978 = vadd.f32 %v2975, 0.5
    %v2979 = vmul.f32 %v2976, %v2675
    %v2980 = vmul.f32 %v2977, %v2676
    %v2981 = vmul.f32 %v2978, %v2677
    %2985 = vrot.lane.b32.xlu0 %v2967, 64
    %v2986 = vpop.permute.xlu0 %2985
    %2987 = vrot.lane.b32.xlu0 %v2969, 64
    %v2988 = vpop.permute.xlu0 %2987
    %2989 = vrot.lane.b32.xlu0 %v2971, 64
    %v2990 = vpop.permute.xlu0 %2989
    %v2994 = vmul.f32 %v2976, %v2986
    %v2995 = vmul.f32 %v2977, %v2988
    %v2996 = vmul.f32 %v2978, %v2990
    %3000 = vrot.lane.b32.xlu0 %v2994, 32
    %v3001 = vpop.permute.xlu0 %3000
    %3002 = vrot.lane.b32.xlu0 %v2995, 32
    %v3003 = vpop.permute.xlu0 %3002
    %3004 = vrot.lane.b32.xlu0 %v2996, 32
    %v3005 = vpop.permute.xlu0 %3004
    %v3009 = vadd.f32 %v2979, %v3001
    %v3010 = vadd.f32 %v2980, %v3003
    %v3011 = vadd.f32 %v2981, %v3005
    %v3012 = vtanh.pop %v3009
    %v3013 = vtanh.pop %v3010
    %v3014 = vtanh.pop %v3011
    %3018 = vrot.lane.b32.xlu0 %v3012, 64
    %v3019 = vpop.permute.xlu0 %3018
    %3020 = vrot.lane.b32.xlu0 %v3013, 64
    %v3021 = vpop.permute.xlu0 %3020
    %3022 = vrot.lane.b32.xlu0 %v3014, 64
    %v3023 = vpop.permute.xlu0 %3022
    %v3027 = vmul.f32 %v2976, %v3019
    %v3028 = vmul.f32 %v2977, %v3021
    %v3029 = vmul.f32 %v2978, %v3023
    %v3030 = vmul.f32 %v2968, 0.5
    %v3031 = vmul.f32 %v2970, 0.5
    %v3032 = vmul.f32 %v2972, 0.5
    %v3033 = vadd.f32 %v3030, 0.5
    %v3034 = vadd.f32 %v3031, 0.5
    %v3035 = vadd.f32 %v3032, 0.5
    %v3036 = vmul.f32 %v3033, %v2732
    %v3037 = vmul.f32 %v3034, %v2733
    %v3038 = vmul.f32 %v3035, %v2734
    %3042 = vrot.lane.b32.xlu0 %v2968, 64
    %v3043 = vpop.permute.xlu0 %3042
    %3044 = vrot.lane.b32.xlu0 %v2970, 64
    %v3045 = vpop.permute.xlu0 %3044
    %3046 = vrot.lane.b32.xlu0 %v2972, 64
    %v3047 = vpop.permute.xlu0 %3046
    %v3051 = vmul.f32 %v3033, %v3043
    %v3052 = vmul.f32 %v3034, %v3045
    %v3053 = vmul.f32 %v3035, %v3047
    %3057 = vrot.lane.b32.xlu0 %v3051, 32
    %v3058 = vpop.permute.xlu0 %3057
    %3059 = vrot.lane.b32.xlu0 %v3052, 32
    %v3060 = vpop.permute.xlu0 %3059
    %3061 = vrot.lane.b32.xlu0 %v3053, 32
    %v3062 = vpop.permute.xlu0 %3061
    %v3066 = vadd.f32 %v3036, %v3058
    %v3067 = vadd.f32 %v3037, %v3060
    %v3068 = vadd.f32 %v3038, %v3062
    %v3069 = vtanh.pop %v3066
    %v3070 = vtanh.pop %v3067
    %v3071 = vtanh.pop %v3068
    %3075 = vrot.lane.b32.xlu0 %v3069, 64
    %v3076 = vpop.permute.xlu0 %3075
    %3077 = vrot.lane.b32.xlu0 %v3070, 64
    %v3078 = vpop.permute.xlu0 %3077
    %3079 = vrot.lane.b32.xlu0 %v3071, 64
    %v3080 = vpop.permute.xlu0 %3079
    %v3084 = vmul.f32 %v3033, %v3076
    %v3085 = vmul.f32 %v3034, %v3078
    %v3086 = vmul.f32 %v3035, %v3080
    %3090 = vrot.lane.b32.xlu0 %v3027, 32
    %v3091 = vpop.permute.xlu0 %3090
    %3092 = vrot.lane.b32.xlu0 %v3028, 32
    %v3093 = vpop.permute.xlu0 %3092
    %3094 = vrot.lane.b32.xlu0 %v3029, 32
    %v3095 = vpop.permute.xlu0 %3094
    %3099 = vst.msk [vmem:[%s768] sm:$0xff] %vm162, %v3091
    %3100 = vst.msk [vmem:[%s768 + $0x8] sm:$0xff] %vm162, %v3093
    %3101 = vst.msk [vmem:[%s768 + $0x10] sm:$0xff] %vm162, %v3095
    %3105 = vrot.lane.b32.xlu0 %v3084, 64
    %v3106 = vpop.permute.xlu0 %3105
    %3107 = vrot.lane.b32.xlu0 %v3085, 64
    %v3108 = vpop.permute.xlu0 %3107
    %3109 = vrot.lane.b32.xlu0 %v3086, 64
    %v3110 = vpop.permute.xlu0 %3109
    %3114 = vst.msk [vmem:[#allocation2] sm:$0xff] %vm769, %v3106
    %3115 = vst.msk [vmem:[#allocation2 + $0x8] sm:$0xff] %vm769, %v3108
    %3116 = vst.msk [vmem:[#allocation2 + $0x10] sm:$0xff] %vm769, %v3110
    %v3117 = vld [vmem:[#allocation2] sm:$0xff]
    %v3118 = vld [vmem:[#allocation2 + $0x8] sm:$0xff]
    %v3119 = vld [vmem:[#allocation2 + $0x10] sm:$0xff]
    %v3120 = vld [vmem:[#allocation2 + $0x18] sm:$0xff]
    %v3121 = vld [vmem:[#allocation2 + $0x20] sm:$0xff]
    %v3122 = vld [vmem:[#allocation2 + $0x28] sm:$0xff]
    %v3123 = vld [vmem:[#allocation2 + $0x30] sm:$0xff]
    %v3124 = vld [vmem:[#allocation2 + $0x38] sm:$0xff]
    %v3125 = vld [vmem:[#allocation2 + $0x40] sm:$0xff]
    %v3126 = vld [vmem:[#allocation2 + $0x48] sm:$0xff]
    %v3127 = vld [vmem:[#allocation2 + $0x50] sm:$0xff]
    %v3128 = vld [vmem:[#allocation2 + $0x58] sm:$0xff]
    %v3129 = vld [vmem:[#allocation2 + $0x60] sm:$0xff]
    %v3130 = vld [vmem:[#allocation2 + $0x68] sm:$0xff]
    %v3131 = vld [vmem:[#allocation2 + $0x70] sm:$0xff]
    %v3132 = vld [vmem:[#allocation2 + $0x78] sm:$0xff]
    %v3133 = vld [vmem:[#allocation2 + $0x80] sm:$0xff]
    %v3134 = vld [vmem:[#allocation2 + $0x88] sm:$0xff]
    %v3135 = vld [vmem:[#allocation2 + $0x90] sm:$0xff]
    %v3136 = vld [vmem:[#allocation2 + $0x98] sm:$0xff]
    %v3137 = vld [vmem:[#allocation2 + $0xa0] sm:$0xff]
    %v3138 = vld [vmem:[#allocation2 + $0xa8] sm:$0xff]
    %v3139 = vld [vmem:[#allocation2 + $0xb0] sm:$0xff]
    %v3140 = vld [vmem:[#allocation2 + $0xb8] sm:$0xff]
    %v3141 = vld [vmem:[#allocation8] sm:$0xff]
    %v3142 = vld [vmem:[#allocation8 + $0x8] sm:$0xff]
    %v3143 = vld [vmem:[#allocation8 + $0x10] sm:$0xff]
    %v3144 = vld [vmem:[#allocation8 + $0x18] sm:$0xff]
    %v3145 = vld [vmem:[#allocation8 + $0x20] sm:$0xff]
    %v3146 = vld [vmem:[#allocation8 + $0x28] sm:$0xff]
    %v3147 = vld [vmem:[#allocation8 + $0x30] sm:$0xff]
    %v3148 = vld [vmem:[#allocation8 + $0x38] sm:$0xff]
    %v3149 = vld [vmem:[#allocation8 + $0x40] sm:$0xff]
    %v3150 = vld [vmem:[#allocation8 + $0x48] sm:$0xff]
    %v3151 = vld [vmem:[#allocation8 + $0x50] sm:$0xff]
    %v3152 = vld [vmem:[#allocation8 + $0x58] sm:$0xff]
    %v3153 = vld [vmem:[#allocation8 + $0x60] sm:$0xff]
    %v3154 = vld [vmem:[#allocation8 + $0x68] sm:$0xff]
    %v3155 = vld [vmem:[#allocation8 + $0x70] sm:$0xff]
    %v3156 = vld [vmem:[#allocation8 + $0x78] sm:$0xff]
    %v3157 = vld [vmem:[%s4] sm:$0x3]
    %v3159 = vlaneseq
    %v3160 = vshrl.u32 %v3159, 7
    %v3161 = vsub.s32 0, %v3160
    %v3162 = vrot.slane %v3157, %v3161
    %v3163 = vlaneseq
    %v3164 = vshrl.u32 %v3163, 7
    %v3165 = vsub.s32 1, %v3164
    %v3166 = vrot.slane %v3157, %v3165
    %vm3169 = vcmask 523264
    %v3171 = vsel %vm3169, %v3117, 0
    %v3174 = vsel %vm3169, %v3118, 0
    %v3177 = vsel %vm3169, %v3119, 0
    %v3180 = vsel %vm3169, %v3120, 0
    %v3183 = vsel %vm3169, %v3121, 0
    %v3186 = vsel %vm3169, %v3122, 0
    %v3189 = vsel %vm3169, %v3123, 0
    %v3192 = vsel %vm3169, %v3124, 0
    %v3195 = vsel %vm3169, %v3125, 0
    %v3198 = vsel %vm3169, %v3126, 0
    %v3201 = vsel %vm3169, %v3127, 0
    %v3204 = vsel %vm3169, %v3128, 0
    %v3207 = vsel %vm3169, %v3129, 0
    %v3210 = vsel %vm3169, %v3130, 0
    %v3213 = vsel %vm3169, %v3131, 0
    %v3216 = vsel %vm3169, %v3132, 0
    %v3219 = vsel %vm3169, %v3133, 0
    %v3222 = vsel %vm3169, %v3134, 0
    %v3225 = vsel %vm3169, %v3135, 0
    %v3228 = vsel %vm3169, %v3136, 0
    %v3231 = vsel %vm3169, %v3137, 0
    %v3234 = vsel %vm3169, %v3138, 0
    %v3237 = vsel %vm3169, %v3139, 0
    %v3240 = vsel %vm3169, %v3140, 0
    %3242 = vmatprep.subr.mxu0 0.0
    %3243 = vmatpush1.msra.mxu0 0.0
    %3244 = vmatprep.subr.mxu0 0.0
    %3245 = vmatpush1.msra.mxu0 0.0
    %3246 = vmatprep.subr.mxu0 0.0
    %3247 = vmatpush1.msra.mxu0 0.0
    %3248 = vmatprep.subr.mxu0 0.0
    %3249 = vmatpush1.msra.mxu0 0.0
    %3250 = vmatprep.subr.mxu0 0.0
    %3251 = vmatpush1.msra.mxu0 0.0
    %3252 = vmatprep.subr.mxu0 0.0
    %3253 = vmatpush1.msra.mxu0 0.0
    %3254 = vmatprep.subr.mxu0 0.0
    %3255 = vmatpush1.msra.mxu0 0.0
    %3256 = vmatprep.subr.mxu0 0.0
    %3257 = vmatpush1.msra.mxu0 0.0
    %3258 = vmatprep.subr.mxu0 %v3156
    %3259 = vmatpush1.msra.mxu0 %v3155
    %3260 = vmatprep.subr.mxu0 %v3154
    %3261 = vmatpush1.msra.mxu0 %v3153
    %3262 = vmatprep.subr.mxu0 %v3152
    %3263 = vmatpush1.msra.mxu0 %v3151
    %3264 = vmatprep.subr.mxu0 %v3150
    %3265 = vmatpush1.msra.mxu0 %v3149
    %3266 = vmatprep.subr.mxu0 %v3148
    %3267 = vmatpush1.msra.mxu0 %v3147
    %3268 = vmatprep.subr.mxu0 %v3146
    %3269 = vmatpush1.msra.mxu0 %v3145
    %3270 = vmatprep.subr.mxu0 %v3144
    %3271 = vmatpush1.msra.mxu0 %v3143
    %3272 = vmatprep.subr.mxu0 %v3142
    %3273 = vmatpush1.msra.mxu0 %v3141
    %3274 = vmatprep.subr.mxu0 0.0
    %3275 = vmatpush2.msra.mxu0 0.0
    %3276 = vmatprep.subr.mxu0 0.0
    %3277 = vmatpush2.msra.mxu0 0.0
    %3278 = vmatprep.subr.mxu0 0.0
    %3279 = vmatpush2.msra.mxu0 0.0
    %3280 = vmatprep.subr.mxu0 0.0
    %3281 = vmatpush2.msra.mxu0 0.0
    %3282 = vmatprep.subr.mxu0 0.0
    %3283 = vmatpush2.msra.mxu0 0.0
    %3284 = vmatprep.subr.mxu0 0.0
    %3285 = vmatpush2.msra.mxu0 0.0
    %3286 = vmatprep.subr.mxu0 0.0
    %3287 = vmatpush2.msra.mxu0 0.0
    %3288 = vmatprep.subr.mxu0 0.0
    %3289 = vmatpush2.msra.mxu0 0.0
    %3290 = vmatprep.subr.mxu0 0.0
    %3291 = vmatpush2.msra.mxu0 0.0
    %3292 = vmatprep.subr.mxu0 0.0
    %3293 = vmatpush2.msra.mxu0 0.0
    %3294 = vmatprep.subr.mxu0 0.0
    %3295 = vmatpush2.msra.mxu0 0.0
    %3296 = vmatprep.subr.mxu0 0.0
    %3297 = vmatpush2.msra.mxu0 0.0
    %3298 = vmatprep.subr.mxu0 0.0
    %3299 = vmatpush2.msra.mxu0 0.0
    %3300 = vmatprep.subr.mxu0 0.0
    %3301 = vmatpush2.msra.mxu0 0.0
    %3302 = vmatprep.subr.mxu0 0.0
    %3303 = vmatpush2.msra.mxu0 0.0
    %3304 = vmatprep.subr.mxu0 0.0
    %3305 = vmatpush2.msra.mxu0 0.0
    %3306 = vmatprep.mubr.f32.mxu0 0.0
    %3307 = vmatmul.mubr.f32.gmra.mxu0 %v3171
    %v3308 = vpop.f32.mrf.mxu0
    %v3309 = vadd.f32 %v3162, %v3308
    %v3310 = vpop.f32.mrf.mxu0
    %v3311 = vadd.f32 %v3166, %v3310
    %3312 = vmatprep.mubr.f32.mxu0 0.0
    %3313 = vmatmul.mubr.f32.gmra.mxu0 %v3174
    %v3314 = vpop.f32.mrf.mxu0
    %v3315 = vadd.f32 %v3162, %v3314
    %v3316 = vpop.f32.mrf.mxu0
    %v3317 = vadd.f32 %v3166, %v3316
    %3318 = vmatprep.mubr.f32.mxu0 0.0
    %3319 = vmatmul.mubr.f32.gmra.mxu0 %v3177
    %v3320 = vpop.f32.mrf.mxu0
    %v3321 = vadd.f32 %v3162, %v3320
    %v3322 = vpop.f32.mrf.mxu0
    %v3323 = vadd.f32 %v3166, %v3322
    %3324 = vmatprep.mubr.f32.mxu0 0.0
    %3325 = vmatmul.mubr.f32.gmra.mxu0 %v3180
    %v3326 = vpop.f32.mrf.mxu0
    %v3327 = vadd.f32 %v3162, %v3326
    %v3328 = vpop.f32.mrf.mxu0
    %v3329 = vadd.f32 %v3166, %v3328
    %3330 = vmatprep.mubr.f32.mxu0 0.0
    %3331 = vmatmul.mubr.f32.gmra.mxu0 %v3183
    %v3332 = vpop.f32.mrf.mxu0
    %v3333 = vadd.f32 %v3162, %v3332
    %v3334 = vpop.f32.mrf.mxu0
    %v3335 = vadd.f32 %v3166, %v3334
    %3336 = vmatprep.mubr.f32.mxu0 0.0
    %3337 = vmatmul.mubr.f32.gmra.mxu0 %v3186
    %v3338 = vpop.f32.mrf.mxu0
    %v3339 = vadd.f32 %v3162, %v3338
    %v3340 = vpop.f32.mrf.mxu0
    %v3341 = vadd.f32 %v3166, %v3340
    %3342 = vmatprep.mubr.f32.mxu0 0.0
    %3343 = vmatmul.mubr.f32.gmra.mxu0 %v3189
    %v3344 = vpop.f32.mrf.mxu0
    %v3345 = vadd.f32 %v3162, %v3344
    %v3346 = vpop.f32.mrf.mxu0
    %v3347 = vadd.f32 %v3166, %v3346
    %3348 = vmatprep.mubr.f32.mxu0 0.0
    %3349 = vmatmul.mubr.f32.gmra.mxu0 %v3192
    %v3350 = vpop.f32.mrf.mxu0
    %v3351 = vadd.f32 %v3162, %v3350
    %v3352 = vpop.f32.mrf.mxu0
    %v3353 = vadd.f32 %v3166, %v3352
    %3354 = vmatprep.mubr.f32.mxu0 0.0
    %3355 = vmatmul.mubr.f32.gmra.mxu0 %v3195
    %v3356 = vpop.f32.mrf.mxu0
    %v3357 = vadd.f32 %v3162, %v3356
    %v3358 = vpop.f32.mrf.mxu0
    %v3359 = vadd.f32 %v3166, %v3358
    %3360 = vmatprep.mubr.f32.mxu0 0.0
    %3361 = vmatmul.mubr.f32.gmra.mxu0 %v3198
    %v3362 = vpop.f32.mrf.mxu0
    %v3363 = vadd.f32 %v3162, %v3362
    %v3364 = vpop.f32.mrf.mxu0
    %v3365 = vadd.f32 %v3166, %v3364
    %3366 = vmatprep.mubr.f32.mxu0 0.0
    %3367 = vmatmul.mubr.f32.gmra.mxu0 %v3201
    %v3368 = vpop.f32.mrf.mxu0
    %v3369 = vadd.f32 %v3162, %v3368
    %v3370 = vpop.f32.mrf.mxu0
    %v3371 = vadd.f32 %v3166, %v3370
    %3372 = vmatprep.mubr.f32.mxu0 0.0
    %3373 = vmatmul.mubr.f32.gmra.mxu0 %v3204
    %v3374 = vpop.f32.mrf.mxu0
    %v3375 = vadd.f32 %v3162, %v3374
    %v3376 = vpop.f32.mrf.mxu0
    %v3377 = vadd.f32 %v3166, %v3376
    %3378 = vmatprep.mubr.f32.mxu0 0.0
    %3379 = vmatmul.mubr.f32.gmra.mxu0 %v3207
    %v3380 = vpop.f32.mrf.mxu0
    %v3381 = vadd.f32 %v3162, %v3380
    %v3382 = vpop.f32.mrf.mxu0
    %v3383 = vadd.f32 %v3166, %v3382
    %3384 = vmatprep.mubr.f32.mxu0 0.0
    %3385 = vmatmul.mubr.f32.gmra.mxu0 %v3210
    %v3386 = vpop.f32.mrf.mxu0
    %v3387 = vadd.f32 %v3162, %v3386
    %v3388 = vpop.f32.mrf.mxu0
    %v3389 = vadd.f32 %v3166, %v3388
    %3390 = vmatprep.mubr.f32.mxu0 0.0
    %3391 = vmatmul.mubr.f32.gmra.mxu0 %v3213
    %v3392 = vpop.f32.mrf.mxu0
    %v3393 = vadd.f32 %v3162, %v3392
    %v3394 = vpop.f32.mrf.mxu0
    %v3395 = vadd.f32 %v3166, %v3394
    %3396 = vmatprep.mubr.f32.mxu0 0.0
    %3397 = vmatmul.mubr.f32.gmra.mxu0 %v3216
    %v3398 = vpop.f32.mrf.mxu0
    %v3399 = vadd.f32 %v3162, %v3398
    %v3400 = vpop.f32.mrf.mxu0
    %v3401 = vadd.f32 %v3166, %v3400
    %3402 = vmatprep.mubr.f32.mxu0 0.0
    %3403 = vmatmul.mubr.f32.gmra.mxu0 %v3219
    %v3404 = vpop.f32.mrf.mxu0
    %v3405 = vadd.f32 %v3162, %v3404
    %v3406 = vpop.f32.mrf.mxu0
    %v3407 = vadd.f32 %v3166, %v3406
    %3408 = vmatprep.mubr.f32.mxu0 0.0
    %3409 = vmatmul.mubr.f32.gmra.mxu0 %v3222
    %v3410 = vpop.f32.mrf.mxu0
    %v3411 = vadd.f32 %v3162, %v3410
    %v3412 = vpop.f32.mrf.mxu0
    %v3413 = vadd.f32 %v3166, %v3412
    %3414 = vmatprep.mubr.f32.mxu0 0.0
    %3415 = vmatmul.mubr.f32.gmra.mxu0 %v3225
    %v3416 = vpop.f32.mrf.mxu0
    %v3417 = vadd.f32 %v3162, %v3416
    %v3418 = vpop.f32.mrf.mxu0
    %v3419 = vadd.f32 %v3166, %v3418
    %3420 = vmatprep.mubr.f32.mxu0 0.0
    %3421 = vmatmul.mubr.f32.gmra.mxu0 %v3228
    %v3422 = vpop.f32.mrf.mxu0
    %v3423 = vadd.f32 %v3162, %v3422
    %v3424 = vpop.f32.mrf.mxu0
    %v3425 = vadd.f32 %v3166, %v3424
    %3426 = vmatprep.mubr.f32.mxu0 0.0
    %3427 = vmatmul.mubr.f32.gmra.mxu0 %v3231
    %v3428 = vpop.f32.mrf.mxu0
    %v3429 = vadd.f32 %v3162, %v3428
    %v3430 = vpop.f32.mrf.mxu0
    %v3431 = vadd.f32 %v3166, %v3430
    %3432 = vmatprep.mubr.f32.mxu0 0.0
    %3433 = vmatmul.mubr.f32.gmra.mxu0 %v3234
    %v3434 = vpop.f32.mrf.mxu0
    %v3435 = vadd.f32 %v3162, %v3434
    %v3436 = vpop.f32.mrf.mxu0
    %v3437 = vadd.f32 %v3166, %v3436
    %3438 = vmatprep.mubr.f32.mxu0 0.0
    %3439 = vmatmul.mubr.f32.gmra.mxu0 %v3237
    %v3440 = vpop.f32.mrf.mxu0
    %v3441 = vadd.f32 %v3162, %v3440
    %v3442 = vpop.f32.mrf.mxu0
    %v3443 = vadd.f32 %v3166, %v3442
    %3444 = vmatprep.mubr.f32.mxu0 0.0
    %3445 = vmatmul.mubr.f32.gmra.mxu0 %v3240
    %v3446 = vpop.f32.mrf.mxu0
    %v3447 = vadd.f32 %v3162, %v3446
    %v3448 = vpop.f32.mrf.mxu0
    %v3449 = vadd.f32 %v3166, %v3448
    %3450 = vdwg.mxu0
    %s3451 = scalar_lea.vmem [#allocation9], 64
    %v3452 = vld [vmem:[%s3451] sm:$0xff]
    %v3453 = vld [vmem:[%s3451 + $0x8] sm:$0xff]
    %v3454 = vld [vmem:[%s3451 + $0x10] sm:$0xff]
    %v3455 = vld [vmem:[%s3451 + $0x18] sm:$0xff]
    %v3456 = vld [vmem:[%s3451 + $0x20] sm:$0xff]
    %v3457 = vld [vmem:[%s3451 + $0x28] sm:$0xff]
    %v3458 = vld [vmem:[%s3451 + $0x30] sm:$0xff]
    %v3459 = vld [vmem:[%s3451 + $0x38] sm:$0xff]
    %3460 = vmatprep.subr.mxu0 0.0
    %3461 = vmatpush1.msra.mxu0 0.0
    %3462 = vmatprep.subr.mxu0 0.0
    %3463 = vmatpush1.msra.mxu0 0.0
    %3464 = vmatprep.subr.mxu0 0.0
    %3465 = vmatpush1.msra.mxu0 0.0
    %3466 = vmatprep.subr.mxu0 0.0
    %3467 = vmatpush1.msra.mxu0 0.0
    %3468 = vmatprep.subr.mxu0 0.0
    %3469 = vmatpush1.msra.mxu0 0.0
    %3470 = vmatprep.subr.mxu0 0.0
    %3471 = vmatpush1.msra.mxu0 0.0
    %3472 = vmatprep.subr.mxu0 0.0
    %3473 = vmatpush1.msra.mxu0 0.0
    %3474 = vmatprep.subr.mxu0 0.0
    %3475 = vmatpush1.msra.mxu0 0.0
    %3476 = vmatprep.subr.mxu0 0.0
    %3477 = vmatpush1.msra.mxu0 0.0
    %3478 = vmatprep.subr.mxu0 0.0
    %3479 = vmatpush1.msra.mxu0 0.0
    %3480 = vmatprep.subr.mxu0 0.0
    %3481 = vmatpush1.msra.mxu0 0.0
    %3482 = vmatprep.subr.mxu0 0.0
    %3483 = vmatpush1.msra.mxu0 0.0
    %3484 = vmatprep.subr.mxu0 0.0
    %3485 = vmatpush1.msra.mxu0 %v3455
    %3486 = vmatprep.subr.mxu0 0.0
    %3487 = vmatpush1.msra.mxu0 %v3454
    %3488 = vmatprep.subr.mxu0 0.0
    %3489 = vmatpush1.msra.mxu0 %v3453
    %3490 = vmatprep.subr.mxu0 0.0
    %3491 = vmatpush1.msra.mxu0 %v3452
    %3492 = vmatprep.subr.mxu0 0.0
    %3493 = vmatpush2.msra.mxu0 0.0
    %3494 = vmatprep.subr.mxu0 0.0
    %3495 = vmatpush2.msra.mxu0 0.0
    %3496 = vmatprep.subr.mxu0 0.0
    %3497 = vmatpush2.msra.mxu0 0.0
    %3498 = vmatprep.subr.mxu0 0.0
    %3499 = vmatpush2.msra.mxu0 0.0
    %3500 = vmatprep.subr.mxu0 0.0
    %3501 = vmatpush2.msra.mxu0 0.0
    %3502 = vmatprep.subr.mxu0 0.0
    %3503 = vmatpush2.msra.mxu0 0.0
    %3504 = vmatprep.subr.mxu0 0.0
    %3505 = vmatpush2.msra.mxu0 0.0
    %3506 = vmatprep.subr.mxu0 0.0
    %3507 = vmatpush2.msra.mxu0 0.0
    %3508 = vmatprep.subr.mxu0 0.0
    %3509 = vmatpush2.msra.mxu0 0.0
    %3510 = vmatprep.subr.mxu0 0.0
    %3511 = vmatpush2.msra.mxu0 0.0
    %3512 = vmatprep.subr.mxu0 0.0
    %3513 = vmatpush2.msra.mxu0 0.0
    %3514 = vmatprep.subr.mxu0 0.0
    %3515 = vmatpush2.msra.mxu0 0.0
    %3516 = vmatprep.subr.mxu0 0.0
    %3517 = vmatpush2.msra.mxu0 0.0
    %3518 = vmatprep.subr.mxu0 0.0
    %3519 = vmatpush2.msra.mxu0 0.0
    %3520 = vmatprep.subr.mxu0 0.0
    %3521 = vmatpush2.msra.mxu0 0.0
    %3522 = vmatprep.subr.mxu0 0.0
    %3523 = vmatpush2.msra.mxu0 0.0
    %3524 = vmatprep.mubr.f32.mxu0 0.0
    %3525 = vmatmul.mubr.f32.gmra.mxu0 %v453
    %v3526 = vpop.f32.mrf.mxu0
    %v3527 = vadd.f32 0.0, %v3526
    %v3528 = vpop.f32.mrf.mxu0
    %3529 = vmatprep.mubr.f32.mxu0 0.0
    %3530 = vmatmul.mubr.f32.gmra.mxu0 %v453
    %v3531 = vpop.f32.mrf.mxu0
    %v3532 = vadd.f32 0.0, %v3531
    %v3533 = vpop.f32.mrf.mxu0
    %3534 = vmatprep.mubr.f32.mxu0 0.0
    %3535 = vmatmul.mubr.f32.gmra.mxu0 %v453
    %v3536 = vpop.f32.mrf.mxu0
    %v3537 = vadd.f32 0.0, %v3536
    %v3538 = vpop.f32.mrf.mxu0
    %3539 = vdwg.mxu0
    %v3540 = vadd.f32 %v3309, %v3527
    %v3541 = vadd.f32 %v3315, %v3532
    %v3542 = vadd.f32 %v3321, %v3537
    %3543 = vmatprep.subr.mxu0 0.0
    %3544 = vmatpush1.msra.mxu0 0.0
    %3545 = vmatprep.subr.mxu0 0.0
    %3546 = vmatpush1.msra.mxu0 0.0
    %3547 = vmatprep.subr.mxu0 0.0
    %3548 = vmatpush1.msra.mxu0 0.0
    %3549 = vmatprep.subr.mxu0 0.0
    %3550 = vmatpush1.msra.mxu0 0.0
    %3551 = vmatprep.subr.mxu0 0.0
    %3552 = vmatpush1.msra.mxu0 0.0
    %3553 = vmatprep.subr.mxu0 0.0
    %3554 = vmatpush1.msra.mxu0 0.0
    %3555 = vmatprep.subr.mxu0 0.0
    %3556 = vmatpush1.msra.mxu0 0.0
    %3557 = vmatprep.subr.mxu0 0.0
    %3558 = vmatpush1.msra.mxu0 0.0
    %3559 = vmatprep.subr.mxu0 0.0
    %3560 = vmatpush1.msra.mxu0 0.0
    %3561 = vmatprep.subr.mxu0 0.0
    %3562 = vmatpush1.msra.mxu0 0.0
    %3563 = vmatprep.subr.mxu0 0.0
    %3564 = vmatpush1.msra.mxu0 0.0
    %3565 = vmatprep.subr.mxu0 0.0
    %3566 = vmatpush1.msra.mxu0 0.0
    %3567 = vmatprep.subr.mxu0 0.0
    %3568 = vmatpush1.msra.mxu0 %v3459
    %3569 = vmatprep.subr.mxu0 0.0
    %3570 = vmatpush1.msra.mxu0 %v3458
    %3571 = vmatprep.subr.mxu0 0.0
    %3572 = vmatpush1.msra.mxu0 %v3457
    %3573 = vmatprep.subr.mxu0 0.0
    %3574 = vmatpush1.msra.mxu0 %v3456
    %3575 = vmatprep.subr.mxu0 0.0
    %3576 = vmatpush2.msra.mxu0 0.0
    %3577 = vmatprep.subr.mxu0 0.0
    %3578 = vmatpush2.msra.mxu0 0.0
    %3579 = vmatprep.subr.mxu0 0.0
    %3580 = vmatpush2.msra.mxu0 0.0
    %3581 = vmatprep.subr.mxu0 0.0
    %3582 = vmatpush2.msra.mxu0 0.0
    %3583 = vmatprep.subr.mxu0 0.0
    %3584 = vmatpush2.msra.mxu0 0.0
    %3585 = vmatprep.subr.mxu0 0.0
    %3586 = vmatpush2.msra.mxu0 0.0
    %3587 = vmatprep.subr.mxu0 0.0
    %3588 = vmatpush2.msra.mxu0 0.0
    %3589 = vmatprep.subr.mxu0 0.0
    %3590 = vmatpush2.msra.mxu0 0.0
    %3591 = vmatprep.subr.mxu0 0.0
    %3592 = vmatpush2.msra.mxu0 0.0
    %3593 = vmatprep.subr.mxu0 0.0
    %3594 = vmatpush2.msra.mxu0 0.0
    %3595 = vmatprep.subr.mxu0 0.0
    %3596 = vmatpush2.msra.mxu0 0.0
    %3597 = vmatprep.subr.mxu0 0.0
    %3598 = vmatpush2.msra.mxu0 0.0
    %3599 = vmatprep.subr.mxu0 0.0
    %3600 = vmatpush2.msra.mxu0 0.0
    %3601 = vmatprep.subr.mxu0 0.0
    %3602 = vmatpush2.msra.mxu0 0.0
    %3603 = vmatprep.subr.mxu0 0.0
    %3604 = vmatpush2.msra.mxu0 0.0
    %3605 = vmatprep.subr.mxu0 0.0
    %3606 = vmatpush2.msra.mxu0 0.0
    %3607 = vmatprep.mubr.f32.mxu0 0.0
    %3608 = vmatmul.mubr.f32.gmra.mxu0 %v453
    %v3609 = vpop.f32.mrf.mxu0
    %v3610 = vadd.f32 0.0, %v3609
    %v3611 = vpop.f32.mrf.mxu0
    %3612 = vmatprep.mubr.f32.mxu0 0.0
    %3613 = vmatmul.mubr.f32.gmra.mxu0 %v453
    %v3614 = vpop.f32.mrf.mxu0
    %v3615 = vadd.f32 0.0, %v3614
    %v3616 = vpop.f32.mrf.mxu0
    %3617 = vmatprep.mubr.f32.mxu0 0.0
    %3618 = vmatmul.mubr.f32.gmra.mxu0 %v453
    %v3619 = vpop.f32.mrf.mxu0
    %v3620 = vadd.f32 0.0, %v3619
    %v3621 = vpop.f32.mrf.mxu0
    %3622 = vdwg.mxu0
    %v3623 = vadd.f32 %v3437, %v3610
    %v3624 = vadd.f32 %v3443, %v3615
    %v3625 = vadd.f32 %v3449, %v3620
    %v3626 = vtanh.pop %v3540
    %v3627 = vtanh.pop %v3623
    %v3628 = vtanh.pop %v3541
    %v3629 = vtanh.pop %v3624
    %v3630 = vtanh.pop %v3542
    %v3631 = vtanh.pop %v3625
    %v3632 = vmul.f32 %v3626, 0.5
    %v3633 = vmul.f32 %v3628, 0.5
    %v3634 = vmul.f32 %v3630, 0.5
    %v3635 = vadd.f32 %v3632, 0.5
    %v3636 = vadd.f32 %v3633, 0.5
    %v3637 = vadd.f32 %v3634, 0.5
    %v3638 = vmul.f32 %v3635, 0.0
    %v3639 = vmul.f32 %v3636, 0.0
    %v3640 = vmul.f32 %v3637, 0.0
    %3644 = vrot.lane.b32.xlu0 %v3626, 64
    %v3645 = vpop.permute.xlu0 %3644
    %3646 = vrot.lane.b32.xlu0 %v3628, 64
    %v3647 = vpop.permute.xlu0 %3646
    %3648 = vrot.lane.b32.xlu0 %v3630, 64
    %v3649 = vpop.permute.xlu0 %3648
    %v3653 = vmul.f32 %v3635, %v3645
    %v3654 = vmul.f32 %v3636, %v3647
    %v3655 = vmul.f32 %v3637, %v3649
    %3659 = vrot.lane.b32.xlu0 %v3653, 32
    %v3660 = vpop.permute.xlu0 %3659
    %3661 = vrot.lane.b32.xlu0 %v3654, 32
    %v3662 = vpop.permute.xlu0 %3661
    %3663 = vrot.lane.b32.xlu0 %v3655, 32
    %v3664 = vpop.permute.xlu0 %3663
    %v3668 = vadd.f32 %v3638, %v3660
    %v3669 = vadd.f32 %v3639, %v3662
    %v3670 = vadd.f32 %v3640, %v3664
    %v3671 = vtanh.pop %v3668
    %v3672 = vtanh.pop %v3669
    %v3673 = vtanh.pop %v3670
    %3677 = vrot.lane.b32.xlu0 %v3671, 64
    %v3678 = vpop.permute.xlu0 %3677
    %3679 = vrot.lane.b32.xlu0 %v3672, 64
    %v3680 = vpop.permute.xlu0 %3679
    %3681 = vrot.lane.b32.xlu0 %v3673, 64
    %v3682 = vpop.permute.xlu0 %3681
    %v3686 = vmul.f32 %v3635, %v3678
    %v3687 = vmul.f32 %v3636, %v3680
    %v3688 = vmul.f32 %v3637, %v3682
    %v3689 = vmul.f32 %v3627, 0.5
    %v3690 = vmul.f32 %v3629, 0.5
    %v3691 = vmul.f32 %v3631, 0.5
    %v3692 = vadd.f32 %v3689, 0.5
    %v3693 = vadd.f32 %v3690, 0.5
    %v3694 = vadd.f32 %v3691, 0.5
    %v3695 = vmul.f32 %v3692, 0.0
    %v3696 = vmul.f32 %v3693, 0.0
    %v3697 = vmul.f32 %v3694, 0.0
    %3701 = vrot.lane.b32.xlu0 %v3627, 64
    %v3702 = vpop.permute.xlu0 %3701
    %3703 = vrot.lane.b32.xlu0 %v3629, 64
    %v3704 = vpop.permute.xlu0 %3703
    %3705 = vrot.lane.b32.xlu0 %v3631, 64
    %v3706 = vpop.permute.xlu0 %3705
    %v3710 = vmul.f32 %v3692, %v3702
    %v3711 = vmul.f32 %v3693, %v3704
    %v3712 = vmul.f32 %v3694, %v3706
    %3716 = vrot.lane.b32.xlu0 %v3710, 32
    %v3717 = vpop.permute.xlu0 %3716
    %3718 = vrot.lane.b32.xlu0 %v3711, 32
    %v3719 = vpop.permute.xlu0 %3718
    %3720 = vrot.lane.b32.xlu0 %v3712, 32
    %v3721 = vpop.permute.xlu0 %3720
    %v3725 = vadd.f32 %v3695, %v3717
    %v3726 = vadd.f32 %v3696, %v3719
    %v3727 = vadd.f32 %v3697, %v3721
    %v3728 = vtanh.pop %v3725
    %v3729 = vtanh.pop %v3726
    %v3730 = vtanh.pop %v3727
    %3734 = vrot.lane.b32.xlu0 %v3728, 64
    %v3735 = vpop.permute.xlu0 %3734
    %3736 = vrot.lane.b32.xlu0 %v3729, 64
    %v3737 = vpop.permute.xlu0 %3736
    %3738 = vrot.lane.b32.xlu0 %v3730, 64
    %v3739 = vpop.permute.xlu0 %3738
    %v3743 = vmul.f32 %v3692, %v3735
    %v3744 = vmul.f32 %v3693, %v3737
    %v3745 = vmul.f32 %v3694, %v3739
    %3749 = vrot.lane.b32.xlu0 %v3686, 32
    %v3750 = vpop.permute.xlu0 %3749
    %3751 = vrot.lane.b32.xlu0 %v3687, 32
    %v3752 = vpop.permute.xlu0 %3751
    %3753 = vrot.lane.b32.xlu0 %v3688, 32
    %v3754 = vpop.permute.xlu0 %3753
    %3758 = vst.msk [vmem:[#allocation2] sm:$0xff] %vm162, %v3750
    %3759 = vst.msk [vmem:[#allocation2 + $0x8] sm:$0xff] %vm162, %v3752
    %3760 = vst.msk [vmem:[#allocation2 + $0x10] sm:$0xff] %vm162, %v3754
    %3764 = vrot.lane.b32.xlu0 %v3743, 64
    %v3765 = vpop.permute.xlu0 %3764
    %3766 = vrot.lane.b32.xlu0 %v3744, 64
    %v3767 = vpop.permute.xlu0 %3766
    %3768 = vrot.lane.b32.xlu0 %v3745, 64
    %v3769 = vpop.permute.xlu0 %3768
    %3773 = vst.msk [vmem:[%s768] sm:$0xff] %vm769, %v3765
    %3774 = vst.msk [vmem:[%s768 + $0x8] sm:$0xff] %vm769, %v3767
    %3775 = vst.msk [vmem:[%s768 + $0x10] sm:$0xff] %vm769, %v3769
    %v3776 = vsel %vm162, %v3750, 0
    %v3778 = vsel %vm162, %v3752, 0
    %v3780 = vsel %vm162, %v3754, 0
    %3782 = vmatprep.subr.mxu0 0.0
    %3783 = vmatpush1.msra.mxu0 0.0
    %3784 = vmatprep.subr.mxu0 0.0
    %3785 = vmatpush1.msra.mxu0 0.0
    %3786 = vmatprep.subr.mxu0 0.0
    %3787 = vmatpush1.msra.mxu0 0.0
    %3788 = vmatprep.subr.mxu0 0.0
    %3789 = vmatpush1.msra.mxu0 0.0
    %3790 = vmatprep.subr.mxu0 0.0
    %3791 = vmatpush1.msra.mxu0 0.0
    %3792 = vmatprep.subr.mxu0 0.0
    %3793 = vmatpush1.msra.mxu0 0.0
    %3794 = vmatprep.subr.mxu0 0.0
    %3795 = vmatpush1.msra.mxu0 0.0
    %3796 = vmatprep.subr.mxu0 0.0
    %3797 = vmatpush1.msra.mxu0 0.0
    %3798 = vmatprep.subr.mxu0 0.0
    %3799 = vmatpush1.msra.mxu0 0.0
    %3800 = vmatprep.subr.mxu0 0.0
    %3801 = vmatpush1.msra.mxu0 0.0
    %3802 = vmatprep.subr.mxu0 0.0
    %3803 = vmatpush1.msra.mxu0 0.0
    %3804 = vmatprep.subr.mxu0 0.0
    %3805 = vmatpush1.msra.mxu0 0.0
    %3806 = vmatprep.subr.mxu0 0.0
    %3807 = vmatpush1.msra.mxu0 %v3455
    %3808 = vmatprep.subr.mxu0 0.0
    %3809 = vmatpush1.msra.mxu0 %v3454
    %3810 = vmatprep.subr.mxu0 0.0
    %3811 = vmatpush1.msra.mxu0 %v3453
    %3812 = vmatprep.subr.mxu0 0.0
    %3813 = vmatpush1.msra.mxu0 %v3452
    %3814 = vmatprep.subr.mxu0 0.0
    %3815 = vmatpush2.msra.mxu0 0.0
    %3816 = vmatprep.subr.mxu0 0.0
    %3817 = vmatpush2.msra.mxu0 0.0
    %3818 = vmatprep.subr.mxu0 0.0
    %3819 = vmatpush2.msra.mxu0 0.0
    %3820 = vmatprep.subr.mxu0 0.0
    %3821 = vmatpush2.msra.mxu0 0.0
    %3822 = vmatprep.subr.mxu0 0.0
    %3823 = vmatpush2.msra.mxu0 0.0
    %3824 = vmatprep.subr.mxu0 0.0
    %3825 = vmatpush2.msra.mxu0 0.0
    %3826 = vmatprep.subr.mxu0 0.0
    %3827 = vmatpush2.msra.mxu0 0.0
    %3828 = vmatprep.subr.mxu0 0.0
    %3829 = vmatpush2.msra.mxu0 0.0
    %3830 = vmatprep.subr.mxu0 0.0
    %3831 = vmatpush2.msra.mxu0 0.0
    %3832 = vmatprep.subr.mxu0 0.0
    %3833 = vmatpush2.msra.mxu0 0.0
    %3834 = vmatprep.subr.mxu0 0.0
    %3835 = vmatpush2.msra.mxu0 0.0
    %3836 = vmatprep.subr.mxu0 0.0
    %3837 = vmatpush2.msra.mxu0 0.0
    %3838 = vmatprep.subr.mxu0 0.0
    %3839 = vmatpush2.msra.mxu0 0.0
    %3840 = vmatprep.subr.mxu0 0.0
    %3841 = vmatpush2.msra.mxu0 0.0
    %3842 = vmatprep.subr.mxu0 0.0
    %3843 = vmatpush2.msra.mxu0 0.0
    %3844 = vmatprep.subr.mxu0 0.0
    %3845 = vmatpush2.msra.mxu0 0.0
    %3846 = vmatprep.mubr.f32.mxu0 0.0
    %3847 = vmatmul.mubr.f32.gmra.mxu0 %v3776
    %v3848 = vpop.f32.mrf.mxu0
    %v3849 = vadd.f32 0.0, %v3848
    %v3850 = vpop.f32.mrf.mxu0
    %3851 = vmatprep.mubr.f32.mxu0 0.0
    %3852 = vmatmul.mubr.f32.gmra.mxu0 %v3778
    %v3853 = vpop.f32.mrf.mxu0
    %v3854 = vadd.f32 0.0, %v3853
    %v3855 = vpop.f32.mrf.mxu0
    %3856 = vmatprep.mubr.f32.mxu0 0.0
    %3857 = vmatmul.mubr.f32.gmra.mxu0 %v3780
    %v3858 = vpop.f32.mrf.mxu0
    %v3859 = vadd.f32 0.0, %v3858
    %v3860 = vpop.f32.mrf.mxu0
    %3861 = vdwg.mxu0
    %v3862 = vadd.f32 %v3327, %v3849
    %v3863 = vadd.f32 %v3333, %v3854
    %v3864 = vadd.f32 %v3339, %v3859
    %3865 = vrot.lane.b32.xlu0 %v3743, 32
    %v3866 = vpop.permute.xlu0 %3865
    %3867 = vrot.lane.b32.xlu0 %v3744, 32
    %v3868 = vpop.permute.xlu0 %3867
    %3869 = vrot.lane.b32.xlu0 %v3745, 32
    %v3870 = vpop.permute.xlu0 %3869
    %v3871 = vsel %vm162, %v3866, 0
    %v3873 = vsel %vm162, %v3868, 0
    %v3875 = vsel %vm162, %v3870, 0
    %3877 = vmatprep.subr.mxu0 0.0
    %3878 = vmatpush1.msra.mxu0 0.0
    %3879 = vmatprep.subr.mxu0 0.0
    %3880 = vmatpush1.msra.mxu0 0.0
    %3881 = vmatprep.subr.mxu0 0.0
    %3882 = vmatpush1.msra.mxu0 0.0
    %3883 = vmatprep.subr.mxu0 0.0
    %3884 = vmatpush1.msra.mxu0 0.0
    %3885 = vmatprep.subr.mxu0 0.0
    %3886 = vmatpush1.msra.mxu0 0.0
    %3887 = vmatprep.subr.mxu0 0.0
    %3888 = vmatpush1.msra.mxu0 0.0
    %3889 = vmatprep.subr.mxu0 0.0
    %3890 = vmatpush1.msra.mxu0 0.0
    %3891 = vmatprep.subr.mxu0 0.0
    %3892 = vmatpush1.msra.mxu0 0.0
    %3893 = vmatprep.subr.mxu0 0.0
    %3894 = vmatpush1.msra.mxu0 0.0
    %3895 = vmatprep.subr.mxu0 0.0
    %3896 = vmatpush1.msra.mxu0 0.0
    %3897 = vmatprep.subr.mxu0 0.0
    %3898 = vmatpush1.msra.mxu0 0.0
    %3899 = vmatprep.subr.mxu0 0.0
    %3900 = vmatpush1.msra.mxu0 0.0
    %3901 = vmatprep.subr.mxu0 0.0
    %3902 = vmatpush1.msra.mxu0 %v3459
    %3903 = vmatprep.subr.mxu0 0.0
    %3904 = vmatpush1.msra.mxu0 %v3458
    %3905 = vmatprep.subr.mxu0 0.0
    %3906 = vmatpush1.msra.mxu0 %v3457
    %3907 = vmatprep.subr.mxu0 0.0
    %3908 = vmatpush1.msra.mxu0 %v3456
    %3909 = vmatprep.subr.mxu0 0.0
    %3910 = vmatpush2.msra.mxu0 0.0
    %3911 = vmatprep.subr.mxu0 0.0
    %3912 = vmatpush2.msra.mxu0 0.0
    %3913 = vmatprep.subr.mxu0 0.0
    %3914 = vmatpush2.msra.mxu0 0.0
    %3915 = vmatprep.subr.mxu0 0.0
    %3916 = vmatpush2.msra.mxu0 0.0
    %3917 = vmatprep.subr.mxu0 0.0
    %3918 = vmatpush2.msra.mxu0 0.0
    %3919 = vmatprep.subr.mxu0 0.0
    %3920 = vmatpush2.msra.mxu0 0.0
    %3921 = vmatprep.subr.mxu0 0.0
    %3922 = vmatpush2.msra.mxu0 0.0
    %3923 = vmatprep.subr.mxu0 0.0
    %3924 = vmatpush2.msra.mxu0 0.0
    %3925 = vmatprep.subr.mxu0 0.0
    %3926 = vmatpush2.msra.mxu0 0.0
    %3927 = vmatprep.subr.mxu0 0.0
    %3928 = vmatpush2.msra.mxu0 0.0
    %3929 = vmatprep.subr.mxu0 0.0
    %3930 = vmatpush2.msra.mxu0 0.0
    %3931 = vmatprep.subr.mxu0 0.0
    %3932 = vmatpush2.msra.mxu0 0.0
    %3933 = vmatprep.subr.mxu0 0.0
    %3934 = vmatpush2.msra.mxu0 0.0
    %3935 = vmatprep.subr.mxu0 0.0
    %3936 = vmatpush2.msra.mxu0 0.0
    %3937 = vmatprep.subr.mxu0 0.0
    %3938 = vmatpush2.msra.mxu0 0.0
    %3939 = vmatprep.subr.mxu0 0.0
    %3940 = vmatpush2.msra.mxu0 0.0
    %3941 = vmatprep.mubr.f32.mxu0 0.0
    %3942 = vmatmul.mubr.f32.gmra.mxu0 %v3871
    %v3943 = vpop.f32.mrf.mxu0
    %v3944 = vadd.f32 0.0, %v3943
    %v3945 = vpop.f32.mrf.mxu0
    %3946 = vmatprep.mubr.f32.mxu0 0.0
    %3947 = vmatmul.mubr.f32.gmra.mxu0 %v3873
    %v3948 = vpop.f32.mrf.mxu0
    %v3949 = vadd.f32 0.0, %v3948
    %v3950 = vpop.f32.mrf.mxu0
    %3951 = vmatprep.mubr.f32.mxu0 0.0
    %3952 = vmatmul.mubr.f32.gmra.mxu0 %v3875
    %v3953 = vpop.f32.mrf.mxu0
    %v3954 = vadd.f32 0.0, %v3953
    %v3955 = vpop.f32.mrf.mxu0
    %3956 = vdwg.mxu0
    %v3957 = vadd.f32 %v3419, %v3944
    %v3958 = vadd.f32 %v3425, %v3949
    %v3959 = vadd.f32 %v3431, %v3954
    %v3960 = vtanh.pop %v3862
    %v3961 = vtanh.pop %v3957
    %v3962 = vtanh.pop %v3863
    %v3963 = vtanh.pop %v3958
    %v3964 = vtanh.pop %v3864
    %v3965 = vtanh.pop %v3959
    %v3966 = vmul.f32 %v3960, 0.5
    %v3967 = vmul.f32 %v3962, 0.5
    %v3968 = vmul.f32 %v3964, 0.5
    %v3969 = vadd.f32 %v3966, 0.5
    %v3970 = vadd.f32 %v3967, 0.5
    %v3971 = vadd.f32 %v3968, 0.5
    %v3972 = vmul.f32 %v3969, %v3668
    %v3973 = vmul.f32 %v3970, %v3669
    %v3974 = vmul.f32 %v3971, %v3670
    %3978 = vrot.lane.b32.xlu0 %v3960, 64
    %v3979 = vpop.permute.xlu0 %3978
    %3980 = vrot.lane.b32.xlu0 %v3962, 64
    %v3981 = vpop.permute.xlu0 %3980
    %3982 = vrot.lane.b32.xlu0 %v3964, 64
    %v3983 = vpop.permute.xlu0 %3982
    %v3987 = vmul.f32 %v3969, %v3979
    %v3988 = vmul.f32 %v3970, %v3981
    %v3989 = vmul.f32 %v3971, %v3983
    %3993 = vrot.lane.b32.xlu0 %v3987, 32
    %v3994 = vpop.permute.xlu0 %3993
    %3995 = vrot.lane.b32.xlu0 %v3988, 32
    %v3996 = vpop.permute.xlu0 %3995
    %3997 = vrot.lane.b32.xlu0 %v3989, 32
    %v3998 = vpop.permute.xlu0 %3997
    %v4002 = vadd.f32 %v3972, %v3994
    %v4003 = vadd.f32 %v3973, %v3996
    %v4004 = vadd.f32 %v3974, %v3998
    %v4005 = vtanh.pop %v4002
    %v4006 = vtanh.pop %v4003
    %v4007 = vtanh.pop %v4004
    %4011 = vrot.lane.b32.xlu0 %v4005, 64
    %v4012 = vpop.permute.xlu0 %4011
    %4013 = vrot.lane.b32.xlu0 %v4006, 64
    %v4014 = vpop.permute.xlu0 %4013
    %4015 = vrot.lane.b32.xlu0 %v4007, 64
    %v4016 = vpop.permute.xlu0 %4015
    %v4020 = vmul.f32 %v3969, %v4012
    %v4021 = vmul.f32 %v3970, %v4014
    %v4022 = vmul.f32 %v3971, %v4016
    %v4023 = vmul.f32 %v3961, 0.5
    %v4024 = vmul.f32 %v3963, 0.5
    %v4025 = vmul.f32 %v3965, 0.5
    %v4026 = vadd.f32 %v4023, 0.5
    %v4027 = vadd.f32 %v4024, 0.5
    %v4028 = vadd.f32 %v4025, 0.5
    %v4029 = vmul.f32 %v4026, %v3725
    %v4030 = vmul.f32 %v4027, %v3726
    %v4031 = vmul.f32 %v4028, %v3727
    %4035 = vrot.lane.b32.xlu0 %v3961, 64
    %v4036 = vpop.permute.xlu0 %4035
    %4037 = vrot.lane.b32.xlu0 %v3963, 64
    %v4038 = vpop.permute.xlu0 %4037
    %4039 = vrot.lane.b32.xlu0 %v3965, 64
    %v4040 = vpop.permute.xlu0 %4039
    %v4044 = vmul.f32 %v4026, %v4036
    %v4045 = vmul.f32 %v4027, %v4038
    %v4046 = vmul.f32 %v4028, %v4040
    %4050 = vrot.lane.b32.xlu0 %v4044, 32
    %v4051 = vpop.permute.xlu0 %4050
    %4052 = vrot.lane.b32.xlu0 %v4045, 32
    %v4053 = vpop.permute.xlu0 %4052
    %4054 = vrot.lane.b32.xlu0 %v4046, 32
    %v4055 = vpop.permute.xlu0 %4054
    %v4059 = vadd.f32 %v4029, %v4051
    %v4060 = vadd.f32 %v4030, %v4053
    %v4061 = vadd.f32 %v4031, %v4055
    %v4062 = vtanh.pop %v4059
    %v4063 = vtanh.pop %v4060
    %v4064 = vtanh.pop %v4061
    %4068 = vrot.lane.b32.xlu0 %v4062, 64
    %v4069 = vpop.permute.xlu0 %4068
    %4070 = vrot.lane.b32.xlu0 %v4063, 64
    %v4071 = vpop.permute.xlu0 %4070
    %4072 = vrot.lane.b32.xlu0 %v4064, 64
    %v4073 = vpop.permute.xlu0 %4072
    %v4077 = vmul.f32 %v4026, %v4069
    %v4078 = vmul.f32 %v4027, %v4071
    %v4079 = vmul.f32 %v4028, %v4073
    %4083 = vrot.lane.b32.xlu0 %v4020, 32
    %v4084 = vpop.permute.xlu0 %4083
    %4085 = vrot.lane.b32.xlu0 %v4021, 32
    %v4086 = vpop.permute.xlu0 %4085
    %4087 = vrot.lane.b32.xlu0 %v4022, 32
    %v4088 = vpop.permute.xlu0 %4087
    %4092 = vst.msk [vmem:[%s1089] sm:$0xff] %vm162, %v4084
    %4093 = vst.msk [vmem:[%s1089 + $0x8] sm:$0xff] %vm162, %v4086
    %4094 = vst.msk [vmem:[%s1089 + $0x10] sm:$0xff] %vm162, %v4088
    %4098 = vrot.lane.b32.xlu0 %v4077, 64
    %v4099 = vpop.permute.xlu0 %4098
    %4100 = vrot.lane.b32.xlu0 %v4078, 64
    %v4101 = vpop.permute.xlu0 %4100
    %4102 = vrot.lane.b32.xlu0 %v4079, 64
    %v4103 = vpop.permute.xlu0 %4102
    %4107 = vst.msk [vmem:[%s1105] sm:$0xff] %vm769, %v4099
    %4108 = vst.msk [vmem:[%s1105 + $0x8] sm:$0xff] %vm769, %v4101
    %4109 = vst.msk [vmem:[%s1105 + $0x10] sm:$0xff] %vm769, %v4103
    %v4110 = vsel %vm162, %v4084, 0
    %v4112 = vsel %vm162, %v4086, 0
    %v4114 = vsel %vm162, %v4088, 0
    %4116 = vmatprep.subr.mxu0 0.0
    %4117 = vmatpush1.msra.mxu0 0.0
    %4118 = vmatprep.subr.mxu0 0.0
    %4119 = vmatpush1.msra.mxu0 0.0
    %4120 = vmatprep.subr.mxu0 0.0
    %4121 = vmatpush1.msra.mxu0 0.0
    %4122 = vmatprep.subr.mxu0 0.0
    %4123 = vmatpush1.msra.mxu0 0.0
    %4124 = vmatprep.subr.mxu0 0.0
    %4125 = vmatpush1.msra.mxu0 0.0
    %4126 = vmatprep.subr.mxu0 0.0
    %4127 = vmatpush1.msra.mxu0 0.0
    %4128 = vmatprep.subr.mxu0 0.0
    %4129 = vmatpush1.msra.mxu0 0.0
    %4130 = vmatprep.subr.mxu0 0.0
    %4131 = vmatpush1.msra.mxu0 0.0
    %4132 = vmatprep.subr.mxu0 0.0
    %4133 = vmatpush1.msra.mxu0 0.0
    %4134 = vmatprep.subr.mxu0 0.0
    %4135 = vmatpush1.msra.mxu0 0.0
    %4136 = vmatprep.subr.mxu0 0.0
    %4137 = vmatpush1.msra.mxu0 0.0
    %4138 = vmatprep.subr.mxu0 0.0
    %4139 = vmatpush1.msra.mxu0 0.0
    %4140 = vmatprep.subr.mxu0 0.0
    %4141 = vmatpush1.msra.mxu0 %v3455
    %4142 = vmatprep.subr.mxu0 0.0
    %4143 = vmatpush1.msra.mxu0 %v3454
    %4144 = vmatprep.subr.mxu0 0.0
    %4145 = vmatpush1.msra.mxu0 %v3453
    %4146 = vmatprep.subr.mxu0 0.0
    %4147 = vmatpush1.msra.mxu0 %v3452
    %4148 = vmatprep.subr.mxu0 0.0
    %4149 = vmatpush2.msra.mxu0 0.0
    %4150 = vmatprep.subr.mxu0 0.0
    %4151 = vmatpush2.msra.mxu0 0.0
    %4152 = vmatprep.subr.mxu0 0.0
    %4153 = vmatpush2.msra.mxu0 0.0
    %4154 = vmatprep.subr.mxu0 0.0
    %4155 = vmatpush2.msra.mxu0 0.0
    %4156 = vmatprep.subr.mxu0 0.0
    %4157 = vmatpush2.msra.mxu0 0.0
    %4158 = vmatprep.subr.mxu0 0.0
    %4159 = vmatpush2.msra.mxu0 0.0
    %4160 = vmatprep.subr.mxu0 0.0
    %4161 = vmatpush2.msra.mxu0 0.0
    %4162 = vmatprep.subr.mxu0 0.0
    %4163 = vmatpush2.msra.mxu0 0.0
    %4164 = vmatprep.subr.mxu0 0.0
    %4165 = vmatpush2.msra.mxu0 0.0
    %4166 = vmatprep.subr.mxu0 0.0
    %4167 = vmatpush2.msra.mxu0 0.0
    %4168 = vmatprep.subr.mxu0 0.0
    %4169 = vmatpush2.msra.mxu0 0.0
    %4170 = vmatprep.subr.mxu0 0.0
    %4171 = vmatpush2.msra.mxu0 0.0
    %4172 = vmatprep.subr.mxu0 0.0
    %4173 = vmatpush2.msra.mxu0 0.0
    %4174 = vmatprep.subr.mxu0 0.0
    %4175 = vmatpush2.msra.mxu0 0.0
    %4176 = vmatprep.subr.mxu0 0.0
    %4177 = vmatpush2.msra.mxu0 0.0
    %4178 = vmatprep.subr.mxu0 0.0
    %4179 = vmatpush2.msra.mxu0 0.0
    %4180 = vmatprep.mubr.f32.mxu0 0.0
    %4181 = vmatmul.mubr.f32.gmra.mxu0 %v4110
    %v4182 = vpop.f32.mrf.mxu0
    %v4183 = vadd.f32 0.0, %v4182
    %v4184 = vpop.f32.mrf.mxu0
    %4185 = vmatprep.mubr.f32.mxu0 0.0
    %4186 = vmatmul.mubr.f32.gmra.mxu0 %v4112
    %v4187 = vpop.f32.mrf.mxu0
    %v4188 = vadd.f32 0.0, %v4187
    %v4189 = vpop.f32.mrf.mxu0
    %4190 = vmatprep.mubr.f32.mxu0 0.0
    %4191 = vmatmul.mubr.f32.gmra.mxu0 %v4114
    %v4192 = vpop.f32.mrf.mxu0
    %v4193 = vadd.f32 0.0, %v4192
    %v4194 = vpop.f32.mrf.mxu0
    %4195 = vdwg.mxu0
    %v4196 = vadd.f32 %v3345, %v4183
    %v4197 = vadd.f32 %v3351, %v4188
    %v4198 = vadd.f32 %v3357, %v4193
    %4199 = vrot.lane.b32.xlu0 %v4077, 32
    %v4200 = vpop.permute.xlu0 %4199
    %4201 = vrot.lane.b32.xlu0 %v4078, 32
    %v4202 = vpop.permute.xlu0 %4201
    %4203 = vrot.lane.b32.xlu0 %v4079, 32
    %v4204 = vpop.permute.xlu0 %4203
    %v4205 = vsel %vm162, %v4200, 0
    %v4207 = vsel %vm162, %v4202, 0
    %v4209 = vsel %vm162, %v4204, 0
    %4211 = vmatprep.subr.mxu0 0.0
    %4212 = vmatpush1.msra.mxu0 0.0
    %4213 = vmatprep.subr.mxu0 0.0
    %4214 = vmatpush1.msra.mxu0 0.0
    %4215 = vmatprep.subr.mxu0 0.0
    %4216 = vmatpush1.msra.mxu0 0.0
    %4217 = vmatprep.subr.mxu0 0.0
    %4218 = vmatpush1.msra.mxu0 0.0
    %4219 = vmatprep.subr.mxu0 0.0
    %4220 = vmatpush1.msra.mxu0 0.0
    %4221 = vmatprep.subr.mxu0 0.0
    %4222 = vmatpush1.msra.mxu0 0.0
    %4223 = vmatprep.subr.mxu0 0.0
    %4224 = vmatpush1.msra.mxu0 0.0
    %4225 = vmatprep.subr.mxu0 0.0
    %4226 = vmatpush1.msra.mxu0 0.0
    %4227 = vmatprep.subr.mxu0 0.0
    %4228 = vmatpush1.msra.mxu0 0.0
    %4229 = vmatprep.subr.mxu0 0.0
    %4230 = vmatpush1.msra.mxu0 0.0
    %4231 = vmatprep.subr.mxu0 0.0
    %4232 = vmatpush1.msra.mxu0 0.0
    %4233 = vmatprep.subr.mxu0 0.0
    %4234 = vmatpush1.msra.mxu0 0.0
    %4235 = vmatprep.subr.mxu0 0.0
    %4236 = vmatpush1.msra.mxu0 %v3459
    %4237 = vmatprep.subr.mxu0 0.0
    %4238 = vmatpush1.msra.mxu0 %v3458
    %4239 = vmatprep.subr.mxu0 0.0
    %4240 = vmatpush1.msra.mxu0 %v3457
    %4241 = vmatprep.subr.mxu0 0.0
    %4242 = vmatpush1.msra.mxu0 %v3456
    %4243 = vmatprep.subr.mxu0 0.0
    %4244 = vmatpush2.msra.mxu0 0.0
    %4245 = vmatprep.subr.mxu0 0.0
    %4246 = vmatpush2.msra.mxu0 0.0
    %4247 = vmatprep.subr.mxu0 0.0
    %4248 = vmatpush2.msra.mxu0 0.0
    %4249 = vmatprep.subr.mxu0 0.0
    %4250 = vmatpush2.msra.mxu0 0.0
    %4251 = vmatprep.subr.mxu0 0.0
    %4252 = vmatpush2.msra.mxu0 0.0
    %4253 = vmatprep.subr.mxu0 0.0
    %4254 = vmatpush2.msra.mxu0 0.0
    %4255 = vmatprep.subr.mxu0 0.0
    %4256 = vmatpush2.msra.mxu0 0.0
    %4257 = vmatprep.subr.mxu0 0.0
    %4258 = vmatpush2.msra.mxu0 0.0
    %4259 = vmatprep.subr.mxu0 0.0
    %4260 = vmatpush2.msra.mxu0 0.0
    %4261 = vmatprep.subr.mxu0 0.0
    %4262 = vmatpush2.msra.mxu0 0.0
    %4263 = vmatprep.subr.mxu0 0.0
    %4264 = vmatpush2.msra.mxu0 0.0
    %4265 = vmatprep.subr.mxu0 0.0
    %4266 = vmatpush2.msra.mxu0 0.0
    %4267 = vmatprep.subr.mxu0 0.0
    %4268 = vmatpush2.msra.mxu0 0.0
    %4269 = vmatprep.subr.mxu0 0.0
    %4270 = vmatpush2.msra.mxu0 0.0
    %4271 = vmatprep.subr.mxu0 0.0
    %4272 = vmatpush2.msra.mxu0 0.0
    %4273 = vmatprep.subr.mxu0 0.0
    %4274 = vmatpush2.msra.mxu0 0.0
    %4275 = vmatprep.mubr.f32.mxu0 0.0
    %4276 = vmatmul.mubr.f32.gmra.mxu0 %v4205
    %v4277 = vpop.f32.mrf.mxu0
    %v4278 = vadd.f32 0.0, %v4277
    %v4279 = vpop.f32.mrf.mxu0
    %4280 = vmatprep.mubr.f32.mxu0 0.0
    %4281 = vmatmul.mubr.f32.gmra.mxu0 %v4207
    %v4282 = vpop.f32.mrf.mxu0
    %v4283 = vadd.f32 0.0, %v4282
    %v4284 = vpop.f32.mrf.mxu0
    %4285 = vmatprep.mubr.f32.mxu0 0.0
    %4286 = vmatmul.mubr.f32.gmra.mxu0 %v4209
    %v4287 = vpop.f32.mrf.mxu0
    %v4288 = vadd.f32 0.0, %v4287
    %v4289 = vpop.f32.mrf.mxu0
    %4290 = vdwg.mxu0
    %v4291 = vadd.f32 %v3401, %v4278
    %v4292 = vadd.f32 %v3407, %v4283
    %v4293 = vadd.f32 %v3413, %v4288
    %v4294 = vtanh.pop %v4196
    %v4295 = vtanh.pop %v4291
    %v4296 = vtanh.pop %v4197
    %v4297 = vtanh.pop %v4292
    %v4298 = vtanh.pop %v4198
    %v4299 = vtanh.pop %v4293
    %v4300 = vmul.f32 %v4294, 0.5
    %v4301 = vmul.f32 %v4296, 0.5
    %v4302 = vmul.f32 %v4298, 0.5
    %v4303 = vadd.f32 %v4300, 0.5
    %v4304 = vadd.f32 %v4301, 0.5
    %v4305 = vadd.f32 %v4302, 0.5
    %v4306 = vmul.f32 %v4303, %v4002
    %v4307 = vmul.f32 %v4304, %v4003
    %v4308 = vmul.f32 %v4305, %v4004
    %4312 = vrot.lane.b32.xlu0 %v4294, 64
    %v4313 = vpop.permute.xlu0 %4312
    %4314 = vrot.lane.b32.xlu0 %v4296, 64
    %v4315 = vpop.permute.xlu0 %4314
    %4316 = vrot.lane.b32.xlu0 %v4298, 64
    %v4317 = vpop.permute.xlu0 %4316
    %v4321 = vmul.f32 %v4303, %v4313
    %v4322 = vmul.f32 %v4304, %v4315
    %v4323 = vmul.f32 %v4305, %v4317
    %4327 = vrot.lane.b32.xlu0 %v4321, 32
    %v4328 = vpop.permute.xlu0 %4327
    %4329 = vrot.lane.b32.xlu0 %v4322, 32
    %v4330 = vpop.permute.xlu0 %4329
    %4331 = vrot.lane.b32.xlu0 %v4323, 32
    %v4332 = vpop.permute.xlu0 %4331
    %v4336 = vadd.f32 %v4306, %v4328
    %v4337 = vadd.f32 %v4307, %v4330
    %v4338 = vadd.f32 %v4308, %v4332
    %v4339 = vtanh.pop %v4336
    %v4340 = vtanh.pop %v4337
    %v4341 = vtanh.pop %v4338
    %4345 = vrot.lane.b32.xlu0 %v4339, 64
    %v4346 = vpop.permute.xlu0 %4345
    %4347 = vrot.lane.b32.xlu0 %v4340, 64
    %v4348 = vpop.permute.xlu0 %4347
    %4349 = vrot.lane.b32.xlu0 %v4341, 64
    %v4350 = vpop.permute.xlu0 %4349
    %v4354 = vmul.f32 %v4303, %v4346
    %v4355 = vmul.f32 %v4304, %v4348
    %v4356 = vmul.f32 %v4305, %v4350
    %v4357 = vmul.f32 %v4295, 0.5
    %v4358 = vmul.f32 %v4297, 0.5
    %v4359 = vmul.f32 %v4299, 0.5
    %v4360 = vadd.f32 %v4357, 0.5
    %v4361 = vadd.f32 %v4358, 0.5
    %v4362 = vadd.f32 %v4359, 0.5
    %v4363 = vmul.f32 %v4360, %v4059
    %v4364 = vmul.f32 %v4361, %v4060
    %v4365 = vmul.f32 %v4362, %v4061
    %4369 = vrot.lane.b32.xlu0 %v4295, 64
    %v4370 = vpop.permute.xlu0 %4369
    %4371 = vrot.lane.b32.xlu0 %v4297, 64
    %v4372 = vpop.permute.xlu0 %4371
    %4373 = vrot.lane.b32.xlu0 %v4299, 64
    %v4374 = vpop.permute.xlu0 %4373
    %v4378 = vmul.f32 %v4360, %v4370
    %v4379 = vmul.f32 %v4361, %v4372
    %v4380 = vmul.f32 %v4362, %v4374
    %4384 = vrot.lane.b32.xlu0 %v4378, 32
    %v4385 = vpop.permute.xlu0 %4384
    %4386 = vrot.lane.b32.xlu0 %v4379, 32
    %v4387 = vpop.permute.xlu0 %4386
    %4388 = vrot.lane.b32.xlu0 %v4380, 32
    %v4389 = vpop.permute.xlu0 %4388
    %v4393 = vadd.f32 %v4363, %v4385
    %v4394 = vadd.f32 %v4364, %v4387
    %v4395 = vadd.f32 %v4365, %v4389
    %v4396 = vtanh.pop %v4393
    %v4397 = vtanh.pop %v4394
    %v4398 = vtanh.pop %v4395
    %4402 = vrot.lane.b32.xlu0 %v4396, 64
    %v4403 = vpop.permute.xlu0 %4402
    %4404 = vrot.lane.b32.xlu0 %v4397, 64
    %v4405 = vpop.permute.xlu0 %4404
    %4406 = vrot.lane.b32.xlu0 %v4398, 64
    %v4407 = vpop.permute.xlu0 %4406
    %v4411 = vmul.f32 %v4360, %v4403
    %v4412 = vmul.f32 %v4361, %v4405
    %v4413 = vmul.f32 %v4362, %v4407
    %4417 = vrot.lane.b32.xlu0 %v4354, 32
    %v4418 = vpop.permute.xlu0 %4417
    %4419 = vrot.lane.b32.xlu0 %v4355, 32
    %v4420 = vpop.permute.xlu0 %4419
    %4421 = vrot.lane.b32.xlu0 %v4356, 32
    %v4422 = vpop.permute.xlu0 %4421
    %4426 = vst.msk [vmem:[%s1425] sm:$0xff] %vm162, %v4418
    %4427 = vst.msk [vmem:[%s1425 + $0x8] sm:$0xff] %vm162, %v4420
    %4428 = vst.msk [vmem:[%s1425 + $0x10] sm:$0xff] %vm162, %v4422
    %4432 = vrot.lane.b32.xlu0 %v4411, 64
    %v4433 = vpop.permute.xlu0 %4432
    %4434 = vrot.lane.b32.xlu0 %v4412, 64
    %v4435 = vpop.permute.xlu0 %4434
    %4436 = vrot.lane.b32.xlu0 %v4413, 64
    %v4437 = vpop.permute.xlu0 %4436
    %4441 = vst.msk [vmem:[%s1441] sm:$0xff] %vm769, %v4433
    %4442 = vst.msk [vmem:[%s1441 + $0x8] sm:$0xff] %vm769, %v4435
    %4443 = vst.msk [vmem:[%s1441 + $0x10] sm:$0xff] %vm769, %v4437
    %v4444 = vsel %vm162, %v4418, 0
    %v4446 = vsel %vm162, %v4420, 0
    %v4448 = vsel %vm162, %v4422, 0
    %4450 = vmatprep.subr.mxu0 0.0
    %4451 = vmatpush1.msra.mxu0 0.0
    %4452 = vmatprep.subr.mxu0 0.0
    %4453 = vmatpush1.msra.mxu0 0.0
    %4454 = vmatprep.subr.mxu0 0.0
    %4455 = vmatpush1.msra.mxu0 0.0
    %4456 = vmatprep.subr.mxu0 0.0
    %4457 = vmatpush1.msra.mxu0 0.0
    %4458 = vmatprep.subr.mxu0 0.0
    %4459 = vmatpush1.msra.mxu0 0.0
    %4460 = vmatprep.subr.mxu0 0.0
    %4461 = vmatpush1.msra.mxu0 0.0
    %4462 = vmatprep.subr.mxu0 0.0
    %4463 = vmatpush1.msra.mxu0 0.0
    %4464 = vmatprep.subr.mxu0 0.0
    %4465 = vmatpush1.msra.mxu0 0.0
    %4466 = vmatprep.subr.mxu0 0.0
    %4467 = vmatpush1.msra.mxu0 0.0
    %4468 = vmatprep.subr.mxu0 0.0
    %4469 = vmatpush1.msra.mxu0 0.0
    %4470 = vmatprep.subr.mxu0 0.0
    %4471 = vmatpush1.msra.mxu0 0.0
    %4472 = vmatprep.subr.mxu0 0.0
    %4473 = vmatpush1.msra.mxu0 0.0
    %4474 = vmatprep.subr.mxu0 0.0
    %4475 = vmatpush1.msra.mxu0 %v3455
    %4476 = vmatprep.subr.mxu0 0.0
    %4477 = vmatpush1.msra.mxu0 %v3454
    %4478 = vmatprep.subr.mxu0 0.0
    %4479 = vmatpush1.msra.mxu0 %v3453
    %4480 = vmatprep.subr.mxu0 0.0
    %4481 = vmatpush1.msra.mxu0 %v3452
    %4482 = vmatprep.subr.mxu0 0.0
    %4483 = vmatpush2.msra.mxu0 0.0
    %4484 = vmatprep.subr.mxu0 0.0
    %4485 = vmatpush2.msra.mxu0 0.0
    %4486 = vmatprep.subr.mxu0 0.0
    %4487 = vmatpush2.msra.mxu0 0.0
    %4488 = vmatprep.subr.mxu0 0.0
    %4489 = vmatpush2.msra.mxu0 0.0
    %4490 = vmatprep.subr.mxu0 0.0
    %4491 = vmatpush2.msra.mxu0 0.0
    %4492 = vmatprep.subr.mxu0 0.0
    %4493 = vmatpush2.msra.mxu0 0.0
    %4494 = vmatprep.subr.mxu0 0.0
    %4495 = vmatpush2.msra.mxu0 0.0
    %4496 = vmatprep.subr.mxu0 0.0
    %4497 = vmatpush2.msra.mxu0 0.0
    %4498 = vmatprep.subr.mxu0 0.0
    %4499 = vmatpush2.msra.mxu0 0.0
    %4500 = vmatprep.subr.mxu0 0.0
    %4501 = vmatpush2.msra.mxu0 0.0
    %4502 = vmatprep.subr.mxu0 0.0
    %4503 = vmatpush2.msra.mxu0 0.0
    %4504 = vmatprep.subr.mxu0 0.0
    %4505 = vmatpush2.msra.mxu0 0.0
    %4506 = vmatprep.subr.mxu0 0.0
    %4507 = vmatpush2.msra.mxu0 0.0
    %4508 = vmatprep.subr.mxu0 0.0
    %4509 = vmatpush2.msra.mxu0 0.0
    %4510 = vmatprep.subr.mxu0 0.0
    %4511 = vmatpush2.msra.mxu0 0.0
    %4512 = vmatprep.subr.mxu0 0.0
    %4513 = vmatpush2.msra.mxu0 0.0
    %4514 = vmatprep.mubr.f32.mxu0 0.0
    %4515 = vmatmul.mubr.f32.gmra.mxu0 %v4444
    %v4516 = vpop.f32.mrf.mxu0
    %v4517 = vadd.f32 0.0, %v4516
    %v4518 = vpop.f32.mrf.mxu0
    %4519 = vmatprep.mubr.f32.mxu0 0.0
    %4520 = vmatmul.mubr.f32.gmra.mxu0 %v4446
    %v4521 = vpop.f32.mrf.mxu0
    %v4522 = vadd.f32 0.0, %v4521
    %v4523 = vpop.f32.mrf.mxu0
    %4524 = vmatprep.mubr.f32.mxu0 0.0
    %4525 = vmatmul.mubr.f32.gmra.mxu0 %v4448
    %v4526 = vpop.f32.mrf.mxu0
    %v4527 = vadd.f32 0.0, %v4526
    %v4528 = vpop.f32.mrf.mxu0
    %4529 = vdwg.mxu0
    %v4530 = vadd.f32 %v3363, %v4517
    %v4531 = vadd.f32 %v3369, %v4522
    %v4532 = vadd.f32 %v3375, %v4527
    %4533 = vrot.lane.b32.xlu0 %v4411, 32
    %v4534 = vpop.permute.xlu0 %4533
    %4535 = vrot.lane.b32.xlu0 %v4412, 32
    %v4536 = vpop.permute.xlu0 %4535
    %4537 = vrot.lane.b32.xlu0 %v4413, 32
    %v4538 = vpop.permute.xlu0 %4537
    %v4539 = vsel %vm162, %v4534, 0
    %v4541 = vsel %vm162, %v4536, 0
    %v4543 = vsel %vm162, %v4538, 0
    %4545 = vmatprep.subr.mxu0 0.0
    %4546 = vmatpush1.msra.mxu0 0.0
    %4547 = vmatprep.subr.mxu0 0.0
    %4548 = vmatpush1.msra.mxu0 0.0
    %4549 = vmatprep.subr.mxu0 0.0
    %4550 = vmatpush1.msra.mxu0 0.0
    %4551 = vmatprep.subr.mxu0 0.0
    %4552 = vmatpush1.msra.mxu0 0.0
    %4553 = vmatprep.subr.mxu0 0.0
    %4554 = vmatpush1.msra.mxu0 0.0
    %4555 = vmatprep.subr.mxu0 0.0
    %4556 = vmatpush1.msra.mxu0 0.0
    %4557 = vmatprep.subr.mxu0 0.0
    %4558 = vmatpush1.msra.mxu0 0.0
    %4559 = vmatprep.subr.mxu0 0.0
    %4560 = vmatpush1.msra.mxu0 0.0
    %4561 = vmatprep.subr.mxu0 0.0
    %4562 = vmatpush1.msra.mxu0 0.0
    %4563 = vmatprep.subr.mxu0 0.0
    %4564 = vmatpush1.msra.mxu0 0.0
    %4565 = vmatprep.subr.mxu0 0.0
    %4566 = vmatpush1.msra.mxu0 0.0
    %4567 = vmatprep.subr.mxu0 0.0
    %4568 = vmatpush1.msra.mxu0 0.0
    %4569 = vmatprep.subr.mxu0 0.0
    %4570 = vmatpush1.msra.mxu0 %v3459
    %4571 = vmatprep.subr.mxu0 0.0
    %4572 = vmatpush1.msra.mxu0 %v3458
    %4573 = vmatprep.subr.mxu0 0.0
    %4574 = vmatpush1.msra.mxu0 %v3457
    %4575 = vmatprep.subr.mxu0 0.0
    %4576 = vmatpush1.msra.mxu0 %v3456
    %4577 = vmatprep.subr.mxu0 0.0
    %4578 = vmatpush2.msra.mxu0 0.0
    %4579 = vmatprep.subr.mxu0 0.0
    %4580 = vmatpush2.msra.mxu0 0.0
    %4581 = vmatprep.subr.mxu0 0.0
    %4582 = vmatpush2.msra.mxu0 0.0
    %4583 = vmatprep.subr.mxu0 0.0
    %4584 = vmatpush2.msra.mxu0 0.0
    %4585 = vmatprep.subr.mxu0 0.0
    %4586 = vmatpush2.msra.mxu0 0.0
    %4587 = vmatprep.subr.mxu0 0.0
    %4588 = vmatpush2.msra.mxu0 0.0
    %4589 = vmatprep.subr.mxu0 0.0
    %4590 = vmatpush2.msra.mxu0 0.0
    %4591 = vmatprep.subr.mxu0 0.0
    %4592 = vmatpush2.msra.mxu0 0.0
    %4593 = vmatprep.subr.mxu0 0.0
    %4594 = vmatpush2.msra.mxu0 0.0
    %4595 = vmatprep.subr.mxu0 0.0
    %4596 = vmatpush2.msra.mxu0 0.0
    %4597 = vmatprep.subr.mxu0 0.0
    %4598 = vmatpush2.msra.mxu0 0.0
    %4599 = vmatprep.subr.mxu0 0.0
    %4600 = vmatpush2.msra.mxu0 0.0
    %4601 = vmatprep.subr.mxu0 0.0
    %4602 = vmatpush2.msra.mxu0 0.0
    %4603 = vmatprep.subr.mxu0 0.0
    %4604 = vmatpush2.msra.mxu0 0.0
    %4605 = vmatprep.subr.mxu0 0.0
    %4606 = vmatpush2.msra.mxu0 0.0
    %4607 = vmatprep.subr.mxu0 0.0
    %4608 = vmatpush2.msra.mxu0 0.0
    %4609 = vmatprep.mubr.f32.mxu0 0.0
    %4610 = vmatmul.mubr.f32.gmra.mxu0 %v4539
    %v4611 = vpop.f32.mrf.mxu0
    %v4612 = vadd.f32 0.0, %v4611
    %v4613 = vpop.f32.mrf.mxu0
    %4614 = vmatprep.mubr.f32.mxu0 0.0
    %4615 = vmatmul.mubr.f32.gmra.mxu0 %v4541
    %v4616 = vpop.f32.mrf.mxu0
    %v4617 = vadd.f32 0.0, %v4616
    %v4618 = vpop.f32.mrf.mxu0
    %4619 = vmatprep.mubr.f32.mxu0 0.0
    %4620 = vmatmul.mubr.f32.gmra.mxu0 %v4543
    %v4621 = vpop.f32.mrf.mxu0
    %v4622 = vadd.f32 0.0, %v4621
    %v4623 = vpop.f32.mrf.mxu0
    %4624 = vdwg.mxu0
    %v4625 = vadd.f32 %v3383, %v4612
    %v4626 = vadd.f32 %v3389, %v4617
    %v4627 = vadd.f32 %v3395, %v4622
    %v4628 = vtanh.pop %v4530
    %v4629 = vtanh.pop %v4625
    %v4630 = vtanh.pop %v4531
    %v4631 = vtanh.pop %v4626
    %v4632 = vtanh.pop %v4532
    %v4633 = vtanh.pop %v4627
    %v4634 = vmul.f32 %v4628, 0.5
    %v4635 = vmul.f32 %v4630, 0.5
    %v4636 = vmul.f32 %v4632, 0.5
    %v4637 = vadd.f32 %v4634, 0.5
    %v4638 = vadd.f32 %v4635, 0.5
    %v4639 = vadd.f32 %v4636, 0.5
    %v4640 = vmul.f32 %v4637, %v4336
    %v4641 = vmul.f32 %v4638, %v4337
    %v4642 = vmul.f32 %v4639, %v4338
    %4646 = vrot.lane.b32.xlu0 %v4628, 64
    %v4647 = vpop.permute.xlu0 %4646
    %4648 = vrot.lane.b32.xlu0 %v4630, 64
    %v4649 = vpop.permute.xlu0 %4648
    %4650 = vrot.lane.b32.xlu0 %v4632, 64
    %v4651 = vpop.permute.xlu0 %4650
    %v4655 = vmul.f32 %v4637, %v4647
    %v4656 = vmul.f32 %v4638, %v4649
    %v4657 = vmul.f32 %v4639, %v4651
    %4661 = vrot.lane.b32.xlu0 %v4655, 32
    %v4662 = vpop.permute.xlu0 %4661
    %4663 = vrot.lane.b32.xlu0 %v4656, 32
    %v4664 = vpop.permute.xlu0 %4663
    %4665 = vrot.lane.b32.xlu0 %v4657, 32
    %v4666 = vpop.permute.xlu0 %4665
    %v4670 = vadd.f32 %v4640, %v4662
    %v4671 = vadd.f32 %v4641, %v4664
    %v4672 = vadd.f32 %v4642, %v4666
    %v4673 = vtanh.pop %v4670
    %v4674 = vtanh.pop %v4671
    %v4675 = vtanh.pop %v4672
    %4679 = vrot.lane.b32.xlu0 %v4673, 64
    %v4680 = vpop.permute.xlu0 %4679
    %4681 = vrot.lane.b32.xlu0 %v4674, 64
    %v4682 = vpop.permute.xlu0 %4681
    %4683 = vrot.lane.b32.xlu0 %v4675, 64
    %v4684 = vpop.permute.xlu0 %4683
    %v4688 = vmul.f32 %v4637, %v4680
    %v4689 = vmul.f32 %v4638, %v4682
    %v4690 = vmul.f32 %v4639, %v4684
    %v4691 = vmul.f32 %v4629, 0.5
    %v4692 = vmul.f32 %v4631, 0.5
    %v4693 = vmul.f32 %v4633, 0.5
    %v4694 = vadd.f32 %v4691, 0.5
    %v4695 = vadd.f32 %v4692, 0.5
    %v4696 = vadd.f32 %v4693, 0.5
    %v4697 = vmul.f32 %v4694, %v4393
    %v4698 = vmul.f32 %v4695, %v4394
    %v4699 = vmul.f32 %v4696, %v4395
    %4703 = vrot.lane.b32.xlu0 %v4629, 64
    %v4704 = vpop.permute.xlu0 %4703
    %4705 = vrot.lane.b32.xlu0 %v4631, 64
    %v4706 = vpop.permute.xlu0 %4705
    %4707 = vrot.lane.b32.xlu0 %v4633, 64
    %v4708 = vpop.permute.xlu0 %4707
    %v4712 = vmul.f32 %v4694, %v4704
    %v4713 = vmul.f32 %v4695, %v4706
    %v4714 = vmul.f32 %v4696, %v4708
    %4718 = vrot.lane.b32.xlu0 %v4712, 32
    %v4719 = vpop.permute.xlu0 %4718
    %4720 = vrot.lane.b32.xlu0 %v4713, 32
    %v4721 = vpop.permute.xlu0 %4720
    %4722 = vrot.lane.b32.xlu0 %v4714, 32
    %v4723 = vpop.permute.xlu0 %4722
    %v4727 = vadd.f32 %v4697, %v4719
    %v4728 = vadd.f32 %v4698, %v4721
    %v4729 = vadd.f32 %v4699, %v4723
    %v4730 = vtanh.pop %v4727
    %v4731 = vtanh.pop %v4728
    %v4732 = vtanh.pop %v4729
    %4736 = vrot.lane.b32.xlu0 %v4730, 64
    %v4737 = vpop.permute.xlu0 %4736
    %4738 = vrot.lane.b32.xlu0 %v4731, 64
    %v4739 = vpop.permute.xlu0 %4738
    %4740 = vrot.lane.b32.xlu0 %v4732, 64
    %v4741 = vpop.permute.xlu0 %4740
    %v4745 = vmul.f32 %v4694, %v4737
    %v4746 = vmul.f32 %v4695, %v4739
    %v4747 = vmul.f32 %v4696, %v4741
    %4751 = vrot.lane.b32.xlu0 %v4688, 32
    %v4752 = vpop.permute.xlu0 %4751
    %4753 = vrot.lane.b32.xlu0 %v4689, 32
    %v4754 = vpop.permute.xlu0 %4753
    %4755 = vrot.lane.b32.xlu0 %v4690, 32
    %v4756 = vpop.permute.xlu0 %4755
    %4760 = vst.msk [vmem:[%s1761] sm:$0xff] %vm162, %v4752
    %4761 = vst.msk [vmem:[%s1761 + $0x8] sm:$0xff] %vm162, %v4754
    %4762 = vst.msk [vmem:[%s1761 + $0x10] sm:$0xff] %vm162, %v4756
    %4766 = vrot.lane.b32.xlu0 %v4745, 64
    %v4767 = vpop.permute.xlu0 %4766
    %4768 = vrot.lane.b32.xlu0 %v4746, 64
    %v4769 = vpop.permute.xlu0 %4768
    %4770 = vrot.lane.b32.xlu0 %v4747, 64
    %v4771 = vpop.permute.xlu0 %4770
    %4775 = vst.msk [vmem:[%s1777] sm:$0xff] %vm769, %v4767
    %4776 = vst.msk [vmem:[%s1777 + $0x8] sm:$0xff] %vm769, %v4769
    %4777 = vst.msk [vmem:[%s1777 + $0x10] sm:$0xff] %vm769, %v4771
    %v4778 = vsel %vm162, %v4752, 0
    %v4780 = vsel %vm162, %v4754, 0
    %v4782 = vsel %vm162, %v4756, 0
    %4784 = vmatprep.subr.mxu0 0.0
    %4785 = vmatpush1.msra.mxu0 0.0
    %4786 = vmatprep.subr.mxu0 0.0
    %4787 = vmatpush1.msra.mxu0 0.0
    %4788 = vmatprep.subr.mxu0 0.0
    %4789 = vmatpush1.msra.mxu0 0.0
    %4790 = vmatprep.subr.mxu0 0.0
    %4791 = vmatpush1.msra.mxu0 0.0
    %4792 = vmatprep.subr.mxu0 0.0
    %4793 = vmatpush1.msra.mxu0 0.0
    %4794 = vmatprep.subr.mxu0 0.0
    %4795 = vmatpush1.msra.mxu0 0.0
    %4796 = vmatprep.subr.mxu0 0.0
    %4797 = vmatpush1.msra.mxu0 0.0
    %4798 = vmatprep.subr.mxu0 0.0
    %4799 = vmatpush1.msra.mxu0 0.0
    %4800 = vmatprep.subr.mxu0 0.0
    %4801 = vmatpush1.msra.mxu0 0.0
    %4802 = vmatprep.subr.mxu0 0.0
    %4803 = vmatpush1.msra.mxu0 0.0
    %4804 = vmatprep.subr.mxu0 0.0
    %4805 = vmatpush1.msra.mxu0 0.0
    %4806 = vmatprep.subr.mxu0 0.0
    %4807 = vmatpush1.msra.mxu0 0.0
    %4808 = vmatprep.subr.mxu0 0.0
    %4809 = vmatpush1.msra.mxu0 %v3455
    %4810 = vmatprep.subr.mxu0 0.0
    %4811 = vmatpush1.msra.mxu0 %v3454
    %4812 = vmatprep.subr.mxu0 0.0
    %4813 = vmatpush1.msra.mxu0 %v3453
    %4814 = vmatprep.subr.mxu0 0.0
    %4815 = vmatpush1.msra.mxu0 %v3452
    %4816 = vmatprep.subr.mxu0 0.0
    %4817 = vmatpush2.msra.mxu0 0.0
    %4818 = vmatprep.subr.mxu0 0.0
    %4819 = vmatpush2.msra.mxu0 0.0
    %4820 = vmatprep.subr.mxu0 0.0
    %4821 = vmatpush2.msra.mxu0 0.0
    %4822 = vmatprep.subr.mxu0 0.0
    %4823 = vmatpush2.msra.mxu0 0.0
    %4824 = vmatprep.subr.mxu0 0.0
    %4825 = vmatpush2.msra.mxu0 0.0
    %4826 = vmatprep.subr.mxu0 0.0
    %4827 = vmatpush2.msra.mxu0 0.0
    %4828 = vmatprep.subr.mxu0 0.0
    %4829 = vmatpush2.msra.mxu0 0.0
    %4830 = vmatprep.subr.mxu0 0.0
    %4831 = vmatpush2.msra.mxu0 0.0
    %4832 = vmatprep.subr.mxu0 0.0
    %4833 = vmatpush2.msra.mxu0 0.0
    %4834 = vmatprep.subr.mxu0 0.0
    %4835 = vmatpush2.msra.mxu0 0.0
    %4836 = vmatprep.subr.mxu0 0.0
    %4837 = vmatpush2.msra.mxu0 0.0
    %4838 = vmatprep.subr.mxu0 0.0
    %4839 = vmatpush2.msra.mxu0 0.0
    %4840 = vmatprep.subr.mxu0 0.0
    %4841 = vmatpush2.msra.mxu0 0.0
    %4842 = vmatprep.subr.mxu0 0.0
    %4843 = vmatpush2.msra.mxu0 0.0
    %4844 = vmatprep.subr.mxu0 0.0
    %4845 = vmatpush2.msra.mxu0 0.0
    %4846 = vmatprep.subr.mxu0 0.0
    %4847 = vmatpush2.msra.mxu0 0.0
    %4848 = vmatprep.mubr.f32.mxu0 0.0
    %4849 = vmatmul.mubr.f32.gmra.mxu0 %v4778
    %v4850 = vpop.f32.mrf.mxu0
    %v4851 = vadd.f32 0.0, %v4850
    %v4852 = vpop.f32.mrf.mxu0
    %4853 = vmatprep.mubr.f32.mxu0 0.0
    %4854 = vmatmul.mubr.f32.gmra.mxu0 %v4780
    %v4855 = vpop.f32.mrf.mxu0
    %v4856 = vadd.f32 0.0, %v4855
    %v4857 = vpop.f32.mrf.mxu0
    %4858 = vmatprep.mubr.f32.mxu0 0.0
    %4859 = vmatmul.mubr.f32.gmra.mxu0 %v4782
    %v4860 = vpop.f32.mrf.mxu0
    %v4861 = vadd.f32 0.0, %v4860
    %v4862 = vpop.f32.mrf.mxu0
    %4863 = vdwg.mxu0
    %v4864 = vadd.f32 %v3381, %v4851
    %v4865 = vadd.f32 %v3387, %v4856
    %v4866 = vadd.f32 %v3393, %v4861
    %4867 = vrot.lane.b32.xlu0 %v4745, 32
    %v4868 = vpop.permute.xlu0 %4867
    %4869 = vrot.lane.b32.xlu0 %v4746, 32
    %v4870 = vpop.permute.xlu0 %4869
    %4871 = vrot.lane.b32.xlu0 %v4747, 32
    %v4872 = vpop.permute.xlu0 %4871
    %v4873 = vsel %vm162, %v4868, 0
    %v4875 = vsel %vm162, %v4870, 0
    %v4877 = vsel %vm162, %v4872, 0
    %4879 = vmatprep.subr.mxu0 0.0
    %4880 = vmatpush1.msra.mxu0 0.0
    %4881 = vmatprep.subr.mxu0 0.0
    %4882 = vmatpush1.msra.mxu0 0.0
    %4883 = vmatprep.subr.mxu0 0.0
    %4884 = vmatpush1.msra.mxu0 0.0
    %4885 = vmatprep.subr.mxu0 0.0
    %4886 = vmatpush1.msra.mxu0 0.0
    %4887 = vmatprep.subr.mxu0 0.0
    %4888 = vmatpush1.msra.mxu0 0.0
    %4889 = vmatprep.subr.mxu0 0.0
    %4890 = vmatpush1.msra.mxu0 0.0
    %4891 = vmatprep.subr.mxu0 0.0
    %4892 = vmatpush1.msra.mxu0 0.0
    %4893 = vmatprep.subr.mxu0 0.0
    %4894 = vmatpush1.msra.mxu0 0.0
    %4895 = vmatprep.subr.mxu0 0.0
    %4896 = vmatpush1.msra.mxu0 0.0
    %4897 = vmatprep.subr.mxu0 0.0
    %4898 = vmatpush1.msra.mxu0 0.0
    %4899 = vmatprep.subr.mxu0 0.0
    %4900 = vmatpush1.msra.mxu0 0.0
    %4901 = vmatprep.subr.mxu0 0.0
    %4902 = vmatpush1.msra.mxu0 0.0
    %4903 = vmatprep.subr.mxu0 0.0
    %4904 = vmatpush1.msra.mxu0 %v3459
    %4905 = vmatprep.subr.mxu0 0.0
    %4906 = vmatpush1.msra.mxu0 %v3458
    %4907 = vmatprep.subr.mxu0 0.0
    %4908 = vmatpush1.msra.mxu0 %v3457
    %4909 = vmatprep.subr.mxu0 0.0
    %4910 = vmatpush1.msra.mxu0 %v3456
    %4911 = vmatprep.subr.mxu0 0.0
    %4912 = vmatpush2.msra.mxu0 0.0
    %4913 = vmatprep.subr.mxu0 0.0
    %4914 = vmatpush2.msra.mxu0 0.0
    %4915 = vmatprep.subr.mxu0 0.0
    %4916 = vmatpush2.msra.mxu0 0.0
    %4917 = vmatprep.subr.mxu0 0.0
    %4918 = vmatpush2.msra.mxu0 0.0
    %4919 = vmatprep.subr.mxu0 0.0
    %4920 = vmatpush2.msra.mxu0 0.0
    %4921 = vmatprep.subr.mxu0 0.0
    %4922 = vmatpush2.msra.mxu0 0.0
    %4923 = vmatprep.subr.mxu0 0.0
    %4924 = vmatpush2.msra.mxu0 0.0
    %4925 = vmatprep.subr.mxu0 0.0
    %4926 = vmatpush2.msra.mxu0 0.0
    %4927 = vmatprep.subr.mxu0 0.0
    %4928 = vmatpush2.msra.mxu0 0.0
    %4929 = vmatprep.subr.mxu0 0.0
    %4930 = vmatpush2.msra.mxu0 0.0
    %4931 = vmatprep.subr.mxu0 0.0
    %4932 = vmatpush2.msra.mxu0 0.0
    %4933 = vmatprep.subr.mxu0 0.0
    %4934 = vmatpush2.msra.mxu0 0.0
    %4935 = vmatprep.subr.mxu0 0.0
    %4936 = vmatpush2.msra.mxu0 0.0
    %4937 = vmatprep.subr.mxu0 0.0
    %4938 = vmatpush2.msra.mxu0 0.0
    %4939 = vmatprep.subr.mxu0 0.0
    %4940 = vmatpush2.msra.mxu0 0.0
    %4941 = vmatprep.subr.mxu0 0.0
    %4942 = vmatpush2.msra.mxu0 0.0
    %4943 = vmatprep.mubr.f32.mxu0 0.0
    %4944 = vmatmul.mubr.f32.gmra.mxu0 %v4873
    %v4945 = vpop.f32.mrf.mxu0
    %v4946 = vadd.f32 0.0, %v4945
    %v4947 = vpop.f32.mrf.mxu0
    %4948 = vmatprep.mubr.f32.mxu0 0.0
    %4949 = vmatmul.mubr.f32.gmra.mxu0 %v4875
    %v4950 = vpop.f32.mrf.mxu0
    %v4951 = vadd.f32 0.0, %v4950
    %v4952 = vpop.f32.mrf.mxu0
    %4953 = vmatprep.mubr.f32.mxu0 0.0
    %4954 = vmatmul.mubr.f32.gmra.mxu0 %v4877
    %v4955 = vpop.f32.mrf.mxu0
    %v4956 = vadd.f32 0.0, %v4955
    %v4957 = vpop.f32.mrf.mxu0
    %4958 = vdwg.mxu0
    %v4959 = vadd.f32 %v3365, %v4946
    %v4960 = vadd.f32 %v3371, %v4951
    %v4961 = vadd.f32 %v3377, %v4956
    %v4962 = vtanh.pop %v4864
    %v4963 = vtanh.pop %v4959
    %v4964 = vtanh.pop %v4865
    %v4965 = vtanh.pop %v4960
    %v4966 = vtanh.pop %v4866
    %v4967 = vtanh.pop %v4961
    %v4968 = vmul.f32 %v4962, 0.5
    %v4969 = vmul.f32 %v4964, 0.5
    %v4970 = vmul.f32 %v4966, 0.5
    %v4971 = vadd.f32 %v4968, 0.5
    %v4972 = vadd.f32 %v4969, 0.5
    %v4973 = vadd.f32 %v4970, 0.5
    %v4974 = vmul.f32 %v4971, %v4670
    %v4975 = vmul.f32 %v4972, %v4671
    %v4976 = vmul.f32 %v4973, %v4672
    %4980 = vrot.lane.b32.xlu0 %v4962, 64
    %v4981 = vpop.permute.xlu0 %4980
    %4982 = vrot.lane.b32.xlu0 %v4964, 64
    %v4983 = vpop.permute.xlu0 %4982
    %4984 = vrot.lane.b32.xlu0 %v4966, 64
    %v4985 = vpop.permute.xlu0 %4984
    %v4989 = vmul.f32 %v4971, %v4981
    %v4990 = vmul.f32 %v4972, %v4983
    %v4991 = vmul.f32 %v4973, %v4985
    %4995 = vrot.lane.b32.xlu0 %v4989, 32
    %v4996 = vpop.permute.xlu0 %4995
    %4997 = vrot.lane.b32.xlu0 %v4990, 32
    %v4998 = vpop.permute.xlu0 %4997
    %4999 = vrot.lane.b32.xlu0 %v4991, 32
    %v5000 = vpop.permute.xlu0 %4999
    %v5004 = vadd.f32 %v4974, %v4996
    %v5005 = vadd.f32 %v4975, %v4998
    %v5006 = vadd.f32 %v4976, %v5000
    %v5007 = vtanh.pop %v5004
    %v5008 = vtanh.pop %v5005
    %v5009 = vtanh.pop %v5006
    %5013 = vrot.lane.b32.xlu0 %v5007, 64
    %v5014 = vpop.permute.xlu0 %5013
    %5015 = vrot.lane.b32.xlu0 %v5008, 64
    %v5016 = vpop.permute.xlu0 %5015
    %5017 = vrot.lane.b32.xlu0 %v5009, 64
    %v5018 = vpop.permute.xlu0 %5017
    %v5022 = vmul.f32 %v4971, %v5014
    %v5023 = vmul.f32 %v4972, %v5016
    %v5024 = vmul.f32 %v4973, %v5018
    %v5025 = vmul.f32 %v4963, 0.5
    %v5026 = vmul.f32 %v4965, 0.5
    %v5027 = vmul.f32 %v4967, 0.5
    %v5028 = vadd.f32 %v5025, 0.5
    %v5029 = vadd.f32 %v5026, 0.5
    %v5030 = vadd.f32 %v5027, 0.5
    %v5031 = vmul.f32 %v5028, %v4727
    %v5032 = vmul.f32 %v5029, %v4728
    %v5033 = vmul.f32 %v5030, %v4729
    %5037 = vrot.lane.b32.xlu0 %v4963, 64
    %v5038 = vpop.permute.xlu0 %5037
    %5039 = vrot.lane.b32.xlu0 %v4965, 64
    %v5040 = vpop.permute.xlu0 %5039
    %5041 = vrot.lane.b32.xlu0 %v4967, 64
    %v5042 = vpop.permute.xlu0 %5041
    %v5046 = vmul.f32 %v5028, %v5038
    %v5047 = vmul.f32 %v5029, %v5040
    %v5048 = vmul.f32 %v5030, %v5042
    %5052 = vrot.lane.b32.xlu0 %v5046, 32
    %v5053 = vpop.permute.xlu0 %5052
    %5054 = vrot.lane.b32.xlu0 %v5047, 32
    %v5055 = vpop.permute.xlu0 %5054
    %5056 = vrot.lane.b32.xlu0 %v5048, 32
    %v5057 = vpop.permute.xlu0 %5056
    %v5061 = vadd.f32 %v5031, %v5053
    %v5062 = vadd.f32 %v5032, %v5055
    %v5063 = vadd.f32 %v5033, %v5057
    %v5064 = vtanh.pop %v5061
    %v5065 = vtanh.pop %v5062
    %v5066 = vtanh.pop %v5063
    %5070 = vrot.lane.b32.xlu0 %v5064, 64
    %v5071 = vpop.permute.xlu0 %5070
    %5072 = vrot.lane.b32.xlu0 %v5065, 64
    %v5073 = vpop.permute.xlu0 %5072
    %5074 = vrot.lane.b32.xlu0 %v5066, 64
    %v5075 = vpop.permute.xlu0 %5074
    %v5079 = vmul.f32 %v5028, %v5071
    %v5080 = vmul.f32 %v5029, %v5073
    %v5081 = vmul.f32 %v5030, %v5075
    %5085 = vrot.lane.b32.xlu0 %v5022, 32
    %v5086 = vpop.permute.xlu0 %5085
    %5087 = vrot.lane.b32.xlu0 %v5023, 32
    %v5088 = vpop.permute.xlu0 %5087
    %5089 = vrot.lane.b32.xlu0 %v5024, 32
    %v5090 = vpop.permute.xlu0 %5089
    %5094 = vst.msk [vmem:[%s1777] sm:$0xff] %vm162, %v5086
    %5095 = vst.msk [vmem:[%s1777 + $0x8] sm:$0xff] %vm162, %v5088
    %5096 = vst.msk [vmem:[%s1777 + $0x10] sm:$0xff] %vm162, %v5090
    %5100 = vrot.lane.b32.xlu0 %v5079, 64
    %v5101 = vpop.permute.xlu0 %5100
    %5102 = vrot.lane.b32.xlu0 %v5080, 64
    %v5103 = vpop.permute.xlu0 %5102
    %5104 = vrot.lane.b32.xlu0 %v5081, 64
    %v5105 = vpop.permute.xlu0 %5104
    %5109 = vst.msk [vmem:[%s1761] sm:$0xff] %vm769, %v5101
    %5110 = vst.msk [vmem:[%s1761 + $0x8] sm:$0xff] %vm769, %v5103
    %5111 = vst.msk [vmem:[%s1761 + $0x10] sm:$0xff] %vm769, %v5105
    %v5112 = vsel %vm162, %v5086, 0
    %v5114 = vsel %vm162, %v5088, 0
    %v5116 = vsel %vm162, %v5090, 0
    %5118 = vmatprep.subr.mxu0 0.0
    %5119 = vmatpush1.msra.mxu0 0.0
    %5120 = vmatprep.subr.mxu0 0.0
    %5121 = vmatpush1.msra.mxu0 0.0
    %5122 = vmatprep.subr.mxu0 0.0
    %5123 = vmatpush1.msra.mxu0 0.0
    %5124 = vmatprep.subr.mxu0 0.0
    %5125 = vmatpush1.msra.mxu0 0.0
    %5126 = vmatprep.subr.mxu0 0.0
    %5127 = vmatpush1.msra.mxu0 0.0
    %5128 = vmatprep.subr.mxu0 0.0
    %5129 = vmatpush1.msra.mxu0 0.0
    %5130 = vmatprep.subr.mxu0 0.0
    %5131 = vmatpush1.msra.mxu0 0.0
    %5132 = vmatprep.subr.mxu0 0.0
    %5133 = vmatpush1.msra.mxu0 0.0
    %5134 = vmatprep.subr.mxu0 0.0
    %5135 = vmatpush1.msra.mxu0 0.0
    %5136 = vmatprep.subr.mxu0 0.0
    %5137 = vmatpush1.msra.mxu0 0.0
    %5138 = vmatprep.subr.mxu0 0.0
    %5139 = vmatpush1.msra.mxu0 0.0
    %5140 = vmatprep.subr.mxu0 0.0
    %5141 = vmatpush1.msra.mxu0 0.0
    %5142 = vmatprep.subr.mxu0 0.0
    %5143 = vmatpush1.msra.mxu0 %v3455
    %5144 = vmatprep.subr.mxu0 0.0
    %5145 = vmatpush1.msra.mxu0 %v3454
    %5146 = vmatprep.subr.mxu0 0.0
    %5147 = vmatpush1.msra.mxu0 %v3453
    %5148 = vmatprep.subr.mxu0 0.0
    %5149 = vmatpush1.msra.mxu0 %v3452
    %5150 = vmatprep.subr.mxu0 0.0
    %5151 = vmatpush2.msra.mxu0 0.0
    %5152 = vmatprep.subr.mxu0 0.0
    %5153 = vmatpush2.msra.mxu0 0.0
    %5154 = vmatprep.subr.mxu0 0.0
    %5155 = vmatpush2.msra.mxu0 0.0
    %5156 = vmatprep.subr.mxu0 0.0
    %5157 = vmatpush2.msra.mxu0 0.0
    %5158 = vmatprep.subr.mxu0 0.0
    %5159 = vmatpush2.msra.mxu0 0.0
    %5160 = vmatprep.subr.mxu0 0.0
    %5161 = vmatpush2.msra.mxu0 0.0
    %5162 = vmatprep.subr.mxu0 0.0
    %5163 = vmatpush2.msra.mxu0 0.0
    %5164 = vmatprep.subr.mxu0 0.0
    %5165 = vmatpush2.msra.mxu0 0.0
    %5166 = vmatprep.subr.mxu0 0.0
    %5167 = vmatpush2.msra.mxu0 0.0
    %5168 = vmatprep.subr.mxu0 0.0
    %5169 = vmatpush2.msra.mxu0 0.0
    %5170 = vmatprep.subr.mxu0 0.0
    %5171 = vmatpush2.msra.mxu0 0.0
    %5172 = vmatprep.subr.mxu0 0.0
    %5173 = vmatpush2.msra.mxu0 0.0
    %5174 = vmatprep.subr.mxu0 0.0
    %5175 = vmatpush2.msra.mxu0 0.0
    %5176 = vmatprep.subr.mxu0 0.0
    %5177 = vmatpush2.msra.mxu0 0.0
    %5178 = vmatprep.subr.mxu0 0.0
    %5179 = vmatpush2.msra.mxu0 0.0
    %5180 = vmatprep.subr.mxu0 0.0
    %5181 = vmatpush2.msra.mxu0 0.0
    %5182 = vmatprep.mubr.f32.mxu0 0.0
    %5183 = vmatmul.mubr.f32.gmra.mxu0 %v5112
    %v5184 = vpop.f32.mrf.mxu0
    %v5185 = vadd.f32 0.0, %v5184
    %v5186 = vpop.f32.mrf.mxu0
    %5187 = vmatprep.mubr.f32.mxu0 0.0
    %5188 = vmatmul.mubr.f32.gmra.mxu0 %v5114
    %v5189 = vpop.f32.mrf.mxu0
    %v5190 = vadd.f32 0.0, %v5189
    %v5191 = vpop.f32.mrf.mxu0
    %5192 = vmatprep.mubr.f32.mxu0 0.0
    %5193 = vmatmul.mubr.f32.gmra.mxu0 %v5116
    %v5194 = vpop.f32.mrf.mxu0
    %v5195 = vadd.f32 0.0, %v5194
    %v5196 = vpop.f32.mrf.mxu0
    %5197 = vdwg.mxu0
    %v5198 = vadd.f32 %v3399, %v5185
    %v5199 = vadd.f32 %v3405, %v5190
    %v5200 = vadd.f32 %v3411, %v5195
    %5201 = vrot.lane.b32.xlu0 %v5079, 32
    %v5202 = vpop.permute.xlu0 %5201
    %5203 = vrot.lane.b32.xlu0 %v5080, 32
    %v5204 = vpop.permute.xlu0 %5203
    %5205 = vrot.lane.b32.xlu0 %v5081, 32
    %v5206 = vpop.permute.xlu0 %5205
    %v5207 = vsel %vm162, %v5202, 0
    %v5209 = vsel %vm162, %v5204, 0
    %v5211 = vsel %vm162, %v5206, 0
    %5213 = vmatprep.subr.mxu0 0.0
    %5214 = vmatpush1.msra.mxu0 0.0
    %5215 = vmatprep.subr.mxu0 0.0
    %5216 = vmatpush1.msra.mxu0 0.0
    %5217 = vmatprep.subr.mxu0 0.0
    %5218 = vmatpush1.msra.mxu0 0.0
    %5219 = vmatprep.subr.mxu0 0.0
    %5220 = vmatpush1.msra.mxu0 0.0
    %5221 = vmatprep.subr.mxu0 0.0
    %5222 = vmatpush1.msra.mxu0 0.0
    %5223 = vmatprep.subr.mxu0 0.0
    %5224 = vmatpush1.msra.mxu0 0.0
    %5225 = vmatprep.subr.mxu0 0.0
    %5226 = vmatpush1.msra.mxu0 0.0
    %5227 = vmatprep.subr.mxu0 0.0
    %5228 = vmatpush1.msra.mxu0 0.0
    %5229 = vmatprep.subr.mxu0 0.0
    %5230 = vmatpush1.msra.mxu0 0.0
    %5231 = vmatprep.subr.mxu0 0.0
    %5232 = vmatpush1.msra.mxu0 0.0
    %5233 = vmatprep.subr.mxu0 0.0
    %5234 = vmatpush1.msra.mxu0 0.0
    %5235 = vmatprep.subr.mxu0 0.0
    %5236 = vmatpush1.msra.mxu0 0.0
    %5237 = vmatprep.subr.mxu0 0.0
    %5238 = vmatpush1.msra.mxu0 %v3459
    %5239 = vmatprep.subr.mxu0 0.0
    %5240 = vmatpush1.msra.mxu0 %v3458
    %5241 = vmatprep.subr.mxu0 0.0
    %5242 = vmatpush1.msra.mxu0 %v3457
    %5243 = vmatprep.subr.mxu0 0.0
    %5244 = vmatpush1.msra.mxu0 %v3456
    %5245 = vmatprep.subr.mxu0 0.0
    %5246 = vmatpush2.msra.mxu0 0.0
    %5247 = vmatprep.subr.mxu0 0.0
    %5248 = vmatpush2.msra.mxu0 0.0
    %5249 = vmatprep.subr.mxu0 0.0
    %5250 = vmatpush2.msra.mxu0 0.0
    %5251 = vmatprep.subr.mxu0 0.0
    %5252 = vmatpush2.msra.mxu0 0.0
    %5253 = vmatprep.subr.mxu0 0.0
    %5254 = vmatpush2.msra.mxu0 0.0
    %5255 = vmatprep.subr.mxu0 0.0
    %5256 = vmatpush2.msra.mxu0 0.0
    %5257 = vmatprep.subr.mxu0 0.0
    %5258 = vmatpush2.msra.mxu0 0.0
    %5259 = vmatprep.subr.mxu0 0.0
    %5260 = vmatpush2.msra.mxu0 0.0
    %5261 = vmatprep.subr.mxu0 0.0
    %5262 = vmatpush2.msra.mxu0 0.0
    %5263 = vmatprep.subr.mxu0 0.0
    %5264 = vmatpush2.msra.mxu0 0.0
    %5265 = vmatprep.subr.mxu0 0.0
    %5266 = vmatpush2.msra.mxu0 0.0
    %5267 = vmatprep.subr.mxu0 0.0
    %5268 = vmatpush2.msra.mxu0 0.0
    %5269 = vmatprep.subr.mxu0 0.0
    %5270 = vmatpush2.msra.mxu0 0.0
    %5271 = vmatprep.subr.mxu0 0.0
    %5272 = vmatpush2.msra.mxu0 0.0
    %5273 = vmatprep.subr.mxu0 0.0
    %5274 = vmatpush2.msra.mxu0 0.0
    %5275 = vmatprep.subr.mxu0 0.0
    %5276 = vmatpush2.msra.mxu0 0.0
    %5277 = vmatprep.mubr.f32.mxu0 0.0
    %5278 = vmatmul.mubr.f32.gmra.mxu0 %v5207
    %v5279 = vpop.f32.mrf.mxu0
    %v5280 = vadd.f32 0.0, %v5279
    %v5281 = vpop.f32.mrf.mxu0
    %5282 = vmatprep.mubr.f32.mxu0 0.0
    %5283 = vmatmul.mubr.f32.gmra.mxu0 %v5209
    %v5284 = vpop.f32.mrf.mxu0
    %v5285 = vadd.f32 0.0, %v5284
    %v5286 = vpop.f32.mrf.mxu0
    %5287 = vmatprep.mubr.f32.mxu0 0.0
    %5288 = vmatmul.mubr.f32.gmra.mxu0 %v5211
    %v5289 = vpop.f32.mrf.mxu0
    %v5290 = vadd.f32 0.0, %v5289
    %v5291 = vpop.f32.mrf.mxu0
    %5292 = vdwg.mxu0
    %v5293 = vadd.f32 %v3347, %v5280
    %v5294 = vadd.f32 %v3353, %v5285
    %v5295 = vadd.f32 %v3359, %v5290
    %v5296 = vtanh.pop %v5198
    %v5297 = vtanh.pop %v5293
    %v5298 = vtanh.pop %v5199
    %v5299 = vtanh.pop %v5294
    %v5300 = vtanh.pop %v5200
    %v5301 = vtanh.pop %v5295
    %v5302 = vmul.f32 %v5296, 0.5
    %v5303 = vmul.f32 %v5298, 0.5
    %v5304 = vmul.f32 %v5300, 0.5
    %v5305 = vadd.f32 %v5302, 0.5
    %v5306 = vadd.f32 %v5303, 0.5
    %v5307 = vadd.f32 %v5304, 0.5
    %v5308 = vmul.f32 %v5305, %v5004
    %v5309 = vmul.f32 %v5306, %v5005
    %v5310 = vmul.f32 %v5307, %v5006
    %5314 = vrot.lane.b32.xlu0 %v5296, 64
    %v5315 = vpop.permute.xlu0 %5314
    %5316 = vrot.lane.b32.xlu0 %v5298, 64
    %v5317 = vpop.permute.xlu0 %5316
    %5318 = vrot.lane.b32.xlu0 %v5300, 64
    %v5319 = vpop.permute.xlu0 %5318
    %v5323 = vmul.f32 %v5305, %v5315
    %v5324 = vmul.f32 %v5306, %v5317
    %v5325 = vmul.f32 %v5307, %v5319
    %5329 = vrot.lane.b32.xlu0 %v5323, 32
    %v5330 = vpop.permute.xlu0 %5329
    %5331 = vrot.lane.b32.xlu0 %v5324, 32
    %v5332 = vpop.permute.xlu0 %5331
    %5333 = vrot.lane.b32.xlu0 %v5325, 32
    %v5334 = vpop.permute.xlu0 %5333
    %v5338 = vadd.f32 %v5308, %v5330
    %v5339 = vadd.f32 %v5309, %v5332
    %v5340 = vadd.f32 %v5310, %v5334
    %v5341 = vtanh.pop %v5338
    %v5342 = vtanh.pop %v5339
    %v5343 = vtanh.pop %v5340
    %5347 = vrot.lane.b32.xlu0 %v5341, 64
    %v5348 = vpop.permute.xlu0 %5347
    %5349 = vrot.lane.b32.xlu0 %v5342, 64
    %v5350 = vpop.permute.xlu0 %5349
    %5351 = vrot.lane.b32.xlu0 %v5343, 64
    %v5352 = vpop.permute.xlu0 %5351
    %v5356 = vmul.f32 %v5305, %v5348
    %v5357 = vmul.f32 %v5306, %v5350
    %v5358 = vmul.f32 %v5307, %v5352
    %v5359 = vmul.f32 %v5297, 0.5
    %v5360 = vmul.f32 %v5299, 0.5
    %v5361 = vmul.f32 %v5301, 0.5
    %v5362 = vadd.f32 %v5359, 0.5
    %v5363 = vadd.f32 %v5360, 0.5
    %v5364 = vadd.f32 %v5361, 0.5
    %v5365 = vmul.f32 %v5362, %v5061
    %v5366 = vmul.f32 %v5363, %v5062
    %v5367 = vmul.f32 %v5364, %v5063
    %5371 = vrot.lane.b32.xlu0 %v5297, 64
    %v5372 = vpop.permute.xlu0 %5371
    %5373 = vrot.lane.b32.xlu0 %v5299, 64
    %v5374 = vpop.permute.xlu0 %5373
    %5375 = vrot.lane.b32.xlu0 %v5301, 64
    %v5376 = vpop.permute.xlu0 %5375
    %v5380 = vmul.f32 %v5362, %v5372
    %v5381 = vmul.f32 %v5363, %v5374
    %v5382 = vmul.f32 %v5364, %v5376
    %5386 = vrot.lane.b32.xlu0 %v5380, 32
    %v5387 = vpop.permute.xlu0 %5386
    %5388 = vrot.lane.b32.xlu0 %v5381, 32
    %v5389 = vpop.permute.xlu0 %5388
    %5390 = vrot.lane.b32.xlu0 %v5382, 32
    %v5391 = vpop.permute.xlu0 %5390
    %v5395 = vadd.f32 %v5365, %v5387
    %v5396 = vadd.f32 %v5366, %v5389
    %v5397 = vadd.f32 %v5367, %v5391
    %v5398 = vtanh.pop %v5395
    %v5399 = vtanh.pop %v5396
    %v5400 = vtanh.pop %v5397
    %5404 = vrot.lane.b32.xlu0 %v5398, 64
    %v5405 = vpop.permute.xlu0 %5404
    %5406 = vrot.lane.b32.xlu0 %v5399, 64
    %v5407 = vpop.permute.xlu0 %5406
    %5408 = vrot.lane.b32.xlu0 %v5400, 64
    %v5409 = vpop.permute.xlu0 %5408
    %v5413 = vmul.f32 %v5362, %v5405
    %v5414 = vmul.f32 %v5363, %v5407
    %v5415 = vmul.f32 %v5364, %v5409
    %5419 = vrot.lane.b32.xlu0 %v5356, 32
    %v5420 = vpop.permute.xlu0 %5419
    %5421 = vrot.lane.b32.xlu0 %v5357, 32
    %v5422 = vpop.permute.xlu0 %5421
    %5423 = vrot.lane.b32.xlu0 %v5358, 32
    %v5424 = vpop.permute.xlu0 %5423
    %5428 = vst.msk [vmem:[%s1441] sm:$0xff] %vm162, %v5420
    %5429 = vst.msk [vmem:[%s1441 + $0x8] sm:$0xff] %vm162, %v5422
    %5430 = vst.msk [vmem:[%s1441 + $0x10] sm:$0xff] %vm162, %v5424
    %5434 = vrot.lane.b32.xlu0 %v5413, 64
    %v5435 = vpop.permute.xlu0 %5434
    %5436 = vrot.lane.b32.xlu0 %v5414, 64
    %v5437 = vpop.permute.xlu0 %5436
    %5438 = vrot.lane.b32.xlu0 %v5415, 64
    %v5439 = vpop.permute.xlu0 %5438
    %5443 = vst.msk [vmem:[%s1425] sm:$0xff] %vm769, %v5435
    %5444 = vst.msk [vmem:[%s1425 + $0x8] sm:$0xff] %vm769, %v5437
    %5445 = vst.msk [vmem:[%s1425 + $0x10] sm:$0xff] %vm769, %v5439
    %v5446 = vsel %vm162, %v5420, 0
    %v5448 = vsel %vm162, %v5422, 0
    %v5450 = vsel %vm162, %v5424, 0
    %5452 = vmatprep.subr.mxu0 0.0
    %5453 = vmatpush1.msra.mxu0 0.0
    %5454 = vmatprep.subr.mxu0 0.0
    %5455 = vmatpush1.msra.mxu0 0.0
    %5456 = vmatprep.subr.mxu0 0.0
    %5457 = vmatpush1.msra.mxu0 0.0
    %5458 = vmatprep.subr.mxu0 0.0
    %5459 = vmatpush1.msra.mxu0 0.0
    %5460 = vmatprep.subr.mxu0 0.0
    %5461 = vmatpush1.msra.mxu0 0.0
    %5462 = vmatprep.subr.mxu0 0.0
    %5463 = vmatpush1.msra.mxu0 0.0
    %5464 = vmatprep.subr.mxu0 0.0
    %5465 = vmatpush1.msra.mxu0 0.0
    %5466 = vmatprep.subr.mxu0 0.0
    %5467 = vmatpush1.msra.mxu0 0.0
    %5468 = vmatprep.subr.mxu0 0.0
    %5469 = vmatpush1.msra.mxu0 0.0
    %5470 = vmatprep.subr.mxu0 0.0
    %5471 = vmatpush1.msra.mxu0 0.0
    %5472 = vmatprep.subr.mxu0 0.0
    %5473 = vmatpush1.msra.mxu0 0.0
    %5474 = vmatprep.subr.mxu0 0.0
    %5475 = vmatpush1.msra.mxu0 0.0
    %5476 = vmatprep.subr.mxu0 0.0
    %5477 = vmatpush1.msra.mxu0 %v3455
    %5478 = vmatprep.subr.mxu0 0.0
    %5479 = vmatpush1.msra.mxu0 %v3454
    %5480 = vmatprep.subr.mxu0 0.0
    %5481 = vmatpush1.msra.mxu0 %v3453
    %5482 = vmatprep.subr.mxu0 0.0
    %5483 = vmatpush1.msra.mxu0 %v3452
    %5484 = vmatprep.subr.mxu0 0.0
    %5485 = vmatpush2.msra.mxu0 0.0
    %5486 = vmatprep.subr.mxu0 0.0
    %5487 = vmatpush2.msra.mxu0 0.0
    %5488 = vmatprep.subr.mxu0 0.0
    %5489 = vmatpush2.msra.mxu0 0.0
    %5490 = vmatprep.subr.mxu0 0.0
    %5491 = vmatpush2.msra.mxu0 0.0
    %5492 = vmatprep.subr.mxu0 0.0
    %5493 = vmatpush2.msra.mxu0 0.0
    %5494 = vmatprep.subr.mxu0 0.0
    %5495 = vmatpush2.msra.mxu0 0.0
    %5496 = vmatprep.subr.mxu0 0.0
    %5497 = vmatpush2.msra.mxu0 0.0
    %5498 = vmatprep.subr.mxu0 0.0
    %5499 = vmatpush2.msra.mxu0 0.0
    %5500 = vmatprep.subr.mxu0 0.0
    %5501 = vmatpush2.msra.mxu0 0.0
    %5502 = vmatprep.subr.mxu0 0.0
    %5503 = vmatpush2.msra.mxu0 0.0
    %5504 = vmatprep.subr.mxu0 0.0
    %5505 = vmatpush2.msra.mxu0 0.0
    %5506 = vmatprep.subr.mxu0 0.0
    %5507 = vmatpush2.msra.mxu0 0.0
    %5508 = vmatprep.subr.mxu0 0.0
    %5509 = vmatpush2.msra.mxu0 0.0
    %5510 = vmatprep.subr.mxu0 0.0
    %5511 = vmatpush2.msra.mxu0 0.0
    %5512 = vmatprep.subr.mxu0 0.0
    %5513 = vmatpush2.msra.mxu0 0.0
    %5514 = vmatprep.subr.mxu0 0.0
    %5515 = vmatpush2.msra.mxu0 0.0
    %5516 = vmatprep.mubr.f32.mxu0 0.0
    %5517 = vmatmul.mubr.f32.gmra.mxu0 %v5446
    %v5518 = vpop.f32.mrf.mxu0
    %v5519 = vadd.f32 0.0, %v5518
    %v5520 = vpop.f32.mrf.mxu0
    %5521 = vmatprep.mubr.f32.mxu0 0.0
    %5522 = vmatmul.mubr.f32.gmra.mxu0 %v5448
    %v5523 = vpop.f32.mrf.mxu0
    %v5524 = vadd.f32 0.0, %v5523
    %v5525 = vpop.f32.mrf.mxu0
    %5526 = vmatprep.mubr.f32.mxu0 0.0
    %5527 = vmatmul.mubr.f32.gmra.mxu0 %v5450
    %v5528 = vpop.f32.mrf.mxu0
    %v5529 = vadd.f32 0.0, %v5528
    %v5530 = vpop.f32.mrf.mxu0
    %5531 = vdwg.mxu0
    %v5532 = vadd.f32 %v3417, %v5519
    %v5533 = vadd.f32 %v3423, %v5524
    %v5534 = vadd.f32 %v3429, %v5529
    %5535 = vrot.lane.b32.xlu0 %v5413, 32
    %v5536 = vpop.permute.xlu0 %5535
    %5537 = vrot.lane.b32.xlu0 %v5414, 32
    %v5538 = vpop.permute.xlu0 %5537
    %5539 = vrot.lane.b32.xlu0 %v5415, 32
    %v5540 = vpop.permute.xlu0 %5539
    %v5541 = vsel %vm162, %v5536, 0
    %v5543 = vsel %vm162, %v5538, 0
    %v5545 = vsel %vm162, %v5540, 0
    %5547 = vmatprep.subr.mxu0 0.0
    %5548 = vmatpush1.msra.mxu0 0.0
    %5549 = vmatprep.subr.mxu0 0.0
    %5550 = vmatpush1.msra.mxu0 0.0
    %5551 = vmatprep.subr.mxu0 0.0
    %5552 = vmatpush1.msra.mxu0 0.0
    %5553 = vmatprep.subr.mxu0 0.0
    %5554 = vmatpush1.msra.mxu0 0.0
    %5555 = vmatprep.subr.mxu0 0.0
    %5556 = vmatpush1.msra.mxu0 0.0
    %5557 = vmatprep.subr.mxu0 0.0
    %5558 = vmatpush1.msra.mxu0 0.0
    %5559 = vmatprep.subr.mxu0 0.0
    %5560 = vmatpush1.msra.mxu0 0.0
    %5561 = vmatprep.subr.mxu0 0.0
    %5562 = vmatpush1.msra.mxu0 0.0
    %5563 = vmatprep.subr.mxu0 0.0
    %5564 = vmatpush1.msra.mxu0 0.0
    %5565 = vmatprep.subr.mxu0 0.0
    %5566 = vmatpush1.msra.mxu0 0.0
    %5567 = vmatprep.subr.mxu0 0.0
    %5568 = vmatpush1.msra.mxu0 0.0
    %5569 = vmatprep.subr.mxu0 0.0
    %5570 = vmatpush1.msra.mxu0 0.0
    %5571 = vmatprep.subr.mxu0 0.0
    %5572 = vmatpush1.msra.mxu0 %v3459
    %5573 = vmatprep.subr.mxu0 0.0
    %5574 = vmatpush1.msra.mxu0 %v3458
    %5575 = vmatprep.subr.mxu0 0.0
    %5576 = vmatpush1.msra.mxu0 %v3457
    %5577 = vmatprep.subr.mxu0 0.0
    %5578 = vmatpush1.msra.mxu0 %v3456
    %5579 = vmatprep.subr.mxu0 0.0
    %5580 = vmatpush2.msra.mxu0 0.0
    %5581 = vmatprep.subr.mxu0 0.0
    %5582 = vmatpush2.msra.mxu0 0.0
    %5583 = vmatprep.subr.mxu0 0.0
    %5584 = vmatpush2.msra.mxu0 0.0
    %5585 = vmatprep.subr.mxu0 0.0
    %5586 = vmatpush2.msra.mxu0 0.0
    %5587 = vmatprep.subr.mxu0 0.0
    %5588 = vmatpush2.msra.mxu0 0.0
    %5589 = vmatprep.subr.mxu0 0.0
    %5590 = vmatpush2.msra.mxu0 0.0
    %5591 = vmatprep.subr.mxu0 0.0
    %5592 = vmatpush2.msra.mxu0 0.0
    %5593 = vmatprep.subr.mxu0 0.0
    %5594 = vmatpush2.msra.mxu0 0.0
    %5595 = vmatprep.subr.mxu0 0.0
    %5596 = vmatpush2.msra.mxu0 0.0
    %5597 = vmatprep.subr.mxu0 0.0
    %5598 = vmatpush2.msra.mxu0 0.0
    %5599 = vmatprep.subr.mxu0 0.0
    %5600 = vmatpush2.msra.mxu0 0.0
    %5601 = vmatprep.subr.mxu0 0.0
    %5602 = vmatpush2.msra.mxu0 0.0
    %5603 = vmatprep.subr.mxu0 0.0
    %5604 = vmatpush2.msra.mxu0 0.0
    %5605 = vmatprep.subr.mxu0 0.0
    %5606 = vmatpush2.msra.mxu0 0.0
    %5607 = vmatprep.subr.mxu0 0.0
    %5608 = vmatpush2.msra.mxu0 0.0
    %5609 = vmatprep.subr.mxu0 0.0
    %5610 = vmatpush2.msra.mxu0 0.0
    %5611 = vmatprep.mubr.f32.mxu0 0.0
    %5612 = vmatmul.mubr.f32.gmra.mxu0 %v5541
    %v5613 = vpop.f32.mrf.mxu0
    %v5614 = vadd.f32 0.0, %v5613
    %v5615 = vpop.f32.mrf.mxu0
    %5616 = vmatprep.mubr.f32.mxu0 0.0
    %5617 = vmatmul.mubr.f32.gmra.mxu0 %v5543
    %v5618 = vpop.f32.mrf.mxu0
    %v5619 = vadd.f32 0.0, %v5618
    %v5620 = vpop.f32.mrf.mxu0
    %5621 = vmatprep.mubr.f32.mxu0 0.0
    %5622 = vmatmul.mubr.f32.gmra.mxu0 %v5545
    %v5623 = vpop.f32.mrf.mxu0
    %v5624 = vadd.f32 0.0, %v5623
    %v5625 = vpop.f32.mrf.mxu0
    %5626 = vdwg.mxu0
    %v5627 = vadd.f32 %v3329, %v5614
    %v5628 = vadd.f32 %v3335, %v5619
    %v5629 = vadd.f32 %v3341, %v5624
    %v5630 = vtanh.pop %v5532
    %v5631 = vtanh.pop %v5627
    %v5632 = vtanh.pop %v5533
    %v5633 = vtanh.pop %v5628
    %v5634 = vtanh.pop %v5534
    %v5635 = vtanh.pop %v5629
    %v5636 = vmul.f32 %v5630, 0.5
    %v5637 = vmul.f32 %v5632, 0.5
    %v5638 = vmul.f32 %v5634, 0.5
    %v5639 = vadd.f32 %v5636, 0.5
    %v5640 = vadd.f32 %v5637, 0.5
    %v5641 = vadd.f32 %v5638, 0.5
    %v5642 = vmul.f32 %v5639, %v5338
    %v5643 = vmul.f32 %v5640, %v5339
    %v5644 = vmul.f32 %v5641, %v5340
    %5648 = vrot.lane.b32.xlu0 %v5630, 64
    %v5649 = vpop.permute.xlu0 %5648
    %5650 = vrot.lane.b32.xlu0 %v5632, 64
    %v5651 = vpop.permute.xlu0 %5650
    %5652 = vrot.lane.b32.xlu0 %v5634, 64
    %v5653 = vpop.permute.xlu0 %5652
    %v5657 = vmul.f32 %v5639, %v5649
    %v5658 = vmul.f32 %v5640, %v5651
    %v5659 = vmul.f32 %v5641, %v5653
    %5663 = vrot.lane.b32.xlu0 %v5657, 32
    %v5664 = vpop.permute.xlu0 %5663
    %5665 = vrot.lane.b32.xlu0 %v5658, 32
    %v5666 = vpop.permute.xlu0 %5665
    %5667 = vrot.lane.b32.xlu0 %v5659, 32
    %v5668 = vpop.permute.xlu0 %5667
    %v5672 = vadd.f32 %v5642, %v5664
    %v5673 = vadd.f32 %v5643, %v5666
    %v5674 = vadd.f32 %v5644, %v5668
    %v5675 = vtanh.pop %v5672
    %v5676 = vtanh.pop %v5673
    %v5677 = vtanh.pop %v5674
    %5681 = vrot.lane.b32.xlu0 %v5675, 64
    %v5682 = vpop.permute.xlu0 %5681
    %5683 = vrot.lane.b32.xlu0 %v5676, 64
    %v5684 = vpop.permute.xlu0 %5683
    %5685 = vrot.lane.b32.xlu0 %v5677, 64
    %v5686 = vpop.permute.xlu0 %5685
    %v5690 = vmul.f32 %v5639, %v5682
    %v5691 = vmul.f32 %v5640, %v5684
    %v5692 = vmul.f32 %v5641, %v5686
    %v5693 = vmul.f32 %v5631, 0.5
    %v5694 = vmul.f32 %v5633, 0.5
    %v5695 = vmul.f32 %v5635, 0.5
    %v5696 = vadd.f32 %v5693, 0.5
    %v5697 = vadd.f32 %v5694, 0.5
    %v5698 = vadd.f32 %v5695, 0.5
    %v5699 = vmul.f32 %v5696, %v5395
    %v5700 = vmul.f32 %v5697, %v5396
    %v5701 = vmul.f32 %v5698, %v5397
    %5705 = vrot.lane.b32.xlu0 %v5631, 64
    %v5706 = vpop.permute.xlu0 %5705
    %5707 = vrot.lane.b32.xlu0 %v5633, 64
    %v5708 = vpop.permute.xlu0 %5707
    %5709 = vrot.lane.b32.xlu0 %v5635, 64
    %v5710 = vpop.permute.xlu0 %5709
    %v5714 = vmul.f32 %v5696, %v5706
    %v5715 = vmul.f32 %v5697, %v5708
    %v5716 = vmul.f32 %v5698, %v5710
    %5720 = vrot.lane.b32.xlu0 %v5714, 32
    %v5721 = vpop.permute.xlu0 %5720
    %5722 = vrot.lane.b32.xlu0 %v5715, 32
    %v5723 = vpop.permute.xlu0 %5722
    %5724 = vrot.lane.b32.xlu0 %v5716, 32
    %v5725 = vpop.permute.xlu0 %5724
    %v5729 = vadd.f32 %v5699, %v5721
    %v5730 = vadd.f32 %v5700, %v5723
    %v5731 = vadd.f32 %v5701, %v5725
    %v5732 = vtanh.pop %v5729
    %v5733 = vtanh.pop %v5730
    %v5734 = vtanh.pop %v5731
    %5738 = vrot.lane.b32.xlu0 %v5732, 64
    %v5739 = vpop.permute.xlu0 %5738
    %5740 = vrot.lane.b32.xlu0 %v5733, 64
    %v5741 = vpop.permute.xlu0 %5740
    %5742 = vrot.lane.b32.xlu0 %v5734, 64
    %v5743 = vpop.permute.xlu0 %5742
    %v5747 = vmul.f32 %v5696, %v5739
    %v5748 = vmul.f32 %v5697, %v5741
    %v5749 = vmul.f32 %v5698, %v5743
    %5753 = vrot.lane.b32.xlu0 %v5690, 32
    %v5754 = vpop.permute.xlu0 %5753
    %5755 = vrot.lane.b32.xlu0 %v5691, 32
    %v5756 = vpop.permute.xlu0 %5755
    %5757 = vrot.lane.b32.xlu0 %v5692, 32
    %v5758 = vpop.permute.xlu0 %5757
    %5762 = vst.msk [vmem:[%s1105] sm:$0xff] %vm162, %v5754
    %5763 = vst.msk [vmem:[%s1105 + $0x8] sm:$0xff] %vm162, %v5756
    %5764 = vst.msk [vmem:[%s1105 + $0x10] sm:$0xff] %vm162, %v5758
    %5768 = vrot.lane.b32.xlu0 %v5747, 64
    %v5769 = vpop.permute.xlu0 %5768
    %5770 = vrot.lane.b32.xlu0 %v5748, 64
    %v5771 = vpop.permute.xlu0 %5770
    %5772 = vrot.lane.b32.xlu0 %v5749, 64
    %v5773 = vpop.permute.xlu0 %5772
    %5777 = vst.msk [vmem:[%s1089] sm:$0xff] %vm769, %v5769
    %5778 = vst.msk [vmem:[%s1089 + $0x8] sm:$0xff] %vm769, %v5771
    %5779 = vst.msk [vmem:[%s1089 + $0x10] sm:$0xff] %vm769, %v5773
    %v5780 = vsel %vm162, %v5754, 0
    %v5782 = vsel %vm162, %v5756, 0
    %v5784 = vsel %vm162, %v5758, 0
    %5786 = vmatprep.subr.mxu0 0.0
    %5787 = vmatpush1.msra.mxu0 0.0
    %5788 = vmatprep.subr.mxu0 0.0
    %5789 = vmatpush1.msra.mxu0 0.0
    %5790 = vmatprep.subr.mxu0 0.0
    %5791 = vmatpush1.msra.mxu0 0.0
    %5792 = vmatprep.subr.mxu0 0.0
    %5793 = vmatpush1.msra.mxu0 0.0
    %5794 = vmatprep.subr.mxu0 0.0
    %5795 = vmatpush1.msra.mxu0 0.0
    %5796 = vmatprep.subr.mxu0 0.0
    %5797 = vmatpush1.msra.mxu0 0.0
    %5798 = vmatprep.subr.mxu0 0.0
    %5799 = vmatpush1.msra.mxu0 0.0
    %5800 = vmatprep.subr.mxu0 0.0
    %5801 = vmatpush1.msra.mxu0 0.0
    %5802 = vmatprep.subr.mxu0 0.0
    %5803 = vmatpush1.msra.mxu0 0.0
    %5804 = vmatprep.subr.mxu0 0.0
    %5805 = vmatpush1.msra.mxu0 0.0
    %5806 = vmatprep.subr.mxu0 0.0
    %5807 = vmatpush1.msra.mxu0 0.0
    %5808 = vmatprep.subr.mxu0 0.0
    %5809 = vmatpush1.msra.mxu0 0.0
    %5810 = vmatprep.subr.mxu0 0.0
    %5811 = vmatpush1.msra.mxu0 %v3455
    %5812 = vmatprep.subr.mxu0 0.0
    %5813 = vmatpush1.msra.mxu0 %v3454
    %5814 = vmatprep.subr.mxu0 0.0
    %5815 = vmatpush1.msra.mxu0 %v3453
    %5816 = vmatprep.subr.mxu0 0.0
    %5817 = vmatpush1.msra.mxu0 %v3452
    %5818 = vmatprep.subr.mxu0 0.0
    %5819 = vmatpush2.msra.mxu0 0.0
    %5820 = vmatprep.subr.mxu0 0.0
    %5821 = vmatpush2.msra.mxu0 0.0
    %5822 = vmatprep.subr.mxu0 0.0
    %5823 = vmatpush2.msra.mxu0 0.0
    %5824 = vmatprep.subr.mxu0 0.0
    %5825 = vmatpush2.msra.mxu0 0.0
    %5826 = vmatprep.subr.mxu0 0.0
    %5827 = vmatpush2.msra.mxu0 0.0
    %5828 = vmatprep.subr.mxu0 0.0
    %5829 = vmatpush2.msra.mxu0 0.0
    %5830 = vmatprep.subr.mxu0 0.0
    %5831 = vmatpush2.msra.mxu0 0.0
    %5832 = vmatprep.subr.mxu0 0.0
    %5833 = vmatpush2.msra.mxu0 0.0
    %5834 = vmatprep.subr.mxu0 0.0
    %5835 = vmatpush2.msra.mxu0 0.0
    %5836 = vmatprep.subr.mxu0 0.0
    %5837 = vmatpush2.msra.mxu0 0.0
    %5838 = vmatprep.subr.mxu0 0.0
    %5839 = vmatpush2.msra.mxu0 0.0
    %5840 = vmatprep.subr.mxu0 0.0
    %5841 = vmatpush2.msra.mxu0 0.0
    %5842 = vmatprep.subr.mxu0 0.0
    %5843 = vmatpush2.msra.mxu0 0.0
    %5844 = vmatprep.subr.mxu0 0.0
    %5845 = vmatpush2.msra.mxu0 0.0
    %5846 = vmatprep.subr.mxu0 0.0
    %5847 = vmatpush2.msra.mxu0 0.0
    %5848 = vmatprep.subr.mxu0 0.0
    %5849 = vmatpush2.msra.mxu0 0.0
    %5850 = vmatprep.mubr.f32.mxu0 0.0
    %5851 = vmatmul.mubr.f32.gmra.mxu0 %v5780
    %v5852 = vpop.f32.mrf.mxu0
    %v5853 = vadd.f32 0.0, %v5852
    %v5854 = vpop.f32.mrf.mxu0
    %5855 = vmatprep.mubr.f32.mxu0 0.0
    %5856 = vmatmul.mubr.f32.gmra.mxu0 %v5782
    %v5857 = vpop.f32.mrf.mxu0
    %v5858 = vadd.f32 0.0, %v5857
    %v5859 = vpop.f32.mrf.mxu0
    %5860 = vmatprep.mubr.f32.mxu0 0.0
    %5861 = vmatmul.mubr.f32.gmra.mxu0 %v5784
    %v5862 = vpop.f32.mrf.mxu0
    %v5863 = vadd.f32 0.0, %v5862
    %v5864 = vpop.f32.mrf.mxu0
    %5865 = vdwg.mxu0
    %v5866 = vadd.f32 %v3435, %v5853
    %v5867 = vadd.f32 %v3441, %v5858
    %v5868 = vadd.f32 %v3447, %v5863
    %5869 = vrot.lane.b32.xlu0 %v5747, 32
    %v5870 = vpop.permute.xlu0 %5869
    %5871 = vrot.lane.b32.xlu0 %v5748, 32
    %v5872 = vpop.permute.xlu0 %5871
    %5873 = vrot.lane.b32.xlu0 %v5749, 32
    %v5874 = vpop.permute.xlu0 %5873
    %v5875 = vsel %vm162, %v5870, 0
    %v5877 = vsel %vm162, %v5872, 0
    %v5879 = vsel %vm162, %v5874, 0
    %5881 = vmatprep.subr.mxu0 0.0
    %5882 = vmatpush1.msra.mxu0 0.0
    %5883 = vmatprep.subr.mxu0 0.0
    %5884 = vmatpush1.msra.mxu0 0.0
    %5885 = vmatprep.subr.mxu0 0.0
    %5886 = vmatpush1.msra.mxu0 0.0
    %5887 = vmatprep.subr.mxu0 0.0
    %5888 = vmatpush1.msra.mxu0 0.0
    %5889 = vmatprep.subr.mxu0 0.0
    %5890 = vmatpush1.msra.mxu0 0.0
    %5891 = vmatprep.subr.mxu0 0.0
    %5892 = vmatpush1.msra.mxu0 0.0
    %5893 = vmatprep.subr.mxu0 0.0
    %5894 = vmatpush1.msra.mxu0 0.0
    %5895 = vmatprep.subr.mxu0 0.0
    %5896 = vmatpush1.msra.mxu0 0.0
    %5897 = vmatprep.subr.mxu0 0.0
    %5898 = vmatpush1.msra.mxu0 0.0
    %5899 = vmatprep.subr.mxu0 0.0
    %5900 = vmatpush1.msra.mxu0 0.0
    %5901 = vmatprep.subr.mxu0 0.0
    %5902 = vmatpush1.msra.mxu0 0.0
    %5903 = vmatprep.subr.mxu0 0.0
    %5904 = vmatpush1.msra.mxu0 0.0
    %5905 = vmatprep.subr.mxu0 0.0
    %5906 = vmatpush1.msra.mxu0 %v3459
    %5907 = vmatprep.subr.mxu0 0.0
    %5908 = vmatpush1.msra.mxu0 %v3458
    %5909 = vmatprep.subr.mxu0 0.0
    %5910 = vmatpush1.msra.mxu0 %v3457
    %5911 = vmatprep.subr.mxu0 0.0
    %5912 = vmatpush1.msra.mxu0 %v3456
    %5913 = vmatprep.subr.mxu0 0.0
    %5914 = vmatpush2.msra.mxu0 0.0
    %5915 = vmatprep.subr.mxu0 0.0
    %5916 = vmatpush2.msra.mxu0 0.0
    %5917 = vmatprep.subr.mxu0 0.0
    %5918 = vmatpush2.msra.mxu0 0.0
    %5919 = vmatprep.subr.mxu0 0.0
    %5920 = vmatpush2.msra.mxu0 0.0
    %5921 = vmatprep.subr.mxu0 0.0
    %5922 = vmatpush2.msra.mxu0 0.0
    %5923 = vmatprep.subr.mxu0 0.0
    %5924 = vmatpush2.msra.mxu0 0.0
    %5925 = vmatprep.subr.mxu0 0.0
    %5926 = vmatpush2.msra.mxu0 0.0
    %5927 = vmatprep.subr.mxu0 0.0
    %5928 = vmatpush2.msra.mxu0 0.0
    %5929 = vmatprep.subr.mxu0 0.0
    %5930 = vmatpush2.msra.mxu0 0.0
    %5931 = vmatprep.subr.mxu0 0.0
    %5932 = vmatpush2.msra.mxu0 0.0
    %5933 = vmatprep.subr.mxu0 0.0
    %5934 = vmatpush2.msra.mxu0 0.0
    %5935 = vmatprep.subr.mxu0 0.0
    %5936 = vmatpush2.msra.mxu0 0.0
    %5937 = vmatprep.subr.mxu0 0.0
    %5938 = vmatpush2.msra.mxu0 0.0
    %5939 = vmatprep.subr.mxu0 0.0
    %5940 = vmatpush2.msra.mxu0 0.0
    %5941 = vmatprep.subr.mxu0 0.0
    %5942 = vmatpush2.msra.mxu0 0.0
    %5943 = vmatprep.subr.mxu0 0.0
    %5944 = vmatpush2.msra.mxu0 0.0
    %5945 = vmatprep.mubr.f32.mxu0 0.0
    %5946 = vmatmul.mubr.f32.gmra.mxu0 %v5875
    %v5947 = vpop.f32.mrf.mxu0
    %v5948 = vadd.f32 0.0, %v5947
    %v5949 = vpop.f32.mrf.mxu0
    %5950 = vmatprep.mubr.f32.mxu0 0.0
    %5951 = vmatmul.mubr.f32.gmra.mxu0 %v5877
    %v5952 = vpop.f32.mrf.mxu0
    %v5953 = vadd.f32 0.0, %v5952
    %v5954 = vpop.f32.mrf.mxu0
    %5955 = vmatprep.mubr.f32.mxu0 0.0
    %5956 = vmatmul.mubr.f32.gmra.mxu0 %v5879
    %v5957 = vpop.f32.mrf.mxu0
    %v5958 = vadd.f32 0.0, %v5957
    %v5959 = vpop.f32.mrf.mxu0
    %5960 = vdwg.mxu0
    %v5961 = vadd.f32 %v3311, %v5948
    %v5962 = vadd.f32 %v3317, %v5953
    %v5963 = vadd.f32 %v3323, %v5958
    %v5964 = vtanh.pop %v5866
    %v5965 = vtanh.pop %v5961
    %v5966 = vtanh.pop %v5867
    %v5967 = vtanh.pop %v5962
    %v5968 = vtanh.pop %v5868
    %v5969 = vtanh.pop %v5963
    %v5970 = vmul.f32 %v5964, 0.5
    %v5971 = vmul.f32 %v5966, 0.5
    %v5972 = vmul.f32 %v5968, 0.5
    %v5973 = vadd.f32 %v5970, 0.5
    %v5974 = vadd.f32 %v5971, 0.5
    %v5975 = vadd.f32 %v5972, 0.5
    %v5976 = vmul.f32 %v5973, %v5672
    %v5977 = vmul.f32 %v5974, %v5673
    %v5978 = vmul.f32 %v5975, %v5674
    %5982 = vrot.lane.b32.xlu0 %v5964, 64
    %v5983 = vpop.permute.xlu0 %5982
    %5984 = vrot.lane.b32.xlu0 %v5966, 64
    %v5985 = vpop.permute.xlu0 %5984
    %5986 = vrot.lane.b32.xlu0 %v5968, 64
    %v5987 = vpop.permute.xlu0 %5986
    %v5991 = vmul.f32 %v5973, %v5983
    %v5992 = vmul.f32 %v5974, %v5985
    %v5993 = vmul.f32 %v5975, %v5987
    %5997 = vrot.lane.b32.xlu0 %v5991, 32
    %v5998 = vpop.permute.xlu0 %5997
    %5999 = vrot.lane.b32.xlu0 %v5992, 32
    %v6000 = vpop.permute.xlu0 %5999
    %6001 = vrot.lane.b32.xlu0 %v5993, 32
    %v6002 = vpop.permute.xlu0 %6001
    %v6006 = vadd.f32 %v5976, %v5998
    %v6007 = vadd.f32 %v5977, %v6000
    %v6008 = vadd.f32 %v5978, %v6002
    %v6009 = vtanh.pop %v6006
    %v6010 = vtanh.pop %v6007
    %v6011 = vtanh.pop %v6008
    %6015 = vrot.lane.b32.xlu0 %v6009, 64
    %v6016 = vpop.permute.xlu0 %6015
    %6017 = vrot.lane.b32.xlu0 %v6010, 64
    %v6018 = vpop.permute.xlu0 %6017
    %6019 = vrot.lane.b32.xlu0 %v6011, 64
    %v6020 = vpop.permute.xlu0 %6019
    %v6024 = vmul.f32 %v5973, %v6016
    %v6025 = vmul.f32 %v5974, %v6018
    %v6026 = vmul.f32 %v5975, %v6020
    %v6027 = vmul.f32 %v5965, 0.5
    %v6028 = vmul.f32 %v5967, 0.5
    %v6029 = vmul.f32 %v5969, 0.5
    %v6030 = vadd.f32 %v6027, 0.5
    %v6031 = vadd.f32 %v6028, 0.5
    %v6032 = vadd.f32 %v6029, 0.5
    %v6033 = vmul.f32 %v6030, %v5729
    %v6034 = vmul.f32 %v6031, %v5730
    %v6035 = vmul.f32 %v6032, %v5731
    %6039 = vrot.lane.b32.xlu0 %v5965, 64
    %v6040 = vpop.permute.xlu0 %6039
    %6041 = vrot.lane.b32.xlu0 %v5967, 64
    %v6042 = vpop.permute.xlu0 %6041
    %6043 = vrot.lane.b32.xlu0 %v5969, 64
    %v6044 = vpop.permute.xlu0 %6043
    %v6048 = vmul.f32 %v6030, %v6040
    %v6049 = vmul.f32 %v6031, %v6042
    %v6050 = vmul.f32 %v6032, %v6044
    %6054 = vrot.lane.b32.xlu0 %v6048, 32
    %v6055 = vpop.permute.xlu0 %6054
    %6056 = vrot.lane.b32.xlu0 %v6049, 32
    %v6057 = vpop.permute.xlu0 %6056
    %6058 = vrot.lane.b32.xlu0 %v6050, 32
    %v6059 = vpop.permute.xlu0 %6058
    %v6063 = vadd.f32 %v6033, %v6055
    %v6064 = vadd.f32 %v6034, %v6057
    %v6065 = vadd.f32 %v6035, %v6059
    %v6066 = vtanh.pop %v6063
    %v6067 = vtanh.pop %v6064
    %v6068 = vtanh.pop %v6065
    %6072 = vrot.lane.b32.xlu0 %v6066, 64
    %v6073 = vpop.permute.xlu0 %6072
    %6074 = vrot.lane.b32.xlu0 %v6067, 64
    %v6075 = vpop.permute.xlu0 %6074
    %6076 = vrot.lane.b32.xlu0 %v6068, 64
    %v6077 = vpop.permute.xlu0 %6076
    %v6081 = vmul.f32 %v6030, %v6073
    %v6082 = vmul.f32 %v6031, %v6075
    %v6083 = vmul.f32 %v6032, %v6077
    %6087 = vrot.lane.b32.xlu0 %v6024, 32
    %v6088 = vpop.permute.xlu0 %6087
    %6089 = vrot.lane.b32.xlu0 %v6025, 32
    %v6090 = vpop.permute.xlu0 %6089
    %6091 = vrot.lane.b32.xlu0 %v6026, 32
    %v6092 = vpop.permute.xlu0 %6091
    %6096 = vst.msk [vmem:[%s768] sm:$0xff] %vm162, %v6088
    %6097 = vst.msk [vmem:[%s768 + $0x8] sm:$0xff] %vm162, %v6090
    %6098 = vst.msk [vmem:[%s768 + $0x10] sm:$0xff] %vm162, %v6092
    %6102 = vrot.lane.b32.xlu0 %v6081, 64
    %v6103 = vpop.permute.xlu0 %6102
    %6104 = vrot.lane.b32.xlu0 %v6082, 64
    %v6105 = vpop.permute.xlu0 %6104
    %6106 = vrot.lane.b32.xlu0 %v6083, 64
    %v6107 = vpop.permute.xlu0 %6106
    %6111 = vst.msk [vmem:[#allocation2] sm:$0xff] %vm769, %v6103
    %6112 = vst.msk [vmem:[#allocation2 + $0x8] sm:$0xff] %vm769, %v6105
    %6113 = vst.msk [vmem:[#allocation2 + $0x10] sm:$0xff] %vm769, %v6107
    %v6114 = vld [vmem:[#allocation2] sm:$0xff]
    %v6115 = vld [vmem:[#allocation2 + $0x8] sm:$0xff]
    %v6116 = vld [vmem:[#allocation2 + $0x10] sm:$0xff]
    %v6117 = vld [vmem:[#allocation2 + $0x18] sm:$0xff]
    %v6118 = vld [vmem:[#allocation2 + $0x20] sm:$0xff]
    %v6119 = vld [vmem:[#allocation2 + $0x28] sm:$0xff]
    %v6120 = vld [vmem:[#allocation2 + $0x30] sm:$0xff]
    %v6121 = vld [vmem:[#allocation2 + $0x38] sm:$0xff]
    %v6122 = vld [vmem:[#allocation2 + $0x40] sm:$0xff]
    %v6123 = vld [vmem:[#allocation2 + $0x48] sm:$0xff]
    %v6124 = vld [vmem:[#allocation2 + $0x50] sm:$0xff]
    %v6125 = vld [vmem:[#allocation2 + $0x58] sm:$0xff]
    %v6126 = vld [vmem:[#allocation2 + $0x60] sm:$0xff]
    %v6127 = vld [vmem:[#allocation2 + $0x68] sm:$0xff]
    %v6128 = vld [vmem:[#allocation2 + $0x70] sm:$0xff]
    %v6129 = vld [vmem:[#allocation2 + $0x78] sm:$0xff]
    %v6130 = vld [vmem:[#allocation2 + $0x80] sm:$0xff]
    %v6131 = vld [vmem:[#allocation2 + $0x88] sm:$0xff]
    %v6132 = vld [vmem:[#allocation2 + $0x90] sm:$0xff]
    %v6133 = vld [vmem:[#allocation2 + $0x98] sm:$0xff]
    %v6134 = vld [vmem:[#allocation2 + $0xa0] sm:$0xff]
    %v6135 = vld [vmem:[#allocation2 + $0xa8] sm:$0xff]
    %v6136 = vld [vmem:[#allocation2 + $0xb0] sm:$0xff]
    %v6137 = vld [vmem:[#allocation2 + $0xb8] sm:$0xff]
    %v6138 = vld [vmem:[#allocation11] sm:$0xff]
    %v6139 = vld [vmem:[#allocation11 + $0x8] sm:$0xff]
    %v6140 = vld [vmem:[#allocation11 + $0x10] sm:$0xff]
    %v6141 = vld [vmem:[#allocation11 + $0x18] sm:$0xff]
    %v6142 = vld [vmem:[#allocation11 + $0x20] sm:$0xff]
    %v6143 = vld [vmem:[#allocation11 + $0x28] sm:$0xff]
    %v6144 = vld [vmem:[#allocation11 + $0x30] sm:$0xff]
    %v6145 = vld [vmem:[#allocation11 + $0x38] sm:$0xff]
    %v6146 = vld [vmem:[#allocation11 + $0x40] sm:$0xff]
    %v6147 = vld [vmem:[#allocation11 + $0x48] sm:$0xff]
    %v6148 = vld [vmem:[#allocation11 + $0x50] sm:$0xff]
    %v6149 = vld [vmem:[#allocation11 + $0x58] sm:$0xff]
    %v6150 = vld [vmem:[#allocation11 + $0x60] sm:$0xff]
    %v6151 = vld [vmem:[#allocation11 + $0x68] sm:$0xff]
    %v6152 = vld [vmem:[#allocation11 + $0x70] sm:$0xff]
    %v6153 = vld [vmem:[#allocation11 + $0x78] sm:$0xff]
    %v6154 = vld [vmem:[#allocation11 + $0x80] sm:$0xff]
    %v6155 = vld [vmem:[#allocation11 + $0x88] sm:$0xff]
    %v6156 = vld [vmem:[#allocation11 + $0x90] sm:$0xff]
    %v6157 = vld [vmem:[#allocation11 + $0x98] sm:$0xff]
    %v6158 = vld [vmem:[#allocation11 + $0xa0] sm:$0xff]
    %v6159 = vld [vmem:[#allocation11 + $0xa8] sm:$0xff]
    %v6160 = vld [vmem:[#allocation11 + $0xb0] sm:$0xff]
    %v6161 = vld [vmem:[#allocation11 + $0xb8] sm:$0xff]
    %v6162 = vld [vmem:[#allocation11 + $0xc0] sm:$0xff]
    %v6163 = vld [vmem:[#allocation11 + $0xc8] sm:$0xff]
    %v6164 = vld [vmem:[#allocation11 + $0xd0] sm:$0xff]
    %v6165 = vld [vmem:[#allocation11 + $0xd8] sm:$0xff]
    %v6166 = vld [vmem:[#allocation11 + $0xe0] sm:$0xff]
    %v6167 = vld [vmem:[#allocation11 + $0xe8] sm:$0xff]
    %v6168 = vld [vmem:[#allocation11 + $0xf0] sm:$0xff]
    %v6169 = vld [vmem:[#allocation11 + $0xf8] sm:$0xff]
    %v6170 = vld [vmem:[#allocation11 + $0x100] sm:$0xff]
    %v6171 = vld [vmem:[#allocation11 + $0x108] sm:$0xff]
    %v6172 = vld [vmem:[#allocation11 + $0x110] sm:$0xff]
    %v6173 = vld [vmem:[#allocation11 + $0x118] sm:$0xff]
    %v6174 = vld [vmem:[#allocation11 + $0x120] sm:$0xff]
    %v6175 = vld [vmem:[#allocation11 + $0x128] sm:$0xff]
    %v6176 = vld [vmem:[#allocation11 + $0x130] sm:$0xff]
    %v6177 = vld [vmem:[#allocation11 + $0x138] sm:$0xff]
    %v6178 = vld [vmem:[#allocation11 + $0x140] sm:$0xff]
    %v6179 = vld [vmem:[#allocation11 + $0x148] sm:$0xff]
    %v6180 = vld [vmem:[#allocation11 + $0x150] sm:$0xff]
    %v6181 = vld [vmem:[#allocation11 + $0x158] sm:$0xff]
    %v6182 = vld [vmem:[#allocation11 + $0x160] sm:$0xff]
    %v6183 = vld [vmem:[#allocation11 + $0x168] sm:$0xff]
    %v6184 = vld [vmem:[#allocation11 + $0x170] sm:$0xff]
    %v6185 = vld [vmem:[#allocation11 + $0x178] sm:$0xff]
    %v6186 = vld [vmem:[#allocation11 + $0x180] sm:$0xff]
    %v6187 = vld [vmem:[#allocation11 + $0x188] sm:$0xff]
    %v6188 = vld [vmem:[#allocation11 + $0x190] sm:$0xff]
    %v6189 = vld [vmem:[#allocation11 + $0x198] sm:$0xff]
    %v6190 = vld [vmem:[#allocation11 + $0x1a0] sm:$0xff]
    %v6191 = vld [vmem:[#allocation11 + $0x1a8] sm:$0xff]
    %v6192 = vld [vmem:[#allocation11 + $0x1b0] sm:$0xff]
    %v6193 = vld [vmem:[#allocation11 + $0x1b8] sm:$0xff]
    %v6194 = vld [vmem:[#allocation11 + $0x1c0] sm:$0xff]
    %v6195 = vld [vmem:[#allocation11 + $0x1c8] sm:$0xff]
    %v6196 = vld [vmem:[#allocation11 + $0x1d0] sm:$0xff]
    %v6197 = vld [vmem:[#allocation11 + $0x1d8] sm:$0xff]
    %v6198 = vld [vmem:[#allocation11 + $0x1e0] sm:$0xff]
    %v6199 = vld [vmem:[#allocation11 + $0x1e8] sm:$0xff]
    %v6200 = vld [vmem:[#allocation11 + $0x1f0] sm:$0xff]
    %v6201 = vld [vmem:[#allocation11 + $0x1f8] sm:$0xff]
    %v6202 = vld [vmem:[#allocation11 + $0x200] sm:$0xff]
    %v6203 = vld [vmem:[#allocation11 + $0x208] sm:$0xff]
    %v6204 = vld [vmem:[#allocation11 + $0x210] sm:$0xff]
    %v6205 = vld [vmem:[#allocation11 + $0x218] sm:$0xff]
    %v6206 = vld [vmem:[#allocation11 + $0x220] sm:$0xff]
    %v6207 = vld [vmem:[#allocation11 + $0x228] sm:$0xff]
    %v6208 = vld [vmem:[#allocation11 + $0x230] sm:$0xff]
    %v6209 = vld [vmem:[#allocation11 + $0x238] sm:$0xff]
    %v6210 = vld [vmem:[#allocation11 + $0x240] sm:$0xff]
    %v6211 = vld [vmem:[#allocation11 + $0x248] sm:$0xff]
    %v6212 = vld [vmem:[#allocation11 + $0x250] sm:$0xff]
    %v6213 = vld [vmem:[#allocation11 + $0x258] sm:$0xff]
    %v6214 = vld [vmem:[#allocation11 + $0x260] sm:$0xff]
    %v6215 = vld [vmem:[#allocation11 + $0x268] sm:$0xff]
    %v6216 = vld [vmem:[#allocation11 + $0x270] sm:$0xff]
    %v6217 = vld [vmem:[#allocation11 + $0x278] sm:$0xff]
    %v6218 = vld [vmem:[#allocation11 + $0x280] sm:$0xff]
    %v6219 = vld [vmem:[#allocation11 + $0x288] sm:$0xff]
    %v6220 = vld [vmem:[#allocation11 + $0x290] sm:$0xff]
    %v6221 = vld [vmem:[#allocation11 + $0x298] sm:$0xff]
    %v6222 = vld [vmem:[#allocation11 + $0x2a0] sm:$0xff]
    %v6223 = vld [vmem:[#allocation11 + $0x2a8] sm:$0xff]
    %v6224 = vld [vmem:[#allocation11 + $0x2b0] sm:$0xff]
    %v6225 = vld [vmem:[#allocation11 + $0x2b8] sm:$0xff]
    %v6226 = vld [vmem:[#allocation11 + $0x2c0] sm:$0xff]
    %v6227 = vld [vmem:[#allocation11 + $0x2c8] sm:$0xff]
    %v6228 = vld [vmem:[#allocation11 + $0x2d0] sm:$0xff]
    %v6229 = vld [vmem:[#allocation11 + $0x2d8] sm:$0xff]
    %v6230 = vld [vmem:[#allocation11 + $0x2e0] sm:$0xff]
    %v6231 = vld [vmem:[#allocation11 + $0x2e8] sm:$0xff]
    %v6232 = vld [vmem:[#allocation11 + $0x2f0] sm:$0xff]
    %v6233 = vld [vmem:[#allocation11 + $0x2f8] sm:$0xff]
    %v6235 = vsel %vm3169, %v6114, 0
    %v6238 = vsel %vm3169, %v6115, 0
    %v6241 = vsel %vm3169, %v6116, 0
    %v6244 = vsel %vm3169, %v6117, 0
    %v6247 = vsel %vm3169, %v6118, 0
    %v6250 = vsel %vm3169, %v6119, 0
    %v6253 = vsel %vm3169, %v6120, 0
    %v6256 = vsel %vm3169, %v6121, 0
    %v6259 = vsel %vm3169, %v6122, 0
    %v6262 = vsel %vm3169, %v6123, 0
    %v6265 = vsel %vm3169, %v6124, 0
    %v6268 = vsel %vm3169, %v6125, 0
    %v6271 = vsel %vm3169, %v6126, 0
    %v6274 = vsel %vm3169, %v6127, 0
    %v6277 = vsel %vm3169, %v6128, 0
    %v6280 = vsel %vm3169, %v6129, 0
    %v6283 = vsel %vm3169, %v6130, 0
    %v6286 = vsel %vm3169, %v6131, 0
    %v6289 = vsel %vm3169, %v6132, 0
    %v6292 = vsel %vm3169, %v6133, 0
    %v6295 = vsel %vm3169, %v6134, 0
    %v6298 = vsel %vm3169, %v6135, 0
    %v6301 = vsel %vm3169, %v6136, 0
    %v6304 = vsel %vm3169, %v6137, 0
    %6306 = vmatprep.subr.mxu0 0.0
    %6307 = vmatpush1.msra.mxu0 0.0
    %6308 = vmatprep.subr.mxu0 0.0
    %6309 = vmatpush1.msra.mxu0 0.0
    %6310 = vmatprep.subr.mxu0 0.0
    %6311 = vmatpush1.msra.mxu0 0.0
    %6312 = vmatprep.subr.mxu0 0.0
    %6313 = vmatpush1.msra.mxu0 0.0
    %6314 = vmatprep.subr.mxu0 0.0
    %6315 = vmatpush1.msra.mxu0 0.0
    %6316 = vmatprep.subr.mxu0 0.0
    %6317 = vmatpush1.msra.mxu0 0.0
    %6318 = vmatprep.subr.mxu0 0.0
    %6319 = vmatpush1.msra.mxu0 0.0
    %6320 = vmatprep.subr.mxu0 0.0
    %6321 = vmatpush1.msra.mxu0 0.0
    %6322 = vmatprep.subr.mxu0 %v6223
    %6323 = vmatpush1.msra.mxu0 %v6222
    %6324 = vmatprep.subr.mxu0 %v6211
    %6325 = vmatpush1.msra.mxu0 %v6210
    %6326 = vmatprep.subr.mxu0 %v6199
    %6327 = vmatpush1.msra.mxu0 %v6198
    %6328 = vmatprep.subr.mxu0 %v6187
    %6329 = vmatpush1.msra.mxu0 %v6186
    %6330 = vmatprep.subr.mxu0 %v6175
    %6331 = vmatpush1.msra.mxu0 %v6174
    %6332 = vmatprep.subr.mxu0 %v6163
    %6333 = vmatpush1.msra.mxu0 %v6162
    %6334 = vmatprep.subr.mxu0 %v6151
    %6335 = vmatpush1.msra.mxu0 %v6150
    %6336 = vmatprep.subr.mxu0 %v6139
    %6337 = vmatpush1.msra.mxu0 %v6138
    %6338 = vmatprep.subr.mxu0 0.0
    %6339 = vmatpush2.msra.mxu0 0.0
    %6340 = vmatprep.subr.mxu0 0.0
    %6341 = vmatpush2.msra.mxu0 0.0
    %6342 = vmatprep.subr.mxu0 0.0
    %6343 = vmatpush2.msra.mxu0 0.0
    %6344 = vmatprep.subr.mxu0 0.0
    %6345 = vmatpush2.msra.mxu0 0.0
    %6346 = vmatprep.subr.mxu0 0.0
    %6347 = vmatpush2.msra.mxu0 0.0
    %6348 = vmatprep.subr.mxu0 0.0
    %6349 = vmatpush2.msra.mxu0 0.0
    %6350 = vmatprep.subr.mxu0 0.0
    %6351 = vmatpush2.msra.mxu0 0.0
    %6352 = vmatprep.subr.mxu0 0.0
    %6353 = vmatpush2.msra.mxu0 0.0
    %6354 = vmatprep.subr.mxu0 0.0
    %6355 = vmatpush2.msra.mxu0 0.0
    %6356 = vmatprep.subr.mxu0 0.0
    %6357 = vmatpush2.msra.mxu0 0.0
    %6358 = vmatprep.subr.mxu0 0.0
    %6359 = vmatpush2.msra.mxu0 0.0
    %6360 = vmatprep.subr.mxu0 0.0
    %6361 = vmatpush2.msra.mxu0 0.0
    %6362 = vmatprep.subr.mxu0 0.0
    %6363 = vmatpush2.msra.mxu0 0.0
    %6364 = vmatprep.subr.mxu0 0.0
    %6365 = vmatpush2.msra.mxu0 0.0
    %6366 = vmatprep.subr.mxu0 0.0
    %6367 = vmatpush2.msra.mxu0 0.0
    %6368 = vmatprep.subr.mxu0 0.0
    %6369 = vmatpush2.msra.mxu0 0.0
    %6370 = vmatprep.mubr.f32.mxu0 0.0
    %6371 = vmatmul.mubr.f32.gmra.mxu0 %v6235
    %v6372 = vpop.f32.mrf.mxu0
    %v6373 = vadd.f32 0.0, %v6372
    %v6374 = vpop.f32.mrf.mxu0
    %6375 = vmatprep.mubr.f32.mxu0 0.0
    %6376 = vmatmul.mubr.f32.gmra.mxu0 %v6238
    %v6377 = vpop.f32.mrf.mxu0
    %v6378 = vadd.f32 0.0, %v6377
    %v6379 = vpop.f32.mrf.mxu0
    %6380 = vmatprep.mubr.f32.mxu0 0.0
    %6381 = vmatmul.mubr.f32.gmra.mxu0 %v6241
    %v6382 = vpop.f32.mrf.mxu0
    %v6383 = vadd.f32 0.0, %v6382
    %v6384 = vpop.f32.mrf.mxu0
    %6385 = vmatprep.mubr.f32.mxu0 0.0
    %6386 = vmatmul.mubr.f32.gmra.mxu0 %v6244
    %v6387 = vpop.f32.mrf.mxu0
    %v6388 = vadd.f32 0.0, %v6387
    %v6389 = vpop.f32.mrf.mxu0
    %v6390 = vadd.f32 0.0, %v6389
    %6391 = vmatprep.mubr.f32.mxu0 0.0
    %6392 = vmatmul.mubr.f32.gmra.mxu0 %v6247
    %v6393 = vpop.f32.mrf.mxu0
    %v6394 = vadd.f32 0.0, %v6393
    %v6395 = vpop.f32.mrf.mxu0
    %v6396 = vadd.f32 0.0, %v6395
    %6397 = vmatprep.mubr.f32.mxu0 0.0
    %6398 = vmatmul.mubr.f32.gmra.mxu0 %v6250
    %v6399 = vpop.f32.mrf.mxu0
    %v6400 = vadd.f32 0.0, %v6399
    %v6401 = vpop.f32.mrf.mxu0
    %v6402 = vadd.f32 0.0, %v6401
    %6403 = vmatprep.mubr.f32.mxu0 0.0
    %6404 = vmatmul.mubr.f32.gmra.mxu0 %v6253
    %v6405 = vpop.f32.mrf.mxu0
    %v6406 = vadd.f32 0.0, %v6405
    %v6407 = vpop.f32.mrf.mxu0
    %v6408 = vadd.f32 0.0, %v6407
    %6409 = vmatprep.mubr.f32.mxu0 0.0
    %6410 = vmatmul.mubr.f32.gmra.mxu0 %v6256
    %v6411 = vpop.f32.mrf.mxu0
    %v6412 = vadd.f32 0.0, %v6411
    %v6413 = vpop.f32.mrf.mxu0
    %v6414 = vadd.f32 0.0, %v6413
    %6415 = vmatprep.mubr.f32.mxu0 0.0
    %6416 = vmatmul.mubr.f32.gmra.mxu0 %v6259
    %v6417 = vpop.f32.mrf.mxu0
    %v6418 = vadd.f32 0.0, %v6417
    %v6419 = vpop.f32.mrf.mxu0
    %v6420 = vadd.f32 0.0, %v6419
    %6421 = vmatprep.mubr.f32.mxu0 0.0
    %6422 = vmatmul.mubr.f32.gmra.mxu0 %v6262
    %v6423 = vpop.f32.mrf.mxu0
    %v6424 = vadd.f32 0.0, %v6423
    %v6425 = vpop.f32.mrf.mxu0
    %v6426 = vadd.f32 0.0, %v6425
    %6427 = vmatprep.mubr.f32.mxu0 0.0
    %6428 = vmatmul.mubr.f32.gmra.mxu0 %v6265
    %v6429 = vpop.f32.mrf.mxu0
    %v6430 = vadd.f32 0.0, %v6429
    %v6431 = vpop.f32.mrf.mxu0
    %v6432 = vadd.f32 0.0, %v6431
    %6433 = vmatprep.mubr.f32.mxu0 0.0
    %6434 = vmatmul.mubr.f32.gmra.mxu0 %v6268
    %v6435 = vpop.f32.mrf.mxu0
    %v6436 = vadd.f32 0.0, %v6435
    %v6437 = vpop.f32.mrf.mxu0
    %v6438 = vadd.f32 0.0, %v6437
    %6439 = vmatprep.mubr.f32.mxu0 0.0
    %6440 = vmatmul.mubr.f32.gmra.mxu0 %v6271
    %v6441 = vpop.f32.mrf.mxu0
    %v6442 = vadd.f32 0.0, %v6441
    %v6443 = vpop.f32.mrf.mxu0
    %v6444 = vadd.f32 0.0, %v6443
    %6445 = vmatprep.mubr.f32.mxu0 0.0
    %6446 = vmatmul.mubr.f32.gmra.mxu0 %v6274
    %v6447 = vpop.f32.mrf.mxu0
    %v6448 = vadd.f32 0.0, %v6447
    %v6449 = vpop.f32.mrf.mxu0
    %v6450 = vadd.f32 0.0, %v6449
    %6451 = vmatprep.mubr.f32.mxu0 0.0
    %6452 = vmatmul.mubr.f32.gmra.mxu0 %v6277
    %v6453 = vpop.f32.mrf.mxu0
    %v6454 = vadd.f32 0.0, %v6453
    %v6455 = vpop.f32.mrf.mxu0
    %v6456 = vadd.f32 0.0, %v6455
    %6457 = vmatprep.mubr.f32.mxu0 0.0
    %6458 = vmatmul.mubr.f32.gmra.mxu0 %v6280
    %v6459 = vpop.f32.mrf.mxu0
    %v6460 = vadd.f32 0.0, %v6459
    %v6461 = vpop.f32.mrf.mxu0
    %v6462 = vadd.f32 0.0, %v6461
    %6463 = vmatprep.mubr.f32.mxu0 0.0
    %6464 = vmatmul.mubr.f32.gmra.mxu0 %v6283
    %v6465 = vpop.f32.mrf.mxu0
    %v6466 = vadd.f32 0.0, %v6465
    %v6467 = vpop.f32.mrf.mxu0
    %v6468 = vadd.f32 0.0, %v6467
    %6469 = vmatprep.mubr.f32.mxu0 0.0
    %6470 = vmatmul.mubr.f32.gmra.mxu0 %v6286
    %v6471 = vpop.f32.mrf.mxu0
    %v6472 = vadd.f32 0.0, %v6471
    %v6473 = vpop.f32.mrf.mxu0
    %v6474 = vadd.f32 0.0, %v6473
    %6475 = vmatprep.mubr.f32.mxu0 0.0
    %6476 = vmatmul.mubr.f32.gmra.mxu0 %v6289
    %v6477 = vpop.f32.mrf.mxu0
    %v6478 = vpop.f32.mrf.mxu0
    %v6479 = vadd.f32 0.0, %v6478
    %6480 = vmatprep.mubr.f32.mxu0 0.0
    %6481 = vmatmul.mubr.f32.gmra.mxu0 %v6292
    %v6482 = vpop.f32.mrf.mxu0
    %v6483 = vpop.f32.mrf.mxu0
    %v6484 = vadd.f32 0.0, %v6483
    %6485 = vmatprep.mubr.f32.mxu0 0.0
    %6486 = vmatmul.mubr.f32.gmra.mxu0 %v6295
    %v6487 = vpop.f32.mrf.mxu0
    %v6488 = vpop.f32.mrf.mxu0
    %v6489 = vadd.f32 0.0, %v6488
    %6490 = vmatprep.mubr.f32.mxu0 0.0
    %6491 = vmatmul.mubr.f32.gmra.mxu0 %v6298
    %v6492 = vpop.f32.mrf.mxu0
    %v6493 = vpop.f32.mrf.mxu0
    %6494 = vmatprep.mubr.f32.mxu0 0.0
    %6495 = vmatmul.mubr.f32.gmra.mxu0 %v6301
    %v6496 = vpop.f32.mrf.mxu0
    %v6497 = vpop.f32.mrf.mxu0
    %6498 = vmatprep.mubr.f32.mxu0 0.0
    %6499 = vmatmul.mubr.f32.gmra.mxu0 %v6304
    %v6500 = vpop.f32.mrf.mxu0
    %v6501 = vpop.f32.mrf.mxu0
    %6502 = vdwg.mxu0
    %6503 = vmatprep.subr.mxu0 0.0
    %6504 = vmatpush1.msra.mxu0 0.0
    %6505 = vmatprep.subr.mxu0 0.0
    %6506 = vmatpush1.msra.mxu0 0.0
    %6507 = vmatprep.subr.mxu0 0.0
    %6508 = vmatpush1.msra.mxu0 0.0
    %6509 = vmatprep.subr.mxu0 0.0
    %6510 = vmatpush1.msra.mxu0 0.0
    %6511 = vmatprep.subr.mxu0 0.0
    %6512 = vmatpush1.msra.mxu0 0.0
    %6513 = vmatprep.subr.mxu0 0.0
    %6514 = vmatpush1.msra.mxu0 0.0
    %6515 = vmatprep.subr.mxu0 0.0
    %6516 = vmatpush1.msra.mxu0 0.0
    %6517 = vmatprep.subr.mxu0 0.0
    %6518 = vmatpush1.msra.mxu0 0.0
    %6519 = vmatprep.subr.mxu0 %v6225
    %6520 = vmatpush1.msra.mxu0 %v6224
    %6521 = vmatprep.subr.mxu0 %v6213
    %6522 = vmatpush1.msra.mxu0 %v6212
    %6523 = vmatprep.subr.mxu0 %v6201
    %6524 = vmatpush1.msra.mxu0 %v6200
    %6525 = vmatprep.subr.mxu0 %v6189
    %6526 = vmatpush1.msra.mxu0 %v6188
    %6527 = vmatprep.subr.mxu0 %v6177
    %6528 = vmatpush1.msra.mxu0 %v6176
    %6529 = vmatprep.subr.mxu0 %v6165
    %6530 = vmatpush1.msra.mxu0 %v6164
    %6531 = vmatprep.subr.mxu0 %v6153
    %6532 = vmatpush1.msra.mxu0 %v6152
    %6533 = vmatprep.subr.mxu0 %v6141
    %6534 = vmatpush1.msra.mxu0 %v6140
    %6535 = vmatprep.subr.mxu0 0.0
    %6536 = vmatpush2.msra.mxu0 0.0
    %6537 = vmatprep.subr.mxu0 0.0
    %6538 = vmatpush2.msra.mxu0 0.0
    %6539 = vmatprep.subr.mxu0 0.0
    %6540 = vmatpush2.msra.mxu0 0.0
    %6541 = vmatprep.subr.mxu0 0.0
    %6542 = vmatpush2.msra.mxu0 0.0
    %6543 = vmatprep.subr.mxu0 0.0
    %6544 = vmatpush2.msra.mxu0 0.0
    %6545 = vmatprep.subr.mxu0 0.0
    %6546 = vmatpush2.msra.mxu0 0.0
    %6547 = vmatprep.subr.mxu0 0.0
    %6548 = vmatpush2.msra.mxu0 0.0
    %6549 = vmatprep.subr.mxu0 0.0
    %6550 = vmatpush2.msra.mxu0 0.0
    %6551 = vmatprep.subr.mxu0 0.0
    %6552 = vmatpush2.msra.mxu0 0.0
    %6553 = vmatprep.subr.mxu0 0.0
    %6554 = vmatpush2.msra.mxu0 0.0
    %6555 = vmatprep.subr.mxu0 0.0
    %6556 = vmatpush2.msra.mxu0 0.0
    %6557 = vmatprep.subr.mxu0 0.0
    %6558 = vmatpush2.msra.mxu0 0.0
    %6559 = vmatprep.subr.mxu0 0.0
    %6560 = vmatpush2.msra.mxu0 0.0
    %6561 = vmatprep.subr.mxu0 0.0
    %6562 = vmatpush2.msra.mxu0 0.0
    %6563 = vmatprep.subr.mxu0 0.0
    %6564 = vmatpush2.msra.mxu0 0.0
    %6565 = vmatprep.subr.mxu0 0.0
    %6566 = vmatpush2.msra.mxu0 0.0
    %6567 = vmatprep.mubr.f32.mxu0 0.0
    %6568 = vmatmul.mubr.f32.gmra.mxu0 %v6235
    %v6569 = vpop.f32.mrf.mxu0
    %v6570 = vpop.f32.mrf.mxu0
    %v6571 = vadd.f32 0.0, %v6570
    %6572 = vmatprep.mubr.f32.mxu0 0.0
    %6573 = vmatmul.mubr.f32.gmra.mxu0 %v6238
    %v6574 = vpop.f32.mrf.mxu0
    %v6575 = vpop.f32.mrf.mxu0
    %v6576 = vadd.f32 0.0, %v6575
    %6577 = vmatprep.mubr.f32.mxu0 0.0
    %6578 = vmatmul.mubr.f32.gmra.mxu0 %v6241
    %v6579 = vpop.f32.mrf.mxu0
    %v6580 = vpop.f32.mrf.mxu0
    %v6581 = vadd.f32 0.0, %v6580
    %6582 = vmatprep.mubr.f32.mxu0 0.0
    %6583 = vmatmul.mubr.f32.gmra.mxu0 %v6244
    %v6584 = vpop.f32.mrf.mxu0
    %v6585 = vpop.f32.mrf.mxu0
    %v6586 = vadd.f32 0.0, %v6585
    %6587 = vmatprep.mubr.f32.mxu0 0.0
    %6588 = vmatmul.mubr.f32.gmra.mxu0 %v6247
    %v6589 = vpop.f32.mrf.mxu0
    %v6590 = vpop.f32.mrf.mxu0
    %v6591 = vadd.f32 0.0, %v6590
    %6592 = vmatprep.mubr.f32.mxu0 0.0
    %6593 = vmatmul.mubr.f32.gmra.mxu0 %v6250
    %v6594 = vpop.f32.mrf.mxu0
    %v6595 = vpop.f32.mrf.mxu0
    %v6596 = vadd.f32 0.0, %v6595
    %6597 = vmatprep.mubr.f32.mxu0 0.0
    %6598 = vmatmul.mubr.f32.gmra.mxu0 %v6253
    %v6599 = vpop.f32.mrf.mxu0
    %v6600 = vadd.f32 0.0, %v6599
    %v6601 = vpop.f32.mrf.mxu0
    %v6602 = vadd.f32 0.0, %v6601
    %6603 = vmatprep.mubr.f32.mxu0 0.0
    %6604 = vmatmul.mubr.f32.gmra.mxu0 %v6256
    %v6605 = vpop.f32.mrf.mxu0
    %v6606 = vadd.f32 0.0, %v6605
    %v6607 = vpop.f32.mrf.mxu0
    %v6608 = vadd.f32 0.0, %v6607
    %6609 = vmatprep.mubr.f32.mxu0 0.0
    %6610 = vmatmul.mubr.f32.gmra.mxu0 %v6259
    %v6611 = vpop.f32.mrf.mxu0
    %v6612 = vadd.f32 0.0, %v6611
    %v6613 = vpop.f32.mrf.mxu0
    %v6614 = vadd.f32 0.0, %v6613
    %6615 = vmatprep.mubr.f32.mxu0 0.0
    %6616 = vmatmul.mubr.f32.gmra.mxu0 %v6262
    %v6617 = vpop.f32.mrf.mxu0
    %v6618 = vadd.f32 0.0, %v6617
    %v6619 = vpop.f32.mrf.mxu0
    %v6620 = vadd.f32 0.0, %v6619
    %6621 = vmatprep.mubr.f32.mxu0 0.0
    %6622 = vmatmul.mubr.f32.gmra.mxu0 %v6265
    %v6623 = vpop.f32.mrf.mxu0
    %v6624 = vadd.f32 0.0, %v6623
    %v6625 = vpop.f32.mrf.mxu0
    %v6626 = vadd.f32 0.0, %v6625
    %6627 = vmatprep.mubr.f32.mxu0 0.0
    %6628 = vmatmul.mubr.f32.gmra.mxu0 %v6268
    %v6629 = vpop.f32.mrf.mxu0
    %v6630 = vadd.f32 0.0, %v6629
    %v6631 = vpop.f32.mrf.mxu0
    %v6632 = vadd.f32 0.0, %v6631
    %6633 = vmatprep.mubr.f32.mxu0 0.0
    %6634 = vmatmul.mubr.f32.gmra.mxu0 %v6271
    %v6635 = vpop.f32.mrf.mxu0
    %v6636 = vadd.f32 0.0, %v6635
    %v6637 = vpop.f32.mrf.mxu0
    %v6638 = vadd.f32 0.0, %v6637
    %6639 = vmatprep.mubr.f32.mxu0 0.0
    %6640 = vmatmul.mubr.f32.gmra.mxu0 %v6274
    %v6641 = vpop.f32.mrf.mxu0
    %v6642 = vadd.f32 0.0, %v6641
    %v6643 = vpop.f32.mrf.mxu0
    %v6644 = vadd.f32 0.0, %v6643
    %6645 = vmatprep.mubr.f32.mxu0 0.0
    %6646 = vmatmul.mubr.f32.gmra.mxu0 %v6277
    %v6647 = vpop.f32.mrf.mxu0
    %v6648 = vadd.f32 0.0, %v6647
    %v6649 = vpop.f32.mrf.mxu0
    %v6650 = vadd.f32 0.0, %v6649
    %6651 = vmatprep.mubr.f32.mxu0 0.0
    %6652 = vmatmul.mubr.f32.gmra.mxu0 %v6280
    %v6653 = vpop.f32.mrf.mxu0
    %v6654 = vadd.f32 0.0, %v6653
    %v6655 = vpop.f32.mrf.mxu0
    %6656 = vmatprep.mubr.f32.mxu0 0.0
    %6657 = vmatmul.mubr.f32.gmra.mxu0 %v6283
    %v6658 = vpop.f32.mrf.mxu0
    %v6659 = vadd.f32 0.0, %v6658
    %v6660 = vpop.f32.mrf.mxu0
    %6661 = vmatprep.mubr.f32.mxu0 0.0
    %6662 = vmatmul.mubr.f32.gmra.mxu0 %v6286
    %v6663 = vpop.f32.mrf.mxu0
    %v6664 = vadd.f32 0.0, %v6663
    %v6665 = vpop.f32.mrf.mxu0
    %6666 = vmatprep.mubr.f32.mxu0 0.0
    %6667 = vmatmul.mubr.f32.gmra.mxu0 %v6289
    %v6668 = vpop.f32.mrf.mxu0
    %v6669 = vadd.f32 0.0, %v6668
    %v6670 = vpop.f32.mrf.mxu0
    %6671 = vmatprep.mubr.f32.mxu0 0.0
    %6672 = vmatmul.mubr.f32.gmra.mxu0 %v6292
    %v6673 = vpop.f32.mrf.mxu0
    %v6674 = vadd.f32 0.0, %v6673
    %v6675 = vpop.f32.mrf.mxu0
    %6676 = vmatprep.mubr.f32.mxu0 0.0
    %6677 = vmatmul.mubr.f32.gmra.mxu0 %v6295
    %v6678 = vpop.f32.mrf.mxu0
    %v6679 = vadd.f32 0.0, %v6678
    %v6680 = vpop.f32.mrf.mxu0
    %6681 = vmatprep.mubr.f32.mxu0 0.0
    %6682 = vmatmul.mubr.f32.gmra.mxu0 %v6298
    %v6683 = vpop.f32.mrf.mxu0
    %v6684 = vadd.f32 0.0, %v6683
    %v6685 = vpop.f32.mrf.mxu0
    %6686 = vmatprep.mubr.f32.mxu0 0.0
    %6687 = vmatmul.mubr.f32.gmra.mxu0 %v6301
    %v6688 = vpop.f32.mrf.mxu0
    %v6689 = vadd.f32 0.0, %v6688
    %v6690 = vpop.f32.mrf.mxu0
    %6691 = vmatprep.mubr.f32.mxu0 0.0
    %6692 = vmatmul.mubr.f32.gmra.mxu0 %v6304
    %v6693 = vpop.f32.mrf.mxu0
    %v6694 = vadd.f32 0.0, %v6693
    %v6695 = vpop.f32.mrf.mxu0
    %6696 = vdwg.mxu0
    %6697 = vmatprep.subr.mxu0 0.0
    %6698 = vmatpush1.msra.mxu0 0.0
    %6699 = vmatprep.subr.mxu0 0.0
    %6700 = vmatpush1.msra.mxu0 0.0
    %6701 = vmatprep.subr.mxu0 0.0
    %6702 = vmatpush1.msra.mxu0 0.0
    %6703 = vmatprep.subr.mxu0 0.0
    %6704 = vmatpush1.msra.mxu0 0.0
    %6705 = vmatprep.subr.mxu0 0.0
    %6706 = vmatpush1.msra.mxu0 0.0
    %6707 = vmatprep.subr.mxu0 0.0
    %6708 = vmatpush1.msra.mxu0 0.0
    %6709 = vmatprep.subr.mxu0 0.0
    %6710 = vmatpush1.msra.mxu0 0.0
    %6711 = vmatprep.subr.mxu0 0.0
    %6712 = vmatpush1.msra.mxu0 0.0
    %6713 = vmatprep.subr.mxu0 %v6227
    %6714 = vmatpush1.msra.mxu0 %v6226
    %6715 = vmatprep.subr.mxu0 %v6215
    %6716 = vmatpush1.msra.mxu0 %v6214
    %6717 = vmatprep.subr.mxu0 %v6203
    %6718 = vmatpush1.msra.mxu0 %v6202
    %6719 = vmatprep.subr.mxu0 %v6191
    %6720 = vmatpush1.msra.mxu0 %v6190
    %6721 = vmatprep.subr.mxu0 %v6179
    %6722 = vmatpush1.msra.mxu0 %v6178
    %6723 = vmatprep.subr.mxu0 %v6167
    %6724 = vmatpush1.msra.mxu0 %v6166
    %6725 = vmatprep.subr.mxu0 %v6155
    %6726 = vmatpush1.msra.mxu0 %v6154
    %6727 = vmatprep.subr.mxu0 %v6143
    %6728 = vmatpush1.msra.mxu0 %v6142
    %6729 = vmatprep.subr.mxu0 0.0
    %6730 = vmatpush2.msra.mxu0 0.0
    %6731 = vmatprep.subr.mxu0 0.0
    %6732 = vmatpush2.msra.mxu0 0.0
    %6733 = vmatprep.subr.mxu0 0.0
    %6734 = vmatpush2.msra.mxu0 0.0
    %6735 = vmatprep.subr.mxu0 0.0
    %6736 = vmatpush2.msra.mxu0 0.0
    %6737 = vmatprep.subr.mxu0 0.0
    %6738 = vmatpush2.msra.mxu0 0.0
    %6739 = vmatprep.subr.mxu0 0.0
    %6740 = vmatpush2.msra.mxu0 0.0
    %6741 = vmatprep.subr.mxu0 0.0
    %6742 = vmatpush2.msra.mxu0 0.0
    %6743 = vmatprep.subr.mxu0 0.0
    %6744 = vmatpush2.msra.mxu0 0.0
    %6745 = vmatprep.subr.mxu0 0.0
    %6746 = vmatpush2.msra.mxu0 0.0
    %6747 = vmatprep.subr.mxu0 0.0
    %6748 = vmatpush2.msra.mxu0 0.0
    %6749 = vmatprep.subr.mxu0 0.0
    %6750 = vmatpush2.msra.mxu0 0.0
    %6751 = vmatprep.subr.mxu0 0.0
    %6752 = vmatpush2.msra.mxu0 0.0
    %6753 = vmatprep.subr.mxu0 0.0
    %6754 = vmatpush2.msra.mxu0 0.0
    %6755 = vmatprep.subr.mxu0 0.0
    %6756 = vmatpush2.msra.mxu0 0.0
    %6757 = vmatprep.subr.mxu0 0.0
    %6758 = vmatpush2.msra.mxu0 0.0
    %6759 = vmatprep.subr.mxu0 0.0
    %6760 = vmatpush2.msra.mxu0 0.0
    %6761 = vmatprep.mubr.f32.mxu0 0.0
    %6762 = vmatmul.mubr.f32.gmra.mxu0 %v6235
    %v6763 = vpop.f32.mrf.mxu0
    %v6764 = vpop.f32.mrf.mxu0
    %6765 = vmatprep.mubr.f32.mxu0 0.0
    %6766 = vmatmul.mubr.f32.gmra.mxu0 %v6238
    %v6767 = vpop.f32.mrf.mxu0
    %v6768 = vpop.f32.mrf.mxu0
    %6769 = vmatprep.mubr.f32.mxu0 0.0
    %6770 = vmatmul.mubr.f32.gmra.mxu0 %v6241
    %v6771 = vpop.f32.mrf.mxu0
    %v6772 = vpop.f32.mrf.mxu0
    %6773 = vmatprep.mubr.f32.mxu0 0.0
    %6774 = vmatmul.mubr.f32.gmra.mxu0 %v6244
    %v6775 = vpop.f32.mrf.mxu0
    %v6776 = vadd.f32 0.0, %v6775
    %v6777 = vpop.f32.mrf.mxu0
    %6778 = vmatprep.mubr.f32.mxu0 0.0
    %6779 = vmatmul.mubr.f32.gmra.mxu0 %v6247
    %v6780 = vpop.f32.mrf.mxu0
    %v6781 = vadd.f32 0.0, %v6780
    %v6782 = vpop.f32.mrf.mxu0
    %6783 = vmatprep.mubr.f32.mxu0 0.0
    %6784 = vmatmul.mubr.f32.gmra.mxu0 %v6250
    %v6785 = vpop.f32.mrf.mxu0
    %v6786 = vadd.f32 0.0, %v6785
    %v6787 = vpop.f32.mrf.mxu0
    %6788 = vmatprep.mubr.f32.mxu0 0.0
    %6789 = vmatmul.mubr.f32.gmra.mxu0 %v6253
    %v6790 = vpop.f32.mrf.mxu0
    %v6791 = vadd.f32 0.0, %v6790
    %v6792 = vpop.f32.mrf.mxu0
    %v6793 = vadd.f32 0.0, %v6792
    %6794 = vmatprep.mubr.f32.mxu0 0.0
    %6795 = vmatmul.mubr.f32.gmra.mxu0 %v6256
    %v6796 = vpop.f32.mrf.mxu0
    %v6797 = vadd.f32 0.0, %v6796
    %v6798 = vpop.f32.mrf.mxu0
    %v6799 = vadd.f32 0.0, %v6798
    %6800 = vmatprep.mubr.f32.mxu0 0.0
    %6801 = vmatmul.mubr.f32.gmra.mxu0 %v6259
    %v6802 = vpop.f32.mrf.mxu0
    %v6803 = vadd.f32 0.0, %v6802
    %v6804 = vpop.f32.mrf.mxu0
    %v6805 = vadd.f32 0.0, %v6804
    %6806 = vmatprep.mubr.f32.mxu0 0.0
    %6807 = vmatmul.mubr.f32.gmra.mxu0 %v6262
    %v6808 = vpop.f32.mrf.mxu0
    %v6809 = vadd.f32 0.0, %v6808
    %v6810 = vpop.f32.mrf.mxu0
    %v6811 = vadd.f32 0.0, %v6810
    %6812 = vmatprep.mubr.f32.mxu0 0.0
    %6813 = vmatmul.mubr.f32.gmra.mxu0 %v6265
    %v6814 = vpop.f32.mrf.mxu0
    %v6815 = vadd.f32 0.0, %v6814
    %v6816 = vpop.f32.mrf.mxu0
    %v6817 = vadd.f32 0.0, %v6816
    %6818 = vmatprep.mubr.f32.mxu0 0.0
    %6819 = vmatmul.mubr.f32.gmra.mxu0 %v6268
    %v6820 = vpop.f32.mrf.mxu0
    %v6821 = vadd.f32 0.0, %v6820
    %v6822 = vpop.f32.mrf.mxu0
    %v6823 = vadd.f32 0.0, %v6822
    %6824 = vmatprep.mubr.f32.mxu0 0.0
    %6825 = vmatmul.mubr.f32.gmra.mxu0 %v6271
    %v6826 = vpop.f32.mrf.mxu0
    %v6827 = vadd.f32 0.0, %v6826
    %v6828 = vpop.f32.mrf.mxu0
    %v6829 = vadd.f32 0.0, %v6828
    %6830 = vmatprep.mubr.f32.mxu0 0.0
    %6831 = vmatmul.mubr.f32.gmra.mxu0 %v6274
    %v6832 = vpop.f32.mrf.mxu0
    %v6833 = vadd.f32 0.0, %v6832
    %v6834 = vpop.f32.mrf.mxu0
    %v6835 = vadd.f32 0.0, %v6834
    %6836 = vmatprep.mubr.f32.mxu0 0.0
    %6837 = vmatmul.mubr.f32.gmra.mxu0 %v6277
    %v6838 = vpop.f32.mrf.mxu0
    %v6839 = vadd.f32 0.0, %v6838
    %v6840 = vpop.f32.mrf.mxu0
    %v6841 = vadd.f32 0.0, %v6840
    %6842 = vmatprep.mubr.f32.mxu0 0.0
    %6843 = vmatmul.mubr.f32.gmra.mxu0 %v6280
    %v6844 = vpop.f32.mrf.mxu0
    %v6845 = vadd.f32 0.0, %v6844
    %v6846 = vpop.f32.mrf.mxu0
    %v6847 = vadd.f32 0.0, %v6846
    %6848 = vmatprep.mubr.f32.mxu0 0.0
    %6849 = vmatmul.mubr.f32.gmra.mxu0 %v6283
    %v6850 = vpop.f32.mrf.mxu0
    %v6851 = vadd.f32 0.0, %v6850
    %v6852 = vpop.f32.mrf.mxu0
    %v6853 = vadd.f32 0.0, %v6852
    %6854 = vmatprep.mubr.f32.mxu0 0.0
    %6855 = vmatmul.mubr.f32.gmra.mxu0 %v6286
    %v6856 = vpop.f32.mrf.mxu0
    %v6857 = vadd.f32 0.0, %v6856
    %v6858 = vpop.f32.mrf.mxu0
    %v6859 = vadd.f32 0.0, %v6858
    %6860 = vmatprep.mubr.f32.mxu0 0.0
    %6861 = vmatmul.mubr.f32.gmra.mxu0 %v6289
    %v6862 = vpop.f32.mrf.mxu0
    %v6863 = vpop.f32.mrf.mxu0
    %v6864 = vadd.f32 0.0, %v6863
    %6865 = vmatprep.mubr.f32.mxu0 0.0
    %6866 = vmatmul.mubr.f32.gmra.mxu0 %v6292
    %v6867 = vpop.f32.mrf.mxu0
    %v6868 = vpop.f32.mrf.mxu0
    %v6869 = vadd.f32 0.0, %v6868
    %6870 = vmatprep.mubr.f32.mxu0 0.0
    %6871 = vmatmul.mubr.f32.gmra.mxu0 %v6295
    %v6872 = vpop.f32.mrf.mxu0
    %v6873 = vpop.f32.mrf.mxu0
    %v6874 = vadd.f32 0.0, %v6873
    %6875 = vmatprep.mubr.f32.mxu0 0.0
    %6876 = vmatmul.mubr.f32.gmra.mxu0 %v6298
    %v6877 = vpop.f32.mrf.mxu0
    %v6878 = vpop.f32.mrf.mxu0
    %6879 = vmatprep.mubr.f32.mxu0 0.0
    %6880 = vmatmul.mubr.f32.gmra.mxu0 %v6301
    %v6881 = vpop.f32.mrf.mxu0
    %v6882 = vpop.f32.mrf.mxu0
    %6883 = vmatprep.mubr.f32.mxu0 0.0
    %6884 = vmatmul.mubr.f32.gmra.mxu0 %v6304
    %v6885 = vpop.f32.mrf.mxu0
    %v6886 = vpop.f32.mrf.mxu0
    %6887 = vdwg.mxu0
    %6888 = vmatprep.subr.mxu0 0.0
    %6889 = vmatpush1.msra.mxu0 0.0
    %6890 = vmatprep.subr.mxu0 0.0
    %6891 = vmatpush1.msra.mxu0 0.0
    %6892 = vmatprep.subr.mxu0 0.0
    %6893 = vmatpush1.msra.mxu0 0.0
    %6894 = vmatprep.subr.mxu0 0.0
    %6895 = vmatpush1.msra.mxu0 0.0
    %6896 = vmatprep.subr.mxu0 0.0
    %6897 = vmatpush1.msra.mxu0 0.0
    %6898 = vmatprep.subr.mxu0 0.0
    %6899 = vmatpush1.msra.mxu0 0.0
    %6900 = vmatprep.subr.mxu0 0.0
    %6901 = vmatpush1.msra.mxu0 0.0
    %6902 = vmatprep.subr.mxu0 0.0
    %6903 = vmatpush1.msra.mxu0 0.0
    %6904 = vmatprep.subr.mxu0 %v6229
    %6905 = vmatpush1.msra.mxu0 %v6228
    %6906 = vmatprep.subr.mxu0 %v6217
    %6907 = vmatpush1.msra.mxu0 %v6216
    %6908 = vmatprep.subr.mxu0 %v6205
    %6909 = vmatpush1.msra.mxu0 %v6204
    %6910 = vmatprep.subr.mxu0 %v6193
    %6911 = vmatpush1.msra.mxu0 %v6192
    %6912 = vmatprep.subr.mxu0 %v6181
    %6913 = vmatpush1.msra.mxu0 %v6180
    %6914 = vmatprep.subr.mxu0 %v6169
    %6915 = vmatpush1.msra.mxu0 %v6168
    %6916 = vmatprep.subr.mxu0 %v6157
    %6917 = vmatpush1.msra.mxu0 %v6156
    %6918 = vmatprep.subr.mxu0 %v6145
    %6919 = vmatpush1.msra.mxu0 %v6144
    %6920 = vmatprep.subr.mxu0 0.0
    %6921 = vmatpush2.msra.mxu0 0.0
    %6922 = vmatprep.subr.mxu0 0.0
    %6923 = vmatpush2.msra.mxu0 0.0
    %6924 = vmatprep.subr.mxu0 0.0
    %6925 = vmatpush2.msra.mxu0 0.0
    %6926 = vmatprep.subr.mxu0 0.0
    %6927 = vmatpush2.msra.mxu0 0.0
    %6928 = vmatprep.subr.mxu0 0.0
    %6929 = vmatpush2.msra.mxu0 0.0
    %6930 = vmatprep.subr.mxu0 0.0
    %6931 = vmatpush2.msra.mxu0 0.0
    %6932 = vmatprep.subr.mxu0 0.0
    %6933 = vmatpush2.msra.mxu0 0.0
    %6934 = vmatprep.subr.mxu0 0.0
    %6935 = vmatpush2.msra.mxu0 0.0
    %6936 = vmatprep.subr.mxu0 0.0
    %6937 = vmatpush2.msra.mxu0 0.0
    %6938 = vmatprep.subr.mxu0 0.0
    %6939 = vmatpush2.msra.mxu0 0.0
    %6940 = vmatprep.subr.mxu0 0.0
    %6941 = vmatpush2.msra.mxu0 0.0
    %6942 = vmatprep.subr.mxu0 0.0
    %6943 = vmatpush2.msra.mxu0 0.0
    %6944 = vmatprep.subr.mxu0 0.0
    %6945 = vmatpush2.msra.mxu0 0.0
    %6946 = vmatprep.subr.mxu0 0.0
    %6947 = vmatpush2.msra.mxu0 0.0
    %6948 = vmatprep.subr.mxu0 0.0
    %6949 = vmatpush2.msra.mxu0 0.0
    %6950 = vmatprep.subr.mxu0 0.0
    %6951 = vmatpush2.msra.mxu0 0.0
    %6952 = vmatprep.mubr.f32.mxu0 0.0
    %6953 = vmatmul.mubr.f32.gmra.mxu0 %v6235
    %v6954 = vpop.f32.mrf.mxu0
    %v6955 = vpop.f32.mrf.mxu0
    %v6956 = vadd.f32 0.0, %v6955
    %6957 = vmatprep.mubr.f32.mxu0 0.0
    %6958 = vmatmul.mubr.f32.gmra.mxu0 %v6238
    %v6959 = vpop.f32.mrf.mxu0
    %v6960 = vpop.f32.mrf.mxu0
    %v6961 = vadd.f32 0.0, %v6960
    %6962 = vmatprep.mubr.f32.mxu0 0.0
    %6963 = vmatmul.mubr.f32.gmra.mxu0 %v6241
    %v6964 = vpop.f32.mrf.mxu0
    %v6965 = vpop.f32.mrf.mxu0
    %v6966 = vadd.f32 0.0, %v6965
    %6967 = vmatprep.mubr.f32.mxu0 0.0
    %6968 = vmatmul.mubr.f32.gmra.mxu0 %v6244
    %v6969 = vpop.f32.mrf.mxu0
    %v6970 = vpop.f32.mrf.mxu0
    %v6971 = vadd.f32 0.0, %v6970
    %6972 = vmatprep.mubr.f32.mxu0 0.0
    %6973 = vmatmul.mubr.f32.gmra.mxu0 %v6247
    %v6974 = vpop.f32.mrf.mxu0
    %v6975 = vpop.f32.mrf.mxu0
    %v6976 = vadd.f32 0.0, %v6975
    %6977 = vmatprep.mubr.f32.mxu0 0.0
    %6978 = vmatmul.mubr.f32.gmra.mxu0 %v6250
    %v6979 = vpop.f32.mrf.mxu0
    %v6980 = vpop.f32.mrf.mxu0
    %v6981 = vadd.f32 0.0, %v6980
    %6982 = vmatprep.mubr.f32.mxu0 0.0
    %6983 = vmatmul.mubr.f32.gmra.mxu0 %v6253
    %v6984 = vpop.f32.mrf.mxu0
    %v6985 = vpop.f32.mrf.mxu0
    %v6986 = vadd.f32 0.0, %v6985
    %6987 = vmatprep.mubr.f32.mxu0 0.0
    %6988 = vmatmul.mubr.f32.gmra.mxu0 %v6256
    %v6989 = vpop.f32.mrf.mxu0
    %v6990 = vpop.f32.mrf.mxu0
    %v6991 = vadd.f32 0.0, %v6990
    %6992 = vmatprep.mubr.f32.mxu0 0.0
    %6993 = vmatmul.mubr.f32.gmra.mxu0 %v6259
    %v6994 = vpop.f32.mrf.mxu0
    %v6995 = vpop.f32.mrf.mxu0
    %v6996 = vadd.f32 0.0, %v6995
    %6997 = vmatprep.mubr.f32.mxu0 0.0
    %6998 = vmatmul.mubr.f32.gmra.mxu0 %v6262
    %v6999 = vpop.f32.mrf.mxu0
    %v7000 = vadd.f32 0.0, %v6999
    %v7001 = vpop.f32.mrf.mxu0
    %v7002 = vadd.f32 0.0, %v7001
    %7003 = vmatprep.mubr.f32.mxu0 0.0
    %7004 = vmatmul.mubr.f32.gmra.mxu0 %v6265
    %v7005 = vpop.f32.mrf.mxu0
    %v7006 = vadd.f32 0.0, %v7005
    %v7007 = vpop.f32.mrf.mxu0
    %v7008 = vadd.f32 0.0, %v7007
    %7009 = vmatprep.mubr.f32.mxu0 0.0
    %7010 = vmatmul.mubr.f32.gmra.mxu0 %v6268
    %v7011 = vpop.f32.mrf.mxu0
    %v7012 = vadd.f32 0.0, %v7011
    %v7013 = vpop.f32.mrf.mxu0
    %v7014 = vadd.f32 0.0, %v7013
    %7015 = vmatprep.mubr.f32.mxu0 0.0
    %7016 = vmatmul.mubr.f32.gmra.mxu0 %v6271
    %v7017 = vpop.f32.mrf.mxu0
    %v7018 = vadd.f32 0.0, %v7017
    %v7019 = vpop.f32.mrf.mxu0
    %7020 = vmatprep.mubr.f32.mxu0 0.0
    %7021 = vmatmul.mubr.f32.gmra.mxu0 %v6274
    %v7022 = vpop.f32.mrf.mxu0
    %v7023 = vadd.f32 0.0, %v7022
    %v7024 = vpop.f32.mrf.mxu0
    %7025 = vmatprep.mubr.f32.mxu0 0.0
    %7026 = vmatmul.mubr.f32.gmra.mxu0 %v6277
    %v7027 = vpop.f32.mrf.mxu0
    %v7028 = vadd.f32 0.0, %v7027
    %v7029 = vpop.f32.mrf.mxu0
    %7030 = vmatprep.mubr.f32.mxu0 0.0
    %7031 = vmatmul.mubr.f32.gmra.mxu0 %v6280
    %v7032 = vpop.f32.mrf.mxu0
    %v7033 = vadd.f32 0.0, %v7032
    %v7034 = vpop.f32.mrf.mxu0
    %7035 = vmatprep.mubr.f32.mxu0 0.0
    %7036 = vmatmul.mubr.f32.gmra.mxu0 %v6283
    %v7037 = vpop.f32.mrf.mxu0
    %v7038 = vadd.f32 0.0, %v7037
    %v7039 = vpop.f32.mrf.mxu0
    %7040 = vmatprep.mubr.f32.mxu0 0.0
    %7041 = vmatmul.mubr.f32.gmra.mxu0 %v6286
    %v7042 = vpop.f32.mrf.mxu0
    %v7043 = vadd.f32 0.0, %v7042
    %v7044 = vpop.f32.mrf.mxu0
    %7045 = vmatprep.mubr.f32.mxu0 0.0
    %7046 = vmatmul.mubr.f32.gmra.mxu0 %v6289
    %v7047 = vpop.f32.mrf.mxu0
    %v7048 = vadd.f32 0.0, %v7047
    %v7049 = vpop.f32.mrf.mxu0
    %7050 = vmatprep.mubr.f32.mxu0 0.0
    %7051 = vmatmul.mubr.f32.gmra.mxu0 %v6292
    %v7052 = vpop.f32.mrf.mxu0
    %v7053 = vadd.f32 0.0, %v7052
    %v7054 = vpop.f32.mrf.mxu0
    %7055 = vmatprep.mubr.f32.mxu0 0.0
    %7056 = vmatmul.mubr.f32.gmra.mxu0 %v6295
    %v7057 = vpop.f32.mrf.mxu0
    %v7058 = vadd.f32 0.0, %v7057
    %v7059 = vpop.f32.mrf.mxu0
    %7060 = vmatprep.mubr.f32.mxu0 0.0
    %7061 = vmatmul.mubr.f32.gmra.mxu0 %v6298
    %v7062 = vpop.f32.mrf.mxu0
    %v7063 = vadd.f32 0.0, %v7062
    %v7064 = vpop.f32.mrf.mxu0
    %7065 = vmatprep.mubr.f32.mxu0 0.0
    %7066 = vmatmul.mubr.f32.gmra.mxu0 %v6301
    %v7067 = vpop.f32.mrf.mxu0
    %v7068 = vadd.f32 0.0, %v7067
    %v7069 = vpop.f32.mrf.mxu0
    %7070 = vmatprep.mubr.f32.mxu0 0.0
    %7071 = vmatmul.mubr.f32.gmra.mxu0 %v6304
    %v7072 = vpop.f32.mrf.mxu0
    %v7073 = vadd.f32 0.0, %v7072
    %v7074 = vpop.f32.mrf.mxu0
    %7075 = vdwg.mxu0
    %7076 = vmatprep.subr.mxu0 0.0
    %7077 = vmatpush1.msra.mxu0 0.0
    %7078 = vmatprep.subr.mxu0 0.0
    %7079 = vmatpush1.msra.mxu0 0.0
    %7080 = vmatprep.subr.mxu0 0.0
    %7081 = vmatpush1.msra.mxu0 0.0
    %7082 = vmatprep.subr.mxu0 0.0
    %7083 = vmatpush1.msra.mxu0 0.0
    %7084 = vmatprep.subr.mxu0 0.0
    %7085 = vmatpush1.msra.mxu0 0.0
    %7086 = vmatprep.subr.mxu0 0.0
    %7087 = vmatpush1.msra.mxu0 0.0
    %7088 = vmatprep.subr.mxu0 0.0
    %7089 = vmatpush1.msra.mxu0 0.0
    %7090 = vmatprep.subr.mxu0 0.0
    %7091 = vmatpush1.msra.mxu0 0.0
    %7092 = vmatprep.subr.mxu0 %v6231
    %7093 = vmatpush1.msra.mxu0 %v6230
    %7094 = vmatprep.subr.mxu0 %v6219
    %7095 = vmatpush1.msra.mxu0 %v6218
    %7096 = vmatprep.subr.mxu0 %v6207
    %7097 = vmatpush1.msra.mxu0 %v6206
    %7098 = vmatprep.subr.mxu0 %v6195
    %7099 = vmatpush1.msra.mxu0 %v6194
    %7100 = vmatprep.subr.mxu0 %v6183
    %7101 = vmatpush1.msra.mxu0 %v6182
    %7102 = vmatprep.subr.mxu0 %v6171
    %7103 = vmatpush1.msra.mxu0 %v6170
    %7104 = vmatprep.subr.mxu0 %v6159
    %7105 = vmatpush1.msra.mxu0 %v6158
    %7106 = vmatprep.subr.mxu0 %v6147
    %7107 = vmatpush1.msra.mxu0 %v6146
    %7108 = vmatprep.subr.mxu0 0.0
    %7109 = vmatpush2.msra.mxu0 0.0
    %7110 = vmatprep.subr.mxu0 0.0
    %7111 = vmatpush2.msra.mxu0 0.0
    %7112 = vmatprep.subr.mxu0 0.0
    %7113 = vmatpush2.msra.mxu0 0.0
    %7114 = vmatprep.subr.mxu0 0.0
    %7115 = vmatpush2.msra.mxu0 0.0
    %7116 = vmatprep.subr.mxu0 0.0
    %7117 = vmatpush2.msra.mxu0 0.0
    %7118 = vmatprep.subr.mxu0 0.0
    %7119 = vmatpush2.msra.mxu0 0.0
    %7120 = vmatprep.subr.mxu0 0.0
    %7121 = vmatpush2.msra.mxu0 0.0
    %7122 = vmatprep.subr.mxu0 0.0
    %7123 = vmatpush2.msra.mxu0 0.0
    %7124 = vmatprep.subr.mxu0 0.0
    %7125 = vmatpush2.msra.mxu0 0.0
    %7126 = vmatprep.subr.mxu0 0.0
    %7127 = vmatpush2.msra.mxu0 0.0
    %7128 = vmatprep.subr.mxu0 0.0
    %7129 = vmatpush2.msra.mxu0 0.0
    %7130 = vmatprep.subr.mxu0 0.0
    %7131 = vmatpush2.msra.mxu0 0.0
    %7132 = vmatprep.subr.mxu0 0.0
    %7133 = vmatpush2.msra.mxu0 0.0
    %7134 = vmatprep.subr.mxu0 0.0
    %7135 = vmatpush2.msra.mxu0 0.0
    %7136 = vmatprep.subr.mxu0 0.0
    %7137 = vmatpush2.msra.mxu0 0.0
    %7138 = vmatprep.subr.mxu0 0.0
    %7139 = vmatpush2.msra.mxu0 0.0
    %7140 = vmatprep.mubr.f32.mxu0 0.0
    %7141 = vmatmul.mubr.f32.gmra.mxu0 %v6235
    %v7142 = vpop.f32.mrf.mxu0
    %v7143 = vpop.f32.mrf.mxu0
    %7144 = vmatprep.mubr.f32.mxu0 0.0
    %7145 = vmatmul.mubr.f32.gmra.mxu0 %v6238
    %v7146 = vpop.f32.mrf.mxu0
    %v7147 = vpop.f32.mrf.mxu0
    %7148 = vmatprep.mubr.f32.mxu0 0.0
    %7149 = vmatmul.mubr.f32.gmra.mxu0 %v6241
    %v7150 = vpop.f32.mrf.mxu0
    %v7151 = vpop.f32.mrf.mxu0
    %7152 = vmatprep.mubr.f32.mxu0 0.0
    %7153 = vmatmul.mubr.f32.gmra.mxu0 %v6244
    %v7154 = vpop.f32.mrf.mxu0
    %v7155 = vadd.f32 0.0, %v7154
    %v7156 = vpop.f32.mrf.mxu0
    %7157 = vmatprep.mubr.f32.mxu0 0.0
    %7158 = vmatmul.mubr.f32.gmra.mxu0 %v6247
    %v7159 = vpop.f32.mrf.mxu0
    %v7160 = vadd.f32 0.0, %v7159
    %v7161 = vpop.f32.mrf.mxu0
    %7162 = vmatprep.mubr.f32.mxu0 0.0
    %7163 = vmatmul.mubr.f32.gmra.mxu0 %v6250
    %v7164 = vpop.f32.mrf.mxu0
    %v7165 = vadd.f32 0.0, %v7164
    %v7166 = vpop.f32.mrf.mxu0
    %7167 = vmatprep.mubr.f32.mxu0 0.0
    %7168 = vmatmul.mubr.f32.gmra.mxu0 %v6253
    %v7169 = vpop.f32.mrf.mxu0
    %v7170 = vadd.f32 0.0, %v7169
    %v7171 = vpop.f32.mrf.mxu0
    %v7172 = vadd.f32 0.0, %v7171
    %7173 = vmatprep.mubr.f32.mxu0 0.0
    %7174 = vmatmul.mubr.f32.gmra.mxu0 %v6256
    %v7175 = vpop.f32.mrf.mxu0
    %v7176 = vadd.f32 0.0, %v7175
    %v7177 = vpop.f32.mrf.mxu0
    %v7178 = vadd.f32 0.0, %v7177
    %7179 = vmatprep.mubr.f32.mxu0 0.0
    %7180 = vmatmul.mubr.f32.gmra.mxu0 %v6259
    %v7181 = vpop.f32.mrf.mxu0
    %v7182 = vadd.f32 0.0, %v7181
    %v7183 = vpop.f32.mrf.mxu0
    %v7184 = vadd.f32 0.0, %v7183
    %7185 = vmatprep.mubr.f32.mxu0 0.0
    %7186 = vmatmul.mubr.f32.gmra.mxu0 %v6262
    %v7187 = vpop.f32.mrf.mxu0
    %v7188 = vadd.f32 0.0, %v7187
    %v7189 = vpop.f32.mrf.mxu0
    %v7190 = vadd.f32 0.0, %v7189
    %7191 = vmatprep.mubr.f32.mxu0 0.0
    %7192 = vmatmul.mubr.f32.gmra.mxu0 %v6265
    %v7193 = vpop.f32.mrf.mxu0
    %v7194 = vadd.f32 0.0, %v7193
    %v7195 = vpop.f32.mrf.mxu0
    %v7196 = vadd.f32 0.0, %v7195
    %7197 = vmatprep.mubr.f32.mxu0 0.0
    %7198 = vmatmul.mubr.f32.gmra.mxu0 %v6268
    %v7199 = vpop.f32.mrf.mxu0
    %v7200 = vadd.f32 0.0, %v7199
    %v7201 = vpop.f32.mrf.mxu0
    %v7202 = vadd.f32 0.0, %v7201
    %7203 = vmatprep.mubr.f32.mxu0 0.0
    %7204 = vmatmul.mubr.f32.gmra.mxu0 %v6271
    %v7205 = vpop.f32.mrf.mxu0
    %v7206 = vadd.f32 0.0, %v7205
    %v7207 = vpop.f32.mrf.mxu0
    %v7208 = vadd.f32 0.0, %v7207
    %7209 = vmatprep.mubr.f32.mxu0 0.0
    %7210 = vmatmul.mubr.f32.gmra.mxu0 %v6274
    %v7211 = vpop.f32.mrf.mxu0
    %v7212 = vadd.f32 0.0, %v7211
    %v7213 = vpop.f32.mrf.mxu0
    %v7214 = vadd.f32 0.0, %v7213
    %7215 = vmatprep.mubr.f32.mxu0 0.0
    %7216 = vmatmul.mubr.f32.gmra.mxu0 %v6277
    %v7217 = vpop.f32.mrf.mxu0
    %v7218 = vadd.f32 0.0, %v7217
    %v7219 = vpop.f32.mrf.mxu0
    %v7220 = vadd.f32 0.0, %v7219
    %7221 = vmatprep.mubr.f32.mxu0 0.0
    %7222 = vmatmul.mubr.f32.gmra.mxu0 %v6280
    %v7223 = vpop.f32.mrf.mxu0
    %v7224 = vpop.f32.mrf.mxu0
    %v7225 = vadd.f32 0.0, %v7224
    %7226 = vmatprep.mubr.f32.mxu0 0.0
    %7227 = vmatmul.mubr.f32.gmra.mxu0 %v6283
    %v7228 = vpop.f32.mrf.mxu0
    %v7229 = vpop.f32.mrf.mxu0
    %v7230 = vadd.f32 0.0, %v7229
    %7231 = vmatprep.mubr.f32.mxu0 0.0
    %7232 = vmatmul.mubr.f32.gmra.mxu0 %v6286
    %v7233 = vpop.f32.mrf.mxu0
    %v7234 = vpop.f32.mrf.mxu0
    %v7235 = vadd.f32 0.0, %v7234
    %7236 = vmatprep.mubr.f32.mxu0 0.0
    %7237 = vmatmul.mubr.f32.gmra.mxu0 %v6289
    %v7238 = vpop.f32.mrf.mxu0
    %v7239 = vpop.f32.mrf.mxu0
    %7240 = vmatprep.mubr.f32.mxu0 0.0
    %7241 = vmatmul.mubr.f32.gmra.mxu0 %v6292
    %v7242 = vpop.f32.mrf.mxu0
    %v7243 = vpop.f32.mrf.mxu0
    %7244 = vmatprep.mubr.f32.mxu0 0.0
    %7245 = vmatmul.mubr.f32.gmra.mxu0 %v6295
    %v7246 = vpop.f32.mrf.mxu0
    %v7247 = vpop.f32.mrf.mxu0
    %7248 = vmatprep.mubr.f32.mxu0 0.0
    %7249 = vmatmul.mubr.f32.gmra.mxu0 %v6298
    %v7250 = vpop.f32.mrf.mxu0
    %v7251 = vpop.f32.mrf.mxu0
    %7252 = vmatprep.mubr.f32.mxu0 0.0
    %7253 = vmatmul.mubr.f32.gmra.mxu0 %v6301
    %v7254 = vpop.f32.mrf.mxu0
    %v7255 = vpop.f32.mrf.mxu0
    %7256 = vmatprep.mubr.f32.mxu0 0.0
    %7257 = vmatmul.mubr.f32.gmra.mxu0 %v6304
    %v7258 = vpop.f32.mrf.mxu0
    %v7259 = vpop.f32.mrf.mxu0
    %7260 = vdwg.mxu0
    %7261 = vmatprep.subr.mxu0 0.0
    %7262 = vmatpush1.msra.mxu0 0.0
    %7263 = vmatprep.subr.mxu0 0.0
    %7264 = vmatpush1.msra.mxu0 0.0
    %7265 = vmatprep.subr.mxu0 0.0
    %7266 = vmatpush1.msra.mxu0 0.0
    %7267 = vmatprep.subr.mxu0 0.0
    %7268 = vmatpush1.msra.mxu0 0.0
    %7269 = vmatprep.subr.mxu0 0.0
    %7270 = vmatpush1.msra.mxu0 0.0
    %7271 = vmatprep.subr.mxu0 0.0
    %7272 = vmatpush1.msra.mxu0 0.0
    %7273 = vmatprep.subr.mxu0 0.0
    %7274 = vmatpush1.msra.mxu0 0.0
    %7275 = vmatprep.subr.mxu0 0.0
    %7276 = vmatpush1.msra.mxu0 0.0
    %7277 = vmatprep.subr.mxu0 %v6233
    %7278 = vmatpush1.msra.mxu0 %v6232
    %7279 = vmatprep.subr.mxu0 %v6221
    %7280 = vmatpush1.msra.mxu0 %v6220
    %7281 = vmatprep.subr.mxu0 %v6209
    %7282 = vmatpush1.msra.mxu0 %v6208
    %7283 = vmatprep.subr.mxu0 %v6197
    %7284 = vmatpush1.msra.mxu0 %v6196
    %7285 = vmatprep.subr.mxu0 %v6185
    %7286 = vmatpush1.msra.mxu0 %v6184
    %7287 = vmatprep.subr.mxu0 %v6173
    %7288 = vmatpush1.msra.mxu0 %v6172
    %7289 = vmatprep.subr.mxu0 %v6161
    %7290 = vmatpush1.msra.mxu0 %v6160
    %7291 = vmatprep.subr.mxu0 %v6149
    %7292 = vmatpush1.msra.mxu0 %v6148
    %7293 = vmatprep.subr.mxu0 0.0
    %7294 = vmatpush2.msra.mxu0 0.0
    %7295 = vmatprep.subr.mxu0 0.0
    %7296 = vmatpush2.msra.mxu0 0.0
    %7297 = vmatprep.subr.mxu0 0.0
    %7298 = vmatpush2.msra.mxu0 0.0
    %7299 = vmatprep.subr.mxu0 0.0
    %7300 = vmatpush2.msra.mxu0 0.0
    %7301 = vmatprep.subr.mxu0 0.0
    %7302 = vmatpush2.msra.mxu0 0.0
    %7303 = vmatprep.subr.mxu0 0.0
    %7304 = vmatpush2.msra.mxu0 0.0
    %7305 = vmatprep.subr.mxu0 0.0
    %7306 = vmatpush2.msra.mxu0 0.0
    %7307 = vmatprep.subr.mxu0 0.0
    %7308 = vmatpush2.msra.mxu0 0.0
    %7309 = vmatprep.subr.mxu0 0.0
    %7310 = vmatpush2.msra.mxu0 0.0
    %7311 = vmatprep.subr.mxu0 0.0
    %7312 = vmatpush2.msra.mxu0 0.0
    %7313 = vmatprep.subr.mxu0 0.0
    %7314 = vmatpush2.msra.mxu0 0.0
    %7315 = vmatprep.subr.mxu0 0.0
    %7316 = vmatpush2.msra.mxu0 0.0
    %7317 = vmatprep.subr.mxu0 0.0
    %7318 = vmatpush2.msra.mxu0 0.0
    %7319 = vmatprep.subr.mxu0 0.0
    %7320 = vmatpush2.msra.mxu0 0.0
    %7321 = vmatprep.subr.mxu0 0.0
    %7322 = vmatpush2.msra.mxu0 0.0
    %7323 = vmatprep.subr.mxu0 0.0
    %7324 = vmatpush2.msra.mxu0 0.0
    %7325 = vmatprep.mubr.f32.mxu0 0.0
    %7326 = vmatmul.mubr.f32.gmra.mxu0 %v6235
    %v7327 = vpop.f32.mrf.mxu0
    %v7328 = vpop.f32.mrf.mxu0
    %7329 = vmatprep.mubr.f32.mxu0 0.0
    %7330 = vmatmul.mubr.f32.gmra.mxu0 %v6238
    %v7331 = vpop.f32.mrf.mxu0
    %v7332 = vpop.f32.mrf.mxu0
    %7333 = vmatprep.mubr.f32.mxu0 0.0
    %7334 = vmatmul.mubr.f32.gmra.mxu0 %v6241
    %v7335 = vpop.f32.mrf.mxu0
    %v7336 = vpop.f32.mrf.mxu0
    %7337 = vmatprep.mubr.f32.mxu0 0.0
    %7338 = vmatmul.mubr.f32.gmra.mxu0 %v6244
    %v7339 = vpop.f32.mrf.mxu0
    %v7340 = vpop.f32.mrf.mxu0
    %7341 = vmatprep.mubr.f32.mxu0 0.0
    %7342 = vmatmul.mubr.f32.gmra.mxu0 %v6247
    %v7343 = vpop.f32.mrf.mxu0
    %v7344 = vpop.f32.mrf.mxu0
    %7345 = vmatprep.mubr.f32.mxu0 0.0
    %7346 = vmatmul.mubr.f32.gmra.mxu0 %v6250
    %v7347 = vpop.f32.mrf.mxu0
    %v7348 = vpop.f32.mrf.mxu0
    %7349 = vmatprep.mubr.f32.mxu0 0.0
    %7350 = vmatmul.mubr.f32.gmra.mxu0 %v6253
    %v7351 = vpop.f32.mrf.mxu0
    %v7352 = vpop.f32.mrf.mxu0
    %7353 = vmatprep.mubr.f32.mxu0 0.0
    %7354 = vmatmul.mubr.f32.gmra.mxu0 %v6256
    %v7355 = vpop.f32.mrf.mxu0
    %v7356 = vpop.f32.mrf.mxu0
    %7357 = vmatprep.mubr.f32.mxu0 0.0
    %7358 = vmatmul.mubr.f32.gmra.mxu0 %v6259
    %v7359 = vpop.f32.mrf.mxu0
    %v7360 = vpop.f32.mrf.mxu0
    %7361 = vmatprep.mubr.f32.mxu0 0.0
    %7362 = vmatmul.mubr.f32.gmra.mxu0 %v6262
    %v7363 = vpop.f32.mrf.mxu0
    %v7364 = vadd.f32 0.0, %v7363
    %v7365 = vpop.f32.mrf.mxu0
    %7366 = vmatprep.mubr.f32.mxu0 0.0
    %7367 = vmatmul.mubr.f32.gmra.mxu0 %v6265
    %v7368 = vpop.f32.mrf.mxu0
    %v7369 = vadd.f32 0.0, %v7368
    %v7370 = vpop.f32.mrf.mxu0
    %7371 = vmatprep.mubr.f32.mxu0 0.0
    %7372 = vmatmul.mubr.f32.gmra.mxu0 %v6268
    %v7373 = vpop.f32.mrf.mxu0
    %v7374 = vadd.f32 0.0, %v7373
    %v7375 = vpop.f32.mrf.mxu0
    %7376 = vmatprep.mubr.f32.mxu0 0.0
    %7377 = vmatmul.mubr.f32.gmra.mxu0 %v6271
    %v7378 = vpop.f32.mrf.mxu0
    %v7379 = vadd.f32 0.0, %v7378
    %v7380 = vpop.f32.mrf.mxu0
    %v7381 = vadd.f32 0.0, %v7380
    %7382 = vmatprep.mubr.f32.mxu0 0.0
    %7383 = vmatmul.mubr.f32.gmra.mxu0 %v6274
    %v7384 = vpop.f32.mrf.mxu0
    %v7385 = vadd.f32 0.0, %v7384
    %v7386 = vpop.f32.mrf.mxu0
    %v7387 = vadd.f32 0.0, %v7386
    %7388 = vmatprep.mubr.f32.mxu0 0.0
    %7389 = vmatmul.mubr.f32.gmra.mxu0 %v6277
    %v7390 = vpop.f32.mrf.mxu0
    %v7391 = vadd.f32 0.0, %v7390
    %v7392 = vpop.f32.mrf.mxu0
    %v7393 = vadd.f32 0.0, %v7392
    %7394 = vmatprep.mubr.f32.mxu0 0.0
    %7395 = vmatmul.mubr.f32.gmra.mxu0 %v6280
    %v7396 = vpop.f32.mrf.mxu0
    %v7397 = vadd.f32 0.0, %v7396
    %v7398 = vpop.f32.mrf.mxu0
    %v7399 = vadd.f32 0.0, %v7398
    %7400 = vmatprep.mubr.f32.mxu0 0.0
    %7401 = vmatmul.mubr.f32.gmra.mxu0 %v6283
    %v7402 = vpop.f32.mrf.mxu0
    %v7403 = vadd.f32 0.0, %v7402
    %v7404 = vpop.f32.mrf.mxu0
    %v7405 = vadd.f32 0.0, %v7404
    %7406 = vmatprep.mubr.f32.mxu0 0.0
    %7407 = vmatmul.mubr.f32.gmra.mxu0 %v6286
    %v7408 = vpop.f32.mrf.mxu0
    %v7409 = vadd.f32 0.0, %v7408
    %v7410 = vpop.f32.mrf.mxu0
    %v7411 = vadd.f32 0.0, %v7410
    %7412 = vmatprep.mubr.f32.mxu0 0.0
    %7413 = vmatmul.mubr.f32.gmra.mxu0 %v6289
    %v7414 = vpop.f32.mrf.mxu0
    %v7415 = vadd.f32 0.0, %v7414
    %v7416 = vpop.f32.mrf.mxu0
    %v7417 = vadd.f32 0.0, %v7416
    %7418 = vmatprep.mubr.f32.mxu0 0.0
    %7419 = vmatmul.mubr.f32.gmra.mxu0 %v6292
    %v7420 = vpop.f32.mrf.mxu0
    %v7421 = vadd.f32 0.0, %v7420
    %v7422 = vpop.f32.mrf.mxu0
    %v7423 = vadd.f32 0.0, %v7422
    %7424 = vmatprep.mubr.f32.mxu0 0.0
    %7425 = vmatmul.mubr.f32.gmra.mxu0 %v6295
    %v7426 = vpop.f32.mrf.mxu0
    %v7427 = vadd.f32 0.0, %v7426
    %v7428 = vpop.f32.mrf.mxu0
    %v7429 = vadd.f32 0.0, %v7428
    %7430 = vmatprep.mubr.f32.mxu0 0.0
    %7431 = vmatmul.mubr.f32.gmra.mxu0 %v6298
    %v7432 = vpop.f32.mrf.mxu0
    %v7433 = vpop.f32.mrf.mxu0
    %v7434 = vadd.f32 0.0, %v7433
    %7435 = vmatprep.mubr.f32.mxu0 0.0
    %7436 = vmatmul.mubr.f32.gmra.mxu0 %v6301
    %v7437 = vpop.f32.mrf.mxu0
    %v7438 = vpop.f32.mrf.mxu0
    %v7439 = vadd.f32 0.0, %v7438
    %7440 = vmatprep.mubr.f32.mxu0 0.0
    %7441 = vmatmul.mubr.f32.gmra.mxu0 %v6304
    %v7442 = vpop.f32.mrf.mxu0
    %v7443 = vpop.f32.mrf.mxu0
    %v7444 = vadd.f32 0.0, %v7443
    %7445 = vdwg.mxu0
    %v7446 = vadd.f32 %v6373, %v6390
    %v7447 = vadd.f32 %v6378, %v6396
    %v7448 = vadd.f32 %v6383, %v6402
    %v7449 = vadd.f32 %v7446, %v6600
    %v7450 = vadd.f32 %v7447, %v6606
    %v7451 = vadd.f32 %v7448, %v6612
    %v7452 = vadd.f32 %v6388, %v6408
    %v7453 = vadd.f32 %v6394, %v6414
    %v7454 = vadd.f32 %v6400, %v6420
    %v7455 = vadd.f32 %v7452, %v6618
    %v7456 = vadd.f32 %v7453, %v6624
    %v7457 = vadd.f32 %v7454, %v6630
    %v7458 = vmax.f32 %v7449, %v7455
    %v7459 = vmax.f32 %v7450, %v7456
    %v7460 = vmax.f32 %v7451, %v7457
    %v7461 = vadd.f32 %v6406, %v6426
    %v7462 = vadd.f32 %v6412, %v6432
    %v7463 = vadd.f32 %v6418, %v6438
    %v7464 = vadd.f32 %v7461, %v6636
    %v7465 = vadd.f32 %v7462, %v6642
    %v7466 = vadd.f32 %v7463, %v6648
    %v7467 = vmax.f32 %v7458, %v7464
    %v7468 = vmax.f32 %v7459, %v7465
    %v7469 = vmax.f32 %v7460, %v7466
    %v7470 = vadd.f32 %v6424, %v6444
    %v7471 = vadd.f32 %v6430, %v6450
    %v7472 = vadd.f32 %v6436, %v6456
    %v7473 = vadd.f32 %v7470, %v6654
    %v7474 = vadd.f32 %v7471, %v6659
    %v7475 = vadd.f32 %v7472, %v6664
    %v7476 = vmax.f32 %v7467, %v7473
    %v7477 = vmax.f32 %v7468, %v7474
    %v7478 = vmax.f32 %v7469, %v7475
    %v7479 = vadd.f32 %v6442, %v6462
    %v7480 = vadd.f32 %v6448, %v6468
    %v7481 = vadd.f32 %v6454, %v6474
    %v7482 = vadd.f32 %v7479, %v6669
    %v7483 = vadd.f32 %v7480, %v6674
    %v7484 = vadd.f32 %v7481, %v6679
    %v7485 = vmax.f32 %v7476, %v7482
    %v7486 = vmax.f32 %v7477, %v7483
    %v7487 = vmax.f32 %v7478, %v7484
    %v7488 = vadd.f32 %v6460, %v6479
    %v7489 = vadd.f32 %v6466, %v6484
    %v7490 = vadd.f32 %v6472, %v6489
    %v7491 = vadd.f32 %v7488, %v6684
    %v7492 = vadd.f32 %v7489, %v6689
    %v7493 = vadd.f32 %v7490, %v6694
    %v7494 = vmax.f32 %v7485, %v7491
    %v7495 = vmax.f32 %v7486, %v7492
    %v7496 = vmax.f32 %v7487, %v7493
    %v7497 = vld [vmem:[%s7] sm:$0x1]
    %v7499 = vlaneseq
    %v7500 = vshrl.u32 %v7499, 7
    %v7501 = vsub.s32 0, %v7500
    %v7502 = vrot.slane %v7497, %v7501
    %v7504 = vadd.f32 %v7494, %v7502
    %v7505 = vadd.f32 %v7495, %v7502
    %v7506 = vadd.f32 %v7496, %v7502
    %v7507 = vmax.f32 %v7504, 0.0
    %v7508 = vmax.f32 %v7505, 0.0
    %v7509 = vmax.f32 %v7506, 0.0
    %v7510 = vadd.f32 %v6571, %v6776
    %v7511 = vadd.f32 %v6576, %v6781
    %v7512 = vadd.f32 %v6581, %v6786
    %v7513 = vadd.f32 %v7510, %v6793
    %v7514 = vadd.f32 %v7511, %v6799
    %v7515 = vadd.f32 %v7512, %v6805
    %v7516 = vadd.f32 %v7513, %v7000
    %v7517 = vadd.f32 %v7514, %v7006
    %v7518 = vadd.f32 %v7515, %v7012
    %v7519 = vadd.f32 %v6586, %v6791
    %v7520 = vadd.f32 %v6591, %v6797
    %v7521 = vadd.f32 %v6596, %v6803
    %v7522 = vadd.f32 %v7519, %v6811
    %v7523 = vadd.f32 %v7520, %v6817
    %v7524 = vadd.f32 %v7521, %v6823
    %v7525 = vadd.f32 %v7522, %v7018
    %v7526 = vadd.f32 %v7523, %v7023
    %v7527 = vadd.f32 %v7524, %v7028
    %v7528 = vmax.f32 %v7516, %v7525
    %v7529 = vmax.f32 %v7517, %v7526
    %v7530 = vmax.f32 %v7518, %v7527
    %v7531 = vadd.f32 %v6602, %v6809
    %v7532 = vadd.f32 %v6608, %v6815
    %v7533 = vadd.f32 %v6614, %v6821
    %v7534 = vadd.f32 %v7531, %v6829
    %v7535 = vadd.f32 %v7532, %v6835
    %v7536 = vadd.f32 %v7533, %v6841
    %v7537 = vadd.f32 %v7534, %v7033
    %v7538 = vadd.f32 %v7535, %v7038
    %v7539 = vadd.f32 %v7536, %v7043
    %v7540 = vmax.f32 %v7528, %v7537
    %v7541 = vmax.f32 %v7529, %v7538
    %v7542 = vmax.f32 %v7530, %v7539
    %v7543 = vadd.f32 %v6620, %v6827
    %v7544 = vadd.f32 %v6626, %v6833
    %v7545 = vadd.f32 %v6632, %v6839
    %v7546 = vadd.f32 %v7543, %v6847
    %v7547 = vadd.f32 %v7544, %v6853
    %v7548 = vadd.f32 %v7545, %v6859
    %v7549 = vadd.f32 %v7546, %v7048
    %v7550 = vadd.f32 %v7547, %v7053
    %v7551 = vadd.f32 %v7548, %v7058
    %v7552 = vmax.f32 %v7540, %v7549
    %v7553 = vmax.f32 %v7541, %v7550
    %v7554 = vmax.f32 %v7542, %v7551
    %v7555 = vadd.f32 %v6638, %v6845
    %v7556 = vadd.f32 %v6644, %v6851
    %v7557 = vadd.f32 %v6650, %v6857
    %v7558 = vadd.f32 %v7555, %v6864
    %v7559 = vadd.f32 %v7556, %v6869
    %v7560 = vadd.f32 %v7557, %v6874
    %v7561 = vadd.f32 %v7558, %v7063
    %v7562 = vadd.f32 %v7559, %v7068
    %v7563 = vadd.f32 %v7560, %v7073
    %v7564 = vmax.f32 %v7552, %v7561
    %v7565 = vmax.f32 %v7553, %v7562
    %v7566 = vmax.f32 %v7554, %v7563
    %s7567 = scalar_lea.vmem %s7, 1
    %v7568 = vld [vmem:[%s7567] sm:$0x1]
    %v7570 = vlaneseq
    %v7571 = vshrl.u32 %v7570, 7
    %v7572 = vsub.s32 0, %v7571
    %v7573 = vrot.slane %v7568, %v7572
    %v7575 = vadd.f32 %v7564, %v7573
    %v7576 = vadd.f32 %v7565, %v7573
    %v7577 = vadd.f32 %v7566, %v7573
    %v7578 = vmax.f32 %v7575, 0.0
    %v7579 = vmax.f32 %v7576, 0.0
    %v7580 = vmax.f32 %v7577, 0.0
    %v7581 = vadd.f32 %v6956, %v7155
    %v7582 = vadd.f32 %v6961, %v7160
    %v7583 = vadd.f32 %v6966, %v7165
    %v7584 = vadd.f32 %v7581, %v7172
    %v7585 = vadd.f32 %v7582, %v7178
    %v7586 = vadd.f32 %v7583, %v7184
    %v7587 = vadd.f32 %v7584, %v7364
    %v7588 = vadd.f32 %v7585, %v7369
    %v7589 = vadd.f32 %v7586, %v7374
    %v7590 = vadd.f32 %v7587, %v7381
    %v7591 = vadd.f32 %v7588, %v7387
    %v7592 = vadd.f32 %v7589, %v7393
    %v7593 = vadd.f32 %v6971, %v7170
    %v7594 = vadd.f32 %v6976, %v7176
    %v7595 = vadd.f32 %v6981, %v7182
    %v7596 = vadd.f32 %v7593, %v7190
    %v7597 = vadd.f32 %v7594, %v7196
    %v7598 = vadd.f32 %v7595, %v7202
    %v7599 = vadd.f32 %v7596, %v7379
    %v7600 = vadd.f32 %v7597, %v7385
    %v7601 = vadd.f32 %v7598, %v7391
    %v7602 = vadd.f32 %v7599, %v7399
    %v7603 = vadd.f32 %v7600, %v7405
    %v7604 = vadd.f32 %v7601, %v7411
    %v7605 = vmax.f32 %v7590, %v7602
    %v7606 = vmax.f32 %v7591, %v7603
    %v7607 = vmax.f32 %v7592, %v7604
    %v7608 = vadd.f32 %v6986, %v7188
    %v7609 = vadd.f32 %v6991, %v7194
    %v7610 = vadd.f32 %v6996, %v7200
    %v7611 = vadd.f32 %v7608, %v7208
    %v7612 = vadd.f32 %v7609, %v7214
    %v7613 = vadd.f32 %v7610, %v7220
    %v7614 = vadd.f32 %v7611, %v7397
    %v7615 = vadd.f32 %v7612, %v7403
    %v7616 = vadd.f32 %v7613, %v7409
    %v7617 = vadd.f32 %v7614, %v7417
    %v7618 = vadd.f32 %v7615, %v7423
    %v7619 = vadd.f32 %v7616, %v7429
    %v7620 = vmax.f32 %v7605, %v7617
    %v7621 = vmax.f32 %v7606, %v7618
    %v7622 = vmax.f32 %v7607, %v7619
    %v7623 = vadd.f32 %v7002, %v7206
    %v7624 = vadd.f32 %v7008, %v7212
    %v7625 = vadd.f32 %v7014, %v7218
    %v7626 = vadd.f32 %v7623, %v7225
    %v7627 = vadd.f32 %v7624, %v7230
    %v7628 = vadd.f32 %v7625, %v7235
    %v7629 = vadd.f32 %v7626, %v7415
    %v7630 = vadd.f32 %v7627, %v7421
    %v7631 = vadd.f32 %v7628, %v7427
    %v7632 = vadd.f32 %v7629, %v7434
    %v7633 = vadd.f32 %v7630, %v7439
    %v7634 = vadd.f32 %v7631, %v7444
    %v7635 = vmax.f32 %v7620, %v7632
    %v7636 = vmax.f32 %v7621, %v7633
    %v7637 = vmax.f32 %v7622, %v7634
    %s7638 = scalar_lea.vmem %s7, 2
    %v7639 = vld [vmem:[%s7638] sm:$0x1]
    %v7641 = vlaneseq
    %v7642 = vshrl.u32 %v7641, 7
    %v7643 = vsub.s32 0, %v7642
    %v7644 = vrot.slane %v7639, %v7643
    %v7646 = vadd.f32 %v7635, %v7644
    %v7647 = vadd.f32 %v7636, %v7644
    %v7648 = vadd.f32 %v7637, %v7644
    %v7649 = vmax.f32 %v7646, 0.0
    %v7650 = vmax.f32 %v7647, 0.0
    %v7651 = vmax.f32 %v7648, 0.0
    %v7652 = vld [vmem:[#allocation12] sm:$0xff]
    %v7653 = vld [vmem:[#allocation12 + $0x8] sm:$0xff]
    %v7654 = vld [vmem:[#allocation12 + $0x10] sm:$0xff]
    %v7655 = vld [vmem:[#allocation12 + $0x18] sm:$0xff]
    %v7656 = vld [vmem:[#allocation12 + $0x20] sm:$0xff]
    %v7657 = vld [vmem:[#allocation12 + $0x28] sm:$0xff]
    %v7658 = vld [vmem:[#allocation12 + $0x30] sm:$0xff]
    %v7659 = vld [vmem:[#allocation12 + $0x38] sm:$0xff]
    %v7660 = vld [vmem:[#allocation12 + $0x40] sm:$0xff]
    %v7661 = vld [vmem:[#allocation12 + $0x48] sm:$0xff]
    %v7662 = vld [vmem:[#allocation12 + $0x50] sm:$0xff]
    %v7663 = vld [vmem:[#allocation12 + $0x58] sm:$0xff]
    %v7664 = vld [vmem:[#allocation12 + $0x60] sm:$0xff]
    %v7665 = vld [vmem:[#allocation12 + $0x68] sm:$0xff]
    %v7666 = vld [vmem:[#allocation12 + $0x70] sm:$0xff]
    %v7667 = vld [vmem:[#allocation12 + $0x78] sm:$0xff]
    %v7668 = vld [vmem:[#allocation12 + $0x80] sm:$0xff]
    %v7669 = vld [vmem:[#allocation12 + $0x88] sm:$0xff]
    %v7670 = vld [vmem:[#allocation12 + $0x90] sm:$0xff]
    %v7671 = vld [vmem:[#allocation12 + $0x98] sm:$0xff]
    %v7672 = vld [vmem:[#allocation12 + $0xa0] sm:$0xff]
    %v7673 = vld [vmem:[#allocation12 + $0xa8] sm:$0xff]
    %v7674 = vld [vmem:[#allocation12 + $0xb0] sm:$0xff]
    %v7675 = vld [vmem:[#allocation12 + $0xb8] sm:$0xff]
    %v7676 = vld [vmem:[#allocation12 + $0xc0] sm:$0xff]
    %v7677 = vld [vmem:[#allocation12 + $0xc8] sm:$0xff]
    %v7678 = vld [vmem:[#allocation12 + $0xd0] sm:$0xff]
    %v7679 = vld [vmem:[#allocation12 + $0xd8] sm:$0xff]
    %v7680 = vld [vmem:[#allocation12 + $0xe0] sm:$0xff]
    %v7681 = vld [vmem:[#allocation12 + $0xe8] sm:$0xff]
    %v7682 = vld [vmem:[#allocation12 + $0xf0] sm:$0xff]
    %v7683 = vld [vmem:[#allocation12 + $0xf8] sm:$0xff]
    %v7684 = vld [vmem:[#allocation12 + $0x100] sm:$0xff]
    %v7685 = vld [vmem:[#allocation12 + $0x108] sm:$0xff]
    %v7686 = vld [vmem:[#allocation12 + $0x110] sm:$0xff]
    %v7687 = vld [vmem:[#allocation12 + $0x118] sm:$0xff]
    %v7688 = vld [vmem:[#allocation12 + $0x120] sm:$0xff]
    %v7689 = vld [vmem:[#allocation12 + $0x128] sm:$0xff]
    %v7690 = vld [vmem:[#allocation12 + $0x130] sm:$0xff]
    %v7691 = vld [vmem:[#allocation12 + $0x138] sm:$0xff]
    %v7692 = vld [vmem:[#allocation12 + $0x140] sm:$0xff]
    %v7693 = vld [vmem:[#allocation12 + $0x148] sm:$0xff]
    %v7694 = vld [vmem:[#allocation12 + $0x150] sm:$0xff]
    %v7695 = vld [vmem:[#allocation12 + $0x158] sm:$0xff]
    %v7696 = vld [vmem:[#allocation12 + $0x160] sm:$0xff]
    %v7697 = vld [vmem:[#allocation12 + $0x168] sm:$0xff]
    %v7698 = vld [vmem:[#allocation12 + $0x170] sm:$0xff]
    %v7699 = vld [vmem:[#allocation12 + $0x178] sm:$0xff]
    %v7700 = vld [vmem:[#allocation12 + $0x180] sm:$0xff]
    %v7701 = vld [vmem:[#allocation12 + $0x188] sm:$0xff]
    %v7702 = vld [vmem:[#allocation12 + $0x190] sm:$0xff]
    %v7703 = vld [vmem:[#allocation12 + $0x198] sm:$0xff]
    %v7704 = vld [vmem:[#allocation12 + $0x1a0] sm:$0xff]
    %v7705 = vld [vmem:[#allocation12 + $0x1a8] sm:$0xff]
    %v7706 = vld [vmem:[#allocation12 + $0x1b0] sm:$0xff]
    %v7707 = vld [vmem:[#allocation12 + $0x1b8] sm:$0xff]
    %v7708 = vld [vmem:[#allocation12 + $0x1c0] sm:$0xff]
    %v7709 = vld [vmem:[#allocation12 + $0x1c8] sm:$0xff]
    %v7710 = vld [vmem:[#allocation12 + $0x1d0] sm:$0xff]
    %v7711 = vld [vmem:[#allocation12 + $0x1d8] sm:$0xff]
    %v7712 = vld [vmem:[#allocation12 + $0x1e0] sm:$0xff]
    %v7713 = vld [vmem:[#allocation12 + $0x1e8] sm:$0xff]
    %v7714 = vld [vmem:[#allocation12 + $0x1f0] sm:$0xff]
    %v7715 = vld [vmem:[#allocation12 + $0x1f8] sm:$0xff]
    %v7716 = vld [vmem:[#allocation12 + $0x200] sm:$0xff]
    %v7717 = vld [vmem:[#allocation12 + $0x208] sm:$0xff]
    %v7718 = vld [vmem:[#allocation12 + $0x210] sm:$0xff]
    %v7719 = vld [vmem:[#allocation12 + $0x218] sm:$0xff]
    %v7720 = vld [vmem:[#allocation12 + $0x220] sm:$0xff]
    %v7721 = vld [vmem:[#allocation12 + $0x228] sm:$0xff]
    %v7722 = vld [vmem:[#allocation12 + $0x230] sm:$0xff]
    %v7723 = vld [vmem:[#allocation12 + $0x238] sm:$0xff]
    %v7724 = vld [vmem:[#allocation12 + $0x240] sm:$0xff]
    %v7725 = vld [vmem:[#allocation12 + $0x248] sm:$0xff]
    %v7726 = vld [vmem:[#allocation12 + $0x250] sm:$0xff]
    %v7727 = vld [vmem:[#allocation12 + $0x258] sm:$0xff]
    %v7728 = vld [vmem:[#allocation12 + $0x260] sm:$0xff]
    %v7729 = vld [vmem:[#allocation12 + $0x268] sm:$0xff]
    %v7730 = vld [vmem:[#allocation12 + $0x270] sm:$0xff]
    %v7731 = vld [vmem:[#allocation12 + $0x278] sm:$0xff]
    %v7732 = vld [vmem:[#allocation12 + $0x280] sm:$0xff]
    %v7733 = vld [vmem:[#allocation12 + $0x288] sm:$0xff]
    %v7734 = vld [vmem:[#allocation12 + $0x290] sm:$0xff]
    %v7735 = vld [vmem:[#allocation12 + $0x298] sm:$0xff]
    %v7736 = vld [vmem:[#allocation12 + $0x2a0] sm:$0xff]
    %v7737 = vld [vmem:[#allocation12 + $0x2a8] sm:$0xff]
    %v7738 = vld [vmem:[#allocation12 + $0x2b0] sm:$0xff]
    %v7739 = vld [vmem:[#allocation12 + $0x2b8] sm:$0xff]
    %v7740 = vld [vmem:[#allocation12 + $0x2c0] sm:$0xff]
    %v7741 = vld [vmem:[#allocation12 + $0x2c8] sm:$0xff]
    %v7742 = vld [vmem:[#allocation12 + $0x2d0] sm:$0xff]
    %v7743 = vld [vmem:[#allocation12 + $0x2d8] sm:$0xff]
    %v7744 = vld [vmem:[#allocation12 + $0x2e0] sm:$0xff]
    %v7745 = vld [vmem:[#allocation12 + $0x2e8] sm:$0xff]
    %v7746 = vld [vmem:[#allocation12 + $0x2f0] sm:$0xff]
    %v7747 = vld [vmem:[#allocation12 + $0x2f8] sm:$0xff]
    %v7748 = vld [vmem:[#allocation12 + $0x300] sm:$0xff]
    %v7749 = vld [vmem:[#allocation12 + $0x308] sm:$0xff]
    %v7750 = vld [vmem:[#allocation12 + $0x310] sm:$0xff]
    %v7751 = vld [vmem:[#allocation12 + $0x318] sm:$0xff]
    %v7752 = vld [vmem:[#allocation12 + $0x320] sm:$0xff]
    %v7753 = vld [vmem:[#allocation12 + $0x328] sm:$0xff]
    %v7754 = vld [vmem:[#allocation12 + $0x330] sm:$0xff]
    %v7755 = vld [vmem:[#allocation12 + $0x338] sm:$0xff]
    %v7756 = vld [vmem:[#allocation12 + $0x340] sm:$0xff]
    %v7757 = vld [vmem:[#allocation12 + $0x348] sm:$0xff]
    %v7758 = vld [vmem:[#allocation12 + $0x350] sm:$0xff]
    %v7759 = vld [vmem:[#allocation12 + $0x358] sm:$0xff]
    %v7760 = vld [vmem:[#allocation12 + $0x360] sm:$0xff]
    %v7761 = vld [vmem:[#allocation12 + $0x368] sm:$0xff]
    %v7762 = vld [vmem:[#allocation12 + $0x370] sm:$0xff]
    %v7763 = vld [vmem:[#allocation12 + $0x378] sm:$0xff]
    %v7764 = vld [vmem:[#allocation12 + $0x380] sm:$0xff]
    %v7765 = vld [vmem:[#allocation12 + $0x388] sm:$0xff]
    %v7766 = vld [vmem:[#allocation12 + $0x390] sm:$0xff]
    %v7767 = vld [vmem:[#allocation12 + $0x398] sm:$0xff]
    %v7768 = vld [vmem:[#allocation12 + $0x3a0] sm:$0xff]
    %v7769 = vld [vmem:[#allocation12 + $0x3a8] sm:$0xff]
    %v7770 = vld [vmem:[#allocation12 + $0x3b0] sm:$0xff]
    %v7771 = vld [vmem:[#allocation12 + $0x3b8] sm:$0xff]
    %v7772 = vld [vmem:[#allocation12 + $0x3c0] sm:$0xff]
    %v7773 = vld [vmem:[#allocation12 + $0x3c8] sm:$0xff]
    %v7774 = vld [vmem:[#allocation12 + $0x3d0] sm:$0xff]
    %v7775 = vld [vmem:[#allocation12 + $0x3d8] sm:$0xff]
    %v7776 = vld [vmem:[#allocation12 + $0x3e0] sm:$0xff]
    %v7777 = vld [vmem:[#allocation12 + $0x3e8] sm:$0xff]
    %v7778 = vld [vmem:[#allocation12 + $0x3f0] sm:$0xff]
    %v7779 = vld [vmem:[#allocation12 + $0x3f8] sm:$0xff]
    %v7780 = vld [vmem:[#allocation12 + $0x400] sm:$0xff]
    %v7781 = vld [vmem:[#allocation12 + $0x408] sm:$0xff]
    %v7782 = vld [vmem:[#allocation12 + $0x410] sm:$0xff]
    %v7783 = vld [vmem:[#allocation12 + $0x418] sm:$0xff]
    %v7784 = vld [vmem:[#allocation12 + $0x420] sm:$0xff]
    %v7785 = vld [vmem:[#allocation12 + $0x428] sm:$0xff]
    %v7786 = vld [vmem:[#allocation12 + $0x430] sm:$0xff]
    %v7787 = vld [vmem:[#allocation12 + $0x438] sm:$0xff]
    %v7788 = vld [vmem:[#allocation12 + $0x440] sm:$0xff]
    %v7789 = vld [vmem:[#allocation12 + $0x448] sm:$0xff]
    %v7790 = vld [vmem:[#allocation12 + $0x450] sm:$0xff]
    %v7791 = vld [vmem:[#allocation12 + $0x458] sm:$0xff]
    %v7792 = vld [vmem:[#allocation12 + $0x460] sm:$0xff]
    %v7793 = vld [vmem:[#allocation12 + $0x468] sm:$0xff]
    %v7794 = vld [vmem:[#allocation12 + $0x470] sm:$0xff]
    %v7795 = vld [vmem:[#allocation12 + $0x478] sm:$0xff]
    %v7796 = vld [vmem:[%s9] sm:$0x1]
    %v7798 = vlaneseq
    %v7799 = vshrl.u32 %v7798, 7
    %v7800 = vsub.s32 0, %v7799
    %v7801 = vrot.slane %v7796, %v7800
    %7803 = vmatprep.subr.mxu0 0.0
    %7804 = vmatpush1.msra.mxu0 %v7667
    %7805 = vmatprep.subr.mxu0 0.0
    %7806 = vmatpush1.msra.mxu0 %v7666
    %7807 = vmatprep.subr.mxu0 0.0
    %7808 = vmatpush1.msra.mxu0 %v7665
    %7809 = vmatprep.subr.mxu0 0.0
    %7810 = vmatpush1.msra.mxu0 %v7664
    %7811 = vmatprep.subr.mxu0 0.0
    %7812 = vmatpush1.msra.mxu0 %v7663
    %7813 = vmatprep.subr.mxu0 0.0
    %7814 = vmatpush1.msra.mxu0 %v7662
    %7815 = vmatprep.subr.mxu0 0.0
    %7816 = vmatpush1.msra.mxu0 %v7661
    %7817 = vmatprep.subr.mxu0 0.0
    %7818 = vmatpush1.msra.mxu0 %v7660
    %7819 = vmatprep.subr.mxu0 0.0
    %7820 = vmatpush1.msra.mxu0 %v7659
    %7821 = vmatprep.subr.mxu0 0.0
    %7822 = vmatpush1.msra.mxu0 %v7658
    %7823 = vmatprep.subr.mxu0 0.0
    %7824 = vmatpush1.msra.mxu0 %v7657
    %7825 = vmatprep.subr.mxu0 0.0
    %7826 = vmatpush1.msra.mxu0 %v7656
    %7827 = vmatprep.subr.mxu0 0.0
    %7828 = vmatpush1.msra.mxu0 %v7655
    %7829 = vmatprep.subr.mxu0 0.0
    %7830 = vmatpush1.msra.mxu0 %v7654
    %7831 = vmatprep.subr.mxu0 0.0
    %7832 = vmatpush1.msra.mxu0 %v7653
    %7833 = vmatprep.subr.mxu0 0.0
    %7834 = vmatpush1.msra.mxu0 %v7652
    %7835 = vmatprep.subr.mxu0 0.0
    %7836 = vmatpush2.msra.mxu0 %v7683
    %7837 = vmatprep.subr.mxu0 0.0
    %7838 = vmatpush2.msra.mxu0 %v7682
    %7839 = vmatprep.subr.mxu0 0.0
    %7840 = vmatpush2.msra.mxu0 %v7681
    %7841 = vmatprep.subr.mxu0 0.0
    %7842 = vmatpush2.msra.mxu0 %v7680
    %7843 = vmatprep.subr.mxu0 0.0
    %7844 = vmatpush2.msra.mxu0 %v7679
    %7845 = vmatprep.subr.mxu0 0.0
    %7846 = vmatpush2.msra.mxu0 %v7678
    %7847 = vmatprep.subr.mxu0 0.0
    %7848 = vmatpush2.msra.mxu0 %v7677
    %7849 = vmatprep.subr.mxu0 0.0
    %7850 = vmatpush2.msra.mxu0 %v7676
    %7851 = vmatprep.subr.mxu0 0.0
    %7852 = vmatpush2.msra.mxu0 %v7675
    %7853 = vmatprep.subr.mxu0 0.0
    %7854 = vmatpush2.msra.mxu0 %v7674
    %7855 = vmatprep.subr.mxu0 0.0
    %7856 = vmatpush2.msra.mxu0 %v7673
    %7857 = vmatprep.subr.mxu0 0.0
    %7858 = vmatpush2.msra.mxu0 %v7672
    %7859 = vmatprep.subr.mxu0 0.0
    %7860 = vmatpush2.msra.mxu0 %v7671
    %7861 = vmatprep.subr.mxu0 0.0
    %7862 = vmatpush2.msra.mxu0 %v7670
    %7863 = vmatprep.subr.mxu0 0.0
    %7864 = vmatpush2.msra.mxu0 %v7669
    %7865 = vmatprep.subr.mxu0 0.0
    %7866 = vmatpush2.msra.mxu0 %v7668
    %7867 = vmatprep.mubr.f32.mxu0 %v7578
    %7868 = vmatmul.mubr.f32.gmra.mxu0 %v7507
    %v7869 = vpop.f32.mrf.mxu0
    %v7870 = vadd.f32 %v7801, %v7869
    %v7871 = vpop.f32.mrf.mxu0
    %7872 = vdwg.mxu0
    %7873 = vmatprep.subr.mxu0 0.0
    %7874 = vmatpush1.msra.mxu0 %v7699
    %7875 = vmatprep.subr.mxu0 0.0
    %7876 = vmatpush1.msra.mxu0 %v7698
    %7877 = vmatprep.subr.mxu0 0.0
    %7878 = vmatpush1.msra.mxu0 %v7697
    %7879 = vmatprep.subr.mxu0 0.0
    %7880 = vmatpush1.msra.mxu0 %v7696
    %7881 = vmatprep.subr.mxu0 0.0
    %7882 = vmatpush1.msra.mxu0 %v7695
    %7883 = vmatprep.subr.mxu0 0.0
    %7884 = vmatpush1.msra.mxu0 %v7694
    %7885 = vmatprep.subr.mxu0 0.0
    %7886 = vmatpush1.msra.mxu0 %v7693
    %7887 = vmatprep.subr.mxu0 0.0
    %7888 = vmatpush1.msra.mxu0 %v7692
    %7889 = vmatprep.subr.mxu0 0.0
    %7890 = vmatpush1.msra.mxu0 %v7691
    %7891 = vmatprep.subr.mxu0 0.0
    %7892 = vmatpush1.msra.mxu0 %v7690
    %7893 = vmatprep.subr.mxu0 0.0
    %7894 = vmatpush1.msra.mxu0 %v7689
    %7895 = vmatprep.subr.mxu0 0.0
    %7896 = vmatpush1.msra.mxu0 %v7688
    %7897 = vmatprep.subr.mxu0 0.0
    %7898 = vmatpush1.msra.mxu0 %v7687
    %7899 = vmatprep.subr.mxu0 0.0
    %7900 = vmatpush1.msra.mxu0 %v7686
    %7901 = vmatprep.subr.mxu0 0.0
    %7902 = vmatpush1.msra.mxu0 %v7685
    %7903 = vmatprep.subr.mxu0 0.0
    %7904 = vmatpush1.msra.mxu0 %v7684
    %7905 = vmatprep.subr.mxu0 0.0
    %7906 = vmatpush2.msra.mxu0 %v7715
    %7907 = vmatprep.subr.mxu0 0.0
    %7908 = vmatpush2.msra.mxu0 %v7714
    %7909 = vmatprep.subr.mxu0 0.0
    %7910 = vmatpush2.msra.mxu0 %v7713
    %7911 = vmatprep.subr.mxu0 0.0
    %7912 = vmatpush2.msra.mxu0 %v7712
    %7913 = vmatprep.subr.mxu0 0.0
    %7914 = vmatpush2.msra.mxu0 %v7711
    %7915 = vmatprep.subr.mxu0 0.0
    %7916 = vmatpush2.msra.mxu0 %v7710
    %7917 = vmatprep.subr.mxu0 0.0
    %7918 = vmatpush2.msra.mxu0 %v7709
    %7919 = vmatprep.subr.mxu0 0.0
    %7920 = vmatpush2.msra.mxu0 %v7708
    %7921 = vmatprep.subr.mxu0 0.0
    %7922 = vmatpush2.msra.mxu0 %v7707
    %7923 = vmatprep.subr.mxu0 0.0
    %7924 = vmatpush2.msra.mxu0 %v7706
    %7925 = vmatprep.subr.mxu0 0.0
    %7926 = vmatpush2.msra.mxu0 %v7705
    %7927 = vmatprep.subr.mxu0 0.0
    %7928 = vmatpush2.msra.mxu0 %v7704
    %7929 = vmatprep.subr.mxu0 0.0
    %7930 = vmatpush2.msra.mxu0 %v7703
    %7931 = vmatprep.subr.mxu0 0.0
    %7932 = vmatpush2.msra.mxu0 %v7702
    %7933 = vmatprep.subr.mxu0 0.0
    %7934 = vmatpush2.msra.mxu0 %v7701
    %7935 = vmatprep.subr.mxu0 0.0
    %7936 = vmatpush2.msra.mxu0 %v7700
    %7937 = vmatprep.mubr.f32.mxu0 %v7508
    %7938 = vmatmul.mubr.f32.gmra.mxu0 %v7649
    %v7939 = vpop.f32.mrf.mxu0
    %v7940 = vadd.f32 %v7870, %v7939
    %v7941 = vpop.f32.mrf.mxu0
    %7942 = vdwg.mxu0
    %7943 = vmatprep.subr.mxu0 0.0
    %7944 = vmatpush1.msra.mxu0 %v7731
    %7945 = vmatprep.subr.mxu0 0.0
    %7946 = vmatpush1.msra.mxu0 %v7730
    %7947 = vmatprep.subr.mxu0 0.0
    %7948 = vmatpush1.msra.mxu0 %v7729
    %7949 = vmatprep.subr.mxu0 0.0
    %7950 = vmatpush1.msra.mxu0 %v7728
    %7951 = vmatprep.subr.mxu0 0.0
    %7952 = vmatpush1.msra.mxu0 %v7727
    %7953 = vmatprep.subr.mxu0 0.0
    %7954 = vmatpush1.msra.mxu0 %v7726
    %7955 = vmatprep.subr.mxu0 0.0
    %7956 = vmatpush1.msra.mxu0 %v7725
    %7957 = vmatprep.subr.mxu0 0.0
    %7958 = vmatpush1.msra.mxu0 %v7724
    %7959 = vmatprep.subr.mxu0 0.0
    %7960 = vmatpush1.msra.mxu0 %v7723
    %7961 = vmatprep.subr.mxu0 0.0
    %7962 = vmatpush1.msra.mxu0 %v7722
    %7963 = vmatprep.subr.mxu0 0.0
    %7964 = vmatpush1.msra.mxu0 %v7721
    %7965 = vmatprep.subr.mxu0 0.0
    %7966 = vmatpush1.msra.mxu0 %v7720
    %7967 = vmatprep.subr.mxu0 0.0
    %7968 = vmatpush1.msra.mxu0 %v7719
    %7969 = vmatprep.subr.mxu0 0.0
    %7970 = vmatpush1.msra.mxu0 %v7718
    %7971 = vmatprep.subr.mxu0 0.0
    %7972 = vmatpush1.msra.mxu0 %v7717
    %7973 = vmatprep.subr.mxu0 0.0
    %7974 = vmatpush1.msra.mxu0 %v7716
    %7975 = vmatprep.subr.mxu0 0.0
    %7976 = vmatpush2.msra.mxu0 %v7747
    %7977 = vmatprep.subr.mxu0 0.0
    %7978 = vmatpush2.msra.mxu0 %v7746
    %7979 = vmatprep.subr.mxu0 0.0
    %7980 = vmatpush2.msra.mxu0 %v7745
    %7981 = vmatprep.subr.mxu0 0.0
    %7982 = vmatpush2.msra.mxu0 %v7744
    %7983 = vmatprep.subr.mxu0 0.0
    %7984 = vmatpush2.msra.mxu0 %v7743
    %7985 = vmatprep.subr.mxu0 0.0
    %7986 = vmatpush2.msra.mxu0 %v7742
    %7987 = vmatprep.subr.mxu0 0.0
    %7988 = vmatpush2.msra.mxu0 %v7741
    %7989 = vmatprep.subr.mxu0 0.0
    %7990 = vmatpush2.msra.mxu0 %v7740
    %7991 = vmatprep.subr.mxu0 0.0
    %7992 = vmatpush2.msra.mxu0 %v7739
    %7993 = vmatprep.subr.mxu0 0.0
    %7994 = vmatpush2.msra.mxu0 %v7738
    %7995 = vmatprep.subr.mxu0 0.0
    %7996 = vmatpush2.msra.mxu0 %v7737
    %7997 = vmatprep.subr.mxu0 0.0
    %7998 = vmatpush2.msra.mxu0 %v7736
    %7999 = vmatprep.subr.mxu0 0.0
    %8000 = vmatpush2.msra.mxu0 %v7735
    %8001 = vmatprep.subr.mxu0 0.0
    %8002 = vmatpush2.msra.mxu0 %v7734
    %8003 = vmatprep.subr.mxu0 0.0
    %8004 = vmatpush2.msra.mxu0 %v7733
    %8005 = vmatprep.subr.mxu0 0.0
    %8006 = vmatpush2.msra.mxu0 %v7732
    %8007 = vmatprep.mubr.f32.mxu0 %v7650
    %8008 = vmatmul.mubr.f32.gmra.mxu0 %v7579
    %v8009 = vpop.f32.mrf.mxu0
    %v8010 = vadd.f32 %v7940, %v8009
    %v8011 = vpop.f32.mrf.mxu0
    %8012 = vdwg.mxu0
    %8013 = vmatprep.subr.mxu0 0.0
    %8014 = vmatpush1.msra.mxu0 %v7763
    %8015 = vmatprep.subr.mxu0 0.0
    %8016 = vmatpush1.msra.mxu0 %v7762
    %8017 = vmatprep.subr.mxu0 0.0
    %8018 = vmatpush1.msra.mxu0 %v7761
    %8019 = vmatprep.subr.mxu0 0.0
    %8020 = vmatpush1.msra.mxu0 %v7760
    %8021 = vmatprep.subr.mxu0 0.0
    %8022 = vmatpush1.msra.mxu0 %v7759
    %8023 = vmatprep.subr.mxu0 0.0
    %8024 = vmatpush1.msra.mxu0 %v7758
    %8025 = vmatprep.subr.mxu0 0.0
    %8026 = vmatpush1.msra.mxu0 %v7757
    %8027 = vmatprep.subr.mxu0 0.0
    %8028 = vmatpush1.msra.mxu0 %v7756
    %8029 = vmatprep.subr.mxu0 0.0
    %8030 = vmatpush1.msra.mxu0 %v7755
    %8031 = vmatprep.subr.mxu0 0.0
    %8032 = vmatpush1.msra.mxu0 %v7754
    %8033 = vmatprep.subr.mxu0 0.0
    %8034 = vmatpush1.msra.mxu0 %v7753
    %8035 = vmatprep.subr.mxu0 0.0
    %8036 = vmatpush1.msra.mxu0 %v7752
    %8037 = vmatprep.subr.mxu0 0.0
    %8038 = vmatpush1.msra.mxu0 %v7751
    %8039 = vmatprep.subr.mxu0 0.0
    %8040 = vmatpush1.msra.mxu0 %v7750
    %8041 = vmatprep.subr.mxu0 0.0
    %8042 = vmatpush1.msra.mxu0 %v7749
    %8043 = vmatprep.subr.mxu0 0.0
    %8044 = vmatpush1.msra.mxu0 %v7748
    %8045 = vmatprep.subr.mxu0 0.0
    %8046 = vmatpush2.msra.mxu0 %v7779
    %8047 = vmatprep.subr.mxu0 0.0
    %8048 = vmatpush2.msra.mxu0 %v7778
    %8049 = vmatprep.subr.mxu0 0.0
    %8050 = vmatpush2.msra.mxu0 %v7777
    %8051 = vmatprep.subr.mxu0 0.0
    %8052 = vmatpush2.msra.mxu0 %v7776
    %8053 = vmatprep.subr.mxu0 0.0
    %8054 = vmatpush2.msra.mxu0 %v7775
    %8055 = vmatprep.subr.mxu0 0.0
    %8056 = vmatpush2.msra.mxu0 %v7774
    %8057 = vmatprep.subr.mxu0 0.0
    %8058 = vmatpush2.msra.mxu0 %v7773
    %8059 = vmatprep.subr.mxu0 0.0
    %8060 = vmatpush2.msra.mxu0 %v7772
    %8061 = vmatprep.subr.mxu0 0.0
    %8062 = vmatpush2.msra.mxu0 %v7771
    %8063 = vmatprep.subr.mxu0 0.0
    %8064 = vmatpush2.msra.mxu0 %v7770
    %8065 = vmatprep.subr.mxu0 0.0
    %8066 = vmatpush2.msra.mxu0 %v7769
    %8067 = vmatprep.subr.mxu0 0.0
    %8068 = vmatpush2.msra.mxu0 %v7768
    %8069 = vmatprep.subr.mxu0 0.0
    %8070 = vmatpush2.msra.mxu0 %v7767
    %8071 = vmatprep.subr.mxu0 0.0
    %8072 = vmatpush2.msra.mxu0 %v7766
    %8073 = vmatprep.subr.mxu0 0.0
    %8074 = vmatpush2.msra.mxu0 %v7765
    %8075 = vmatprep.subr.mxu0 0.0
    %8076 = vmatpush2.msra.mxu0 %v7764
    %8077 = vmatprep.mubr.f32.mxu0 %v7580
    %8078 = vmatmul.mubr.f32.gmra.mxu0 %v7509
    %v8079 = vpop.f32.mrf.mxu0
    %v8080 = vadd.f32 %v8010, %v8079
    %v8081 = vpop.f32.mrf.mxu0
    %8082 = vdwg.mxu0
    %8083 = vmatprep.subr.mxu0 0.0
    %8084 = vmatpush1.msra.mxu0 %v7795
    %8085 = vmatprep.subr.mxu0 0.0
    %8086 = vmatpush1.msra.mxu0 %v7794
    %8087 = vmatprep.subr.mxu0 0.0
    %8088 = vmatpush1.msra.mxu0 %v7793
    %8089 = vmatprep.subr.mxu0 0.0
    %8090 = vmatpush1.msra.mxu0 %v7792
    %8091 = vmatprep.subr.mxu0 0.0
    %8092 = vmatpush1.msra.mxu0 %v7791
    %8093 = vmatprep.subr.mxu0 0.0
    %8094 = vmatpush1.msra.mxu0 %v7790
    %8095 = vmatprep.subr.mxu0 0.0
    %8096 = vmatpush1.msra.mxu0 %v7789
    %8097 = vmatprep.subr.mxu0 0.0
    %8098 = vmatpush1.msra.mxu0 %v7788
    %8099 = vmatprep.subr.mxu0 0.0
    %8100 = vmatpush1.msra.mxu0 %v7787
    %8101 = vmatprep.subr.mxu0 0.0
    %8102 = vmatpush1.msra.mxu0 %v7786
    %8103 = vmatprep.subr.mxu0 0.0
    %8104 = vmatpush1.msra.mxu0 %v7785
    %8105 = vmatprep.subr.mxu0 0.0
    %8106 = vmatpush1.msra.mxu0 %v7784
    %8107 = vmatprep.subr.mxu0 0.0
    %8108 = vmatpush1.msra.mxu0 %v7783
    %8109 = vmatprep.subr.mxu0 0.0
    %8110 = vmatpush1.msra.mxu0 %v7782
    %8111 = vmatprep.subr.mxu0 0.0
    %8112 = vmatpush1.msra.mxu0 %v7781
    %8113 = vmatprep.subr.mxu0 0.0
    %8114 = vmatpush1.msra.mxu0 %v7780
    %8115 = vmatprep.subr.mxu0 0.0
    %8116 = vmatpush2.msra.mxu0 0.0
    %8117 = vmatprep.subr.mxu0 0.0
    %8118 = vmatpush2.msra.mxu0 0.0
    %8119 = vmatprep.subr.mxu0 0.0
    %8120 = vmatpush2.msra.mxu0 0.0
    %8121 = vmatprep.subr.mxu0 0.0
    %8122 = vmatpush2.msra.mxu0 0.0
    %8123 = vmatprep.subr.mxu0 0.0
    %8124 = vmatpush2.msra.mxu0 0.0
    %8125 = vmatprep.subr.mxu0 0.0
    %8126 = vmatpush2.msra.mxu0 0.0
    %8127 = vmatprep.subr.mxu0 0.0
    %8128 = vmatpush2.msra.mxu0 0.0
    %8129 = vmatprep.subr.mxu0 0.0
    %8130 = vmatpush2.msra.mxu0 0.0
    %8131 = vmatprep.subr.mxu0 0.0
    %8132 = vmatpush2.msra.mxu0 0.0
    %8133 = vmatprep.subr.mxu0 0.0
    %8134 = vmatpush2.msra.mxu0 0.0
    %8135 = vmatprep.subr.mxu0 0.0
    %8136 = vmatpush2.msra.mxu0 0.0
    %8137 = vmatprep.subr.mxu0 0.0
    %8138 = vmatpush2.msra.mxu0 0.0
    %8139 = vmatprep.subr.mxu0 0.0
    %8140 = vmatpush2.msra.mxu0 0.0
    %8141 = vmatprep.subr.mxu0 0.0
    %8142 = vmatpush2.msra.mxu0 0.0
    %8143 = vmatprep.subr.mxu0 0.0
    %8144 = vmatpush2.msra.mxu0 0.0
    %8145 = vmatprep.subr.mxu0 0.0
    %8146 = vmatpush2.msra.mxu0 0.0
    %8147 = vmatprep.mubr.f32.mxu0 0.0
    %8148 = vmatmul.mubr.f32.gmra.mxu0 %v7651
    %v8149 = vpop.f32.mrf.mxu0
    %v8150 = vadd.f32 %v8080, %v8149
    %v8151 = vpop.f32.mrf.mxu0
    %8152 = vdwg.mxu0
    %8153 = vst [vmem:[#allocation14] sm:$0xff] %v8150
    // Predicated region
    $region66: #{tpu_custom_call.1} parent=1 // pred_check
      _
    $region67: #{tpu_custom_call.1} parent=1 // pred_check_branch
      %8155 = sbr.rel (0) target = $region69
    $region68: #{tpu_custom_call.1} parent=1 // pred_region
      %s8157 = ssub.s32 128, 128
      %8158 = vsyncadd [#allocation5], %s8157
      %s8160 = sshll.u32 [#allocation14], 4
      %s8161 = int_to_ptr.vmem [resolvable:$true] %s8160
      %8163 = dma.vmem_to_hbm [thread:$0]  %s8161, 128, %s10, [#allocation5]
    $region69: #{tpu_custom_call.1} parent=1 // pred_fallthru
      _
    // Predicated region
    $region70: #{tpu_custom_call.1} parent=1 // pred_check
      _
    $region71: #{tpu_custom_call.1} parent=1 // pred_check_branch
      %8165 = sbr.rel (0) target = $region73
    $region72: #{tpu_custom_call.1} parent=1 // pred_region
      %8166 = dma.done [#allocation5], 128
    $region73: #{tpu_custom_call.1} parent=1 // pred_fallthru
      _
    %8167 = vsyncpa [#allocation4], 1
    %8168 = vsyncpa [#allocation7], 1
    %8169 = vsyncpa [#allocation10], 1
    %8170 = vsyncpa [#allocation13], 1
    %8171 = vsyncpa [#allocation5], 1

</llo_original>
